<compile_context>
chip_gen: v7x
topology: tpu7x:2x2x1
jax: 0.10.0
libtpu: 0.0.40
codegen_flags: <defaults>
</compile_context>

<pallas_src>
import math

import numpy as np
import jax
import jax.numpy as jnp
from jax import lax
from jax.experimental import pallas as pl
from jax.experimental.pallas import tpu as pltpu

# Whole-array-in-VMEM spec (all operands are tiny; total < ~4 MiB).
VMEM = pl.BlockSpec(memory_space=pltpu.MemorySpace.VMEM)


# ----------------------------- static layer dims ----------------------------

def _layer_dims(H, W, cin, cout):
    Hc, Wc = H + 2, W + 2          # Conv2d(k=3, stride=1, padding=2)
    Ho, Wo = Hc // 2, Wc // 2      # MaxPool2d(2, 2), floor
    return dict(H=H, W=W, cin=cin, cout=cout, Hc=Hc, Wc=Wc, Ho=Ho, Wo=Wo,
                K=W * cin, L=Wc * cout, Lp=Wo * cout)


# ------------------------- host-side constant folding -----------------------

def _prep_conv_layer(blk, d, N, h_major_pool, eps=1e-5):
    """Banded per-kh conv matrices (BN scale folded), BN shift, pool selectors."""
    w = np.asarray(blk["w"], np.float32)       # (Cout, Cin, 3, 3)
    b = np.asarray(blk["b"], np.float32)
    gamma = np.asarray(blk["gamma"], np.float32)
    beta = np.asarray(blk["beta"], np.float32)
    mean = np.asarray(blk["mean"], np.float32)
    var = np.asarray(blk["var"], np.float32)

    cin, cout = d["cin"], d["cout"]
    W, Wc, Hc, Ho, Wo = d["W"], d["Wc"], d["Hc"], d["Ho"], d["Wo"]

    scale = gamma / np.sqrt(var + eps)                  # eval-mode BN scale
    shift = (b - mean) * scale + beta                   # conv bias + BN shift
    w_sc = w * scale[:, None, None, None]               # fold scale into weights

    # Banded per-kh weight matrices: (3, W*Cin, Wc*Cout).  Column block w_out of
    # tap kh gathers input column w_in = w_out + kw - 2 (zero pad == clipping).
    wk = np.zeros((3, W, cin, Wc, cout), np.float32)
    for kh in range(3):
        for w_out in range(Wc):
            for kw in range(3):
                w_in = w_out + kw - 2
                if 0 <= w_in < W:
                    wk[kh, w_in, :, w_out, :] = w_sc[:, :, kh, kw].T
    wk = wk.reshape(3, W * cin, Wc * cout)

    shift_t = np.tile(shift, Wc).reshape(1, Wc * cout)  # lane order w*Cout + c

    # W-pool selection (even / odd width blocks): (2, Wc*Cout, Wo*Cout)
    ws = np.zeros((2, Wc * cout, Wo * cout), np.float32)
    eye = np.eye(cout, dtype=np.float32)
    for j in range(Wo):
        ws[0, (2 * j) * cout:(2 * j + 1) * cout, j * cout:(j + 1) * cout] = eye
        ws[1, (2 * j + 1) * cout:(2 * j + 2) * cout, j * cout:(j + 1) * cout] = eye

    # H-pool row selection (0/1 picks -> exact max pool).
    if not h_major_pool:
        hs = np.zeros((2, N, Ho, N * Hc), np.float32)   # per-sample (Ho, N*Hc)
        for n in range(N):
            for i in range(Ho):
                hs[0, n, i, n * Hc + 2 * i] = 1.0
                hs[1, n, i, n * Hc + 2 * i + 1] = 1.0
    else:
        hs = np.zeros((2, Ho, N, N * Hc), np.float32)   # per-output-row (N, N*Hc)
        for i in range(Ho):
            for n in range(N):
                hs[0, i, n, n * Hc + 2 * i] = 1.0
                hs[1, i, n, n * Hc + 2 * i + 1] = 1.0

    return (jnp.asarray(wk, jnp.bfloat16), jnp.asarray(shift_t),
            jnp.asarray(ws), jnp.asarray(hs))


def _prep_mlp(params, d3):
    """Fold the NCHW flatten permutation into linear1's weight rows."""
    w1 = np.asarray(params["w1"], np.float32)           # (1152, 256), rows (c,h,w)
    cout, Ho, Wo = d3["cout"], d3["Ho"], d3["Wo"]
    dh = w1.shape[1]
    # new row index = h*(Wo*Cout) + w*Cout + c  (matches the kernel's layout)
    w1p = w1.reshape(cout, Ho, Wo, dh).transpose(1, 2, 0, 3).reshape(Ho * Wo * cout, dh)
    return (jnp.asarray(w1p, jnp.bfloat16),
            jnp.asarray(np.asarray(params["b1"], np.float32).reshape(1, -1)),
            jnp.asarray(np.asarray(params["w2"], np.float32)),
            jnp.asarray(np.asarray(params["b2"], np.float32).reshape(1, -1)))


# --------------------------------- kernel -----------------------------------

def _build_kernel(N, d1, d2, d3):
    def kernel(x_ref,
               wk1, sh1, ws1, hs1,
               wk2, sh2, ws2, hs2,
               wk3, sh3, ws3, hs3,
               w1p_ref, b1_ref, w2_ref, b2_ref,
               out_ref,
               acc1, p1, acc2, p2, acc3):

        def conv_wmax(act_ref, wk_ref, sh_ref, ws_ref, acc_ref, d):
            """conv(k3,p2) + folded BN + ReLU + W-direction max pool, all in VMEM."""
            H, Hc = d["H"], d["Hc"]
            acc_ref[...] = jnp.zeros_like(acc_ref)
            for kh in range(3):                         # static unroll: 3 taps
                wmat = wk_ref[kh]                       # (W*Cin, Wc*Cout) bf16
                for n in range(N):
                    lhs = act_ref[n]                    # (H, W*Cin) bf16
                    contrib = jnp.dot(lhs, wmat,
                                      preferred_element_type=jnp.float32)
                    r0 = n * Hc + (2 - kh)              # shifted output-row window
                    acc_ref[r0:r0 + H, :] += contrib
            y = jnp.maximum(acc_ref[...] + sh_ref[...], 0.0)          # shift + ReLU
            e = jnp.dot(y, ws_ref[0], preferred_element_type=jnp.float32)
            o = jnp.dot(y, ws_ref[1], preferred_element_type=jnp.float32)
            return jnp.maximum(e, o)                    # (N*Hc, Wo*Cout) f32

        def hpool_to(pool_ref, hs_ref, wmax):
            for n in range(N):
                a = jnp.dot(hs_ref[0, n], wmax, preferred_element_type=jnp.float32)
                b = jnp.dot(hs_ref[1, n], wmax, preferred_element_type=jnp.float32)
                pool_ref[n] = jnp.maximum(a, b).astype(pool_ref.dtype)

        # conv blocks 1 & 2 -> bf16 pooled activations kept in VMEM scratch
        hpool_to(p1, hs1, conv_wmax(x_ref, wk1, sh1, ws1, acc1, d1))
        hpool_to(p2, hs2, conv_wmax(p1, wk2, sh2, ws2, acc2, d2))

        # conv block 3: H-pool + (NCHW) flatten + linear1 fused together
        wm3 = conv_wmax(p2, wk3, sh3, ws3, acc3, d3)
        L3 = d3["Lp"]                                   # Wo3 * Cout3
        y1 = None
        for h in range(d3["Ho"]):                       # static unroll: 6 rows
            a = jnp.dot(hs3[0, h], wm3, preferred_element_type=jnp.float32)
            b = jnp.dot(hs3[1, h], wm3, preferred_element_type=jnp.float32)
            rows = jnp.maximum(a, b).astype(jnp.bfloat16)       # (N, L3)
            wsl = w1p_ref[h * L3:(h + 1) * L3, :]               # (L3, 256) bf16
            t = jnp.dot(rows, wsl, preferred_element_type=jnp.float32)
            y1 = t if y1 is None else y1 + t
        h1 = y1 + b1_ref[...]                                   # linear1 bias
        logits = jnp.dot(h1, w2_ref[...],
                         preferred_element_type=jnp.float32) + b2_ref[...]
        out_ref[...] = logits.astype(out_ref.dtype)             # only HBM store

    return kernel


# ------------------------------ forward builder ------------------------------

def build_cnn_forward(params, N, H0, W0):
    d1 = _layer_dims(H0, W0, 1, 16)
    d2 = _layer_dims(d1["Ho"], d1["Wo"], 16, 32)
    d3 = _layer_dims(d2["Ho"], d2["Wo"], 32, 64)
    assert params["w1"].shape[0] == d3["Ho"] * d3["Wo"] * d3["cout"]
    n_classes = params["w2"].shape[1]

    wk1, sh1, ws1, hs1 = _prep_conv_layer(params["conv1"], d1, N, h_major_pool=False)
    wk2, sh2, ws2, hs2 = _prep_conv_layer(params["conv2"], d2, N, h_major_pool=False)
    wk3, sh3, ws3, hs3 = _prep_conv_layer(params["conv3"], d3, N, h_major_pool=True)
    w1p, b1, w2, b2 = _prep_mlp(params, d3)

    scratch = [
        pltpu.VMEM((N * d1["Hc"], d1["L"]), jnp.float32),    # acc1
        pltpu.VMEM((N, d1["Ho"], d1["Lp"]), jnp.bfloat16),   # pooled1
        pltpu.VMEM((N * d2["Hc"], d2["L"]), jnp.float32),    # acc2
        pltpu.VMEM((N, d2["Ho"], d2["Lp"]), jnp.bfloat16),   # pooled2
        pltpu.VMEM((N * d3["Hc"], d3["L"]), jnp.float32),    # acc3
    ]

    fused = pl.pallas_call(
        _build_kernel(N, d1, d2, d3),
        out_shape=jax.ShapeDtypeStruct((N, n_classes), jnp.float32),
        in_specs=[VMEM] * 17,
        out_specs=VMEM,
        scratch_shapes=scratch,
    )

    @jax.jit
    def forward(x_nchw):
        # NCHW -> per-sample rows (H, W*Cin), channels fastest on the lane dim.
        c = x_nchw.shape[1]
        x = jnp.transpose(x_nchw, (0, 2, 3, 1)).reshape(N, H0, W0 * c)
        x = x.astype(jnp.bfloat16)
        return fused(x, wk1, sh1, ws1, hs1, wk2, sh2, ws2, hs2,
                     wk3, sh3, ws3, hs3, w1p, b1, w2, b2)

    return forward


# ------------------------ plain-JAX reference (checking) ---------------------

def _reference_forward(params, x_nchw, eps=1e-5):
    """Mirrors the kernel's bf16 rounding points; f32 accumulation throughout."""
    x = jnp.transpose(x_nchw, (0, 2, 3, 1)).astype(jnp.float32)   # NHWC
    for name in ("conv1", "conv2", "conv3"):
        blk = params[name]
        scale = blk["gamma"] / jnp.sqrt(blk["var"] + eps)
        shift = (blk["b"] - blk["mean"]) * scale + blk["beta"]
        w = (blk["w"] * scale[:, None, None, None]).astype(jnp.bfloat16).astype(jnp.float32)
        xin = x.astype(jnp.bfloat16).astype(jnp.float32)
        y = lax.conv_general_dilated(
            xin, w, window_strides=(1, 1), padding=((2, 2), (2, 2)),
            dimension_numbers=("NHWC", "OIHW", "NHWC"))
        y = jnp.maximum(y + shift[None, None, None, :], 0.0)
        x = lax.reduce_window(y, -jnp.inf, lax.max,
                              (1, 2, 2, 1), (1, 2, 2, 1), "VALID")
    flat = jnp.transpose(x, (0, 3, 1, 2)).reshape(x.shape[0], -1)  # NCHW flatten
    flat = flat.astype(jnp.bfloat16).astype(jnp.float32)
    w1 = params["w1"].astype(jnp.bfloat16).astype(jnp.float32)
    h = flat @ w1 + params["b1"]
    return h @ params["w2"] + params["b2"]


# ------------------------------ parameter init -------------------------------

def init_params(key):
    def conv_block_params(k, cin, cout):
        ks = jax.random.split(k, 4)
        return dict(
            w=jax.random.normal(ks[0], (cout, cin, 3, 3), jnp.float32)
              * (1.0 / math.sqrt(9 * cin)),
            b=0.01 * jax.random.normal(ks[1], (cout,), jnp.float32),
            gamma=1.0 + 0.1 * jax.random.normal(ks[2], (cout,), jnp.float32),
            beta=0.1 * jax.random.normal(ks[3], (cout,), jnp.float32),
            mean=jnp.zeros((cout,), jnp.float32),
            var=jnp.ones((cout,), jnp.float32),
        )

    k1, k2, k3, k4, k5, k6, k7 = jax.random.split(key, 7)
    d_in, d_h, d_out = 64 * 6 * 3, 256, 6
    return dict(
        conv1=conv_block_params(k1, 1, 16),
        conv2=conv_block_params(k2, 16, 32),
        conv3=conv_block_params(k3, 32, 64),
        w1=jax.random.normal(k4, (d_in, d_h), jnp.float32) / math.sqrt(d_in),
        b1=0.01 * jax.random.normal(k5, (d_h,), jnp.float32),
        w2=jax.random.normal(k6, (d_h, d_out), jnp.float32) / math.sqrt(d_h),
        b2=0.01 * jax.random.normal(k7, (d_out,), jnp.float32),
    )


# ----------------------------------- main ------------------------------------

if __name__ == "__main__":
    key = jax.random.PRNGKey(0)
    pkey, xkey = jax.random.split(key)
    params = init_params(pkey)

    # Input chosen so conv3's pooled output is (N, 64, 6, 3) -> 1152 features,
    # matching nn.Linear(64 * 6 * 3, 256): NCHW (2, 1, 40, 12).
    N, C, H, W = 2, 1, 40, 12
    x = jax.random.normal(xkey, (N, C, H, W), jnp.float32)

    forward = build_cnn_forward(params, N, H, W)
    logits = jax.block_until_ready(forward(x))

    assert logits.shape == (N, 6), logits.shape
    assert bool(jnp.all(jnp.isfinite(logits)))

    ref = jax.block_until_ready(_reference_forward(params, x))
    np.testing.assert_allclose(np.asarray(logits), np.asarray(ref),
                               rtol=5e-2, atol=5e-2)

    print("KERNEL_OK")
</pallas_src>

<mosaic_0001>
module attributes {stable_mosaic.version = 11 : i64} {
  func.func @kernel(%arg0: memref<2x40x12xbf16, #tpu.memory_space<vmem>>, %arg1: memref<3x12x224xbf16, #tpu.memory_space<vmem>>, %arg2: memref<1x224xf32, #tpu.memory_space<vmem>>, %arg3: memref<2x224x112xf32, #tpu.memory_space<vmem>>, %arg4: memref<2x2x21x84xf32, #tpu.memory_space<vmem>>, %arg5: memref<3x112x288xbf16, #tpu.memory_space<vmem>>, %arg6: memref<1x288xf32, #tpu.memory_space<vmem>>, %arg7: memref<2x288x128xf32, #tpu.memory_space<vmem>>, %arg8: memref<2x2x11x46xf32, #tpu.memory_space<vmem>>, %arg9: memref<3x128x384xbf16, #tpu.memory_space<vmem>>, %arg10: memref<1x384xf32, #tpu.memory_space<vmem>>, %arg11: memref<2x384x192xf32, #tpu.memory_space<vmem>>, %arg12: memref<2x6x2x26xf32, #tpu.memory_space<vmem>>, %arg13: memref<1152x256xbf16, #tpu.memory_space<vmem>>, %arg14: memref<1x256xf32, #tpu.memory_space<vmem>>, %arg15: memref<256x6xf32, #tpu.memory_space<vmem>>, %arg16: memref<1x6xf32, #tpu.memory_space<vmem>>, %arg17: memref<2x6xf32, #tpu.memory_space<vmem>>, %arg18: memref<84x224xf32, #tpu.memory_space<vmem>>, %arg19: memref<2x21x112xbf16, #tpu.memory_space<vmem>>, %arg20: memref<46x288xf32, #tpu.memory_space<vmem>>, %arg21: memref<2x11x128xbf16, #tpu.memory_space<vmem>>, %arg22: memref<26x384xf32, #tpu.memory_space<vmem>>) attributes {dimension_semantics = [], scalar_prefetch = 0 : i64, scratch_operands = 5 : i64, tpu.core_type = #tpu.core_type<tc>} {
    %cst = arith.constant 0.000000e+00 : f32
    %0 = vector.broadcast %cst : f32 to vector<84x224xf32>
    %c0 = arith.constant 0 : index
    %c0_0 = arith.constant 0 : index
    %1 = vector.load %arg18[%c0, %c0_0] : memref<84x224xf32, #tpu.memory_space<vmem>>, vector<84x224xf32>
    tpu.vector_store %arg18[%c0, %c0_0], %0 {strides = array<i32>} : memref<84x224xf32, #tpu.memory_space<vmem>>, vector<84x224xf32>,
    %c0_1 = arith.constant 0 : index
    %c0_2 = arith.constant 0 : index
    %c0_3 = arith.constant 0 : index
    %2 = vector.load %arg1[%c0_1, %c0_2, %c0_3] : memref<3x12x224xbf16, #tpu.memory_space<vmem>>, vector<1x12x224xbf16>
    %3 = vector.shape_cast %2 : vector<1x12x224xbf16> to vector<12x224xbf16>
    %c0_4 = arith.constant 0 : index
    %c0_5 = arith.constant 0 : index
    %c0_6 = arith.constant 0 : index
    %4 = vector.load %arg0[%c0_4, %c0_5, %c0_6] : memref<2x40x12xbf16, #tpu.memory_space<vmem>>, vector<1x40x12xbf16>
    %5 = vector.shape_cast %4 : vector<1x40x12xbf16> to vector<40x12xbf16>
    %cst_7 = arith.constant dense<0.000000e+00> : vector<40x224xf32>
    %6 = tpu.matmul %5, %3, %cst_7 {dimension_numbers = #tpu.dot_dimension_numbers<[1], [0], [0], [1], [0, 0, 1, 1], [], []>} : vector<40x12xbf16>, vector<12x224xbf16>, vector<40x224xf32> -> vector<40x224xf32>
    %c2 = arith.constant 2 : index
    %c0_8 = arith.constant 0 : index
    %7 = vector.load %arg18[%c2, %c0_8] : memref<84x224xf32, #tpu.memory_space<vmem>>, vector<40x224xf32>
    %8 = arith.addf %7, %6 : vector<40x224xf32>
    %c2_9 = arith.constant 2 : index
    %c0_10 = arith.constant 0 : index
    %9 = vector.load %arg18[%c2_9, %c0_10] : memref<84x224xf32, #tpu.memory_space<vmem>>, vector<40x224xf32>
    tpu.vector_store %arg18[%c2_9, %c0_10], %8 {strides = array<i32>} : memref<84x224xf32, #tpu.memory_space<vmem>>, vector<40x224xf32>,
    %c1 = arith.constant 1 : index
    %c0_11 = arith.constant 0 : index
    %c0_12 = arith.constant 0 : index
    %10 = vector.load %arg0[%c1, %c0_11, %c0_12] : memref<2x40x12xbf16, #tpu.memory_space<vmem>>, vector<1x40x12xbf16>
    %11 = vector.shape_cast %10 : vector<1x40x12xbf16> to vector<40x12xbf16>
    %cst_13 = arith.constant dense<0.000000e+00> : vector<40x224xf32>
    %12 = tpu.matmul %11, %3, %cst_13 {dimension_numbers = #tpu.dot_dimension_numbers<[1], [0], [0], [1], [0, 0, 1, 1], [], []>} : vector<40x12xbf16>, vector<12x224xbf16>, vector<40x224xf32> -> vector<40x224xf32>
    %c44 = arith.constant 44 : index
    %c0_14 = arith.constant 0 : index
    %13 = vector.load %arg18[%c44, %c0_14] : memref<84x224xf32, #tpu.memory_space<vmem>>, vector<40x224xf32>
    %14 = arith.addf %13, %12 : vector<40x224xf32>
    %c44_15 = arith.constant 44 : index
    %c0_16 = arith.constant 0 : index
    %15 = vector.load %arg18[%c44_15, %c0_16] : memref<84x224xf32, #tpu.memory_space<vmem>>, vector<40x224xf32>
    tpu.vector_store %arg18[%c44_15, %c0_16], %14 {strides = array<i32>} : memref<84x224xf32, #tpu.memory_space<vmem>>, vector<40x224xf32>,
    %c1_17 = arith.constant 1 : index
    %c0_18 = arith.constant 0 : index
    %c0_19 = arith.constant 0 : index
    %16 = vector.load %arg1[%c1_17, %c0_18, %c0_19] : memref<3x12x224xbf16, #tpu.memory_space<vmem>>, vector<1x12x224xbf16>
    %17 = vector.shape_cast %16 : vector<1x12x224xbf16> to vector<12x224xbf16>
    %c0_20 = arith.constant 0 : index
    %c0_21 = arith.constant 0 : index
    %c0_22 = arith.constant 0 : index
    %18 = vector.load %arg0[%c0_20, %c0_21, %c0_22] : memref<2x40x12xbf16, #tpu.memory_space<vmem>>, vector<1x40x12xbf16>
    %19 = vector.shape_cast %18 : vector<1x40x12xbf16> to vector<40x12xbf16>
    %cst_23 = arith.constant dense<0.000000e+00> : vector<40x224xf32>
    %20 = tpu.matmul %19, %17, %cst_23 {dimension_numbers = #tpu.dot_dimension_numbers<[1], [0], [0], [1], [0, 0, 1, 1], [], []>} : vector<40x12xbf16>, vector<12x224xbf16>, vector<40x224xf32> -> vector<40x224xf32>
    %c1_24 = arith.constant 1 : index
    %c0_25 = arith.constant 0 : index
    %21 = vector.load %arg18[%c1_24, %c0_25] : memref<84x224xf32, #tpu.memory_space<vmem>>, vector<40x224xf32>
    %22 = arith.addf %21, %20 : vector<40x224xf32>
    %c1_26 = arith.constant 1 : index
    %c0_27 = arith.constant 0 : index
    %23 = vector.load %arg18[%c1_26, %c0_27] : memref<84x224xf32, #tpu.memory_space<vmem>>, vector<40x224xf32>
    tpu.vector_store %arg18[%c1_26, %c0_27], %22 {strides = array<i32>} : memref<84x224xf32, #tpu.memory_space<vmem>>, vector<40x224xf32>,
    %c1_28 = arith.constant 1 : index
    %c0_29 = arith.constant 0 : index
    %c0_30 = arith.constant 0 : index
    %24 = vector.load %arg0[%c1_28, %c0_29, %c0_30] : memref<2x40x12xbf16, #tpu.memory_space<vmem>>, vector<1x40x12xbf16>
    %25 = vector.shape_cast %24 : vector<1x40x12xbf16> to vector<40x12xbf16>
    %cst_31 = arith.constant dense<0.000000e+00> : vector<40x224xf32>
    %26 = tpu.matmul %25, %17, %cst_31 {dimension_numbers = #tpu.dot_dimension_numbers<[1], [0], [0], [1], [0, 0, 1, 1], [], []>} : vector<40x12xbf16>, vector<12x224xbf16>, vector<40x224xf32> -> vector<40x224xf32>
    %c43 = arith.constant 43 : index
    %c0_32 = arith.constant 0 : index
    %27 = vector.load %arg18[%c43, %c0_32] : memref<84x224xf32, #tpu.memory_space<vmem>>, vector<40x224xf32>
    %28 = arith.addf %27, %26 : vector<40x224xf32>
    %c43_33 = arith.constant 43 : index
    %c0_34 = arith.constant 0 : index
    %29 = vector.load %arg18[%c43_33, %c0_34] : memref<84x224xf32, #tpu.memory_space<vmem>>, vector<40x224xf32>
    tpu.vector_store %arg18[%c43_33, %c0_34], %28 {strides = array<i32>} : memref<84x224xf32, #tpu.memory_space<vmem>>, vector<40x224xf32>,
    %c2_35 = arith.constant 2 : index
    %c0_36 = arith.constant 0 : index
    %c0_37 = arith.constant 0 : index
    %30 = vector.load %arg1[%c2_35, %c0_36, %c0_37] : memref<3x12x224xbf16, #tpu.memory_space<vmem>>, vector<1x12x224xbf16>
    %31 = vector.shape_cast %30 : vector<1x12x224xbf16> to vector<12x224xbf16>
    %c0_38 = arith.constant 0 : index
    %c0_39 = arith.constant 0 : index
    %c0_40 = arith.constant 0 : index
    %32 = vector.load %arg0[%c0_38, %c0_39, %c0_40] : memref<2x40x12xbf16, #tpu.memory_space<vmem>>, vector<1x40x12xbf16>
    %33 = vector.shape_cast %32 : vector<1x40x12xbf16> to vector<40x12xbf16>
    %cst_41 = arith.constant dense<0.000000e+00> : vector<40x224xf32>
    %34 = tpu.matmul %33, %31, %cst_41 {dimension_numbers = #tpu.dot_dimension_numbers<[1], [0], [0], [1], [0, 0, 1, 1], [], []>} : vector<40x12xbf16>, vector<12x224xbf16>, vector<40x224xf32> -> vector<40x224xf32>
    %c0_42 = arith.constant 0 : index
    %c0_43 = arith.constant 0 : index
    %35 = vector.load %arg18[%c0_42, %c0_43] : memref<84x224xf32, #tpu.memory_space<vmem>>, vector<40x224xf32>
    %36 = arith.addf %35, %34 : vector<40x224xf32>
    %c0_44 = arith.constant 0 : index
    %c0_45 = arith.constant 0 : index
    %37 = vector.load %arg18[%c0_44, %c0_45] : memref<84x224xf32, #tpu.memory_space<vmem>>, vector<40x224xf32>
    tpu.vector_store %arg18[%c0_44, %c0_45], %36 {strides = array<i32>} : memref<84x224xf32, #tpu.memory_space<vmem>>, vector<40x224xf32>,
    %c1_46 = arith.constant 1 : index
    %c0_47 = arith.constant 0 : index
    %c0_48 = arith.constant 0 : index
    %38 = vector.load %arg0[%c1_46, %c0_47, %c0_48] : memref<2x40x12xbf16, #tpu.memory_space<vmem>>, vector<1x40x12xbf16>
    %39 = vector.shape_cast %38 : vector<1x40x12xbf16> to vector<40x12xbf16>
    %cst_49 = arith.constant dense<0.000000e+00> : vector<40x224xf32>
    %40 = tpu.matmul %39, %31, %cst_49 {dimension_numbers = #tpu.dot_dimension_numbers<[1], [0], [0], [1], [0, 0, 1, 1], [], []>} : vector<40x12xbf16>, vector<12x224xbf16>, vector<40x224xf32> -> vector<40x224xf32>
    %c42 = arith.constant 42 : index
    %c0_50 = arith.constant 0 : index
    %41 = vector.load %arg18[%c42, %c0_50] : memref<84x224xf32, #tpu.memory_space<vmem>>, vector<40x224xf32>
    %42 = arith.addf %41, %40 : vector<40x224xf32>
    %c42_51 = arith.constant 42 : index
    %c0_52 = arith.constant 0 : index
    %43 = vector.load %arg18[%c42_51, %c0_52] : memref<84x224xf32, #tpu.memory_space<vmem>>, vector<40x224xf32>
    tpu.vector_store %arg18[%c42_51, %c0_52], %42 {strides = array<i32>} : memref<84x224xf32, #tpu.memory_space<vmem>>, vector<40x224xf32>,
    %c0_53 = arith.constant 0 : index
    %c0_54 = arith.constant 0 : index
    %44 = vector.load %arg18[%c0_53, %c0_54] : memref<84x224xf32, #tpu.memory_space<vmem>>, vector<84x224xf32>
    %c0_55 = arith.constant 0 : index
    %c0_56 = arith.constant 0 : index
    %45 = vector.load %arg2[%c0_55, %c0_56] : memref<1x224xf32, #tpu.memory_space<vmem>>, vector<1x224xf32>
    %46 = vector.broadcast %45 : vector<1x224xf32> to vector<84x224xf32>
    %47 = arith.addf %44, %46 : vector<84x224xf32>
    %cst_57 = arith.constant 0.000000e+00 : f32
    %48 = vector.broadcast %cst_57 : f32 to vector<84x224xf32>
    %49 = arith.maximumf %47, %48 : vector<84x224xf32>
    %c0_58 = arith.constant 0 : index
    %c0_59 = arith.constant 0 : index
    %c0_60 = arith.constant 0 : index
    %50 = vector.load %arg3[%c0_58, %c0_59, %c0_60] : memref<2x224x112xf32, #tpu.memory_space<vmem>>, vector<1x224x112xf32>
    %51 = vector.shape_cast %50 : vector<1x224x112xf32> to vector<224x112xf32>
    %cst_61 = arith.constant dense<0.000000e+00> : vector<84x112xf32>
    %52 = tpu.matmul %49, %51, %cst_61 {dimension_numbers = #tpu.dot_dimension_numbers<[1], [0], [0], [1], [0, 0, 1, 1], [], []>} : vector<84x224xf32>, vector<224x112xf32>, vector<84x112xf32> -> vector<84x112xf32>
    %c1_62 = arith.constant 1 : index
    %c0_63 = arith.constant 0 : index
    %c0_64 = arith.constant 0 : index
    %53 = vector.load %arg3[%c1_62, %c0_63, %c0_64] : memref<2x224x112xf32, #tpu.memory_space<vmem>>, vector<1x224x112xf32>
    %54 = vector.shape_cast %53 : vector<1x224x112xf32> to vector<224x112xf32>
    %cst_65 = arith.constant dense<0.000000e+00> : vector<84x112xf32>
    %55 = tpu.matmul %49, %54, %cst_65 {dimension_numbers = #tpu.dot_dimension_numbers<[1], [0], [0], [1], [0, 0, 1, 1], [], []>} : vector<84x224xf32>, vector<224x112xf32>, vector<84x112xf32> -> vector<84x112xf32>
    %56 = arith.maximumf %52, %55 : vector<84x112xf32>
    %c0_66 = arith.constant 0 : index
    %c0_67 = arith.constant 0 : index
    %c0_68 = arith.constant 0 : index
    %c0_69 = arith.constant 0 : index
    %57 = vector.load %arg4[%c0_66, %c0_67, %c0_68, %c0_69] : memref<2x2x21x84xf32, #tpu.memory_space<vmem>>, vector<1x1x21x84xf32>
    %58 = vector.shape_cast %57 : vector<1x1x21x84xf32> to vector<21x84xf32>
    %cst_70 = arith.constant dense<0.000000e+00> : vector<21x112xf32>
    %59 = tpu.matmul %58, %56, %cst_70 {dimension_numbers = #tpu.dot_dimension_numbers<[1], [0], [0], [1], [0, 0, 1, 1], [], []>} : vector<21x84xf32>, vector<84x112xf32>, vector<21x112xf32> -> vector<21x112xf32>
    %c1_71 = arith.constant 1 : index
    %c0_72 = arith.constant 0 : index
    %c0_73 = arith.constant 0 : index
    %c0_74 = arith.constant 0 : index
    %60 = vector.load %arg4[%c1_71, %c0_72, %c0_73, %c0_74] : memref<2x2x21x84xf32, #tpu.memory_space<vmem>>, vector<1x1x21x84xf32>
    %61 = vector.shape_cast %60 : vector<1x1x21x84xf32> to vector<21x84xf32>
    %cst_75 = arith.constant dense<0.000000e+00> : vector<21x112xf32>
    %62 = tpu.matmul %61, %56, %cst_75 {dimension_numbers = #tpu.dot_dimension_numbers<[1], [0], [0], [1], [0, 0, 1, 1], [], []>} : vector<21x84xf32>, vector<84x112xf32>, vector<21x112xf32> -> vector<21x112xf32>
    %63 = arith.maximumf %59, %62 : vector<21x112xf32>
    %64 = arith.truncf %63 : vector<21x112xf32> to vector<21x112xbf16>
    %c0_76 = arith.constant 0 : index
    %c0_77 = arith.constant 0 : index
    %c0_78 = arith.constant 0 : index
    %65 = vector.load %arg19[%c0_76, %c0_77, %c0_78] : memref<2x21x112xbf16, #tpu.memory_space<vmem>>, vector<1x21x112xbf16>
    %66 = vector.shape_cast %65 : vector<1x21x112xbf16> to vector<21x112xbf16>
    %67 = vector.shape_cast %64 : vector<21x112xbf16> to vector<1x21x112xbf16>
    tpu.vector_store %arg19[%c0_76, %c0_77, %c0_78], %67 {strides = array<i32>} : memref<2x21x112xbf16, #tpu.memory_space<vmem>>, vector<1x21x112xbf16>,
    %c0_79 = arith.constant 0 : index
    %c1_80 = arith.constant 1 : index
    %c0_81 = arith.constant 0 : index
    %c0_82 = arith.constant 0 : index
    %68 = vector.load %arg4[%c0_79, %c1_80, %c0_81, %c0_82] : memref<2x2x21x84xf32, #tpu.memory_space<vmem>>, vector<1x1x21x84xf32>
    %69 = vector.shape_cast %68 : vector<1x1x21x84xf32> to vector<21x84xf32>
    %cst_83 = arith.constant dense<0.000000e+00> : vector<21x112xf32>
    %70 = tpu.matmul %69, %56, %cst_83 {dimension_numbers = #tpu.dot_dimension_numbers<[1], [0], [0], [1], [0, 0, 1, 1], [], []>} : vector<21x84xf32>, vector<84x112xf32>, vector<21x112xf32> -> vector<21x112xf32>
    %c1_84 = arith.constant 1 : index
    %c1_85 = arith.constant 1 : index
    %c0_86 = arith.constant 0 : index
    %c0_87 = arith.constant 0 : index
    %71 = vector.load %arg4[%c1_84, %c1_85, %c0_86, %c0_87] : memref<2x2x21x84xf32, #tpu.memory_space<vmem>>, vector<1x1x21x84xf32>
    %72 = vector.shape_cast %71 : vector<1x1x21x84xf32> to vector<21x84xf32>
    %cst_88 = arith.constant dense<0.000000e+00> : vector<21x112xf32>
    %73 = tpu.matmul %72, %56, %cst_88 {dimension_numbers = #tpu.dot_dimension_numbers<[1], [0], [0], [1], [0, 0, 1, 1], [], []>} : vector<21x84xf32>, vector<84x112xf32>, vector<21x112xf32> -> vector<21x112xf32>
    %74 = arith.maximumf %70, %73 : vector<21x112xf32>
    %75 = arith.truncf %74 : vector<21x112xf32> to vector<21x112xbf16>
    %c1_89 = arith.constant 1 : index
    %c0_90 = arith.constant 0 : index
    %c0_91 = arith.constant 0 : index
    %76 = vector.load %arg19[%c1_89, %c0_90, %c0_91] : memref<2x21x112xbf16, #tpu.memory_space<vmem>>, vector<1x21x112xbf16>
    %77 = vector.shape_cast %76 : vector<1x21x112xbf16> to vector<21x112xbf16>
    %78 = vector.shape_cast %75 : vector<21x112xbf16> to vector<1x21x112xbf16>
    tpu.vector_store %arg19[%c1_89, %c0_90, %c0_91], %78 {strides = array<i32>} : memref<2x21x112xbf16, #tpu.memory_space<vmem>>, vector<1x21x112xbf16>,
    %cst_92 = arith.constant 0.000000e+00 : f32
    %79 = vector.broadcast %cst_92 : f32 to vector<46x288xf32>
    %c0_93 = arith.constant 0 : index
    %c0_94 = arith.constant 0 : index
    %80 = vector.load %arg20[%c0_93, %c0_94] : memref<46x288xf32, #tpu.memory_space<vmem>>, vector<46x288xf32>
    tpu.vector_store %arg20[%c0_93, %c0_94], %79 {strides = array<i32>} : memref<46x288xf32, #tpu.memory_space<vmem>>, vector<46x288xf32>,
    %c0_95 = arith.constant 0 : index
    %c0_96 = arith.constant 0 : index
    %c0_97 = arith.constant 0 : index
    %81 = vector.load %arg5[%c0_95, %c0_96, %c0_97] : memref<3x112x288xbf16, #tpu.memory_space<vmem>>, vector<1x112x288xbf16>
    %82 = vector.shape_cast %81 : vector<1x112x288xbf16> to vector<112x288xbf16>
    %c0_98 = arith.constant 0 : index
    %c0_99 = arith.constant 0 : index
    %c0_100 = arith.constant 0 : index
    %83 = vector.load %arg19[%c0_98, %c0_99, %c0_100] : memref<2x21x112xbf16, #tpu.memory_space<vmem>>, vector<1x21x112xbf16>
    %84 = vector.shape_cast %83 : vector<1x21x112xbf16> to vector<21x112xbf16>
    %cst_101 = arith.constant dense<0.000000e+00> : vector<21x288xf32>
    %85 = tpu.matmul %84, %82, %cst_101 {dimension_numbers = #tpu.dot_dimension_numbers<[1], [0], [0], [1], [0, 0, 1, 1], [], []>} : vector<21x112xbf16>, vector<112x288xbf16>, vector<21x288xf32> -> vector<21x288xf32>
    %c2_102 = arith.constant 2 : index
    %c0_103 = arith.constant 0 : index
    %86 = vector.load %arg20[%c2_102, %c0_103] : memref<46x288xf32, #tpu.memory_space<vmem>>, vector<21x288xf32>
    %87 = arith.addf %86, %85 : vector<21x288xf32>
    %c2_104 = arith.constant 2 : index
    %c0_105 = arith.constant 0 : index
    %88 = vector.load %arg20[%c2_104, %c0_105] : memref<46x288xf32, #tpu.memory_space<vmem>>, vector<21x288xf32>
    tpu.vector_store %arg20[%c2_104, %c0_105], %87 {strides = array<i32>} : memref<46x288xf32, #tpu.memory_space<vmem>>, vector<21x288xf32>,
    %c1_106 = arith.constant 1 : index
    %c0_107 = arith.constant 0 : index
    %c0_108 = arith.constant 0 : index
    %89 = vector.load %arg19[%c1_106, %c0_107, %c0_108] : memref<2x21x112xbf16, #tpu.memory_space<vmem>>, vector<1x21x112xbf16>
    %90 = vector.shape_cast %89 : vector<1x21x112xbf16> to vector<21x112xbf16>
    %cst_109 = arith.constant dense<0.000000e+00> : vector<21x288xf32>
    %91 = tpu.matmul %90, %82, %cst_109 {dimension_numbers = #tpu.dot_dimension_numbers<[1], [0], [0], [1], [0, 0, 1, 1], [], []>} : vector<21x112xbf16>, vector<112x288xbf16>, vector<21x288xf32> -> vector<21x288xf32>
    %c25 = arith.constant 25 : index
    %c0_110 = arith.constant 0 : index
    %92 = vector.load %arg20[%c25, %c0_110] : memref<46x288xf32, #tpu.memory_space<vmem>>, vector<21x288xf32>
    %93 = arith.addf %92, %91 : vector<21x288xf32>
    %c25_111 = arith.constant 25 : index
    %c0_112 = arith.constant 0 : index
    %94 = vector.load %arg20[%c25_111, %c0_112] : memref<46x288xf32, #tpu.memory_space<vmem>>, vector<21x288xf32>
    tpu.vector_store %arg20[%c25_111, %c0_112], %93 {strides = array<i32>} : memref<46x288xf32, #tpu.memory_space<vmem>>, vector<21x288xf32>,
    %c1_113 = arith.constant 1 : index
    %c0_114 = arith.constant 0 : index
    %c0_115 = arith.constant 0 : index
    %95 = vector.load %arg5[%c1_113, %c0_114, %c0_115] : memref<3x112x288xbf16, #tpu.memory_space<vmem>>, vector<1x112x288xbf16>
    %96 = vector.shape_cast %95 : vector<1x112x288xbf16> to vector<112x288xbf16>
    %c0_116 = arith.constant 0 : index
    %c0_117 = arith.constant 0 : index
    %c0_118 = arith.constant 0 : index
    %97 = vector.load %arg19[%c0_116, %c0_117, %c0_118] : memref<2x21x112xbf16, #tpu.memory_space<vmem>>, vector<1x21x112xbf16>
    %98 = vector.shape_cast %97 : vector<1x21x112xbf16> to vector<21x112xbf16>
    %cst_119 = arith.constant dense<0.000000e+00> : vector<21x288xf32>
    %99 = tpu.matmul %98, %96, %cst_119 {dimension_numbers = #tpu.dot_dimension_numbers<[1], [0], [0], [1], [0, 0, 1, 1], [], []>} : vector<21x112xbf16>, vector<112x288xbf16>, vector<21x288xf32> -> vector<21x288xf32>
    %c1_120 = arith.constant 1 : index
    %c0_121 = arith.constant 0 : index
    %100 = vector.load %arg20[%c1_120, %c0_121] : memref<46x288xf32, #tpu.memory_space<vmem>>, vector<21x288xf32>
    %101 = arith.addf %100, %99 : vector<21x288xf32>
    %c1_122 = arith.constant 1 : index
    %c0_123 = arith.constant 0 : index
    %102 = vector.load %arg20[%c1_122, %c0_123] : memref<46x288xf32, #tpu.memory_space<vmem>>, vector<21x288xf32>
    tpu.vector_store %arg20[%c1_122, %c0_123], %101 {strides = array<i32>} : memref<46x288xf32, #tpu.memory_space<vmem>>, vector<21x288xf32>,
    %c1_124 = arith.constant 1 : index
    %c0_125 = arith.constant 0 : index
    %c0_126 = arith.constant 0 : index
    %103 = vector.load %arg19[%c1_124, %c0_125, %c0_126] : memref<2x21x112xbf16, #tpu.memory_space<vmem>>, vector<1x21x112xbf16>
    %104 = vector.shape_cast %103 : vector<1x21x112xbf16> to vector<21x112xbf16>
    %cst_127 = arith.constant dense<0.000000e+00> : vector<21x288xf32>
    %105 = tpu.matmul %104, %96, %cst_127 {dimension_numbers = #tpu.dot_dimension_numbers<[1], [0], [0], [1], [0, 0, 1, 1], [], []>} : vector<21x112xbf16>, vector<112x288xbf16>, vector<21x288xf32> -> vector<21x288xf32>
    %c24 = arith.constant 24 : index
    %c0_128 = arith.constant 0 : index
    %106 = vector.load %arg20[%c24, %c0_128] : memref<46x288xf32, #tpu.memory_space<vmem>>, vector<21x288xf32>
    %107 = arith.addf %106, %105 : vector<21x288xf32>
    %c24_129 = arith.constant 24 : index
    %c0_130 = arith.constant 0 : index
    %108 = vector.load %arg20[%c24_129, %c0_130] : memref<46x288xf32, #tpu.memory_space<vmem>>, vector<21x288xf32>
    tpu.vector_store %arg20[%c24_129, %c0_130], %107 {strides = array<i32>} : memref<46x288xf32, #tpu.memory_space<vmem>>, vector<21x288xf32>,
    %c2_131 = arith.constant 2 : index
    %c0_132 = arith.constant 0 : index
    %c0_133 = arith.constant 0 : index
    %109 = vector.load %arg5[%c2_131, %c0_132, %c0_133] : memref<3x112x288xbf16, #tpu.memory_space<vmem>>, vector<1x112x288xbf16>
    %110 = vector.shape_cast %109 : vector<1x112x288xbf16> to vector<112x288xbf16>
    %c0_134 = arith.constant 0 : index
    %c0_135 = arith.constant 0 : index
    %c0_136 = arith.constant 0 : index
    %111 = vector.load %arg19[%c0_134, %c0_135, %c0_136] : memref<2x21x112xbf16, #tpu.memory_space<vmem>>, vector<1x21x112xbf16>
    %112 = vector.shape_cast %111 : vector<1x21x112xbf16> to vector<21x112xbf16>
    %cst_137 = arith.constant dense<0.000000e+00> : vector<21x288xf32>
    %113 = tpu.matmul %112, %110, %cst_137 {dimension_numbers = #tpu.dot_dimension_numbers<[1], [0], [0], [1], [0, 0, 1, 1], [], []>} : vector<21x112xbf16>, vector<112x288xbf16>, vector<21x288xf32> -> vector<21x288xf32>
    %c0_138 = arith.constant 0 : index
    %c0_139 = arith.constant 0 : index
    %114 = vector.load %arg20[%c0_138, %c0_139] : memref<46x288xf32, #tpu.memory_space<vmem>>, vector<21x288xf32>
    %115 = arith.addf %114, %113 : vector<21x288xf32>
    %c0_140 = arith.constant 0 : index
    %c0_141 = arith.constant 0 : index
    %116 = vector.load %arg20[%c0_140, %c0_141] : memref<46x288xf32, #tpu.memory_space<vmem>>, vector<21x288xf32>
    tpu.vector_store %arg20[%c0_140, %c0_141], %115 {strides = array<i32>} : memref<46x288xf32, #tpu.memory_space<vmem>>, vector<21x288xf32>,
    %c1_142 = arith.constant 1 : index
    %c0_143 = arith.constant 0 : index
    %c0_144 = arith.constant 0 : index
    %117 = vector.load %arg19[%c1_142, %c0_143, %c0_144] : memref<2x21x112xbf16, #tpu.memory_space<vmem>>, vector<1x21x112xbf16>
    %118 = vector.shape_cast %117 : vector<1x21x112xbf16> to vector<21x112xbf16>
    %cst_145 = arith.constant dense<0.000000e+00> : vector<21x288xf32>
    %119 = tpu.matmul %118, %110, %cst_145 {dimension_numbers = #tpu.dot_dimension_numbers<[1], [0], [0], [1], [0, 0, 1, 1], [], []>} : vector<21x112xbf16>, vector<112x288xbf16>, vector<21x288xf32> -> vector<21x288xf32>
    %c23 = arith.constant 23 : index
    %c0_146 = arith.constant 0 : index
    %120 = vector.load %arg20[%c23, %c0_146] : memref<46x288xf32, #tpu.memory_space<vmem>>, vector<21x288xf32>
    %121 = arith.addf %120, %119 : vector<21x288xf32>
    %c23_147 = arith.constant 23 : index
    %c0_148 = arith.constant 0 : index
    %122 = vector.load %arg20[%c23_147, %c0_148] : memref<46x288xf32, #tpu.memory_space<vmem>>, vector<21x288xf32>
    tpu.vector_store %arg20[%c23_147, %c0_148], %121 {strides = array<i32>} : memref<46x288xf32, #tpu.memory_space<vmem>>, vector<21x288xf32>,
    %c0_149 = arith.constant 0 : index
    %c0_150 = arith.constant 0 : index
    %123 = vector.load %arg20[%c0_149, %c0_150] : memref<46x288xf32, #tpu.memory_space<vmem>>, vector<46x288xf32>
    %c0_151 = arith.constant 0 : index
    %c0_152 = arith.constant 0 : index
    %124 = vector.load %arg6[%c0_151, %c0_152] : memref<1x288xf32, #tpu.memory_space<vmem>>, vector<1x288xf32>
    %125 = vector.broadcast %124 : vector<1x288xf32> to vector<46x288xf32>
    %126 = arith.addf %123, %125 : vector<46x288xf32>
    %cst_153 = arith.constant 0.000000e+00 : f32
    %127 = vector.broadcast %cst_153 : f32 to vector<46x288xf32>
    %128 = arith.maximumf %126, %127 : vector<46x288xf32>
    %c0_154 = arith.constant 0 : index
    %c0_155 = arith.constant 0 : index
    %c0_156 = arith.constant 0 : index
    %129 = vector.load %arg7[%c0_154, %c0_155, %c0_156] : memref<2x288x128xf32, #tpu.memory_space<vmem>>, vector<1x288x128xf32>
    %130 = vector.shape_cast %129 : vector<1x288x128xf32> to vector<288x128xf32>
    %cst_157 = arith.constant dense<0.000000e+00> : vector<46x128xf32>
    %131 = tpu.matmul %128, %130, %cst_157 {dimension_numbers = #tpu.dot_dimension_numbers<[1], [0], [0], [1], [0, 0, 1, 1], [], []>} : vector<46x288xf32>, vector<288x128xf32>, vector<46x128xf32> -> vector<46x128xf32>
    %c1_158 = arith.constant 1 : index
    %c0_159 = arith.constant 0 : index
    %c0_160 = arith.constant 0 : index
    %132 = vector.load %arg7[%c1_158, %c0_159, %c0_160] : memref<2x288x128xf32, #tpu.memory_space<vmem>>, vector<1x288x128xf32>
    %133 = vector.shape_cast %132 : vector<1x288x128xf32> to vector<288x128xf32>
    %cst_161 = arith.constant dense<0.000000e+00> : vector<46x128xf32>
    %134 = tpu.matmul %128, %133, %cst_161 {dimension_numbers = #tpu.dot_dimension_numbers<[1], [0], [0], [1], [0, 0, 1, 1], [], []>} : vector<46x288xf32>, vector<288x128xf32>, vector<46x128xf32> -> vector<46x128xf32>
    %135 = arith.maximumf %131, %134 : vector<46x128xf32>
    %c0_162 = arith.constant 0 : index
    %c0_163 = arith.constant 0 : index
    %c0_164 = arith.constant 0 : index
    %c0_165 = arith.constant 0 : index
    %136 = vector.load %arg8[%c0_162, %c0_163, %c0_164, %c0_165] : memref<2x2x11x46xf32, #tpu.memory_space<vmem>>, vector<1x1x11x46xf32>
    %137 = vector.shape_cast %136 : vector<1x1x11x46xf32> to vector<11x46xf32>
    %cst_166 = arith.constant dense<0.000000e+00> : vector<11x128xf32>
    %138 = tpu.matmul %137, %135, %cst_166 {dimension_numbers = #tpu.dot_dimension_numbers<[1], [0], [0], [1], [0, 0, 1, 1], [], []>} : vector<11x46xf32>, vector<46x128xf32>, vector<11x128xf32> -> vector<11x128xf32>
    %c1_167 = arith.constant 1 : index
    %c0_168 = arith.constant 0 : index
    %c0_169 = arith.constant 0 : index
    %c0_170 = arith.constant 0 : index
    %139 = vector.load %arg8[%c1_167, %c0_168, %c0_169, %c0_170] : memref<2x2x11x46xf32, #tpu.memory_space<vmem>>, vector<1x1x11x46xf32>
    %140 = vector.shape_cast %139 : vector<1x1x11x46xf32> to vector<11x46xf32>
    %cst_171 = arith.constant dense<0.000000e+00> : vector<11x128xf32>
    %141 = tpu.matmul %140, %135, %cst_171 {dimension_numbers = #tpu.dot_dimension_numbers<[1], [0], [0], [1], [0, 0, 1, 1], [], []>} : vector<11x46xf32>, vector<46x128xf32>, vector<11x128xf32> -> vector<11x128xf32>
    %142 = arith.maximumf %138, %141 : vector<11x128xf32>
    %143 = arith.truncf %142 : vector<11x128xf32> to vector<11x128xbf16>
    %c0_172 = arith.constant 0 : index
    %c0_173 = arith.constant 0 : index
    %c0_174 = arith.constant 0 : index
    %144 = vector.load %arg21[%c0_172, %c0_173, %c0_174] : memref<2x11x128xbf16, #tpu.memory_space<vmem>>, vector<1x11x128xbf16>
    %145 = vector.shape_cast %144 : vector<1x11x128xbf16> to vector<11x128xbf16>
    %146 = vector.shape_cast %143 : vector<11x128xbf16> to vector<1x11x128xbf16>
    tpu.vector_store %arg21[%c0_172, %c0_173, %c0_174], %146 {strides = array<i32>} : memref<2x11x128xbf16, #tpu.memory_space<vmem>>, vector<1x11x128xbf16>,
    %c0_175 = arith.constant 0 : index
    %c1_176 = arith.constant 1 : index
    %c0_177 = arith.constant 0 : index
    %c0_178 = arith.constant 0 : index
    %147 = vector.load %arg8[%c0_175, %c1_176, %c0_177, %c0_178] : memref<2x2x11x46xf32, #tpu.memory_space<vmem>>, vector<1x1x11x46xf32>
    %148 = vector.shape_cast %147 : vector<1x1x11x46xf32> to vector<11x46xf32>
    %cst_179 = arith.constant dense<0.000000e+00> : vector<11x128xf32>
    %149 = tpu.matmul %148, %135, %cst_179 {dimension_numbers = #tpu.dot_dimension_numbers<[1], [0], [0], [1], [0, 0, 1, 1], [], []>} : vector<11x46xf32>, vector<46x128xf32>, vector<11x128xf32> -> vector<11x128xf32>
    %c1_180 = arith.constant 1 : index
    %c1_181 = arith.constant 1 : index
    %c0_182 = arith.constant 0 : index
    %c0_183 = arith.constant 0 : index
    %150 = vector.load %arg8[%c1_180, %c1_181, %c0_182, %c0_183] : memref<2x2x11x46xf32, #tpu.memory_space<vmem>>, vector<1x1x11x46xf32>
    %151 = vector.shape_cast %150 : vector<1x1x11x46xf32> to vector<11x46xf32>
    %cst_184 = arith.constant dense<0.000000e+00> : vector<11x128xf32>
    %152 = tpu.matmul %151, %135, %cst_184 {dimension_numbers = #tpu.dot_dimension_numbers<[1], [0], [0], [1], [0, 0, 1, 1], [], []>} : vector<11x46xf32>, vector<46x128xf32>, vector<11x128xf32> -> vector<11x128xf32>
    %153 = arith.maximumf %149, %152 : vector<11x128xf32>
    %154 = arith.truncf %153 : vector<11x128xf32> to vector<11x128xbf16>
    %c1_185 = arith.constant 1 : index
    %c0_186 = arith.constant 0 : index
    %c0_187 = arith.constant 0 : index
    %155 = vector.load %arg21[%c1_185, %c0_186, %c0_187] : memref<2x11x128xbf16, #tpu.memory_space<vmem>>, vector<1x11x128xbf16>
    %156 = vector.shape_cast %155 : vector<1x11x128xbf16> to vector<11x128xbf16>
    %157 = vector.shape_cast %154 : vector<11x128xbf16> to vector<1x11x128xbf16>
    tpu.vector_store %arg21[%c1_185, %c0_186, %c0_187], %157 {strides = array<i32>} : memref<2x11x128xbf16, #tpu.memory_space<vmem>>, vector<1x11x128xbf16>,
    %cst_188 = arith.constant 0.000000e+00 : f32
    %158 = vector.broadcast %cst_188 : f32 to vector<26x384xf32>
    %c0_189 = arith.constant 0 : index
    %c0_190 = arith.constant 0 : index
    %159 = vector.load %arg22[%c0_189, %c0_190] : memref<26x384xf32, #tpu.memory_space<vmem>>, vector<26x384xf32>
    tpu.vector_store %arg22[%c0_189, %c0_190], %158 {strides = array<i32>} : memref<26x384xf32, #tpu.memory_space<vmem>>, vector<26x384xf32>,
    %c0_191 = arith.constant 0 : index
    %c0_192 = arith.constant 0 : index
    %c0_193 = arith.constant 0 : index
    %160 = vector.load %arg9[%c0_191, %c0_192, %c0_193] : memref<3x128x384xbf16, #tpu.memory_space<vmem>>, vector<1x128x384xbf16>
    %161 = vector.shape_cast %160 : vector<1x128x384xbf16> to vector<128x384xbf16>
    %c0_194 = arith.constant 0 : index
    %c0_195 = arith.constant 0 : index
    %c0_196 = arith.constant 0 : index
    %162 = vector.load %arg21[%c0_194, %c0_195, %c0_196] : memref<2x11x128xbf16, #tpu.memory_space<vmem>>, vector<1x11x128xbf16>
    %163 = vector.shape_cast %162 : vector<1x11x128xbf16> to vector<11x128xbf16>
    %cst_197 = arith.constant dense<0.000000e+00> : vector<11x384xf32>
    %164 = tpu.matmul %163, %161, %cst_197 {dimension_numbers = #tpu.dot_dimension_numbers<[1], [0], [0], [1], [0, 0, 1, 1], [], []>} : vector<11x128xbf16>, vector<128x384xbf16>, vector<11x384xf32> -> vector<11x384xf32>
    %c2_198 = arith.constant 2 : index
    %c0_199 = arith.constant 0 : index
    %165 = vector.load %arg22[%c2_198, %c0_199] : memref<26x384xf32, #tpu.memory_space<vmem>>, vector<11x384xf32>
    %166 = arith.addf %165, %164 : vector<11x384xf32>
    %c2_200 = arith.constant 2 : index
    %c0_201 = arith.constant 0 : index
    %167 = vector.load %arg22[%c2_200, %c0_201] : memref<26x384xf32, #tpu.memory_space<vmem>>, vector<11x384xf32>
    tpu.vector_store %arg22[%c2_200, %c0_201], %166 {strides = array<i32>} : memref<26x384xf32, #tpu.memory_space<vmem>>, vector<11x384xf32>,
    %c1_202 = arith.constant 1 : index
    %c0_203 = arith.constant 0 : index
    %c0_204 = arith.constant 0 : index
    %168 = vector.load %arg21[%c1_202, %c0_203, %c0_204] : memref<2x11x128xbf16, #tpu.memory_space<vmem>>, vector<1x11x128xbf16>
    %169 = vector.shape_cast %168 : vector<1x11x128xbf16> to vector<11x128xbf16>
    %cst_205 = arith.constant dense<0.000000e+00> : vector<11x384xf32>
    %170 = tpu.matmul %169, %161, %cst_205 {dimension_numbers = #tpu.dot_dimension_numbers<[1], [0], [0], [1], [0, 0, 1, 1], [], []>} : vector<11x128xbf16>, vector<128x384xbf16>, vector<11x384xf32> -> vector<11x384xf32>
    %c15 = arith.constant 15 : index
    %c0_206 = arith.constant 0 : index
    %171 = vector.load %arg22[%c15, %c0_206] : memref<26x384xf32, #tpu.memory_space<vmem>>, vector<11x384xf32>
    %172 = arith.addf %171, %170 : vector<11x384xf32>
    %c15_207 = arith.constant 15 : index
    %c0_208 = arith.constant 0 : index
    %173 = vector.load %arg22[%c15_207, %c0_208] : memref<26x384xf32, #tpu.memory_space<vmem>>, vector<11x384xf32>
    tpu.vector_store %arg22[%c15_207, %c0_208], %172 {strides = array<i32>} : memref<26x384xf32, #tpu.memory_space<vmem>>, vector<11x384xf32>,
    %c1_209 = arith.constant 1 : index
    %c0_210 = arith.constant 0 : index
    %c0_211 = arith.constant 0 : index
    %174 = vector.load %arg9[%c1_209, %c0_210, %c0_211] : memref<3x128x384xbf16, #tpu.memory_space<vmem>>, vector<1x128x384xbf16>
    %175 = vector.shape_cast %174 : vector<1x128x384xbf16> to vector<128x384xbf16>
    %c0_212 = arith.constant 0 : index
    %c0_213 = arith.constant 0 : index
    %c0_214 = arith.constant 0 : index
    %176 = vector.load %arg21[%c0_212, %c0_213, %c0_214] : memref<2x11x128xbf16, #tpu.memory_space<vmem>>, vector<1x11x128xbf16>
    %177 = vector.shape_cast %176 : vector<1x11x128xbf16> to vector<11x128xbf16>
    %cst_215 = arith.constant dense<0.000000e+00> : vector<11x384xf32>
    %178 = tpu.matmul %177, %175, %cst_215 {dimension_numbers = #tpu.dot_dimension_numbers<[1], [0], [0], [1], [0, 0, 1, 1], [], []>} : vector<11x128xbf16>, vector<128x384xbf16>, vector<11x384xf32> -> vector<11x384xf32>
    %c1_216 = arith.constant 1 : index
    %c0_217 = arith.constant 0 : index
    %179 = vector.load %arg22[%c1_216, %c0_217] : memref<26x384xf32, #tpu.memory_space<vmem>>, vector<11x384xf32>
    %180 = arith.addf %179, %178 : vector<11x384xf32>
    %c1_218 = arith.constant 1 : index
    %c0_219 = arith.constant 0 : index
    %181 = vector.load %arg22[%c1_218, %c0_219] : memref<26x384xf32, #tpu.memory_space<vmem>>, vector<11x384xf32>
    tpu.vector_store %arg22[%c1_218, %c0_219], %180 {strides = array<i32>} : memref<26x384xf32, #tpu.memory_space<vmem>>, vector<11x384xf32>,
    %c1_220 = arith.constant 1 : index
    %c0_221 = arith.constant 0 : index
    %c0_222 = arith.constant 0 : index
    %182 = vector.load %arg21[%c1_220, %c0_221, %c0_222] : memref<2x11x128xbf16, #tpu.memory_space<vmem>>, vector<1x11x128xbf16>
    %183 = vector.shape_cast %182 : vector<1x11x128xbf16> to vector<11x128xbf16>
    %cst_223 = arith.constant dense<0.000000e+00> : vector<11x384xf32>
    %184 = tpu.matmul %183, %175, %cst_223 {dimension_numbers = #tpu.dot_dimension_numbers<[1], [0], [0], [1], [0, 0, 1, 1], [], []>} : vector<11x128xbf16>, vector<128x384xbf16>, vector<11x384xf32> -> vector<11x384xf32>
    %c14 = arith.constant 14 : index
    %c0_224 = arith.constant 0 : index
    %185 = vector.load %arg22[%c14, %c0_224] : memref<26x384xf32, #tpu.memory_space<vmem>>, vector<11x384xf32>
    %186 = arith.addf %185, %184 : vector<11x384xf32>
    %c14_225 = arith.constant 14 : index
    %c0_226 = arith.constant 0 : index
    %187 = vector.load %arg22[%c14_225, %c0_226] : memref<26x384xf32, #tpu.memory_space<vmem>>, vector<11x384xf32>
    tpu.vector_store %arg22[%c14_225, %c0_226], %186 {strides = array<i32>} : memref<26x384xf32, #tpu.memory_space<vmem>>, vector<11x384xf32>,
    %c2_227 = arith.constant 2 : index
    %c0_228 = arith.constant 0 : index
    %c0_229 = arith.constant 0 : index
    %188 = vector.load %arg9[%c2_227, %c0_228, %c0_229] : memref<3x128x384xbf16, #tpu.memory_space<vmem>>, vector<1x128x384xbf16>
    %189 = vector.shape_cast %188 : vector<1x128x384xbf16> to vector<128x384xbf16>
    %c0_230 = arith.constant 0 : index
    %c0_231 = arith.constant 0 : index
    %c0_232 = arith.constant 0 : index
    %190 = vector.load %arg21[%c0_230, %c0_231, %c0_232] : memref<2x11x128xbf16, #tpu.memory_space<vmem>>, vector<1x11x128xbf16>
    %191 = vector.shape_cast %190 : vector<1x11x128xbf16> to vector<11x128xbf16>
    %cst_233 = arith.constant dense<0.000000e+00> : vector<11x384xf32>
    %192 = tpu.matmul %191, %189, %cst_233 {dimension_numbers = #tpu.dot_dimension_numbers<[1], [0], [0], [1], [0, 0, 1, 1], [], []>} : vector<11x128xbf16>, vector<128x384xbf16>, vector<11x384xf32> -> vector<11x384xf32>
    %c0_234 = arith.constant 0 : index
    %c0_235 = arith.constant 0 : index
    %193 = vector.load %arg22[%c0_234, %c0_235] : memref<26x384xf32, #tpu.memory_space<vmem>>, vector<11x384xf32>
    %194 = arith.addf %193, %192 : vector<11x384xf32>
    %c0_236 = arith.constant 0 : index
    %c0_237 = arith.constant 0 : index
    %195 = vector.load %arg22[%c0_236, %c0_237] : memref<26x384xf32, #tpu.memory_space<vmem>>, vector<11x384xf32>
    tpu.vector_store %arg22[%c0_236, %c0_237], %194 {strides = array<i32>} : memref<26x384xf32, #tpu.memory_space<vmem>>, vector<11x384xf32>,
    %c1_238 = arith.constant 1 : index
    %c0_239 = arith.constant 0 : index
    %c0_240 = arith.constant 0 : index
    %196 = vector.load %arg21[%c1_238, %c0_239, %c0_240] : memref<2x11x128xbf16, #tpu.memory_space<vmem>>, vector<1x11x128xbf16>
    %197 = vector.shape_cast %196 : vector<1x11x128xbf16> to vector<11x128xbf16>
    %cst_241 = arith.constant dense<0.000000e+00> : vector<11x384xf32>
    %198 = tpu.matmul %197, %189, %cst_241 {dimension_numbers = #tpu.dot_dimension_numbers<[1], [0], [0], [1], [0, 0, 1, 1], [], []>} : vector<11x128xbf16>, vector<128x384xbf16>, vector<11x384xf32> -> vector<11x384xf32>
    %c13 = arith.constant 13 : index
    %c0_242 = arith.constant 0 : index
    %199 = vector.load %arg22[%c13, %c0_242] : memref<26x384xf32, #tpu.memory_space<vmem>>, vector<11x384xf32>
    %200 = arith.addf %199, %198 : vector<11x384xf32>
    %c13_243 = arith.constant 13 : index
    %c0_244 = arith.constant 0 : index
    %201 = vector.load %arg22[%c13_243, %c0_244] : memref<26x384xf32, #tpu.memory_space<vmem>>, vector<11x384xf32>
    tpu.vector_store %arg22[%c13_243, %c0_244], %200 {strides = array<i32>} : memref<26x384xf32, #tpu.memory_space<vmem>>, vector<11x384xf32>,
    %c0_245 = arith.constant 0 : index
    %c0_246 = arith.constant 0 : index
    %202 = vector.load %arg22[%c0_245, %c0_246] : memref<26x384xf32, #tpu.memory_space<vmem>>, vector<26x384xf32>
    %c0_247 = arith.constant 0 : index
    %c0_248 = arith.constant 0 : index
    %203 = vector.load %arg10[%c0_247, %c0_248] : memref<1x384xf32, #tpu.memory_space<vmem>>, vector<1x384xf32>
    %204 = vector.broadcast %203 : vector<1x384xf32> to vector<26x384xf32>
    %205 = arith.addf %202, %204 : vector<26x384xf32>
    %cst_249 = arith.constant 0.000000e+00 : f32
    %206 = vector.broadcast %cst_249 : f32 to vector<26x384xf32>
    %207 = arith.maximumf %205, %206 : vector<26x384xf32>
    %c0_250 = arith.constant 0 : index
    %c0_251 = arith.constant 0 : index
    %c0_252 = arith.constant 0 : index
    %208 = vector.load %arg11[%c0_250, %c0_251, %c0_252] : memref<2x384x192xf32, #tpu.memory_space<vmem>>, vector<1x384x192xf32>
    %209 = vector.shape_cast %208 : vector<1x384x192xf32> to vector<384x192xf32>
    %cst_253 = arith.constant dense<0.000000e+00> : vector<26x192xf32>
    %210 = tpu.matmul %207, %209, %cst_253 {dimension_numbers = #tpu.dot_dimension_numbers<[1], [0], [0], [1], [0, 0, 1, 1], [], []>} : vector<26x384xf32>, vector<384x192xf32>, vector<26x192xf32> -> vector<26x192xf32>
    %c1_254 = arith.constant 1 : index
    %c0_255 = arith.constant 0 : index
    %c0_256 = arith.constant 0 : index
    %211 = vector.load %arg11[%c1_254, %c0_255, %c0_256] : memref<2x384x192xf32, #tpu.memory_space<vmem>>, vector<1x384x192xf32>
    %212 = vector.shape_cast %211 : vector<1x384x192xf32> to vector<384x192xf32>
    %cst_257 = arith.constant dense<0.000000e+00> : vector<26x192xf32>
    %213 = tpu.matmul %207, %212, %cst_257 {dimension_numbers = #tpu.dot_dimension_numbers<[1], [0], [0], [1], [0, 0, 1, 1], [], []>} : vector<26x384xf32>, vector<384x192xf32>, vector<26x192xf32> -> vector<26x192xf32>
    %214 = arith.maximumf %210, %213 : vector<26x192xf32>
    %c0_258 = arith.constant 0 : index
    %c0_259 = arith.constant 0 : index
    %c0_260 = arith.constant 0 : index
    %c0_261 = arith.constant 0 : index
    %215 = vector.load %arg12[%c0_258, %c0_259, %c0_260, %c0_261] : memref<2x6x2x26xf32, #tpu.memory_space<vmem>>, vector<1x1x2x26xf32>
    %216 = vector.shape_cast %215 : vector<1x1x2x26xf32> to vector<2x26xf32>
    %cst_262 = arith.constant dense<0.000000e+00> : vector<2x192xf32>
    %217 = tpu.matmul %216, %214, %cst_262 {dimension_numbers = #tpu.dot_dimension_numbers<[1], [0], [0], [1], [0, 0, 1, 1], [], []>} : vector<2x26xf32>, vector<26x192xf32>, vector<2x192xf32> -> vector<2x192xf32>
    %c1_263 = arith.constant 1 : index
    %c0_264 = arith.constant 0 : index
    %c0_265 = arith.constant 0 : index
    %c0_266 = arith.constant 0 : index
    %218 = vector.load %arg12[%c1_263, %c0_264, %c0_265, %c0_266] : memref<2x6x2x26xf32, #tpu.memory_space<vmem>>, vector<1x1x2x26xf32>
    %219 = vector.shape_cast %218 : vector<1x1x2x26xf32> to vector<2x26xf32>
    %cst_267 = arith.constant dense<0.000000e+00> : vector<2x192xf32>
    %220 = tpu.matmul %219, %214, %cst_267 {dimension_numbers = #tpu.dot_dimension_numbers<[1], [0], [0], [1], [0, 0, 1, 1], [], []>} : vector<2x26xf32>, vector<26x192xf32>, vector<2x192xf32> -> vector<2x192xf32>
    %221 = arith.maximumf %217, %220 : vector<2x192xf32>
    %222 = arith.truncf %221 : vector<2x192xf32> to vector<2x192xbf16>
    %c0_268 = arith.constant 0 : index
    %c0_269 = arith.constant 0 : index
    %223 = vector.load %arg13[%c0_268, %c0_269] : memref<1152x256xbf16, #tpu.memory_space<vmem>>, vector<192x256xbf16>
    %cst_270 = arith.constant dense<0.000000e+00> : vector<2x256xf32>
    %224 = tpu.matmul %222, %223, %cst_270 {dimension_numbers = #tpu.dot_dimension_numbers<[1], [0], [0], [1], [0, 0, 1, 1], [], []>} : vector<2x192xbf16>, vector<192x256xbf16>, vector<2x256xf32> -> vector<2x256xf32>
    %c0_271 = arith.constant 0 : index
    %c1_272 = arith.constant 1 : index
    %c0_273 = arith.constant 0 : index
    %c0_274 = arith.constant 0 : index
    %225 = vector.load %arg12[%c0_271, %c1_272, %c0_273, %c0_274] : memref<2x6x2x26xf32, #tpu.memory_space<vmem>>, vector<1x1x2x26xf32>
    %226 = vector.shape_cast %225 : vector<1x1x2x26xf32> to vector<2x26xf32>
    %cst_275 = arith.constant dense<0.000000e+00> : vector<2x192xf32>
    %227 = tpu.matmul %226, %214, %cst_275 {dimension_numbers = #tpu.dot_dimension_numbers<[1], [0], [0], [1], [0, 0, 1, 1], [], []>} : vector<2x26xf32>, vector<26x192xf32>, vector<2x192xf32> -> vector<2x192xf32>
    %c1_276 = arith.constant 1 : index
    %c1_277 = arith.constant 1 : index
    %c0_278 = arith.constant 0 : index
    %c0_279 = arith.constant 0 : index
    %228 = vector.load %arg12[%c1_276, %c1_277, %c0_278, %c0_279] : memref<2x6x2x26xf32, #tpu.memory_space<vmem>>, vector<1x1x2x26xf32>
    %229 = vector.shape_cast %228 : vector<1x1x2x26xf32> to vector<2x26xf32>
    %cst_280 = arith.constant dense<0.000000e+00> : vector<2x192xf32>
    %230 = tpu.matmul %229, %214, %cst_280 {dimension_numbers = #tpu.dot_dimension_numbers<[1], [0], [0], [1], [0, 0, 1, 1], [], []>} : vector<2x26xf32>, vector<26x192xf32>, vector<2x192xf32> -> vector<2x192xf32>
    %231 = arith.maximumf %227, %230 : vector<2x192xf32>
    %232 = arith.truncf %231 : vector<2x192xf32> to vector<2x192xbf16>
    %c192 = arith.constant 192 : index
    %c0_281 = arith.constant 0 : index
    %233 = vector.load %arg13[%c192, %c0_281] : memref<1152x256xbf16, #tpu.memory_space<vmem>>, vector<192x256xbf16>
    %cst_282 = arith.constant dense<0.000000e+00> : vector<2x256xf32>
    %234 = tpu.matmul %232, %233, %cst_282 {dimension_numbers = #tpu.dot_dimension_numbers<[1], [0], [0], [1], [0, 0, 1, 1], [], []>} : vector<2x192xbf16>, vector<192x256xbf16>, vector<2x256xf32> -> vector<2x256xf32>
    %235 = arith.addf %224, %234 : vector<2x256xf32>
    %c0_283 = arith.constant 0 : index
    %c2_284 = arith.constant 2 : index
    %c0_285 = arith.constant 0 : index
    %c0_286 = arith.constant 0 : index
    %236 = vector.load %arg12[%c0_283, %c2_284, %c0_285, %c0_286] : memref<2x6x2x26xf32, #tpu.memory_space<vmem>>, vector<1x1x2x26xf32>
    %237 = vector.shape_cast %236 : vector<1x1x2x26xf32> to vector<2x26xf32>
    %cst_287 = arith.constant dense<0.000000e+00> : vector<2x192xf32>
    %238 = tpu.matmul %237, %214, %cst_287 {dimension_numbers = #tpu.dot_dimension_numbers<[1], [0], [0], [1], [0, 0, 1, 1], [], []>} : vector<2x26xf32>, vector<26x192xf32>, vector<2x192xf32> -> vector<2x192xf32>
    %c1_288 = arith.constant 1 : index
    %c2_289 = arith.constant 2 : index
    %c0_290 = arith.constant 0 : index
    %c0_291 = arith.constant 0 : index
    %239 = vector.load %arg12[%c1_288, %c2_289, %c0_290, %c0_291] : memref<2x6x2x26xf32, #tpu.memory_space<vmem>>, vector<1x1x2x26xf32>
    %240 = vector.shape_cast %239 : vector<1x1x2x26xf32> to vector<2x26xf32>
    %cst_292 = arith.constant dense<0.000000e+00> : vector<2x192xf32>
    %241 = tpu.matmul %240, %214, %cst_292 {dimension_numbers = #tpu.dot_dimension_numbers<[1], [0], [0], [1], [0, 0, 1, 1], [], []>} : vector<2x26xf32>, vector<26x192xf32>, vector<2x192xf32> -> vector<2x192xf32>
    %242 = arith.maximumf %238, %241 : vector<2x192xf32>
    %243 = arith.truncf %242 : vector<2x192xf32> to vector<2x192xbf16>
    %c384 = arith.constant 384 : index
    %c0_293 = arith.constant 0 : index
    %244 = vector.load %arg13[%c384, %c0_293] : memref<1152x256xbf16, #tpu.memory_space<vmem>>, vector<192x256xbf16>
    %cst_294 = arith.constant dense<0.000000e+00> : vector<2x256xf32>
    %245 = tpu.matmul %243, %244, %cst_294 {dimension_numbers = #tpu.dot_dimension_numbers<[1], [0], [0], [1], [0, 0, 1, 1], [], []>} : vector<2x192xbf16>, vector<192x256xbf16>, vector<2x256xf32> -> vector<2x256xf32>
    %246 = arith.addf %235, %245 : vector<2x256xf32>
    %c0_295 = arith.constant 0 : index
    %c3 = arith.constant 3 : index
    %c0_296 = arith.constant 0 : index
    %c0_297 = arith.constant 0 : index
    %247 = vector.load %arg12[%c0_295, %c3, %c0_296, %c0_297] : memref<2x6x2x26xf32, #tpu.memory_space<vmem>>, vector<1x1x2x26xf32>
    %248 = vector.shape_cast %247 : vector<1x1x2x26xf32> to vector<2x26xf32>
    %cst_298 = arith.constant dense<0.000000e+00> : vector<2x192xf32>
    %249 = tpu.matmul %248, %214, %cst_298 {dimension_numbers = #tpu.dot_dimension_numbers<[1], [0], [0], [1], [0, 0, 1, 1], [], []>} : vector<2x26xf32>, vector<26x192xf32>, vector<2x192xf32> -> vector<2x192xf32>
    %c1_299 = arith.constant 1 : index
    %c3_300 = arith.constant 3 : index
    %c0_301 = arith.constant 0 : index
    %c0_302 = arith.constant 0 : index
    %250 = vector.load %arg12[%c1_299, %c3_300, %c0_301, %c0_302] : memref<2x6x2x26xf32, #tpu.memory_space<vmem>>, vector<1x1x2x26xf32>
    %251 = vector.shape_cast %250 : vector<1x1x2x26xf32> to vector<2x26xf32>
    %cst_303 = arith.constant dense<0.000000e+00> : vector<2x192xf32>
    %252 = tpu.matmul %251, %214, %cst_303 {dimension_numbers = #tpu.dot_dimension_numbers<[1], [0], [0], [1], [0, 0, 1, 1], [], []>} : vector<2x26xf32>, vector<26x192xf32>, vector<2x192xf32> -> vector<2x192xf32>
    %253 = arith.maximumf %249, %252 : vector<2x192xf32>
    %254 = arith.truncf %253 : vector<2x192xf32> to vector<2x192xbf16>
    %c576 = arith.constant 576 : index
    %c0_304 = arith.constant 0 : index
    %255 = vector.load %arg13[%c576, %c0_304] : memref<1152x256xbf16, #tpu.memory_space<vmem>>, vector<192x256xbf16>
    %cst_305 = arith.constant dense<0.000000e+00> : vector<2x256xf32>
    %256 = tpu.matmul %254, %255, %cst_305 {dimension_numbers = #tpu.dot_dimension_numbers<[1], [0], [0], [1], [0, 0, 1, 1], [], []>} : vector<2x192xbf16>, vector<192x256xbf16>, vector<2x256xf32> -> vector<2x256xf32>
    %257 = arith.addf %246, %256 : vector<2x256xf32>
    %c0_306 = arith.constant 0 : index
    %c4 = arith.constant 4 : index
    %c0_307 = arith.constant 0 : index
    %c0_308 = arith.constant 0 : index
    %258 = vector.load %arg12[%c0_306, %c4, %c0_307, %c0_308] : memref<2x6x2x26xf32, #tpu.memory_space<vmem>>, vector<1x1x2x26xf32>
    %259 = vector.shape_cast %258 : vector<1x1x2x26xf32> to vector<2x26xf32>
    %cst_309 = arith.constant dense<0.000000e+00> : vector<2x192xf32>
    %260 = tpu.matmul %259, %214, %cst_309 {dimension_numbers = #tpu.dot_dimension_numbers<[1], [0], [0], [1], [0, 0, 1, 1], [], []>} : vector<2x26xf32>, vector<26x192xf32>, vector<2x192xf32> -> vector<2x192xf32>
    %c1_310 = arith.constant 1 : index
    %c4_311 = arith.constant 4 : index
    %c0_312 = arith.constant 0 : index
    %c0_313 = arith.constant 0 : index
    %261 = vector.load %arg12[%c1_310, %c4_311, %c0_312, %c0_313] : memref<2x6x2x26xf32, #tpu.memory_space<vmem>>, vector<1x1x2x26xf32>
    %262 = vector.shape_cast %261 : vector<1x1x2x26xf32> to vector<2x26xf32>
    %cst_314 = arith.constant dense<0.000000e+00> : vector<2x192xf32>
    %263 = tpu.matmul %262, %214, %cst_314 {dimension_numbers = #tpu.dot_dimension_numbers<[1], [0], [0], [1], [0, 0, 1, 1], [], []>} : vector<2x26xf32>, vector<26x192xf32>, vector<2x192xf32> -> vector<2x192xf32>
    %264 = arith.maximumf %260, %263 : vector<2x192xf32>
    %265 = arith.truncf %264 : vector<2x192xf32> to vector<2x192xbf16>
    %c768 = arith.constant 768 : index
    %c0_315 = arith.constant 0 : index
    %266 = vector.load %arg13[%c768, %c0_315] : memref<1152x256xbf16, #tpu.memory_space<vmem>>, vector<192x256xbf16>
    %cst_316 = arith.constant dense<0.000000e+00> : vector<2x256xf32>
    %267 = tpu.matmul %265, %266, %cst_316 {dimension_numbers = #tpu.dot_dimension_numbers<[1], [0], [0], [1], [0, 0, 1, 1], [], []>} : vector<2x192xbf16>, vector<192x256xbf16>, vector<2x256xf32> -> vector<2x256xf32>
    %268 = arith.addf %257, %267 : vector<2x256xf32>
    %c0_317 = arith.constant 0 : index
    %c5 = arith.constant 5 : index
    %c0_318 = arith.constant 0 : index
    %c0_319 = arith.constant 0 : index
    %269 = vector.load %arg12[%c0_317, %c5, %c0_318, %c0_319] : memref<2x6x2x26xf32, #tpu.memory_space<vmem>>, vector<1x1x2x26xf32>
    %270 = vector.shape_cast %269 : vector<1x1x2x26xf32> to vector<2x26xf32>
    %cst_320 = arith.constant dense<0.000000e+00> : vector<2x192xf32>
    %271 = tpu.matmul %270, %214, %cst_320 {dimension_numbers = #tpu.dot_dimension_numbers<[1], [0], [0], [1], [0, 0, 1, 1], [], []>} : vector<2x26xf32>, vector<26x192xf32>, vector<2x192xf32> -> vector<2x192xf32>
    %c1_321 = arith.constant 1 : index
    %c5_322 = arith.constant 5 : index
    %c0_323 = arith.constant 0 : index
    %c0_324 = arith.constant 0 : index
    %272 = vector.load %arg12[%c1_321, %c5_322, %c0_323, %c0_324] : memref<2x6x2x26xf32, #tpu.memory_space<vmem>>, vector<1x1x2x26xf32>
    %273 = vector.shape_cast %272 : vector<1x1x2x26xf32> to vector<2x26xf32>
    %cst_325 = arith.constant dense<0.000000e+00> : vector<2x192xf32>
    %274 = tpu.matmul %273, %214, %cst_325 {dimension_numbers = #tpu.dot_dimension_numbers<[1], [0], [0], [1], [0, 0, 1, 1], [], []>} : vector<2x26xf32>, vector<26x192xf32>, vector<2x192xf32> -> vector<2x192xf32>
    %275 = arith.maximumf %271, %274 : vector<2x192xf32>
    %276 = arith.truncf %275 : vector<2x192xf32> to vector<2x192xbf16>
    %c960 = arith.constant 960 : index
    %c0_326 = arith.constant 0 : index
    %277 = vector.load %arg13[%c960, %c0_326] : memref<1152x256xbf16, #tpu.memory_space<vmem>>, vector<192x256xbf16>
    %cst_327 = arith.constant dense<0.000000e+00> : vector<2x256xf32>
    %278 = tpu.matmul %276, %277, %cst_327 {dimension_numbers = #tpu.dot_dimension_numbers<[1], [0], [0], [1], [0, 0, 1, 1], [], []>} : vector<2x192xbf16>, vector<192x256xbf16>, vector<2x256xf32> -> vector<2x256xf32>
    %279 = arith.addf %268, %278 : vector<2x256xf32>
    %c0_328 = arith.constant 0 : index
    %c0_329 = arith.constant 0 : index
    %280 = vector.load %arg14[%c0_328, %c0_329] : memref<1x256xf32, #tpu.memory_space<vmem>>, vector<1x256xf32>
    %281 = vector.broadcast %280 : vector<1x256xf32> to vector<2x256xf32>
    %282 = arith.addf %279, %281 : vector<2x256xf32>
    %c0_330 = arith.constant 0 : index
    %c0_331 = arith.constant 0 : index
    %283 = vector.load %arg15[%c0_330, %c0_331] : memref<256x6xf32, #tpu.memory_space<vmem>>, vector<256x6xf32>
    %cst_332 = arith.constant dense<0.000000e+00> : vector<2x6xf32>
    %284 = tpu.matmul %282, %283, %cst_332 {dimension_numbers = #tpu.dot_dimension_numbers<[1], [0], [0], [1], [0, 0, 1, 1], [], []>} : vector<2x256xf32>, vector<256x6xf32>, vector<2x6xf32> -> vector<2x6xf32>
    %c0_333 = arith.constant 0 : index
    %c0_334 = arith.constant 0 : index
    %285 = vector.load %arg16[%c0_333, %c0_334] : memref<1x6xf32, #tpu.memory_space<vmem>>, vector<1x6xf32>
    %286 = vector.broadcast %285 : vector<1x6xf32> to vector<2x6xf32>
    %287 = arith.addf %284, %286 : vector<2x6xf32>
    %c0_335 = arith.constant 0 : index
    %c0_336 = arith.constant 0 : index
    %288 = vector.load %arg17[%c0_335, %c0_336] : memref<2x6xf32, #tpu.memory_space<vmem>>, vector<2x6xf32>
    tpu.vector_store %arg17[%c0_335, %c0_336], %287 {strides = array<i32>} : memref<2x6xf32, #tpu.memory_space<vmem>>, vector<2x6xf32>,
    return
  }
}

</mosaic_0001>

<llo_original>
// kernel: forward.1
$region0: #{forward.1}
  #allocation0 [shape = 'u32[]', space=smem, size = 0x4, offset = 0x4, fixed_abs, tag = 'smem constant byte address 0x4 - core index']
  #allocation1 [shape = 'u32[144,128]{1,0:T(1,128)}', space=vmem, size = 0x12000, scoped, tag = 'internal scratch']
  #allocation2 [shape = 'f32[84,224]{1,0:T(8,128)}', space=vmem, size = 0x16000, scoped, tag = 'scratch operand']
  #allocation3 [shape = 'bf16[2,21,112]{2,1,0:T(8,128)(2,1)}', space=vmem, size = 0x3000, scoped, tag = 'scratch operand']
  #allocation4 [shape = 'f32[46,288]{1,0:T(8,128)}', space=vmem, size = 0x12000, scoped, tag = 'scratch operand']
  #allocation5 [shape = 'bf16[2,11,128]{2,1,0:T(8,128)(2,1)}', space=vmem, size = 0x2000, scoped, tag = 'scratch operand']
  #allocation6 [shape = 'f32[26,384]{1,0:T(8,128)}', space=vmem, size = 0xc000, scoped, tag = 'scratch operand']
  %s0 = inlined_call_operand.vmem [shape: bf16[2,40,12], index: 0, kind: input, shape index: {}]
  %s1 = inlined_call_operand.hbm [shape: bf16[3,12,224], index: 1, kind: input, shape index: {}]
  %s2 = inlined_call_operand.vmem [shape: f32[1,224], index: 2, kind: input, shape index: {}]
  %s3 = inlined_call_operand.vmem [shape: f32[2,224,112], index: 3, kind: input, shape index: {}]
  %s4 = inlined_call_operand.hbm [shape: f32[2,2,21,84], index: 4, kind: input, shape index: {}]
  %s5 = inlined_call_operand.vmem [shape: bf16[3,112,288], index: 5, kind: input, shape index: {}]
  %s6 = inlined_call_operand.vmem [shape: f32[1,288], index: 6, kind: input, shape index: {}]
  %s7 = inlined_call_operand.vmem [shape: f32[2,288,128], index: 7, kind: input, shape index: {}]
  %s8 = inlined_call_operand.hbm [shape: f32[2,2,11,46], index: 8, kind: input, shape index: {}]
  %s9 = inlined_call_operand.vmem [shape: bf16[3,128,384], index: 9, kind: input, shape index: {}]
  %s10 = inlined_call_operand.vmem [shape: f32[1,384], index: 10, kind: input, shape index: {}]
  %s11 = inlined_call_operand.vmem [shape: f32[2,384,192], index: 11, kind: input, shape index: {}]
  %s12 = inlined_call_operand.vmem [shape: f32[2,6,2,26], index: 12, kind: input, shape index: {}]
  %s13 = inlined_call_operand.vmem [shape: bf16[1152,256], index: 13, kind: input, shape index: {}]
  %s14 = inlined_call_operand.vmem [shape: f32[1,256], index: 14, kind: input, shape index: {}]
  %s15 = inlined_call_operand.vmem [shape: f32[256,6], index: 15, kind: input, shape index: {}]
  %s16 = inlined_call_operand.vmem [shape: f32[1,6], index: 16, kind: input, shape index: {}]
  %s17 = inlined_call_operand.hbm [shape: f32[2,6], index: 17, kind: output, shape index: {}]
  %s18 = sld [smem:[#allocation0]]
  $region90: #{forward.1} parent=0
    _
  %s20 = ssub.s32 1, %s18
  %s21 = scalar_select 0, %s20, %s18
  $region1: #{forward.1} parent=0
    #allocation7 [shape = 'u8[24576]{0}', space=vmem, size = 0x6000, scoped, tag = 'input window, operand 1, single buffered']
    #allocation8 [shape = 's32[1]{0}', space=sflag, size = 0x4, scoped, tag = 'scoped memory for forward.1']
    #allocation9 [shape = 's32[1]{0}', space=sflag, size = 0x4, scoped, tag = 'scoped memory for forward.1']
    #allocation10 [shape = 'u8[49152]{0}', space=vmem, size = 0xc000, scoped, tag = 'input window, operand 4, single buffered']
    #allocation11 [shape = 's32[1]{0}', space=sflag, size = 0x4, scoped, tag = 'scoped memory for forward.1']
    #allocation12 [shape = 'u8[32768]{0}', space=vmem, size = 0x8000, scoped, tag = 'input window, operand 8, single buffered']
    #allocation13 [shape = 'u8[1024]{0}', space=vmem, size = 0x400, scoped, tag = 'output window, operand 0, single buffered']
    %22 = vsyncpa [#allocation8], 0
    %23 = vsyncpa [#allocation11], 0
    %24 = vsyncpa [#allocation9], 0
    // Predicated region
    $region2: #{forward.1} parent=1 // pred_check
      _
    $region3: #{forward.1} parent=1 // pred_check_branch
      %26 = sbr.rel (0) target = $region5
    $region4: #{forward.1} parent=1 // pred_region
      _
    $region5: #{forward.1} parent=1 // pred_fallthru
      _
    // Predicated region
    $region6: #{forward.1} parent=1 // pred_check
      _
    $region7: #{forward.1} parent=1 // pred_check_branch
      %28 = sbr.rel (0) target = $region9
    $region8: #{forward.1} parent=1 // pred_region
      %s30 = ssub.s32 768, 768
      %31 = vsyncadd [#allocation8], %s30
      %s32 = sshll.u32 [#allocation7], 4
      %s33 = int_to_ptr.vmem [resolvable:$true] %s32
      %38 = dma.hbm_to_vmem [thread:$0]  %s1, 768, %s33, [#allocation8], 128, 128, 8
    $region9: #{forward.1} parent=1 // pred_fallthru
      _
    // Predicated region
    $region10: #{forward.1} parent=1 // pred_check
      _
    $region11: #{forward.1} parent=1 // pred_check_branch
      %40 = sbr.rel (0) target = $region13
    $region12: #{forward.1} parent=1 // pred_region
      _
    $region13: #{forward.1} parent=1 // pred_fallthru
      _
    // Predicated region
    $region14: #{forward.1} parent=1 // pred_check
      _
    $region15: #{forward.1} parent=1 // pred_check_branch
      %42 = sbr.rel (0) target = $region17
    $region16: #{forward.1} parent=1 // pred_region
      _
    $region17: #{forward.1} parent=1 // pred_fallthru
      _
    // Predicated region
    $region18: #{forward.1} parent=1 // pred_check
      _
    $region19: #{forward.1} parent=1 // pred_check_branch
      %44 = sbr.rel (0) target = $region21
    $region20: #{forward.1} parent=1 // pred_region
      %s46 = ssub.s32 1536, 1536
      %47 = vsyncadd [#allocation11], %s46
      %s48 = sshll.u32 [#allocation10], 4
      %s49 = int_to_ptr.vmem [resolvable:$true] %s48
      %54 = dma.hbm_to_vmem [thread:$0]  %s4, 1536, %s49, [#allocation11], 128, 128, 8
    $region21: #{forward.1} parent=1 // pred_fallthru
      _
    // Predicated region
    $region22: #{forward.1} parent=1 // pred_check
      _
    $region23: #{forward.1} parent=1 // pred_check_branch
      %56 = sbr.rel (0) target = $region25
    $region24: #{forward.1} parent=1 // pred_region
      _
    $region25: #{forward.1} parent=1 // pred_fallthru
      _
    // Predicated region
    $region26: #{forward.1} parent=1 // pred_check
      _
    $region27: #{forward.1} parent=1 // pred_check_branch
      %58 = sbr.rel (0) target = $region29
    $region28: #{forward.1} parent=1 // pred_region
      _
    $region29: #{forward.1} parent=1 // pred_fallthru
      _
    // Predicated region
    $region30: #{forward.1} parent=1 // pred_check
      _
    $region31: #{forward.1} parent=1 // pred_check_branch
      %60 = sbr.rel (0) target = $region33
    $region32: #{forward.1} parent=1 // pred_region
      _
    $region33: #{forward.1} parent=1 // pred_fallthru
      _
    // Predicated region
    $region34: #{forward.1} parent=1 // pred_check
      _
    $region35: #{forward.1} parent=1 // pred_check_branch
      %62 = sbr.rel (0) target = $region37
    $region36: #{forward.1} parent=1 // pred_region
      %s64 = ssub.s32 1024, 1024
      %65 = vsyncadd [#allocation11], %s64
      %s66 = sshll.u32 [#allocation12], 4
      %s67 = int_to_ptr.vmem [resolvable:$true] %s66
      %72 = dma.hbm_to_vmem [thread:$0]  %s8, 1024, %s67, [#allocation11], 128, 128, 8
    $region37: #{forward.1} parent=1 // pred_fallthru
      _
    // Predicated region
    $region38: #{forward.1} parent=1 // pred_check
      _
    $region39: #{forward.1} parent=1 // pred_check_branch
      %74 = sbr.rel (0) target = $region41
    $region40: #{forward.1} parent=1 // pred_region
      _
    $region41: #{forward.1} parent=1 // pred_fallthru
      _
    // Predicated region
    $region42: #{forward.1} parent=1 // pred_check
      _
    $region43: #{forward.1} parent=1 // pred_check_branch
      %76 = sbr.rel (0) target = $region45
    $region44: #{forward.1} parent=1 // pred_region
      _
    $region45: #{forward.1} parent=1 // pred_fallthru
      _
    // Predicated region
    $region46: #{forward.1} parent=1 // pred_check
      _
    $region47: #{forward.1} parent=1 // pred_check_branch
      %78 = sbr.rel (0) target = $region49
    $region48: #{forward.1} parent=1 // pred_region
      _
    $region49: #{forward.1} parent=1 // pred_fallthru
      _
    // Predicated region
    $region50: #{forward.1} parent=1 // pred_check
      _
    $region51: #{forward.1} parent=1 // pred_check_branch
      %80 = sbr.rel (0) target = $region53
    $region52: #{forward.1} parent=1 // pred_region
      _
    $region53: #{forward.1} parent=1 // pred_fallthru
      _
    // Predicated region
    $region54: #{forward.1} parent=1 // pred_check
      _
    $region55: #{forward.1} parent=1 // pred_check_branch
      %82 = sbr.rel (0) target = $region57
    $region56: #{forward.1} parent=1 // pred_region
      _
    $region57: #{forward.1} parent=1 // pred_fallthru
      _
    // Predicated region
    $region58: #{forward.1} parent=1 // pred_check
      _
    $region59: #{forward.1} parent=1 // pred_check_branch
      %84 = sbr.rel (0) target = $region61
    $region60: #{forward.1} parent=1 // pred_region
      _
    $region61: #{forward.1} parent=1 // pred_fallthru
      _
    // Predicated region
    $region62: #{forward.1} parent=1 // pred_check
      _
    $region63: #{forward.1} parent=1 // pred_check_branch
      %86 = sbr.rel (0) target = $region65
    $region64: #{forward.1} parent=1 // pred_region
      _
    $region65: #{forward.1} parent=1 // pred_fallthru
      _
    // Predicated region
    $region66: #{forward.1} parent=1 // pred_check
      _
    $region67: #{forward.1} parent=1 // pred_check_branch
      %88 = sbr.rel (0) target = $region69
    $region68: #{forward.1} parent=1 // pred_region
      _
    $region69: #{forward.1} parent=1 // pred_fallthru
      _
    // Predicated region
    $region70: #{forward.1} parent=1 // pred_check
      _
    $region71: #{forward.1} parent=1 // pred_check_branch
      %90 = sbr.rel (0) target = $region73
    $region72: #{forward.1} parent=1 // pred_region
      %91 = dma.done [#allocation8], 768
    $region73: #{forward.1} parent=1 // pred_fallthru
      _
    // Predicated region
    $region74: #{forward.1} parent=1 // pred_check
      _
    $region75: #{forward.1} parent=1 // pred_check_branch
      %93 = sbr.rel (0) target = $region77
    $region76: #{forward.1} parent=1 // pred_region
      %94 = dma.done [#allocation11], 1536
    $region77: #{forward.1} parent=1 // pred_fallthru
      _
    // Predicated region
    $region78: #{forward.1} parent=1 // pred_check
      _
    $region79: #{forward.1} parent=1 // pred_check_branch
      %96 = sbr.rel (0) target = $region81
    $region80: #{forward.1} parent=1 // pred_region
      %97 = dma.done [#allocation11], 1024
    $region81: #{forward.1} parent=1 // pred_fallthru
      _
    %99 = vst [vmem:[#allocation2] sm:$0xff] 0.0
    %vm100 = vcmask 785408
    %101 = vst.msk [vmem:[#allocation2 + $0x8] sm:$0xff] %vm100, 0.0
    %102 = vst [vmem:[#allocation2 + $0x10] sm:$0xff] 0.0
    %103 = vst.msk [vmem:[#allocation2 + $0x18] sm:$0xff] %vm100, 0.0
    %104 = vst [vmem:[#allocation2 + $0x20] sm:$0xff] 0.0
    %105 = vst.msk [vmem:[#allocation2 + $0x28] sm:$0xff] %vm100, 0.0
    %106 = vst [vmem:[#allocation2 + $0x30] sm:$0xff] 0.0
    %107 = vst.msk [vmem:[#allocation2 + $0x38] sm:$0xff] %vm100, 0.0
    %108 = vst [vmem:[#allocation2 + $0x40] sm:$0xff] 0.0
    %109 = vst.msk [vmem:[#allocation2 + $0x48] sm:$0xff] %vm100, 0.0
    %110 = vst [vmem:[#allocation2 + $0x50] sm:$0xff] 0.0
    %111 = vst.msk [vmem:[#allocation2 + $0x58] sm:$0xff] %vm100, 0.0
    %112 = vst [vmem:[#allocation2 + $0x60] sm:$0xff] 0.0
    %113 = vst.msk [vmem:[#allocation2 + $0x68] sm:$0xff] %vm100, 0.0
    %114 = vst [vmem:[#allocation2 + $0x70] sm:$0xff] 0.0
    %115 = vst.msk [vmem:[#allocation2 + $0x78] sm:$0xff] %vm100, 0.0
    %116 = vst [vmem:[#allocation2 + $0x80] sm:$0xff] 0.0
    %117 = vst.msk [vmem:[#allocation2 + $0x88] sm:$0xff] %vm100, 0.0
    %118 = vst [vmem:[#allocation2 + $0x90] sm:$0xff] 0.0
    %119 = vst.msk [vmem:[#allocation2 + $0x98] sm:$0xff] %vm100, 0.0
    %120 = vst [vmem:[#allocation2 + $0xa0] sm:$0xf] 0.0
    %vm121 = vcmask 781312
    %122 = vst.msk [vmem:[#allocation2 + $0xa8] sm:$0xf] %vm121, 0.0
    %v123 = vld [vmem:[#allocation7] sm:$0xff]
    %v124 = vld [vmem:[#allocation7 + $0x8] sm:$0x33]
    %v125 = vld [vmem:[%s0] sm:$0xf]
    %v126 = vld [vmem:[%s0 + $0x4] sm:$0xf]
    %v127 = vld [vmem:[%s0 + $0x8] sm:$0xf]
    %v128 = vld [vmem:[%s0 + $0xc] sm:$0xf]
    %v129 = vld [vmem:[%s0 + $0x10] sm:$0xf]
    %v135 = vunpack.c.l.b16 %v125
    %v136 = vunpack.c.l.b16 %v126
    %v137 = vunpack.c.l.b16 %v127
    %v138 = vunpack.c.l.b16 %v128
    %v139 = vunpack.c.l.b16 %v129
    %v140 = vpack.c.b16 %v136, %v135
    %v141 = vpack.c.b16 %v138, %v137
    %v142 = vpack.c.b16 %v139, %v139
    %v145 = vunpack.c.l.b16 %v123
    %v146 = vunpack.c.h.b16 %v123
    %v147 = vunpack.c.l.b16 %v124
    %v148 = vunpack.c.h.b16 %v124
    %v149 = vpack.c.b16 %v147, %v145
    %v150 = vpack.c.b16 %v148, %v146
    %vm151 = vcmask 97280
    %v153 = vsel %vm151, %v140, 0
    %v156 = vsel %vm151, %v141, 0
    %v159 = vsel %vm151, %v142, 0
    %vm161 = vcmask 1045504
    %v163 = vsel %vm161, %v149, 0
    %v166 = vsel %vm161, %v150, 0
    %168 = vmatprep.subr.bf16.mxu0 %v166
    %169 = vmatpush1.bf16.msra.mxu0 %v163
    %170 = vmatprep.subr.bf16.mxu0 0
    %171 = vmatpush1.bf16.msra.mxu0 0
    %172 = vmatprep.subr.bf16.mxu0 0
    %173 = vmatpush1.bf16.msra.mxu0 0
    %174 = vmatprep.subr.bf16.mxu0 0
    %175 = vmatpush1.bf16.msra.mxu0 0
    %176 = vmatprep.subr.bf16.mxu0 0
    %177 = vmatpush1.bf16.msra.mxu0 0
    %178 = vmatprep.subr.bf16.mxu0 0
    %179 = vmatpush1.bf16.msra.mxu0 0
    %180 = vmatprep.subr.bf16.mxu0 0
    %181 = vmatpush1.bf16.msra.mxu0 0
    %182 = vmatprep.subr.bf16.mxu0 0
    %183 = vmatpush1.bf16.msra.mxu0 0
    %184 = vmatprep.subr.bf16.mxu0 0
    %185 = vmatpush1.bf16.msra.mxu0 0
    %186 = vmatprep.subr.bf16.mxu0 0
    %187 = vmatpush1.bf16.msra.mxu0 0
    %188 = vmatprep.subr.bf16.mxu0 0
    %189 = vmatpush1.bf16.msra.mxu0 0
    %190 = vmatprep.subr.bf16.mxu0 0
    %191 = vmatpush1.bf16.msra.mxu0 0
    %192 = vmatprep.subr.bf16.mxu0 0
    %193 = vmatpush1.bf16.msra.mxu0 0
    %194 = vmatprep.subr.bf16.mxu0 0
    %195 = vmatpush1.bf16.msra.mxu0 0
    %196 = vmatprep.subr.bf16.mxu0 0
    %197 = vmatpush1.bf16.msra.mxu0 0
    %198 = vmatprep.subr.bf16.mxu0 0
    %199 = vmatpush1.bf16.msra.mxu0 0
    %200 = vmatprep.mubr.bf16.mxu0 0
    %201 = vmatmul.mubr.bf16.gmra.mrb[0].mxu0 %v153
    %v202 = vpop.f32.mrb[0].mxu0
    %v203 = vadd.f32 0.0, %v202
    %v204 = vpop.f32.mrb[0].mxu0
    %v205 = vadd.f32 0.0, %v204
    %v206 = vpop.f32.mrb[0].mxu0
    %v207 = vadd.f32 0.0, %v206
    %v208 = vpop.f32.mrb[0].mxu0
    %v209 = vadd.f32 0.0, %v208
    %210 = vmatprep.mubr.bf16.mxu0 0
    %211 = vmatmul.mubr.bf16.gmra.mrb[0].mxu0 %v156
    %v212 = vpop.f32.mrb[0].mxu0
    %v213 = vadd.f32 0.0, %v212
    %v214 = vpop.f32.mrb[0].mxu0
    %v215 = vadd.f32 0.0, %v214
    %v216 = vpop.f32.mrb[0].mxu0
    %v217 = vadd.f32 0.0, %v216
    %v218 = vpop.f32.mrb[0].mxu0
    %v219 = vadd.f32 0.0, %v218
    %220 = vmatprep.mubr.bf16.mxu0 0
    %221 = vmatmul.mubr.bf16.gmra.mrb[0].mxu0 %v159
    %v222 = vpop.f32.mrb[0].mxu0
    %v223 = vadd.f32 0.0, %v222
    %v224 = vpop.f32.mrb[0].mxu0
    %v225 = vadd.f32 0.0, %v224
    %v226 = vpop.f32.mrb[0].mxu0
    %v227 = vpop.f32.mrb[0].mxu0
    %228 = vdwg.mxu0
    %v229 = vld [vmem:[#allocation2] sm:$0xfc]
    %v230 = vld [vmem:[#allocation2 + $0x8] sm:$0xfc]
    %v231 = vld [vmem:[#allocation2 + $0x10] sm:$0xff]
    %v232 = vld [vmem:[#allocation2 + $0x18] sm:$0xff]
    %v233 = vld [vmem:[#allocation2 + $0x20] sm:$0xff]
    %v234 = vld [vmem:[#allocation2 + $0x28] sm:$0xff]
    %v235 = vld [vmem:[#allocation2 + $0x30] sm:$0xff]
    %v236 = vld [vmem:[#allocation2 + $0x38] sm:$0xff]
    %v237 = vld [vmem:[#allocation2 + $0x40] sm:$0xff]
    %v238 = vld [vmem:[#allocation2 + $0x48] sm:$0xff]
    %v239 = vld [vmem:[#allocation2 + $0x50] sm:$0x3]
    %v240 = vld [vmem:[#allocation2 + $0x58] sm:$0x3]
    %vm251 = vcmask 1041408
    %v252 = vrot.slane %v203, 6
    %v253 = vrot.slane %v205, 6
    %v254 = vrot.slane %v207, 6
    %v255 = vsel %vm251, %v252, %v254
    %v256 = vrot.slane %v209, 6
    %v257 = vsel %vm251, %v253, %v256
    %v258 = vrot.slane %v213, 6
    %v259 = vsel %vm251, %v254, %v258
    %v260 = vrot.slane %v215, 6
    %v261 = vsel %vm251, %v256, %v260
    %v262 = vrot.slane %v217, 6
    %v263 = vsel %vm251, %v258, %v262
    %v264 = vrot.slane %v219, 6
    %v265 = vsel %vm251, %v260, %v264
    %v266 = vrot.slane %v223, 6
    %v267 = vsel %vm251, %v262, %v266
    %v268 = vrot.slane %v225, 6
    %v269 = vsel %vm251, %v264, %v268
    %v282 = vadd.f32 %v229, %v252
    %v283 = vadd.f32 %v230, %v253
    %v284 = vadd.f32 %v231, %v255
    %v285 = vadd.f32 %v232, %v257
    %v286 = vadd.f32 %v233, %v259
    %v287 = vadd.f32 %v234, %v261
    %v288 = vadd.f32 %v235, %v263
    %v289 = vadd.f32 %v236, %v265
    %v290 = vadd.f32 %v237, %v267
    %v291 = vadd.f32 %v238, %v269
    %v292 = vadd.f32 %v239, %v266
    %v293 = vadd.f32 %v240, %v268
    %294 = vst [vmem:[#allocation2] sm:$0xfc] %v282
    %vm295 = vcmask 785410
    %296 = vst.msk [vmem:[#allocation2 + $0x8] sm:$0xfc] %vm295, %v283
    %297 = vst [vmem:[#allocation2 + $0x10] sm:$0xff] %v284
    %298 = vst.msk [vmem:[#allocation2 + $0x18] sm:$0xff] %vm100, %v285
    %299 = vst [vmem:[#allocation2 + $0x20] sm:$0xff] %v286
    %300 = vst.msk [vmem:[#allocation2 + $0x28] sm:$0xff] %vm100, %v287
    %301 = vst [vmem:[#allocation2 + $0x30] sm:$0xff] %v288
    %302 = vst.msk [vmem:[#allocation2 + $0x38] sm:$0xff] %vm100, %v289
    %303 = vst [vmem:[#allocation2 + $0x40] sm:$0xff] %v290
    %304 = vst.msk [vmem:[#allocation2 + $0x48] sm:$0xff] %vm100, %v291
    %305 = vst [vmem:[#allocation2 + $0x50] sm:$0x3] %v292
    %vm306 = vcmask 779264
    %307 = vst.msk [vmem:[#allocation2 + $0x58] sm:$0x3] %vm306, %v293
    %s308 = scalar_lea.vmem %s0, 20
    %v309 = vld [vmem:[%s308] sm:$0xf]
    %v310 = vld [vmem:[%s308 + $0x4] sm:$0xf]
    %v311 = vld [vmem:[%s308 + $0x8] sm:$0xf]
    %v312 = vld [vmem:[%s308 + $0xc] sm:$0xf]
    %v313 = vld [vmem:[%s308 + $0x10] sm:$0xf]
    %v319 = vunpack.c.l.b16 %v309
    %v320 = vunpack.c.l.b16 %v310
    %v321 = vunpack.c.l.b16 %v311
    %v322 = vunpack.c.l.b16 %v312
    %v323 = vunpack.c.l.b16 %v313
    %v324 = vpack.c.b16 %v320, %v319
    %v325 = vpack.c.b16 %v322, %v321
    %v326 = vpack.c.b16 %v323, %v323
    %v328 = vsel %vm151, %v324, 0
    %v331 = vsel %vm151, %v325, 0
    %v334 = vsel %vm151, %v326, 0
    %336 = vmatprep.subr.bf16.mxu0 %v166
    %337 = vmatpush1.bf16.msra.mxu0 %v163
    %338 = vmatprep.subr.bf16.mxu0 0
    %339 = vmatpush1.bf16.msra.mxu0 0
    %340 = vmatprep.subr.bf16.mxu0 0
    %341 = vmatpush1.bf16.msra.mxu0 0
    %342 = vmatprep.subr.bf16.mxu0 0
    %343 = vmatpush1.bf16.msra.mxu0 0
    %344 = vmatprep.subr.bf16.mxu0 0
    %345 = vmatpush1.bf16.msra.mxu0 0
    %346 = vmatprep.subr.bf16.mxu0 0
    %347 = vmatpush1.bf16.msra.mxu0 0
    %348 = vmatprep.subr.bf16.mxu0 0
    %349 = vmatpush1.bf16.msra.mxu0 0
    %350 = vmatprep.subr.bf16.mxu0 0
    %351 = vmatpush1.bf16.msra.mxu0 0
    %352 = vmatprep.subr.bf16.mxu0 0
    %353 = vmatpush1.bf16.msra.mxu0 0
    %354 = vmatprep.subr.bf16.mxu0 0
    %355 = vmatpush1.bf16.msra.mxu0 0
    %356 = vmatprep.subr.bf16.mxu0 0
    %357 = vmatpush1.bf16.msra.mxu0 0
    %358 = vmatprep.subr.bf16.mxu0 0
    %359 = vmatpush1.bf16.msra.mxu0 0
    %360 = vmatprep.subr.bf16.mxu0 0
    %361 = vmatpush1.bf16.msra.mxu0 0
    %362 = vmatprep.subr.bf16.mxu0 0
    %363 = vmatpush1.bf16.msra.mxu0 0
    %364 = vmatprep.subr.bf16.mxu0 0
    %365 = vmatpush1.bf16.msra.mxu0 0
    %366 = vmatprep.subr.bf16.mxu0 0
    %367 = vmatpush1.bf16.msra.mxu0 0
    %368 = vmatprep.mubr.bf16.mxu0 0
    %369 = vmatmul.mubr.bf16.gmra.mrb[0].mxu0 %v328
    %v370 = vpop.f32.mrb[0].mxu0
    %v371 = vadd.f32 0.0, %v370
    %v372 = vpop.f32.mrb[0].mxu0
    %v373 = vadd.f32 0.0, %v372
    %v374 = vpop.f32.mrb[0].mxu0
    %v375 = vadd.f32 0.0, %v374
    %v376 = vpop.f32.mrb[0].mxu0
    %v377 = vadd.f32 0.0, %v376
    %378 = vmatprep.mubr.bf16.mxu0 0
    %379 = vmatmul.mubr.bf16.gmra.mrb[0].mxu0 %v331
    %v380 = vpop.f32.mrb[0].mxu0
    %v381 = vadd.f32 0.0, %v380
    %v382 = vpop.f32.mrb[0].mxu0
    %v383 = vadd.f32 0.0, %v382
    %v384 = vpop.f32.mrb[0].mxu0
    %v385 = vadd.f32 0.0, %v384
    %v386 = vpop.f32.mrb[0].mxu0
    %v387 = vadd.f32 0.0, %v386
    %388 = vmatprep.mubr.bf16.mxu0 0
    %389 = vmatmul.mubr.bf16.gmra.mrb[0].mxu0 %v334
    %v390 = vpop.f32.mrb[0].mxu0
    %v391 = vadd.f32 0.0, %v390
    %v392 = vpop.f32.mrb[0].mxu0
    %v393 = vadd.f32 0.0, %v392
    %v394 = vpop.f32.mrb[0].mxu0
    %v395 = vpop.f32.mrb[0].mxu0
    %396 = vdwg.mxu0
    %v397 = vld [vmem:[#allocation2 + $0x50] sm:$0xf0]
    %v398 = vld [vmem:[#allocation2 + $0x58] sm:$0xf0]
    %v399 = vld [vmem:[#allocation2 + $0x60] sm:$0xff]
    %v400 = vld [vmem:[#allocation2 + $0x68] sm:$0xff]
    %v401 = vld [vmem:[#allocation2 + $0x70] sm:$0xff]
    %v402 = vld [vmem:[#allocation2 + $0x78] sm:$0xff]
    %v403 = vld [vmem:[#allocation2 + $0x80] sm:$0xff]
    %v404 = vld [vmem:[#allocation2 + $0x88] sm:$0xff]
    %v405 = vld [vmem:[#allocation2 + $0x90] sm:$0xff]
    %v406 = vld [vmem:[#allocation2 + $0x98] sm:$0xff]
    %v407 = vld [vmem:[#allocation2 + $0xa0] sm:$0xf]
    %v408 = vld [vmem:[#allocation2 + $0xa8] sm:$0xf]
    %vm419 = vcmask 1043456
    %v420 = vrot.slane %v371, 4
    %v421 = vrot.slane %v373, 4
    %v422 = vrot.slane %v375, 4
    %v423 = vsel %vm419, %v420, %v422
    %v424 = vrot.slane %v377, 4
    %v425 = vsel %vm419, %v421, %v424
    %v426 = vrot.slane %v381, 4
    %v427 = vsel %vm419, %v422, %v426
    %v428 = vrot.slane %v383, 4
    %v429 = vsel %vm419, %v424, %v428
    %v430 = vrot.slane %v385, 4
    %v431 = vsel %vm419, %v426, %v430
    %v432 = vrot.slane %v387, 4
    %v433 = vsel %vm419, %v428, %v432
    %v434 = vrot.slane %v391, 4
    %v435 = vsel %vm419, %v430, %v434
    %v436 = vrot.slane %v393, 4
    %v437 = vsel %vm419, %v432, %v436
    %v450 = vadd.f32 %v397, %v420
    %v451 = vadd.f32 %v398, %v421
    %v452 = vadd.f32 %v399, %v423
    %v453 = vadd.f32 %v400, %v425
    %v454 = vadd.f32 %v401, %v427
    %v455 = vadd.f32 %v402, %v429
    %v456 = vadd.f32 %v403, %v431
    %v457 = vadd.f32 %v404, %v433
    %v458 = vadd.f32 %v405, %v435
    %v459 = vadd.f32 %v406, %v437
    %v460 = vadd.f32 %v407, %v434
    %v461 = vadd.f32 %v408, %v436
    %462 = vst [vmem:[#allocation2 + $0x50] sm:$0xf0] %v450
    %vm463 = vcmask 785412
    %464 = vst.msk [vmem:[#allocation2 + $0x58] sm:$0xf0] %vm463, %v451
    %465 = vst [vmem:[#allocation2 + $0x60] sm:$0xff] %v452
    %466 = vst.msk [vmem:[#allocation2 + $0x68] sm:$0xff] %vm100, %v453
    %467 = vst [vmem:[#allocation2 + $0x70] sm:$0xff] %v454
    %468 = vst.msk [vmem:[#allocation2 + $0x78] sm:$0xff] %vm100, %v455
    %469 = vst [vmem:[#allocation2 + $0x80] sm:$0xff] %v456
    %470 = vst.msk [vmem:[#allocation2 + $0x88] sm:$0xff] %vm100, %v457
    %471 = vst [vmem:[#allocation2 + $0x90] sm:$0xff] %v458
    %472 = vst.msk [vmem:[#allocation2 + $0x98] sm:$0xff] %vm100, %v459
    %473 = vst [vmem:[#allocation2 + $0xa0] sm:$0xf] %v460
    %474 = vst.msk [vmem:[#allocation2 + $0xa8] sm:$0xf] %vm121, %v461
    %s475 = scalar_lea.vmem [#allocation7], 16
    %v476 = vld [vmem:[%s475] sm:$0xff]
    %v477 = vld [vmem:[%s475 + $0x8] sm:$0x33]
    %v478 = vld [vmem:[%s0] sm:$0xf]
    %v479 = vld [vmem:[%s0 + $0x4] sm:$0xf]
    %v480 = vld [vmem:[%s0 + $0x8] sm:$0xf]
    %v481 = vld [vmem:[%s0 + $0xc] sm:$0xf]
    %v482 = vld [vmem:[%s0 + $0x10] sm:$0xf]
    %v488 = vunpack.c.l.b16 %v478
    %v489 = vunpack.c.l.b16 %v479
    %v490 = vunpack.c.l.b16 %v480
    %v491 = vunpack.c.l.b16 %v481
    %v492 = vunpack.c.l.b16 %v482
    %v493 = vpack.c.b16 %v489, %v488
    %v494 = vpack.c.b16 %v491, %v490
    %v495 = vpack.c.b16 %v492, %v492
    %v498 = vunpack.c.l.b16 %v476
    %v499 = vunpack.c.h.b16 %v476
    %v500 = vunpack.c.l.b16 %v477
    %v501 = vunpack.c.h.b16 %v477
    %v502 = vpack.c.b16 %v500, %v498
    %v503 = vpack.c.b16 %v501, %v499
    %v505 = vsel %vm151, %v493, 0
    %v508 = vsel %vm151, %v494, 0
    %v511 = vsel %vm151, %v495, 0
    %v514 = vsel %vm161, %v502, 0
    %v517 = vsel %vm161, %v503, 0
    %519 = vmatprep.subr.bf16.mxu0 %v517
    %520 = vmatpush1.bf16.msra.mxu0 %v514
    %521 = vmatprep.subr.bf16.mxu0 0
    %522 = vmatpush1.bf16.msra.mxu0 0
    %523 = vmatprep.subr.bf16.mxu0 0
    %524 = vmatpush1.bf16.msra.mxu0 0
    %525 = vmatprep.subr.bf16.mxu0 0
    %526 = vmatpush1.bf16.msra.mxu0 0
    %527 = vmatprep.subr.bf16.mxu0 0
    %528 = vmatpush1.bf16.msra.mxu0 0
    %529 = vmatprep.subr.bf16.mxu0 0
    %530 = vmatpush1.bf16.msra.mxu0 0
    %531 = vmatprep.subr.bf16.mxu0 0
    %532 = vmatpush1.bf16.msra.mxu0 0
    %533 = vmatprep.subr.bf16.mxu0 0
    %534 = vmatpush1.bf16.msra.mxu0 0
    %535 = vmatprep.subr.bf16.mxu0 0
    %536 = vmatpush1.bf16.msra.mxu0 0
    %537 = vmatprep.subr.bf16.mxu0 0
    %538 = vmatpush1.bf16.msra.mxu0 0
    %539 = vmatprep.subr.bf16.mxu0 0
    %540 = vmatpush1.bf16.msra.mxu0 0
    %541 = vmatprep.subr.bf16.mxu0 0
    %542 = vmatpush1.bf16.msra.mxu0 0
    %543 = vmatprep.subr.bf16.mxu0 0
    %544 = vmatpush1.bf16.msra.mxu0 0
    %545 = vmatprep.subr.bf16.mxu0 0
    %546 = vmatpush1.bf16.msra.mxu0 0
    %547 = vmatprep.subr.bf16.mxu0 0
    %548 = vmatpush1.bf16.msra.mxu0 0
    %549 = vmatprep.subr.bf16.mxu0 0
    %550 = vmatpush1.bf16.msra.mxu0 0
    %551 = vmatprep.mubr.bf16.mxu0 0
    %552 = vmatmul.mubr.bf16.gmra.mrb[0].mxu0 %v505
    %v553 = vpop.f32.mrb[0].mxu0
    %v554 = vadd.f32 0.0, %v553
    %v555 = vpop.f32.mrb[0].mxu0
    %v556 = vadd.f32 0.0, %v555
    %v557 = vpop.f32.mrb[0].mxu0
    %v558 = vadd.f32 0.0, %v557
    %v559 = vpop.f32.mrb[0].mxu0
    %v560 = vadd.f32 0.0, %v559
    %561 = vmatprep.mubr.bf16.mxu0 0
    %562 = vmatmul.mubr.bf16.gmra.mrb[0].mxu0 %v508
    %v563 = vpop.f32.mrb[0].mxu0
    %v564 = vadd.f32 0.0, %v563
    %v565 = vpop.f32.mrb[0].mxu0
    %v566 = vadd.f32 0.0, %v565
    %v567 = vpop.f32.mrb[0].mxu0
    %v568 = vadd.f32 0.0, %v567
    %v569 = vpop.f32.mrb[0].mxu0
    %v570 = vadd.f32 0.0, %v569
    %571 = vmatprep.mubr.bf16.mxu0 0
    %572 = vmatmul.mubr.bf16.gmra.mrb[0].mxu0 %v511
    %v573 = vpop.f32.mrb[0].mxu0
    %v574 = vadd.f32 0.0, %v573
    %v575 = vpop.f32.mrb[0].mxu0
    %v576 = vadd.f32 0.0, %v575
    %v577 = vpop.f32.mrb[0].mxu0
    %v578 = vpop.f32.mrb[0].mxu0
    %579 = vdwg.mxu0
    %v580 = vld [vmem:[#allocation2] sm:$0xfe]
    %v581 = vld [vmem:[#allocation2 + $0x8] sm:$0xfe]
    %v582 = vld [vmem:[#allocation2 + $0x10] sm:$0xff]
    %v583 = vld [vmem:[#allocation2 + $0x18] sm:$0xff]
    %v584 = vld [vmem:[#allocation2 + $0x20] sm:$0xff]
    %v585 = vld [vmem:[#allocation2 + $0x28] sm:$0xff]
    %v586 = vld [vmem:[#allocation2 + $0x30] sm:$0xff]
    %v587 = vld [vmem:[#allocation2 + $0x38] sm:$0xff]
    %v588 = vld [vmem:[#allocation2 + $0x40] sm:$0xff]
    %v589 = vld [vmem:[#allocation2 + $0x48] sm:$0xff]
    %v590 = vld [vmem:[#allocation2 + $0x50] sm:$0x1]
    %v591 = vld [vmem:[#allocation2 + $0x58] sm:$0x1]
    %vm602 = vcmask 1040384
    %v603 = vrot.slane %v554, 7
    %v604 = vrot.slane %v556, 7
    %v605 = vrot.slane %v558, 7
    %v606 = vsel %vm602, %v603, %v605
    %v607 = vrot.slane %v560, 7
    %v608 = vsel %vm602, %v604, %v607
    %v609 = vrot.slane %v564, 7
    %v610 = vsel %vm602, %v605, %v609
    %v611 = vrot.slane %v566, 7
    %v612 = vsel %vm602, %v607, %v611
    %v613 = vrot.slane %v568, 7
    %v614 = vsel %vm602, %v609, %v613
    %v615 = vrot.slane %v570, 7
    %v616 = vsel %vm602, %v611, %v615
    %v617 = vrot.slane %v574, 7
    %v618 = vsel %vm602, %v613, %v617
    %v619 = vrot.slane %v576, 7
    %v620 = vsel %vm602, %v615, %v619
    %v633 = vadd.f32 %v580, %v603
    %v634 = vadd.f32 %v581, %v604
    %v635 = vadd.f32 %v582, %v606
    %v636 = vadd.f32 %v583, %v608
    %v637 = vadd.f32 %v584, %v610
    %v638 = vadd.f32 %v585, %v612
    %v639 = vadd.f32 %v586, %v614
    %v640 = vadd.f32 %v587, %v616
    %v641 = vadd.f32 %v588, %v618
    %v642 = vadd.f32 %v589, %v620
    %v643 = vadd.f32 %v590, %v617
    %v644 = vadd.f32 %v591, %v619
    %645 = vst [vmem:[#allocation2] sm:$0xfe] %v633
    %vm646 = vcmask 785409
    %647 = vst.msk [vmem:[#allocation2 + $0x8] sm:$0xfe] %vm646, %v634
    %648 = vst [vmem:[#allocation2 + $0x10] sm:$0xff] %v635
    %649 = vst.msk [vmem:[#allocation2 + $0x18] sm:$0xff] %vm100, %v636
    %650 = vst [vmem:[#allocation2 + $0x20] sm:$0xff] %v637
    %651 = vst.msk [vmem:[#allocation2 + $0x28] sm:$0xff] %vm100, %v638
    %652 = vst [vmem:[#allocation2 + $0x30] sm:$0xff] %v639
    %653 = vst.msk [vmem:[#allocation2 + $0x38] sm:$0xff] %vm100, %v640
    %654 = vst [vmem:[#allocation2 + $0x40] sm:$0xff] %v641
    %655 = vst.msk [vmem:[#allocation2 + $0x48] sm:$0xff] %vm100, %v642
    %656 = vst [vmem:[#allocation2 + $0x50] sm:$0x1] %v643
    %vm657 = vcmask 778240
    %658 = vst.msk [vmem:[#allocation2 + $0x58] sm:$0x1] %vm657, %v644
    %v659 = vld [vmem:[%s308] sm:$0xf]
    %v660 = vld [vmem:[%s308 + $0x4] sm:$0xf]
    %v661 = vld [vmem:[%s308 + $0x8] sm:$0xf]
    %v662 = vld [vmem:[%s308 + $0xc] sm:$0xf]
    %v663 = vld [vmem:[%s308 + $0x10] sm:$0xf]
    %v669 = vunpack.c.l.b16 %v659
    %v670 = vunpack.c.l.b16 %v660
    %v671 = vunpack.c.l.b16 %v661
    %v672 = vunpack.c.l.b16 %v662
    %v673 = vunpack.c.l.b16 %v663
    %v674 = vpack.c.b16 %v670, %v669
    %v675 = vpack.c.b16 %v672, %v671
    %v676 = vpack.c.b16 %v673, %v673
    %v678 = vsel %vm151, %v674, 0
    %v681 = vsel %vm151, %v675, 0
    %v684 = vsel %vm151, %v676, 0
    %686 = vmatprep.subr.bf16.mxu0 %v517
    %687 = vmatpush1.bf16.msra.mxu0 %v514
    %688 = vmatprep.subr.bf16.mxu0 0
    %689 = vmatpush1.bf16.msra.mxu0 0
    %690 = vmatprep.subr.bf16.mxu0 0
    %691 = vmatpush1.bf16.msra.mxu0 0
    %692 = vmatprep.subr.bf16.mxu0 0
    %693 = vmatpush1.bf16.msra.mxu0 0
    %694 = vmatprep.subr.bf16.mxu0 0
    %695 = vmatpush1.bf16.msra.mxu0 0
    %696 = vmatprep.subr.bf16.mxu0 0
    %697 = vmatpush1.bf16.msra.mxu0 0
    %698 = vmatprep.subr.bf16.mxu0 0
    %699 = vmatpush1.bf16.msra.mxu0 0
    %700 = vmatprep.subr.bf16.mxu0 0
    %701 = vmatpush1.bf16.msra.mxu0 0
    %702 = vmatprep.subr.bf16.mxu0 0
    %703 = vmatpush1.bf16.msra.mxu0 0
    %704 = vmatprep.subr.bf16.mxu0 0
    %705 = vmatpush1.bf16.msra.mxu0 0
    %706 = vmatprep.subr.bf16.mxu0 0
    %707 = vmatpush1.bf16.msra.mxu0 0
    %708 = vmatprep.subr.bf16.mxu0 0
    %709 = vmatpush1.bf16.msra.mxu0 0
    %710 = vmatprep.subr.bf16.mxu0 0
    %711 = vmatpush1.bf16.msra.mxu0 0
    %712 = vmatprep.subr.bf16.mxu0 0
    %713 = vmatpush1.bf16.msra.mxu0 0
    %714 = vmatprep.subr.bf16.mxu0 0
    %715 = vmatpush1.bf16.msra.mxu0 0
    %716 = vmatprep.subr.bf16.mxu0 0
    %717 = vmatpush1.bf16.msra.mxu0 0
    %718 = vmatprep.mubr.bf16.mxu0 0
    %719 = vmatmul.mubr.bf16.gmra.mrb[0].mxu0 %v678
    %v720 = vpop.f32.mrb[0].mxu0
    %v721 = vadd.f32 0.0, %v720
    %v722 = vpop.f32.mrb[0].mxu0
    %v723 = vadd.f32 0.0, %v722
    %v724 = vpop.f32.mrb[0].mxu0
    %v725 = vadd.f32 0.0, %v724
    %v726 = vpop.f32.mrb[0].mxu0
    %v727 = vadd.f32 0.0, %v726
    %728 = vmatprep.mubr.bf16.mxu0 0
    %729 = vmatmul.mubr.bf16.gmra.mrb[0].mxu0 %v681
    %v730 = vpop.f32.mrb[0].mxu0
    %v731 = vadd.f32 0.0, %v730
    %v732 = vpop.f32.mrb[0].mxu0
    %v733 = vadd.f32 0.0, %v732
    %v734 = vpop.f32.mrb[0].mxu0
    %v735 = vadd.f32 0.0, %v734
    %v736 = vpop.f32.mrb[0].mxu0
    %v737 = vadd.f32 0.0, %v736
    %738 = vmatprep.mubr.bf16.mxu0 0
    %739 = vmatmul.mubr.bf16.gmra.mrb[0].mxu0 %v684
    %v740 = vpop.f32.mrb[0].mxu0
    %v741 = vadd.f32 0.0, %v740
    %v742 = vpop.f32.mrb[0].mxu0
    %v743 = vadd.f32 0.0, %v742
    %v744 = vpop.f32.mrb[0].mxu0
    %v745 = vpop.f32.mrb[0].mxu0
    %746 = vdwg.mxu0
    %v747 = vld [vmem:[#allocation2 + $0x50] sm:$0xf8]
    %v748 = vld [vmem:[#allocation2 + $0x58] sm:$0xf8]
    %v749 = vld [vmem:[#allocation2 + $0x60] sm:$0xff]
    %v750 = vld [vmem:[#allocation2 + $0x68] sm:$0xff]
    %v751 = vld [vmem:[#allocation2 + $0x70] sm:$0xff]
    %v752 = vld [vmem:[#allocation2 + $0x78] sm:$0xff]
    %v753 = vld [vmem:[#allocation2 + $0x80] sm:$0xff]
    %v754 = vld [vmem:[#allocation2 + $0x88] sm:$0xff]
    %v755 = vld [vmem:[#allocation2 + $0x90] sm:$0xff]
    %v756 = vld [vmem:[#allocation2 + $0x98] sm:$0xff]
    %v757 = vld [vmem:[#allocation2 + $0xa0] sm:$0x7]
    %v758 = vld [vmem:[#allocation2 + $0xa8] sm:$0x7]
    %vm769 = vcmask 1042432
    %v770 = vrot.slane %v721, 5
    %v771 = vrot.slane %v723, 5
    %v772 = vrot.slane %v725, 5
    %v773 = vsel %vm769, %v770, %v772
    %v774 = vrot.slane %v727, 5
    %v775 = vsel %vm769, %v771, %v774
    %v776 = vrot.slane %v731, 5
    %v777 = vsel %vm769, %v772, %v776
    %v778 = vrot.slane %v733, 5
    %v779 = vsel %vm769, %v774, %v778
    %v780 = vrot.slane %v735, 5
    %v781 = vsel %vm769, %v776, %v780
    %v782 = vrot.slane %v737, 5
    %v783 = vsel %vm769, %v778, %v782
    %v784 = vrot.slane %v741, 5
    %v785 = vsel %vm769, %v780, %v784
    %v786 = vrot.slane %v743, 5
    %v787 = vsel %vm769, %v782, %v786
    %v800 = vadd.f32 %v747, %v770
    %v801 = vadd.f32 %v748, %v771
    %v802 = vadd.f32 %v749, %v773
    %v803 = vadd.f32 %v750, %v775
    %v804 = vadd.f32 %v751, %v777
    %v805 = vadd.f32 %v752, %v779
    %v806 = vadd.f32 %v753, %v781
    %v807 = vadd.f32 %v754, %v783
    %v808 = vadd.f32 %v755, %v785
    %v809 = vadd.f32 %v756, %v787
    %v810 = vadd.f32 %v757, %v784
    %v811 = vadd.f32 %v758, %v786
    %812 = vst [vmem:[#allocation2 + $0x50] sm:$0xf8] %v800
    %vm813 = vcmask 785411
    %814 = vst.msk [vmem:[#allocation2 + $0x58] sm:$0xf8] %vm813, %v801
    %815 = vst [vmem:[#allocation2 + $0x60] sm:$0xff] %v802
    %816 = vst.msk [vmem:[#allocation2 + $0x68] sm:$0xff] %vm100, %v803
    %817 = vst [vmem:[#allocation2 + $0x70] sm:$0xff] %v804
    %818 = vst.msk [vmem:[#allocation2 + $0x78] sm:$0xff] %vm100, %v805
    %819 = vst [vmem:[#allocation2 + $0x80] sm:$0xff] %v806
    %820 = vst.msk [vmem:[#allocation2 + $0x88] sm:$0xff] %vm100, %v807
    %821 = vst [vmem:[#allocation2 + $0x90] sm:$0xff] %v808
    %822 = vst.msk [vmem:[#allocation2 + $0x98] sm:$0xff] %vm100, %v809
    %823 = vst [vmem:[#allocation2 + $0xa0] sm:$0x7] %v810
    %vm824 = vcmask 780288
    %825 = vst.msk [vmem:[#allocation2 + $0xa8] sm:$0x7] %vm824, %v811
    %s826 = scalar_lea.vmem [#allocation7], 32
    %v827 = vld [vmem:[%s826] sm:$0xff]
    %v828 = vld [vmem:[%s826 + $0x8] sm:$0x33]
    %v829 = vld [vmem:[%s0] sm:$0xf]
    %v830 = vld [vmem:[%s0 + $0x4] sm:$0xf]
    %v831 = vld [vmem:[%s0 + $0x8] sm:$0xf]
    %v832 = vld [vmem:[%s0 + $0xc] sm:$0xf]
    %v833 = vld [vmem:[%s0 + $0x10] sm:$0xf]
    %v839 = vunpack.c.l.b16 %v829
    %v840 = vunpack.c.l.b16 %v830
    %v841 = vunpack.c.l.b16 %v831
    %v842 = vunpack.c.l.b16 %v832
    %v843 = vunpack.c.l.b16 %v833
    %v844 = vpack.c.b16 %v840, %v839
    %v845 = vpack.c.b16 %v842, %v841
    %v846 = vpack.c.b16 %v843, %v843
    %v849 = vunpack.c.l.b16 %v827
    %v850 = vunpack.c.h.b16 %v827
    %v851 = vunpack.c.l.b16 %v828
    %v852 = vunpack.c.h.b16 %v828
    %v853 = vpack.c.b16 %v851, %v849
    %v854 = vpack.c.b16 %v852, %v850
    %v856 = vsel %vm151, %v844, 0
    %v859 = vsel %vm151, %v845, 0
    %v862 = vsel %vm151, %v846, 0
    %v865 = vsel %vm161, %v853, 0
    %v868 = vsel %vm161, %v854, 0
    %870 = vmatprep.subr.bf16.mxu0 %v868
    %871 = vmatpush1.bf16.msra.mxu0 %v865
    %872 = vmatprep.subr.bf16.mxu0 0
    %873 = vmatpush1.bf16.msra.mxu0 0
    %874 = vmatprep.subr.bf16.mxu0 0
    %875 = vmatpush1.bf16.msra.mxu0 0
    %876 = vmatprep.subr.bf16.mxu0 0
    %877 = vmatpush1.bf16.msra.mxu0 0
    %878 = vmatprep.subr.bf16.mxu0 0
    %879 = vmatpush1.bf16.msra.mxu0 0
    %880 = vmatprep.subr.bf16.mxu0 0
    %881 = vmatpush1.bf16.msra.mxu0 0
    %882 = vmatprep.subr.bf16.mxu0 0
    %883 = vmatpush1.bf16.msra.mxu0 0
    %884 = vmatprep.subr.bf16.mxu0 0
    %885 = vmatpush1.bf16.msra.mxu0 0
    %886 = vmatprep.subr.bf16.mxu0 0
    %887 = vmatpush1.bf16.msra.mxu0 0
    %888 = vmatprep.subr.bf16.mxu0 0
    %889 = vmatpush1.bf16.msra.mxu0 0
    %890 = vmatprep.subr.bf16.mxu0 0
    %891 = vmatpush1.bf16.msra.mxu0 0
    %892 = vmatprep.subr.bf16.mxu0 0
    %893 = vmatpush1.bf16.msra.mxu0 0
    %894 = vmatprep.subr.bf16.mxu0 0
    %895 = vmatpush1.bf16.msra.mxu0 0
    %896 = vmatprep.subr.bf16.mxu0 0
    %897 = vmatpush1.bf16.msra.mxu0 0
    %898 = vmatprep.subr.bf16.mxu0 0
    %899 = vmatpush1.bf16.msra.mxu0 0
    %900 = vmatprep.subr.bf16.mxu0 0
    %901 = vmatpush1.bf16.msra.mxu0 0
    %902 = vmatprep.mubr.bf16.mxu0 0
    %903 = vmatmul.mubr.bf16.gmra.mrb[0].mxu0 %v856
    %v904 = vpop.f32.mrb[0].mxu0
    %v905 = vadd.f32 0.0, %v904
    %v906 = vpop.f32.mrb[0].mxu0
    %v907 = vadd.f32 0.0, %v906
    %v908 = vpop.f32.mrb[0].mxu0
    %v909 = vadd.f32 0.0, %v908
    %v910 = vpop.f32.mrb[0].mxu0
    %v911 = vadd.f32 0.0, %v910
    %912 = vmatprep.mubr.bf16.mxu0 0
    %913 = vmatmul.mubr.bf16.gmra.mrb[0].mxu0 %v859
    %v914 = vpop.f32.mrb[0].mxu0
    %v915 = vadd.f32 0.0, %v914
    %v916 = vpop.f32.mrb[0].mxu0
    %v917 = vadd.f32 0.0, %v916
    %v918 = vpop.f32.mrb[0].mxu0
    %v919 = vadd.f32 0.0, %v918
    %v920 = vpop.f32.mrb[0].mxu0
    %v921 = vadd.f32 0.0, %v920
    %922 = vmatprep.mubr.bf16.mxu0 0
    %923 = vmatmul.mubr.bf16.gmra.mrb[0].mxu0 %v862
    %v924 = vpop.f32.mrb[0].mxu0
    %v925 = vadd.f32 0.0, %v924
    %v926 = vpop.f32.mrb[0].mxu0
    %v927 = vadd.f32 0.0, %v926
    %v928 = vpop.f32.mrb[0].mxu0
    %v929 = vpop.f32.mrb[0].mxu0
    %930 = vdwg.mxu0
    %v931 = vld [vmem:[#allocation2] sm:$0xff]
    %v932 = vld [vmem:[#allocation2 + $0x8] sm:$0xff]
    %v933 = vld [vmem:[#allocation2 + $0x10] sm:$0xff]
    %v934 = vld [vmem:[#allocation2 + $0x18] sm:$0xff]
    %v935 = vld [vmem:[#allocation2 + $0x20] sm:$0xff]
    %v936 = vld [vmem:[#allocation2 + $0x28] sm:$0xff]
    %v937 = vld [vmem:[#allocation2 + $0x30] sm:$0xff]
    %v938 = vld [vmem:[#allocation2 + $0x38] sm:$0xff]
    %v939 = vld [vmem:[#allocation2 + $0x40] sm:$0xff]
    %v940 = vld [vmem:[#allocation2 + $0x48] sm:$0xff]
    %v941 = vadd.f32 %v931, %v905
    %v942 = vadd.f32 %v932, %v907
    %v943 = vadd.f32 %v933, %v909
    %v944 = vadd.f32 %v934, %v911
    %v945 = vadd.f32 %v935, %v915
    %v946 = vadd.f32 %v936, %v917
    %v947 = vadd.f32 %v937, %v919
    %v948 = vadd.f32 %v938, %v921
    %v949 = vadd.f32 %v939, %v925
    %v950 = vadd.f32 %v940, %v927
    %951 = vst [vmem:[#allocation2] sm:$0xff] %v941
    %952 = vst.msk [vmem:[#allocation2 + $0x8] sm:$0xff] %vm100, %v942
    %953 = vst [vmem:[#allocation2 + $0x10] sm:$0xff] %v943
    %954 = vst.msk [vmem:[#allocation2 + $0x18] sm:$0xff] %vm100, %v944
    %955 = vst [vmem:[#allocation2 + $0x20] sm:$0xff] %v945
    %956 = vst.msk [vmem:[#allocation2 + $0x28] sm:$0xff] %vm100, %v946
    %957 = vst [vmem:[#allocation2 + $0x30] sm:$0xff] %v947
    %958 = vst.msk [vmem:[#allocation2 + $0x38] sm:$0xff] %vm100, %v948
    %959 = vst [vmem:[#allocation2 + $0x40] sm:$0xff] %v949
    %960 = vst.msk [vmem:[#allocation2 + $0x48] sm:$0xff] %vm100, %v950
    %v961 = vld [vmem:[%s308] sm:$0xf]
    %v962 = vld [vmem:[%s308 + $0x4] sm:$0xf]
    %v963 = vld [vmem:[%s308 + $0x8] sm:$0xf]
    %v964 = vld [vmem:[%s308 + $0xc] sm:$0xf]
    %v965 = vld [vmem:[%s308 + $0x10] sm:$0xf]
    %v971 = vunpack.c.l.b16 %v961
    %v972 = vunpack.c.l.b16 %v962
    %v973 = vunpack.c.l.b16 %v963
    %v974 = vunpack.c.l.b16 %v964
    %v975 = vunpack.c.l.b16 %v965
    %v976 = vpack.c.b16 %v972, %v971
    %v977 = vpack.c.b16 %v974, %v973
    %v978 = vpack.c.b16 %v975, %v975
    %v980 = vsel %vm151, %v976, 0
    %v983 = vsel %vm151, %v977, 0
    %v986 = vsel %vm151, %v978, 0
    %988 = vmatprep.subr.bf16.mxu0 %v868
    %989 = vmatpush1.bf16.msra.mxu0 %v865
    %990 = vmatprep.subr.bf16.mxu0 0
    %991 = vmatpush1.bf16.msra.mxu0 0
    %992 = vmatprep.subr.bf16.mxu0 0
    %993 = vmatpush1.bf16.msra.mxu0 0
    %994 = vmatprep.subr.bf16.mxu0 0
    %995 = vmatpush1.bf16.msra.mxu0 0
    %996 = vmatprep.subr.bf16.mxu0 0
    %997 = vmatpush1.bf16.msra.mxu0 0
    %998 = vmatprep.subr.bf16.mxu0 0
    %999 = vmatpush1.bf16.msra.mxu0 0
    %1000 = vmatprep.subr.bf16.mxu0 0
    %1001 = vmatpush1.bf16.msra.mxu0 0
    %1002 = vmatprep.subr.bf16.mxu0 0
    %1003 = vmatpush1.bf16.msra.mxu0 0
    %1004 = vmatprep.subr.bf16.mxu0 0
    %1005 = vmatpush1.bf16.msra.mxu0 0
    %1006 = vmatprep.subr.bf16.mxu0 0
    %1007 = vmatpush1.bf16.msra.mxu0 0
    %1008 = vmatprep.subr.bf16.mxu0 0
    %1009 = vmatpush1.bf16.msra.mxu0 0
    %1010 = vmatprep.subr.bf16.mxu0 0
    %1011 = vmatpush1.bf16.msra.mxu0 0
    %1012 = vmatprep.subr.bf16.mxu0 0
    %1013 = vmatpush1.bf16.msra.mxu0 0
    %1014 = vmatprep.subr.bf16.mxu0 0
    %1015 = vmatpush1.bf16.msra.mxu0 0
    %1016 = vmatprep.subr.bf16.mxu0 0
    %1017 = vmatpush1.bf16.msra.mxu0 0
    %1018 = vmatprep.subr.bf16.mxu0 0
    %1019 = vmatpush1.bf16.msra.mxu0 0
    %1020 = vmatprep.mubr.bf16.mxu0 0
    %1021 = vmatmul.mubr.bf16.gmra.mrb[0].mxu0 %v980
    %v1022 = vpop.f32.mrb[0].mxu0
    %v1023 = vadd.f32 0.0, %v1022
    %v1024 = vpop.f32.mrb[0].mxu0
    %v1025 = vadd.f32 0.0, %v1024
    %v1026 = vpop.f32.mrb[0].mxu0
    %v1027 = vadd.f32 0.0, %v1026
    %v1028 = vpop.f32.mrb[0].mxu0
    %v1029 = vadd.f32 0.0, %v1028
    %1030 = vmatprep.mubr.bf16.mxu0 0
    %1031 = vmatmul.mubr.bf16.gmra.mrb[0].mxu0 %v983
    %v1032 = vpop.f32.mrb[0].mxu0
    %v1033 = vadd.f32 0.0, %v1032
    %v1034 = vpop.f32.mrb[0].mxu0
    %v1035 = vadd.f32 0.0, %v1034
    %v1036 = vpop.f32.mrb[0].mxu0
    %v1037 = vadd.f32 0.0, %v1036
    %v1038 = vpop.f32.mrb[0].mxu0
    %v1039 = vadd.f32 0.0, %v1038
    %1040 = vmatprep.mubr.bf16.mxu0 0
    %1041 = vmatmul.mubr.bf16.gmra.mrb[0].mxu0 %v986
    %v1042 = vpop.f32.mrb[0].mxu0
    %v1043 = vadd.f32 0.0, %v1042
    %v1044 = vpop.f32.mrb[0].mxu0
    %v1045 = vadd.f32 0.0, %v1044
    %v1046 = vpop.f32.mrb[0].mxu0
    %v1047 = vpop.f32.mrb[0].mxu0
    %1048 = vdwg.mxu0
    %v1049 = vld [vmem:[#allocation2 + $0x50] sm:$0xfc]
    %v1050 = vld [vmem:[#allocation2 + $0x58] sm:$0xfc]
    %v1051 = vld [vmem:[#allocation2 + $0x60] sm:$0xff]
    %v1052 = vld [vmem:[#allocation2 + $0x68] sm:$0xff]
    %v1053 = vld [vmem:[#allocation2 + $0x70] sm:$0xff]
    %v1054 = vld [vmem:[#allocation2 + $0x78] sm:$0xff]
    %v1055 = vld [vmem:[#allocation2 + $0x80] sm:$0xff]
    %v1056 = vld [vmem:[#allocation2 + $0x88] sm:$0xff]
    %v1057 = vld [vmem:[#allocation2 + $0x90] sm:$0xff]
    %v1058 = vld [vmem:[#allocation2 + $0x98] sm:$0xff]
    %v1059 = vld [vmem:[#allocation2 + $0xa0] sm:$0x3]
    %v1060 = vld [vmem:[#allocation2 + $0xa8] sm:$0x3]
    %v1071 = vrot.slane %v1023, 6
    %v1072 = vrot.slane %v1025, 6
    %v1073 = vrot.slane %v1027, 6
    %v1074 = vsel %vm251, %v1071, %v1073
    %v1075 = vrot.slane %v1029, 6
    %v1076 = vsel %vm251, %v1072, %v1075
    %v1077 = vrot.slane %v1033, 6
    %v1078 = vsel %vm251, %v1073, %v1077
    %v1079 = vrot.slane %v1035, 6
    %v1080 = vsel %vm251, %v1075, %v1079
    %v1081 = vrot.slane %v1037, 6
    %v1082 = vsel %vm251, %v1077, %v1081
    %v1083 = vrot.slane %v1039, 6
    %v1084 = vsel %vm251, %v1079, %v1083
    %v1085 = vrot.slane %v1043, 6
    %v1086 = vsel %vm251, %v1081, %v1085
    %v1087 = vrot.slane %v1045, 6
    %v1088 = vsel %vm251, %v1083, %v1087
    %v1101 = vadd.f32 %v1049, %v1071
    %v1102 = vadd.f32 %v1050, %v1072
    %v1103 = vadd.f32 %v1051, %v1074
    %v1104 = vadd.f32 %v1052, %v1076
    %v1105 = vadd.f32 %v1053, %v1078
    %v1106 = vadd.f32 %v1054, %v1080
    %v1107 = vadd.f32 %v1055, %v1082
    %v1108 = vadd.f32 %v1056, %v1084
    %v1109 = vadd.f32 %v1057, %v1086
    %v1110 = vadd.f32 %v1058, %v1088
    %v1111 = vadd.f32 %v1059, %v1085
    %v1112 = vadd.f32 %v1060, %v1087
    %1113 = vst [vmem:[#allocation2 + $0x50] sm:$0xfc] %v1101
    %1114 = vst.msk [vmem:[#allocation2 + $0x58] sm:$0xfc] %vm295, %v1102
    %1115 = vst [vmem:[#allocation2 + $0x60] sm:$0xff] %v1103
    %1116 = vst.msk [vmem:[#allocation2 + $0x68] sm:$0xff] %vm100, %v1104
    %1117 = vst [vmem:[#allocation2 + $0x70] sm:$0xff] %v1105
    %1118 = vst.msk [vmem:[#allocation2 + $0x78] sm:$0xff] %vm100, %v1106
    %1119 = vst [vmem:[#allocation2 + $0x80] sm:$0xff] %v1107
    %1120 = vst.msk [vmem:[#allocation2 + $0x88] sm:$0xff] %vm100, %v1108
    %1121 = vst [vmem:[#allocation2 + $0x90] sm:$0xff] %v1109
    %1122 = vst.msk [vmem:[#allocation2 + $0x98] sm:$0xff] %vm100, %v1110
    %1123 = vst [vmem:[#allocation2 + $0xa0] sm:$0x3] %v1111
    %1124 = vst.msk [vmem:[#allocation2 + $0xa8] sm:$0x3] %vm306, %v1112
    %v1125 = vld [vmem:[#allocation2] sm:$0xff]
    %v1126 = vld [vmem:[#allocation2 + $0x8] sm:$0xff]
    %v1127 = vld [vmem:[#allocation2 + $0x10] sm:$0xff]
    %v1128 = vld [vmem:[#allocation2 + $0x18] sm:$0xff]
    %v1129 = vld [vmem:[#allocation2 + $0x20] sm:$0xff]
    %v1130 = vld [vmem:[#allocation2 + $0x28] sm:$0xff]
    %v1131 = vld [vmem:[#allocation2 + $0x30] sm:$0xff]
    %v1132 = vld [vmem:[#allocation2 + $0x38] sm:$0xff]
    %v1133 = vld [vmem:[#allocation2 + $0x40] sm:$0xff]
    %v1134 = vld [vmem:[#allocation2 + $0x48] sm:$0xff]
    %v1135 = vld [vmem:[#allocation2 + $0x50] sm:$0xff]
    %v1136 = vld [vmem:[#allocation2 + $0x58] sm:$0xff]
    %v1137 = vld [vmem:[#allocation2 + $0x60] sm:$0xff]
    %v1138 = vld [vmem:[#allocation2 + $0x68] sm:$0xff]
    %v1139 = vld [vmem:[#allocation2 + $0x70] sm:$0xff]
    %v1140 = vld [vmem:[#allocation2 + $0x78] sm:$0xff]
    %v1141 = vld [vmem:[#allocation2 + $0x80] sm:$0xff]
    %v1142 = vld [vmem:[#allocation2 + $0x88] sm:$0xff]
    %v1143 = vld [vmem:[#allocation2 + $0x90] sm:$0xff]
    %v1144 = vld [vmem:[#allocation2 + $0x98] sm:$0xff]
    %v1145 = vld [vmem:[#allocation2 + $0xa0] sm:$0xf]
    %v1146 = vld [vmem:[#allocation2 + $0xa8] sm:$0xf]
    %v1147 = vld [vmem:[%s2] sm:$0x3]
    %v1149 = vlaneseq
    %v1150 = vshrl.u32 %v1149, 7
    %v1151 = vsub.s32 0, %v1150
    %v1152 = vrot.slane %v1147, %v1151
    %v1153 = vlaneseq
    %v1154 = vshrl.u32 %v1153, 7
    %v1155 = vsub.s32 1, %v1154
    %v1156 = vrot.slane %v1147, %v1155
    %v1159 = vadd.f32 %v1125, %v1152
    %v1160 = vadd.f32 %v1126, %v1156
    %v1161 = vadd.f32 %v1127, %v1152
    %v1162 = vadd.f32 %v1128, %v1156
    %v1163 = vadd.f32 %v1129, %v1152
    %v1164 = vadd.f32 %v1130, %v1156
    %v1165 = vadd.f32 %v1131, %v1152
    %v1166 = vadd.f32 %v1132, %v1156
    %v1167 = vadd.f32 %v1133, %v1152
    %v1168 = vadd.f32 %v1134, %v1156
    %v1169 = vadd.f32 %v1135, %v1152
    %v1170 = vadd.f32 %v1136, %v1156
    %v1171 = vadd.f32 %v1137, %v1152
    %v1172 = vadd.f32 %v1138, %v1156
    %v1173 = vadd.f32 %v1139, %v1152
    %v1174 = vadd.f32 %v1140, %v1156
    %v1175 = vadd.f32 %v1141, %v1152
    %v1176 = vadd.f32 %v1142, %v1156
    %v1177 = vadd.f32 %v1143, %v1152
    %v1178 = vadd.f32 %v1144, %v1156
    %v1179 = vadd.f32 %v1145, %v1152
    %v1180 = vadd.f32 %v1146, %v1156
    %v1181 = vmax.f32 %v1159, 0.0
    %v1182 = vmax.f32 %v1160, 0.0
    %v1183 = vmax.f32 %v1161, 0.0
    %v1184 = vmax.f32 %v1162, 0.0
    %v1185 = vmax.f32 %v1163, 0.0
    %v1186 = vmax.f32 %v1164, 0.0
    %v1187 = vmax.f32 %v1165, 0.0
    %v1188 = vmax.f32 %v1166, 0.0
    %v1189 = vmax.f32 %v1167, 0.0
    %v1190 = vmax.f32 %v1168, 0.0
    %v1191 = vmax.f32 %v1169, 0.0
    %v1192 = vmax.f32 %v1170, 0.0
    %v1193 = vmax.f32 %v1171, 0.0
    %v1194 = vmax.f32 %v1172, 0.0
    %v1195 = vmax.f32 %v1173, 0.0
    %v1196 = vmax.f32 %v1174, 0.0
    %v1197 = vmax.f32 %v1175, 0.0
    %v1198 = vmax.f32 %v1176, 0.0
    %v1199 = vmax.f32 %v1177, 0.0
    %v1200 = vmax.f32 %v1178, 0.0
    %v1201 = vmax.f32 %v1179, 0.0
    %v1202 = vmax.f32 %v1180, 0.0
    %v1203 = vld [vmem:[%s3] sm:$0xff]
    %v1204 = vld [vmem:[%s3 + $0x8] sm:$0xff]
    %v1205 = vld [vmem:[%s3 + $0x10] sm:$0xff]
    %v1206 = vld [vmem:[%s3 + $0x18] sm:$0xff]
    %v1207 = vld [vmem:[%s3 + $0x20] sm:$0xff]
    %v1208 = vld [vmem:[%s3 + $0x28] sm:$0xff]
    %v1209 = vld [vmem:[%s3 + $0x30] sm:$0xff]
    %v1210 = vld [vmem:[%s3 + $0x38] sm:$0xff]
    %v1211 = vld [vmem:[%s3 + $0x40] sm:$0xff]
    %v1212 = vld [vmem:[%s3 + $0x48] sm:$0xff]
    %v1213 = vld [vmem:[%s3 + $0x50] sm:$0xff]
    %v1214 = vld [vmem:[%s3 + $0x58] sm:$0xff]
    %v1215 = vld [vmem:[%s3 + $0x60] sm:$0xff]
    %v1216 = vld [vmem:[%s3 + $0x68] sm:$0xff]
    %v1217 = vld [vmem:[%s3 + $0x70] sm:$0xff]
    %v1218 = vld [vmem:[%s3 + $0x78] sm:$0xff]
    %v1219 = vld [vmem:[%s3 + $0x80] sm:$0xff]
    %v1220 = vld [vmem:[%s3 + $0x88] sm:$0xff]
    %v1221 = vld [vmem:[%s3 + $0x90] sm:$0xff]
    %v1222 = vld [vmem:[%s3 + $0x98] sm:$0xff]
    %v1223 = vld [vmem:[%s3 + $0xa0] sm:$0xff]
    %v1224 = vld [vmem:[%s3 + $0xa8] sm:$0xff]
    %v1225 = vld [vmem:[%s3 + $0xb0] sm:$0xff]
    %v1226 = vld [vmem:[%s3 + $0xb8] sm:$0xff]
    %v1227 = vld [vmem:[%s3 + $0xc0] sm:$0xff]
    %v1228 = vld [vmem:[%s3 + $0xc8] sm:$0xff]
    %v1229 = vld [vmem:[%s3 + $0xd0] sm:$0xff]
    %v1230 = vld [vmem:[%s3 + $0xd8] sm:$0xff]
    %v1232 = vsel %vm100, %v1182, 0
    %v1235 = vsel %vm100, %v1184, 0
    %v1238 = vsel %vm100, %v1186, 0
    %v1241 = vsel %vm100, %v1188, 0
    %v1244 = vsel %vm100, %v1190, 0
    %v1247 = vsel %vm100, %v1192, 0
    %v1250 = vsel %vm100, %v1194, 0
    %v1253 = vsel %vm100, %v1196, 0
    %v1256 = vsel %vm100, %v1198, 0
    %v1259 = vsel %vm100, %v1200, 0
    %v1262 = vsel %vm100, %v1202, 0
    %1264 = vmatprep.subr.mxu0 0.0
    %1265 = vmatpush1.msra.mxu0 %v1203
    %1266 = vmatprep.subr.mxu0 0.0
    %1267 = vmatpush1.msra.mxu0 %v1204
    %1268 = vmatprep.subr.mxu0 0.0
    %1269 = vmatpush1.msra.mxu0 %v1205
    %1270 = vmatprep.subr.mxu0 0.0
    %1271 = vmatpush1.msra.mxu0 %v1206
    %1272 = vmatprep.subr.mxu0 0.0
    %1273 = vmatpush1.msra.mxu0 %v1207
    %1274 = vmatprep.subr.mxu0 0.0
    %1275 = vmatpush1.msra.mxu0 %v1208
    %1276 = vmatprep.subr.mxu0 0.0
    %1277 = vmatpush1.msra.mxu0 %v1209
    %1278 = vmatprep.subr.mxu0 0.0
    %1279 = vmatpush1.msra.mxu0 %v1210
    %1280 = vmatprep.subr.mxu0 0.0
    %1281 = vmatpush1.msra.mxu0 %v1211
    %1282 = vmatprep.subr.mxu0 0.0
    %1283 = vmatpush1.msra.mxu0 %v1212
    %1284 = vmatprep.subr.mxu0 0.0
    %1285 = vmatpush1.msra.mxu0 %v1213
    %1286 = vmatprep.subr.mxu0 0.0
    %1287 = vmatpush1.msra.mxu0 %v1214
    %1288 = vmatprep.subr.mxu0 0.0
    %1289 = vmatpush1.msra.mxu0 %v1215
    %1290 = vmatprep.subr.mxu0 0.0
    %1291 = vmatpush1.msra.mxu0 %v1216
    %1292 = vmatprep.subr.mxu0 0.0
    %1293 = vmatpush1.msra.mxu0 %v1217
    %1294 = vmatprep.subr.mxu0 0.0
    %1295 = vmatpush1.msra.mxu0 %v1218
    %1296 = vmatprep.subr.mxu0 0.0
    %1297 = vmatpush1.msra.mxu0 %v1219
    %1298 = vmatprep.subr.mxu0 0.0
    %1299 = vmatpush1.msra.mxu0 %v1220
    %1300 = vmatprep.subr.mxu0 0.0
    %1301 = vmatpush1.msra.mxu0 %v1221
    %1302 = vmatprep.subr.mxu0 0.0
    %1303 = vmatpush1.msra.mxu0 %v1222
    %1304 = vmatprep.subr.mxu0 0.0
    %1305 = vmatpush1.msra.mxu0 %v1223
    %1306 = vmatprep.subr.mxu0 0.0
    %1307 = vmatpush1.msra.mxu0 %v1224
    %1308 = vmatprep.subr.mxu0 0.0
    %1309 = vmatpush1.msra.mxu0 %v1225
    %1310 = vmatprep.subr.mxu0 0.0
    %1311 = vmatpush1.msra.mxu0 %v1226
    %1312 = vmatprep.subr.mxu0 0.0
    %1313 = vmatpush1.msra.mxu0 %v1227
    %1314 = vmatprep.subr.mxu0 0.0
    %1315 = vmatpush1.msra.mxu0 %v1228
    %1316 = vmatprep.subr.mxu0 0.0
    %1317 = vmatpush1.msra.mxu0 %v1229
    %1318 = vmatprep.subr.mxu0 0.0
    %1319 = vmatpush1.msra.mxu0 %v1230
    %1320 = vmatprep.subr.mxu0 0.0
    %1321 = vmatpush1.msra.mxu0 0.0
    %1322 = vmatprep.subr.mxu0 0.0
    %1323 = vmatpush1.msra.mxu0 0.0
    %1324 = vmatprep.subr.mxu0 0.0
    %1325 = vmatpush1.msra.mxu0 0.0
    %1326 = vmatprep.subr.mxu0 0.0
    %1327 = vmatpush1.msra.mxu0 0.0
    %1328 = vmatprep.mubr.f32.mxu0 %v1232
    %1329 = vmatmul.mubr.f32.gmra.mrb[0].mxu0 %v1181
    %v1330 = vpop.f32.mrb[0].mxu0
    %v1331 = vadd.f32 0.0, %v1330
    %v1332 = vpop.f32.mrb[0].mxu0
    %1333 = vmatprep.mubr.f32.mxu0 %v1235
    %1334 = vmatmul.mubr.f32.gmra.mrb[0].mxu0 %v1183
    %v1335 = vpop.f32.mrb[0].mxu0
    %v1336 = vadd.f32 0.0, %v1335
    %v1337 = vpop.f32.mrb[0].mxu0
    %1338 = vmatprep.mubr.f32.mxu0 %v1238
    %1339 = vmatmul.mubr.f32.gmra.mrb[0].mxu0 %v1185
    %v1340 = vpop.f32.mrb[0].mxu0
    %v1341 = vadd.f32 0.0, %v1340
    %v1342 = vpop.f32.mrb[0].mxu0
    %1343 = vmatprep.mubr.f32.mxu0 %v1241
    %1344 = vmatmul.mubr.f32.gmra.mrb[0].mxu0 %v1187
    %v1345 = vpop.f32.mrb[0].mxu0
    %v1346 = vadd.f32 0.0, %v1345
    %v1347 = vpop.f32.mrb[0].mxu0
    %1348 = vmatprep.mubr.f32.mxu0 %v1244
    %1349 = vmatmul.mubr.f32.gmra.mrb[0].mxu0 %v1189
    %v1350 = vpop.f32.mrb[0].mxu0
    %v1351 = vadd.f32 0.0, %v1350
    %v1352 = vpop.f32.mrb[0].mxu0
    %1353 = vmatprep.mubr.f32.mxu0 %v1247
    %1354 = vmatmul.mubr.f32.gmra.mrb[0].mxu0 %v1191
    %v1355 = vpop.f32.mrb[0].mxu0
    %v1356 = vadd.f32 0.0, %v1355
    %v1357 = vpop.f32.mrb[0].mxu0
    %1358 = vmatprep.mubr.f32.mxu0 %v1250
    %1359 = vmatmul.mubr.f32.gmra.mrb[0].mxu0 %v1193
    %v1360 = vpop.f32.mrb[0].mxu0
    %v1361 = vadd.f32 0.0, %v1360
    %v1362 = vpop.f32.mrb[0].mxu0
    %1363 = vmatprep.mubr.f32.mxu0 %v1253
    %1364 = vmatmul.mubr.f32.gmra.mrb[0].mxu0 %v1195
    %v1365 = vpop.f32.mrb[0].mxu0
    %v1366 = vadd.f32 0.0, %v1365
    %v1367 = vpop.f32.mrb[0].mxu0
    %1368 = vmatprep.mubr.f32.mxu0 %v1256
    %1369 = vmatmul.mubr.f32.gmra.mrb[0].mxu0 %v1197
    %v1370 = vpop.f32.mrb[0].mxu0
    %v1371 = vadd.f32 0.0, %v1370
    %v1372 = vpop.f32.mrb[0].mxu0
    %1373 = vmatprep.mubr.f32.mxu0 %v1259
    %1374 = vmatmul.mubr.f32.gmra.mrb[0].mxu0 %v1199
    %v1375 = vpop.f32.mrb[0].mxu0
    %v1376 = vadd.f32 0.0, %v1375
    %v1377 = vpop.f32.mrb[0].mxu0
    %1378 = vmatprep.mubr.f32.mxu0 %v1262
    %1379 = vmatmul.mubr.f32.gmra.mrb[0].mxu0 %v1201
    %v1380 = vpop.f32.mrb[0].mxu0
    %v1381 = vadd.f32 0.0, %v1380
    %v1382 = vpop.f32.mrb[0].mxu0
    %1383 = vdwg.mxu0
    %s1384 = scalar_lea.vmem %s3, 224
    %v1385 = vld [vmem:[%s1384] sm:$0xff]
    %v1386 = vld [vmem:[%s1384 + $0x8] sm:$0xff]
    %v1387 = vld [vmem:[%s1384 + $0x10] sm:$0xff]
    %v1388 = vld [vmem:[%s1384 + $0x18] sm:$0xff]
    %v1389 = vld [vmem:[%s1384 + $0x20] sm:$0xff]
    %v1390 = vld [vmem:[%s1384 + $0x28] sm:$0xff]
    %v1391 = vld [vmem:[%s1384 + $0x30] sm:$0xff]
    %v1392 = vld [vmem:[%s1384 + $0x38] sm:$0xff]
    %v1393 = vld [vmem:[%s1384 + $0x40] sm:$0xff]
    %v1394 = vld [vmem:[%s1384 + $0x48] sm:$0xff]
    %v1395 = vld [vmem:[%s1384 + $0x50] sm:$0xff]
    %v1396 = vld [vmem:[%s1384 + $0x58] sm:$0xff]
    %v1397 = vld [vmem:[%s1384 + $0x60] sm:$0xff]
    %v1398 = vld [vmem:[%s1384 + $0x68] sm:$0xff]
    %v1399 = vld [vmem:[%s1384 + $0x70] sm:$0xff]
    %v1400 = vld [vmem:[%s1384 + $0x78] sm:$0xff]
    %v1401 = vld [vmem:[%s1384 + $0x80] sm:$0xff]
    %v1402 = vld [vmem:[%s1384 + $0x88] sm:$0xff]
    %v1403 = vld [vmem:[%s1384 + $0x90] sm:$0xff]
    %v1404 = vld [vmem:[%s1384 + $0x98] sm:$0xff]
    %v1405 = vld [vmem:[%s1384 + $0xa0] sm:$0xff]
    %v1406 = vld [vmem:[%s1384 + $0xa8] sm:$0xff]
    %v1407 = vld [vmem:[%s1384 + $0xb0] sm:$0xff]
    %v1408 = vld [vmem:[%s1384 + $0xb8] sm:$0xff]
    %v1409 = vld [vmem:[%s1384 + $0xc0] sm:$0xff]
    %v1410 = vld [vmem:[%s1384 + $0xc8] sm:$0xff]
    %v1411 = vld [vmem:[%s1384 + $0xd0] sm:$0xff]
    %v1412 = vld [vmem:[%s1384 + $0xd8] sm:$0xff]
    %1413 = vmatprep.subr.mxu0 0.0
    %1414 = vmatpush1.msra.mxu0 %v1385
    %1415 = vmatprep.subr.mxu0 0.0
    %1416 = vmatpush1.msra.mxu0 %v1386
    %1417 = vmatprep.subr.mxu0 0.0
    %1418 = vmatpush1.msra.mxu0 %v1387
    %1419 = vmatprep.subr.mxu0 0.0
    %1420 = vmatpush1.msra.mxu0 %v1388
    %1421 = vmatprep.subr.mxu0 0.0
    %1422 = vmatpush1.msra.mxu0 %v1389
    %1423 = vmatprep.subr.mxu0 0.0
    %1424 = vmatpush1.msra.mxu0 %v1390
    %1425 = vmatprep.subr.mxu0 0.0
    %1426 = vmatpush1.msra.mxu0 %v1391
    %1427 = vmatprep.subr.mxu0 0.0
    %1428 = vmatpush1.msra.mxu0 %v1392
    %1429 = vmatprep.subr.mxu0 0.0
    %1430 = vmatpush1.msra.mxu0 %v1393
    %1431 = vmatprep.subr.mxu0 0.0
    %1432 = vmatpush1.msra.mxu0 %v1394
    %1433 = vmatprep.subr.mxu0 0.0
    %1434 = vmatpush1.msra.mxu0 %v1395
    %1435 = vmatprep.subr.mxu0 0.0
    %1436 = vmatpush1.msra.mxu0 %v1396
    %1437 = vmatprep.subr.mxu0 0.0
    %1438 = vmatpush1.msra.mxu0 %v1397
    %1439 = vmatprep.subr.mxu0 0.0
    %1440 = vmatpush1.msra.mxu0 %v1398
    %1441 = vmatprep.subr.mxu0 0.0
    %1442 = vmatpush1.msra.mxu0 %v1399
    %1443 = vmatprep.subr.mxu0 0.0
    %1444 = vmatpush1.msra.mxu0 %v1400
    %1445 = vmatprep.subr.mxu0 0.0
    %1446 = vmatpush1.msra.mxu0 %v1401
    %1447 = vmatprep.subr.mxu0 0.0
    %1448 = vmatpush1.msra.mxu0 %v1402
    %1449 = vmatprep.subr.mxu0 0.0
    %1450 = vmatpush1.msra.mxu0 %v1403
    %1451 = vmatprep.subr.mxu0 0.0
    %1452 = vmatpush1.msra.mxu0 %v1404
    %1453 = vmatprep.subr.mxu0 0.0
    %1454 = vmatpush1.msra.mxu0 %v1405
    %1455 = vmatprep.subr.mxu0 0.0
    %1456 = vmatpush1.msra.mxu0 %v1406
    %1457 = vmatprep.subr.mxu0 0.0
    %1458 = vmatpush1.msra.mxu0 %v1407
    %1459 = vmatprep.subr.mxu0 0.0
    %1460 = vmatpush1.msra.mxu0 %v1408
    %1461 = vmatprep.subr.mxu0 0.0
    %1462 = vmatpush1.msra.mxu0 %v1409
    %1463 = vmatprep.subr.mxu0 0.0
    %1464 = vmatpush1.msra.mxu0 %v1410
    %1465 = vmatprep.subr.mxu0 0.0
    %1466 = vmatpush1.msra.mxu0 %v1411
    %1467 = vmatprep.subr.mxu0 0.0
    %1468 = vmatpush1.msra.mxu0 %v1412
    %1469 = vmatprep.subr.mxu0 0.0
    %1470 = vmatpush1.msra.mxu0 0.0
    %1471 = vmatprep.subr.mxu0 0.0
    %1472 = vmatpush1.msra.mxu0 0.0
    %1473 = vmatprep.subr.mxu0 0.0
    %1474 = vmatpush1.msra.mxu0 0.0
    %1475 = vmatprep.subr.mxu0 0.0
    %1476 = vmatpush1.msra.mxu0 0.0
    %1477 = vmatprep.mubr.f32.mxu0 %v1232
    %1478 = vmatmul.mubr.f32.gmra.mrb[0].mxu0 %v1181
    %v1479 = vpop.f32.mrb[0].mxu0
    %v1480 = vadd.f32 0.0, %v1479
    %v1481 = vpop.f32.mrb[0].mxu0
    %1482 = vmatprep.mubr.f32.mxu0 %v1235
    %1483 = vmatmul.mubr.f32.gmra.mrb[0].mxu0 %v1183
    %v1484 = vpop.f32.mrb[0].mxu0
    %v1485 = vadd.f32 0.0, %v1484
    %v1486 = vpop.f32.mrb[0].mxu0
    %1487 = vmatprep.mubr.f32.mxu0 %v1238
    %1488 = vmatmul.mubr.f32.gmra.mrb[0].mxu0 %v1185
    %v1489 = vpop.f32.mrb[0].mxu0
    %v1490 = vadd.f32 0.0, %v1489
    %v1491 = vpop.f32.mrb[0].mxu0
    %1492 = vmatprep.mubr.f32.mxu0 %v1241
    %1493 = vmatmul.mubr.f32.gmra.mrb[0].mxu0 %v1187
    %v1494 = vpop.f32.mrb[0].mxu0
    %v1495 = vadd.f32 0.0, %v1494
    %v1496 = vpop.f32.mrb[0].mxu0
    %1497 = vmatprep.mubr.f32.mxu0 %v1244
    %1498 = vmatmul.mubr.f32.gmra.mrb[0].mxu0 %v1189
    %v1499 = vpop.f32.mrb[0].mxu0
    %v1500 = vadd.f32 0.0, %v1499
    %v1501 = vpop.f32.mrb[0].mxu0
    %1502 = vmatprep.mubr.f32.mxu0 %v1247
    %1503 = vmatmul.mubr.f32.gmra.mrb[0].mxu0 %v1191
    %v1504 = vpop.f32.mrb[0].mxu0
    %v1505 = vadd.f32 0.0, %v1504
    %v1506 = vpop.f32.mrb[0].mxu0
    %1507 = vmatprep.mubr.f32.mxu0 %v1250
    %1508 = vmatmul.mubr.f32.gmra.mrb[0].mxu0 %v1193
    %v1509 = vpop.f32.mrb[0].mxu0
    %v1510 = vadd.f32 0.0, %v1509
    %v1511 = vpop.f32.mrb[0].mxu0
    %1512 = vmatprep.mubr.f32.mxu0 %v1253
    %1513 = vmatmul.mubr.f32.gmra.mrb[0].mxu0 %v1195
    %v1514 = vpop.f32.mrb[0].mxu0
    %v1515 = vadd.f32 0.0, %v1514
    %v1516 = vpop.f32.mrb[0].mxu0
    %1517 = vmatprep.mubr.f32.mxu0 %v1256
    %1518 = vmatmul.mubr.f32.gmra.mrb[0].mxu0 %v1197
    %v1519 = vpop.f32.mrb[0].mxu0
    %v1520 = vadd.f32 0.0, %v1519
    %v1521 = vpop.f32.mrb[0].mxu0
    %1522 = vmatprep.mubr.f32.mxu0 %v1259
    %1523 = vmatmul.mubr.f32.gmra.mrb[0].mxu0 %v1199
    %v1524 = vpop.f32.mrb[0].mxu0
    %v1525 = vadd.f32 0.0, %v1524
    %v1526 = vpop.f32.mrb[0].mxu0
    %1527 = vmatprep.mubr.f32.mxu0 %v1262
    %1528 = vmatmul.mubr.f32.gmra.mrb[0].mxu0 %v1201
    %v1529 = vpop.f32.mrb[0].mxu0
    %v1530 = vadd.f32 0.0, %v1529
    %v1531 = vpop.f32.mrb[0].mxu0
    %1532 = vdwg.mxu0
    %v1533 = vmax.f32 %v1331, %v1480
    %v1534 = vmax.f32 %v1336, %v1485
    %v1535 = vmax.f32 %v1341, %v1490
    %v1536 = vmax.f32 %v1346, %v1495
    %v1537 = vmax.f32 %v1351, %v1500
    %v1538 = vmax.f32 %v1356, %v1505
    %v1539 = vmax.f32 %v1361, %v1510
    %v1540 = vmax.f32 %v1366, %v1515
    %v1541 = vmax.f32 %v1371, %v1520
    %v1542 = vmax.f32 %v1376, %v1525
    %v1543 = vmax.f32 %v1381, %v1530
    %v1544 = vld [vmem:[#allocation10] sm:$0xff]
    %v1545 = vld [vmem:[#allocation10 + $0x8] sm:$0xff]
    %v1546 = vld [vmem:[#allocation10 + $0x10] sm:$0x1f]
    %vm1547 = vcmask 687104
    %v1549 = vsel %vm1547, %v1544, 0
    %v1552 = vsel %vm1547, %v1545, 0
    %v1555 = vsel %vm1547, %v1546, 0
    %v1558 = vsel %vm419, %v1543, 0
    %1560 = vmatprep.subr.mxu0 0.0
    %1561 = vmatpush1.msra.mxu0 %v1533
    %1562 = vmatprep.subr.mxu0 0.0
    %1563 = vmatpush1.msra.mxu0 %v1534
    %1564 = vmatprep.subr.mxu0 0.0
    %1565 = vmatpush1.msra.mxu0 %v1535
    %1566 = vmatprep.subr.mxu0 0.0
    %1567 = vmatpush1.msra.mxu0 %v1536
    %1568 = vmatprep.subr.mxu0 0.0
    %1569 = vmatpush1.msra.mxu0 %v1537
    %1570 = vmatprep.subr.mxu0 0.0
    %1571 = vmatpush1.msra.mxu0 %v1538
    %1572 = vmatprep.subr.mxu0 0.0
    %1573 = vmatpush1.msra.mxu0 %v1539
    %1574 = vmatprep.subr.mxu0 0.0
    %1575 = vmatpush1.msra.mxu0 %v1540
    %1576 = vmatprep.subr.mxu0 0.0
    %1577 = vmatpush1.msra.mxu0 %v1541
    %1578 = vmatprep.subr.mxu0 0.0
    %1579 = vmatpush1.msra.mxu0 %v1542
    %1580 = vmatprep.subr.mxu0 0.0
    %1581 = vmatpush1.msra.mxu0 %v1558
    %1582 = vmatprep.subr.mxu0 0.0
    %1583 = vmatpush1.msra.mxu0 0.0
    %1584 = vmatprep.subr.mxu0 0.0
    %1585 = vmatpush1.msra.mxu0 0.0
    %1586 = vmatprep.subr.mxu0 0.0
    %1587 = vmatpush1.msra.mxu0 0.0
    %1588 = vmatprep.subr.mxu0 0.0
    %1589 = vmatpush1.msra.mxu0 0.0
    %1590 = vmatprep.subr.mxu0 0.0
    %1591 = vmatpush1.msra.mxu0 0.0
    %1592 = vmatprep.subr.mxu0 0.0
    %1593 = vmatpush1.msra.mxu0 0.0
    %1594 = vmatprep.subr.mxu0 0.0
    %1595 = vmatpush1.msra.mxu0 0.0
    %1596 = vmatprep.subr.mxu0 0.0
    %1597 = vmatpush1.msra.mxu0 0.0
    %1598 = vmatprep.subr.mxu0 0.0
    %1599 = vmatpush1.msra.mxu0 0.0
    %1600 = vmatprep.subr.mxu0 0.0
    %1601 = vmatpush1.msra.mxu0 0.0
    %1602 = vmatprep.subr.mxu0 0.0
    %1603 = vmatpush1.msra.mxu0 0.0
    %1604 = vmatprep.subr.mxu0 0.0
    %1605 = vmatpush1.msra.mxu0 0.0
    %1606 = vmatprep.subr.mxu0 0.0
    %1607 = vmatpush1.msra.mxu0 0.0
    %1608 = vmatprep.subr.mxu0 0.0
    %1609 = vmatpush1.msra.mxu0 0.0
    %1610 = vmatprep.subr.mxu0 0.0
    %1611 = vmatpush1.msra.mxu0 0.0
    %1612 = vmatprep.subr.mxu0 0.0
    %1613 = vmatpush1.msra.mxu0 0.0
    %1614 = vmatprep.subr.mxu0 0.0
    %1615 = vmatpush1.msra.mxu0 0.0
    %1616 = vmatprep.subr.mxu0 0.0
    %1617 = vmatpush1.msra.mxu0 0.0
    %1618 = vmatprep.subr.mxu0 0.0
    %1619 = vmatpush1.msra.mxu0 0.0
    %1620 = vmatprep.subr.mxu0 0.0
    %1621 = vmatpush1.msra.mxu0 0.0
    %1622 = vmatprep.subr.mxu0 0.0
    %1623 = vmatpush1.msra.mxu0 0.0
    %1624 = vmatprep.mubr.f32.mxu0 0.0
    %1625 = vmatmul.mubr.f32.gmra.mrb[0].mxu0 %v1549
    %v1626 = vpop.f32.mrb[0].mxu0
    %v1627 = vadd.f32 0.0, %v1626
    %v1628 = vpop.f32.mrb[0].mxu0
    %1629 = vmatprep.mubr.f32.mxu0 0.0
    %1630 = vmatmul.mubr.f32.gmra.mrb[0].mxu0 %v1552
    %v1631 = vpop.f32.mrb[0].mxu0
    %v1632 = vadd.f32 0.0, %v1631
    %v1633 = vpop.f32.mrb[0].mxu0
    %1634 = vmatprep.mubr.f32.mxu0 0.0
    %1635 = vmatmul.mubr.f32.gmra.mrb[0].mxu0 %v1555
    %v1636 = vpop.f32.mrb[0].mxu0
    %v1637 = vadd.f32 0.0, %v1636
    %v1638 = vpop.f32.mrb[0].mxu0
    %1639 = vdwg.mxu0
    %s1640 = scalar_lea.vmem [#allocation10], 48
    %v1641 = vld [vmem:[%s1640] sm:$0xff]
    %v1642 = vld [vmem:[%s1640 + $0x8] sm:$0xff]
    %v1643 = vld [vmem:[%s1640 + $0x10] sm:$0x1f]
    %v1645 = vsel %vm1547, %v1641, 0
    %v1648 = vsel %vm1547, %v1642, 0
    %v1651 = vsel %vm1547, %v1643, 0
    %1653 = vmatprep.subr.mxu0 0.0
    %1654 = vmatpush1.msra.mxu0 %v1533
    %1655 = vmatprep.subr.mxu0 0.0
    %1656 = vmatpush1.msra.mxu0 %v1534
    %1657 = vmatprep.subr.mxu0 0.0
    %1658 = vmatpush1.msra.mxu0 %v1535
    %1659 = vmatprep.subr.mxu0 0.0
    %1660 = vmatpush1.msra.mxu0 %v1536
    %1661 = vmatprep.subr.mxu0 0.0
    %1662 = vmatpush1.msra.mxu0 %v1537
    %1663 = vmatprep.subr.mxu0 0.0
    %1664 = vmatpush1.msra.mxu0 %v1538
    %1665 = vmatprep.subr.mxu0 0.0
    %1666 = vmatpush1.msra.mxu0 %v1539
    %1667 = vmatprep.subr.mxu0 0.0
    %1668 = vmatpush1.msra.mxu0 %v1540
    %1669 = vmatprep.subr.mxu0 0.0
    %1670 = vmatpush1.msra.mxu0 %v1541
    %1671 = vmatprep.subr.mxu0 0.0
    %1672 = vmatpush1.msra.mxu0 %v1542
    %1673 = vmatprep.subr.mxu0 0.0
    %1674 = vmatpush1.msra.mxu0 %v1558
    %1675 = vmatprep.subr.mxu0 0.0
    %1676 = vmatpush1.msra.mxu0 0.0
    %1677 = vmatprep.subr.mxu0 0.0
    %1678 = vmatpush1.msra.mxu0 0.0
    %1679 = vmatprep.subr.mxu0 0.0
    %1680 = vmatpush1.msra.mxu0 0.0
    %1681 = vmatprep.subr.mxu0 0.0
    %1682 = vmatpush1.msra.mxu0 0.0
    %1683 = vmatprep.subr.mxu0 0.0
    %1684 = vmatpush1.msra.mxu0 0.0
    %1685 = vmatprep.subr.mxu0 0.0
    %1686 = vmatpush1.msra.mxu0 0.0
    %1687 = vmatprep.subr.mxu0 0.0
    %1688 = vmatpush1.msra.mxu0 0.0
    %1689 = vmatprep.subr.mxu0 0.0
    %1690 = vmatpush1.msra.mxu0 0.0
    %1691 = vmatprep.subr.mxu0 0.0
    %1692 = vmatpush1.msra.mxu0 0.0
    %1693 = vmatprep.subr.mxu0 0.0
    %1694 = vmatpush1.msra.mxu0 0.0
    %1695 = vmatprep.subr.mxu0 0.0
    %1696 = vmatpush1.msra.mxu0 0.0
    %1697 = vmatprep.subr.mxu0 0.0
    %1698 = vmatpush1.msra.mxu0 0.0
    %1699 = vmatprep.subr.mxu0 0.0
    %1700 = vmatpush1.msra.mxu0 0.0
    %1701 = vmatprep.subr.mxu0 0.0
    %1702 = vmatpush1.msra.mxu0 0.0
    %1703 = vmatprep.subr.mxu0 0.0
    %1704 = vmatpush1.msra.mxu0 0.0
    %1705 = vmatprep.subr.mxu0 0.0
    %1706 = vmatpush1.msra.mxu0 0.0
    %1707 = vmatprep.subr.mxu0 0.0
    %1708 = vmatpush1.msra.mxu0 0.0
    %1709 = vmatprep.subr.mxu0 0.0
    %1710 = vmatpush1.msra.mxu0 0.0
    %1711 = vmatprep.subr.mxu0 0.0
    %1712 = vmatpush1.msra.mxu0 0.0
    %1713 = vmatprep.subr.mxu0 0.0
    %1714 = vmatpush1.msra.mxu0 0.0
    %1715 = vmatprep.subr.mxu0 0.0
    %1716 = vmatpush1.msra.mxu0 0.0
    %1717 = vmatprep.mubr.f32.mxu0 0.0
    %1718 = vmatmul.mubr.f32.gmra.mrb[0].mxu0 %v1645
    %v1719 = vpop.f32.mrb[0].mxu0
    %v1720 = vadd.f32 0.0, %v1719
    %v1721 = vpop.f32.mrb[0].mxu0
    %1722 = vmatprep.mubr.f32.mxu0 0.0
    %1723 = vmatmul.mubr.f32.gmra.mrb[0].mxu0 %v1648
    %v1724 = vpop.f32.mrb[0].mxu0
    %v1725 = vadd.f32 0.0, %v1724
    %v1726 = vpop.f32.mrb[0].mxu0
    %1727 = vmatprep.mubr.f32.mxu0 0.0
    %1728 = vmatmul.mubr.f32.gmra.mrb[0].mxu0 %v1651
    %v1729 = vpop.f32.mrb[0].mxu0
    %v1730 = vadd.f32 0.0, %v1729
    %v1731 = vpop.f32.mrb[0].mxu0
    %1732 = vdwg.mxu0
    %v1733 = vmax.f32 %v1627, %v1720
    %v1734 = vmax.f32 %v1632, %v1725
    %v1735 = vmax.f32 %v1637, %v1730
    %v1736 = vpack.c.bf16 %v1734, %v1733
    %v1737 = vpack.c.bf16 %v1735, %v1735
    %v1740 = vunpack.c.l.b16 %v1736
    %v1741 = vunpack.c.h.b16 %v1736
    %v1742 = vunpack.c.l.b16 %v1737
    %v1743 = vpack.c.b16 %v1740, %v1740
    %v1744 = vpack.c.b16 %v1741, %v1741
    %v1745 = vpack.c.b16 %v1742, %v1742
    %vm1749 = vcmask 912384
    %1750 = vst.msk [vmem:[#allocation3] sm:$0xf] %vm1749, %v1743
    %1751 = vst.msk [vmem:[#allocation3 + $0x4] sm:$0xf] %vm1749, %v1744
    %vm1752 = vcmask 911360
    %vm1753 = vsmask.f32 2304
    %vm1754 = vmand %vm1752, %vm1753
    %v1755 = vld [vmem:[#allocation3 + $0x8] sm:$0x7]
    %v1756 = vsel %vm1754, %v1745, %v1755
    %1757 = vst [vmem:[#allocation3 + $0x8] sm:$0x7] %v1756
    %s1758 = scalar_lea.vmem [#allocation10], 24
    %v1759 = vld [vmem:[%s1758] sm:$0xff]
    %v1760 = vld [vmem:[%s1758 + $0x8] sm:$0xff]
    %v1761 = vld [vmem:[%s1758 + $0x10] sm:$0x1f]
    %v1763 = vsel %vm1547, %v1759, 0
    %v1766 = vsel %vm1547, %v1760, 0
    %v1769 = vsel %vm1547, %v1761, 0
    %1771 = vmatprep.subr.mxu0 0.0
    %1772 = vmatpush1.msra.mxu0 %v1533
    %1773 = vmatprep.subr.mxu0 0.0
    %1774 = vmatpush1.msra.mxu0 %v1534
    %1775 = vmatprep.subr.mxu0 0.0
    %1776 = vmatpush1.msra.mxu0 %v1535
    %1777 = vmatprep.subr.mxu0 0.0
    %1778 = vmatpush1.msra.mxu0 %v1536
    %1779 = vmatprep.subr.mxu0 0.0
    %1780 = vmatpush1.msra.mxu0 %v1537
    %1781 = vmatprep.subr.mxu0 0.0
    %1782 = vmatpush1.msra.mxu0 %v1538
    %1783 = vmatprep.subr.mxu0 0.0
    %1784 = vmatpush1.msra.mxu0 %v1539
    %1785 = vmatprep.subr.mxu0 0.0
    %1786 = vmatpush1.msra.mxu0 %v1540
    %1787 = vmatprep.subr.mxu0 0.0
    %1788 = vmatpush1.msra.mxu0 %v1541
    %1789 = vmatprep.subr.mxu0 0.0
    %1790 = vmatpush1.msra.mxu0 %v1542
    %1791 = vmatprep.subr.mxu0 0.0
    %1792 = vmatpush1.msra.mxu0 %v1558
    %1793 = vmatprep.subr.mxu0 0.0
    %1794 = vmatpush1.msra.mxu0 0.0
    %1795 = vmatprep.subr.mxu0 0.0
    %1796 = vmatpush1.msra.mxu0 0.0
    %1797 = vmatprep.subr.mxu0 0.0
    %1798 = vmatpush1.msra.mxu0 0.0
    %1799 = vmatprep.subr.mxu0 0.0
    %1800 = vmatpush1.msra.mxu0 0.0
    %1801 = vmatprep.subr.mxu0 0.0
    %1802 = vmatpush1.msra.mxu0 0.0
    %1803 = vmatprep.subr.mxu0 0.0
    %1804 = vmatpush1.msra.mxu0 0.0
    %1805 = vmatprep.subr.mxu0 0.0
    %1806 = vmatpush1.msra.mxu0 0.0
    %1807 = vmatprep.subr.mxu0 0.0
    %1808 = vmatpush1.msra.mxu0 0.0
    %1809 = vmatprep.subr.mxu0 0.0
    %1810 = vmatpush1.msra.mxu0 0.0
    %1811 = vmatprep.subr.mxu0 0.0
    %1812 = vmatpush1.msra.mxu0 0.0
    %1813 = vmatprep.subr.mxu0 0.0
    %1814 = vmatpush1.msra.mxu0 0.0
    %1815 = vmatprep.subr.mxu0 0.0
    %1816 = vmatpush1.msra.mxu0 0.0
    %1817 = vmatprep.subr.mxu0 0.0
    %1818 = vmatpush1.msra.mxu0 0.0
    %1819 = vmatprep.subr.mxu0 0.0
    %1820 = vmatpush1.msra.mxu0 0.0
    %1821 = vmatprep.subr.mxu0 0.0
    %1822 = vmatpush1.msra.mxu0 0.0
    %1823 = vmatprep.subr.mxu0 0.0
    %1824 = vmatpush1.msra.mxu0 0.0
    %1825 = vmatprep.subr.mxu0 0.0
    %1826 = vmatpush1.msra.mxu0 0.0
    %1827 = vmatprep.subr.mxu0 0.0
    %1828 = vmatpush1.msra.mxu0 0.0
    %1829 = vmatprep.subr.mxu0 0.0
    %1830 = vmatpush1.msra.mxu0 0.0
    %1831 = vmatprep.subr.mxu0 0.0
    %1832 = vmatpush1.msra.mxu0 0.0
    %1833 = vmatprep.subr.mxu0 0.0
    %1834 = vmatpush1.msra.mxu0 0.0
    %1835 = vmatprep.mubr.f32.mxu0 0.0
    %1836 = vmatmul.mubr.f32.gmra.mrb[0].mxu0 %v1763
    %v1837 = vpop.f32.mrb[0].mxu0
    %v1838 = vadd.f32 0.0, %v1837
    %v1839 = vpop.f32.mrb[0].mxu0
    %1840 = vmatprep.mubr.f32.mxu0 0.0
    %1841 = vmatmul.mubr.f32.gmra.mrb[0].mxu0 %v1766
    %v1842 = vpop.f32.mrb[0].mxu0
    %v1843 = vadd.f32 0.0, %v1842
    %v1844 = vpop.f32.mrb[0].mxu0
    %1845 = vmatprep.mubr.f32.mxu0 0.0
    %1846 = vmatmul.mubr.f32.gmra.mrb[0].mxu0 %v1769
    %v1847 = vpop.f32.mrb[0].mxu0
    %v1848 = vadd.f32 0.0, %v1847
    %v1849 = vpop.f32.mrb[0].mxu0
    %1850 = vdwg.mxu0
    %s1851 = scalar_lea.vmem [#allocation10], 72
    %v1852 = vld [vmem:[%s1851] sm:$0xff]
    %v1853 = vld [vmem:[%s1851 + $0x8] sm:$0xff]
    %v1854 = vld [vmem:[%s1851 + $0x10] sm:$0x1f]
    %v1856 = vsel %vm1547, %v1852, 0
    %v1859 = vsel %vm1547, %v1853, 0
    %v1862 = vsel %vm1547, %v1854, 0
    %1864 = vmatprep.subr.mxu0 0.0
    %1865 = vmatpush1.msra.mxu0 %v1533
    %1866 = vmatprep.subr.mxu0 0.0
    %1867 = vmatpush1.msra.mxu0 %v1534
    %1868 = vmatprep.subr.mxu0 0.0
    %1869 = vmatpush1.msra.mxu0 %v1535
    %1870 = vmatprep.subr.mxu0 0.0
    %1871 = vmatpush1.msra.mxu0 %v1536
    %1872 = vmatprep.subr.mxu0 0.0
    %1873 = vmatpush1.msra.mxu0 %v1537
    %1874 = vmatprep.subr.mxu0 0.0
    %1875 = vmatpush1.msra.mxu0 %v1538
    %1876 = vmatprep.subr.mxu0 0.0
    %1877 = vmatpush1.msra.mxu0 %v1539
    %1878 = vmatprep.subr.mxu0 0.0
    %1879 = vmatpush1.msra.mxu0 %v1540
    %1880 = vmatprep.subr.mxu0 0.0
    %1881 = vmatpush1.msra.mxu0 %v1541
    %1882 = vmatprep.subr.mxu0 0.0
    %1883 = vmatpush1.msra.mxu0 %v1542
    %1884 = vmatprep.subr.mxu0 0.0
    %1885 = vmatpush1.msra.mxu0 %v1558
    %1886 = vmatprep.subr.mxu0 0.0
    %1887 = vmatpush1.msra.mxu0 0.0
    %1888 = vmatprep.subr.mxu0 0.0
    %1889 = vmatpush1.msra.mxu0 0.0
    %1890 = vmatprep.subr.mxu0 0.0
    %1891 = vmatpush1.msra.mxu0 0.0
    %1892 = vmatprep.subr.mxu0 0.0
    %1893 = vmatpush1.msra.mxu0 0.0
    %1894 = vmatprep.subr.mxu0 0.0
    %1895 = vmatpush1.msra.mxu0 0.0
    %1896 = vmatprep.subr.mxu0 0.0
    %1897 = vmatpush1.msra.mxu0 0.0
    %1898 = vmatprep.subr.mxu0 0.0
    %1899 = vmatpush1.msra.mxu0 0.0
    %1900 = vmatprep.subr.mxu0 0.0
    %1901 = vmatpush1.msra.mxu0 0.0
    %1902 = vmatprep.subr.mxu0 0.0
    %1903 = vmatpush1.msra.mxu0 0.0
    %1904 = vmatprep.subr.mxu0 0.0
    %1905 = vmatpush1.msra.mxu0 0.0
    %1906 = vmatprep.subr.mxu0 0.0
    %1907 = vmatpush1.msra.mxu0 0.0
    %1908 = vmatprep.subr.mxu0 0.0
    %1909 = vmatpush1.msra.mxu0 0.0
    %1910 = vmatprep.subr.mxu0 0.0
    %1911 = vmatpush1.msra.mxu0 0.0
    %1912 = vmatprep.subr.mxu0 0.0
    %1913 = vmatpush1.msra.mxu0 0.0
    %1914 = vmatprep.subr.mxu0 0.0
    %1915 = vmatpush1.msra.mxu0 0.0
    %1916 = vmatprep.subr.mxu0 0.0
    %1917 = vmatpush1.msra.mxu0 0.0
    %1918 = vmatprep.subr.mxu0 0.0
    %1919 = vmatpush1.msra.mxu0 0.0
    %1920 = vmatprep.subr.mxu0 0.0
    %1921 = vmatpush1.msra.mxu0 0.0
    %1922 = vmatprep.subr.mxu0 0.0
    %1923 = vmatpush1.msra.mxu0 0.0
    %1924 = vmatprep.subr.mxu0 0.0
    %1925 = vmatpush1.msra.mxu0 0.0
    %1926 = vmatprep.subr.mxu0 0.0
    %1927 = vmatpush1.msra.mxu0 0.0
    %1928 = vmatprep.mubr.f32.mxu0 0.0
    %1929 = vmatmul.mubr.f32.gmra.mrb[0].mxu0 %v1856
    %v1930 = vpop.f32.mrb[0].mxu0
    %v1931 = vadd.f32 0.0, %v1930
    %v1932 = vpop.f32.mrb[0].mxu0
    %1933 = vmatprep.mubr.f32.mxu0 0.0
    %1934 = vmatmul.mubr.f32.gmra.mrb[0].mxu0 %v1859
    %v1935 = vpop.f32.mrb[0].mxu0
    %v1936 = vadd.f32 0.0, %v1935
    %v1937 = vpop.f32.mrb[0].mxu0
    %1938 = vmatprep.mubr.f32.mxu0 0.0
    %1939 = vmatmul.mubr.f32.gmra.mrb[0].mxu0 %v1862
    %v1940 = vpop.f32.mrb[0].mxu0
    %v1941 = vadd.f32 0.0, %v1940
    %v1942 = vpop.f32.mrb[0].mxu0
    %1943 = vdwg.mxu0
    %v1944 = vmax.f32 %v1838, %v1931
    %v1945 = vmax.f32 %v1843, %v1936
    %v1946 = vmax.f32 %v1848, %v1941
    %v1947 = vpack.c.bf16 %v1945, %v1944
    %v1948 = vpack.c.bf16 %v1946, %v1946
    %v1951 = vunpack.c.l.b16 %v1947
    %v1952 = vunpack.c.h.b16 %v1947
    %v1953 = vunpack.c.l.b16 %v1948
    %v1954 = vpack.c.b16 %v1951, %v1951
    %v1955 = vpack.c.b16 %v1952, %v1952
    %v1956 = vpack.c.b16 %v1953, %v1953
    %s1960 = scalar_lea.vmem [#allocation3], 12
    %1961 = vst.msk [vmem:[%s1960] sm:$0xf] %vm1749, %v1954
    %1962 = vst.msk [vmem:[%s1960 + $0x4] sm:$0xf] %vm1749, %v1955
    %v1963 = vld [vmem:[%s1960 + $0x8] sm:$0x7]
    %v1964 = vsel %vm1754, %v1956, %v1963
    %1965 = vst [vmem:[%s1960 + $0x8] sm:$0x7] %v1964
    %1966 = vst [vmem:[#allocation4] sm:$0xff] 0.0
    %1967 = vst [vmem:[#allocation4 + $0x8] sm:$0xff] 0.0
    %vm1968 = vcmask 261120
    %1969 = vst.msk [vmem:[#allocation4 + $0x10] sm:$0xff] %vm1968, 0.0
    %1970 = vst [vmem:[#allocation4 + $0x18] sm:$0xff] 0.0
    %1971 = vst [vmem:[#allocation4 + $0x20] sm:$0xff] 0.0
    %1972 = vst.msk [vmem:[#allocation4 + $0x28] sm:$0xff] %vm1968, 0.0
    %1973 = vst [vmem:[#allocation4 + $0x30] sm:$0xff] 0.0
    %1974 = vst [vmem:[#allocation4 + $0x38] sm:$0xff] 0.0
    %1975 = vst.msk [vmem:[#allocation4 + $0x40] sm:$0xff] %vm1968, 0.0
    %1976 = vst [vmem:[#allocation4 + $0x48] sm:$0xff] 0.0
    %1977 = vst [vmem:[#allocation4 + $0x50] sm:$0xff] 0.0
    %1978 = vst.msk [vmem:[#allocation4 + $0x58] sm:$0xff] %vm1968, 0.0
    %1979 = vst [vmem:[#allocation4 + $0x60] sm:$0xff] 0.0
    %1980 = vst [vmem:[#allocation4 + $0x68] sm:$0xff] 0.0
    %1981 = vst.msk [vmem:[#allocation4 + $0x70] sm:$0xff] %vm1968, 0.0
    %1982 = vst [vmem:[#allocation4 + $0x78] sm:$0x3f] 0.0
    %1983 = vst [vmem:[#allocation4 + $0x80] sm:$0x3f] 0.0
    %vm1984 = vcmask 259072
    %1985 = vst.msk [vmem:[#allocation4 + $0x88] sm:$0x3f] %vm1984, 0.0
    %v1986 = vld [vmem:[%s5] sm:$0xff]
    %v1987 = vld [vmem:[%s5 + $0x8] sm:$0xf]
    %v1988 = vld [vmem:[%s5 + $0xc] sm:$0xff]
    %v1989 = vld [vmem:[%s5 + $0x14] sm:$0xf]
    %v1990 = vld [vmem:[%s5 + $0x18] sm:$0xff]
    %v1991 = vld [vmem:[%s5 + $0x20] sm:$0xf]
    %v1992 = vld [vmem:[%s5 + $0x24] sm:$0xff]
    %v1993 = vld [vmem:[%s5 + $0x2c] sm:$0xf]
    %v1994 = vld [vmem:[%s5 + $0x30] sm:$0xff]
    %v1995 = vld [vmem:[%s5 + $0x38] sm:$0xf]
    %v1996 = vld [vmem:[%s5 + $0x3c] sm:$0xff]
    %v1997 = vld [vmem:[%s5 + $0x44] sm:$0xf]
    %v1998 = vld [vmem:[%s5 + $0x48] sm:$0xff]
    %v1999 = vld [vmem:[%s5 + $0x50] sm:$0xf]
    %v2000 = vld [vmem:[%s5 + $0x54] sm:$0xff]
    %v2001 = vld [vmem:[%s5 + $0x5c] sm:$0xf]
    %v2002 = vld [vmem:[%s5 + $0x60] sm:$0xff]
    %v2003 = vld [vmem:[%s5 + $0x68] sm:$0xf]
    %v2004 = vld [vmem:[%s5 + $0x6c] sm:$0xff]
    %v2005 = vld [vmem:[%s5 + $0x74] sm:$0xf]
    %v2006 = vld [vmem:[%s5 + $0x78] sm:$0xff]
    %v2007 = vld [vmem:[%s5 + $0x80] sm:$0xf]
    %v2008 = vld [vmem:[%s5 + $0x84] sm:$0xff]
    %v2009 = vld [vmem:[%s5 + $0x8c] sm:$0xf]
    %v2010 = vld [vmem:[%s5 + $0x90] sm:$0xff]
    %v2011 = vld [vmem:[%s5 + $0x98] sm:$0xf]
    %v2012 = vld [vmem:[%s5 + $0x9c] sm:$0xff]
    %v2013 = vld [vmem:[%s5 + $0xa4] sm:$0xf]
    %v2014 = vld [vmem:[#allocation3] sm:$0xf]
    %v2015 = vld [vmem:[#allocation3 + $0x4] sm:$0xf]
    %v2016 = vld [vmem:[#allocation3 + $0x8] sm:$0x7]
    %v2020 = vunpack.c.l.b16 %v2014
    %v2021 = vunpack.c.l.b16 %v2015
    %v2022 = vunpack.c.l.b16 %v2016
    %v2023 = vpack.c.b16 %v2021, %v2020
    %v2024 = vpack.c.b16 %v2022, %v2022
    %v2053 = vunpack.c.l.b16 %v1986
    %v2054 = vunpack.c.h.b16 %v1986
    %v2055 = vunpack.c.l.b16 %v1987
    %v2056 = vunpack.c.l.b16 %v1988
    %v2057 = vunpack.c.h.b16 %v1988
    %v2058 = vunpack.c.l.b16 %v1989
    %v2059 = vunpack.c.l.b16 %v1990
    %v2060 = vunpack.c.h.b16 %v1990
    %v2061 = vunpack.c.l.b16 %v1991
    %v2062 = vunpack.c.l.b16 %v1992
    %v2063 = vunpack.c.h.b16 %v1992
    %v2064 = vunpack.c.l.b16 %v1993
    %v2065 = vunpack.c.l.b16 %v1994
    %v2066 = vunpack.c.h.b16 %v1994
    %v2067 = vunpack.c.l.b16 %v1995
    %v2068 = vunpack.c.l.b16 %v1996
    %v2069 = vunpack.c.h.b16 %v1996
    %v2070 = vunpack.c.l.b16 %v1997
    %v2071 = vunpack.c.l.b16 %v1998
    %v2072 = vunpack.c.h.b16 %v1998
    %v2073 = vunpack.c.l.b16 %v1999
    %v2074 = vunpack.c.l.b16 %v2000
    %v2075 = vunpack.c.h.b16 %v2000
    %v2076 = vunpack.c.l.b16 %v2001
    %v2077 = vunpack.c.l.b16 %v2002
    %v2078 = vunpack.c.h.b16 %v2002
    %v2079 = vunpack.c.l.b16 %v2003
    %v2080 = vunpack.c.l.b16 %v2004
    %v2081 = vunpack.c.h.b16 %v2004
    %v2082 = vunpack.c.l.b16 %v2005
    %v2083 = vunpack.c.l.b16 %v2006
    %v2084 = vunpack.c.h.b16 %v2006
    %v2085 = vunpack.c.l.b16 %v2007
    %v2086 = vunpack.c.l.b16 %v2008
    %v2087 = vunpack.c.h.b16 %v2008
    %v2088 = vunpack.c.l.b16 %v2009
    %v2089 = vunpack.c.l.b16 %v2010
    %v2090 = vunpack.c.h.b16 %v2010
    %v2091 = vunpack.c.l.b16 %v2011
    %v2092 = vunpack.c.l.b16 %v2012
    %v2093 = vunpack.c.h.b16 %v2012
    %v2094 = vunpack.c.l.b16 %v2013
    %v2095 = vpack.c.b16 %v2056, %v2053
    %v2096 = vpack.c.b16 %v2057, %v2054
    %v2097 = vpack.c.b16 %v2058, %v2055
    %v2098 = vpack.c.b16 %v2062, %v2059
    %v2099 = vpack.c.b16 %v2063, %v2060
    %v2100 = vpack.c.b16 %v2064, %v2061
    %v2101 = vpack.c.b16 %v2068, %v2065
    %v2102 = vpack.c.b16 %v2069, %v2066
    %v2103 = vpack.c.b16 %v2070, %v2067
    %v2104 = vpack.c.b16 %v2074, %v2071
    %v2105 = vpack.c.b16 %v2075, %v2072
    %v2106 = vpack.c.b16 %v2076, %v2073
    %v2107 = vpack.c.b16 %v2080, %v2077
    %v2108 = vpack.c.b16 %v2081, %v2078
    %v2109 = vpack.c.b16 %v2082, %v2079
    %v2110 = vpack.c.b16 %v2086, %v2083
    %v2111 = vpack.c.b16 %v2087, %v2084
    %v2112 = vpack.c.b16 %v2088, %v2085
    %v2113 = vpack.c.b16 %v2092, %v2089
    %v2114 = vpack.c.b16 %v2093, %v2090
    %v2115 = vpack.c.b16 %v2094, %v2091
    %vm2137 = vcmask 916480
    %v2139 = vsel %vm2137, %v2023, 0
    %v2142 = vsel %vm2137, %v2024, 0
    %2144 = vmatprep.subr.bf16.mxu0 %v2096
    %2145 = vmatpush1.bf16.msra.mxu0 %v2095
    %2146 = vmatprep.subr.bf16.mxu0 %v2099
    %2147 = vmatpush1.bf16.msra.mxu0 %v2098
    %2148 = vmatprep.subr.bf16.mxu0 %v2102
    %2149 = vmatpush1.bf16.msra.mxu0 %v2101
    %2150 = vmatprep.subr.bf16.mxu0 %v2105
    %2151 = vmatpush1.bf16.msra.mxu0 %v2104
    %2152 = vmatprep.subr.bf16.mxu0 %v2108
    %2153 = vmatpush1.bf16.msra.mxu0 %v2107
    %2154 = vmatprep.subr.bf16.mxu0 %v2111
    %2155 = vmatpush1.bf16.msra.mxu0 %v2110
    %2156 = vmatprep.subr.bf16.mxu0 %v2114
    %2157 = vmatpush1.bf16.msra.mxu0 %v2113
    %2158 = vmatprep.subr.bf16.mxu0 0
    %2159 = vmatpush1.bf16.msra.mxu0 0
    %2160 = vmatprep.subr.bf16.mxu0 0
    %2161 = vmatpush1.bf16.msra.mxu0 0
    %2162 = vmatprep.subr.bf16.mxu0 0
    %2163 = vmatpush1.bf16.msra.mxu0 0
    %2164 = vmatprep.subr.bf16.mxu0 0
    %2165 = vmatpush1.bf16.msra.mxu0 0
    %2166 = vmatprep.subr.bf16.mxu0 0
    %2167 = vmatpush1.bf16.msra.mxu0 0
    %2168 = vmatprep.subr.bf16.mxu0 0
    %2169 = vmatpush1.bf16.msra.mxu0 0
    %2170 = vmatprep.subr.bf16.mxu0 0
    %2171 = vmatpush1.bf16.msra.mxu0 0
    %2172 = vmatprep.subr.bf16.mxu0 0
    %2173 = vmatpush1.bf16.msra.mxu0 0
    %2174 = vmatprep.subr.bf16.mxu0 0
    %2175 = vmatpush1.bf16.msra.mxu0 0
    %2176 = vmatprep.mubr.bf16.mxu0 0
    %2177 = vmatmul.mubr.bf16.gmra.mrb[0].mxu0 %v2139
    %v2178 = vpop.f32.mrb[0].mxu0
    %v2179 = vadd.f32 0.0, %v2178
    %v2180 = vpop.f32.mrb[0].mxu0
    %v2181 = vadd.f32 0.0, %v2180
    %v2182 = vpop.f32.mrb[0].mxu0
    %v2183 = vadd.f32 0.0, %v2182
    %v2184 = vpop.f32.mrb[0].mxu0
    %v2185 = vadd.f32 0.0, %v2184
    %2186 = vmatprep.mubr.bf16.mxu0 0
    %2187 = vmatmul.mubr.bf16.gmra.mrb[0].mxu0 %v2142
    %v2188 = vpop.f32.mrb[0].mxu0
    %v2189 = vadd.f32 0.0, %v2188
    %v2190 = vpop.f32.mrb[0].mxu0
    %v2191 = vadd.f32 0.0, %v2190
    %v2192 = vpop.f32.mrb[0].mxu0
    %v2193 = vpop.f32.mrb[0].mxu0
    %2194 = vdwg.mxu0
    %2195 = vmatprep.subr.bf16.mxu0 0
    %2196 = vmatpush1.bf16.msra.mxu0 %v2097
    %2197 = vmatprep.subr.bf16.mxu0 0
    %2198 = vmatpush1.bf16.msra.mxu0 %v2100
    %2199 = vmatprep.subr.bf16.mxu0 0
    %2200 = vmatpush1.bf16.msra.mxu0 %v2103
    %2201 = vmatprep.subr.bf16.mxu0 0
    %2202 = vmatpush1.bf16.msra.mxu0 %v2106
    %2203 = vmatprep.subr.bf16.mxu0 0
    %2204 = vmatpush1.bf16.msra.mxu0 %v2109
    %2205 = vmatprep.subr.bf16.mxu0 0
    %2206 = vmatpush1.bf16.msra.mxu0 %v2112
    %2207 = vmatprep.subr.bf16.mxu0 0
    %2208 = vmatpush1.bf16.msra.mxu0 %v2115
    %2209 = vmatprep.subr.bf16.mxu0 0
    %2210 = vmatpush1.bf16.msra.mxu0 0
    %2211 = vmatprep.subr.bf16.mxu0 0
    %2212 = vmatpush1.bf16.msra.mxu0 0
    %2213 = vmatprep.subr.bf16.mxu0 0
    %2214 = vmatpush1.bf16.msra.mxu0 0
    %2215 = vmatprep.subr.bf16.mxu0 0
    %2216 = vmatpush1.bf16.msra.mxu0 0
    %2217 = vmatprep.subr.bf16.mxu0 0
    %2218 = vmatpush1.bf16.msra.mxu0 0
    %2219 = vmatprep.subr.bf16.mxu0 0
    %2220 = vmatpush1.bf16.msra.mxu0 0
    %2221 = vmatprep.subr.bf16.mxu0 0
    %2222 = vmatpush1.bf16.msra.mxu0 0
    %2223 = vmatprep.subr.bf16.mxu0 0
    %2224 = vmatpush1.bf16.msra.mxu0 0
    %2225 = vmatprep.subr.bf16.mxu0 0
    %2226 = vmatpush1.bf16.msra.mxu0 0
    %2227 = vmatprep.mubr.bf16.mxu0 0
    %2228 = vmatmul.mubr.bf16.gmra.mrb[0].mxu0 %v2139
    %v2229 = vpop.f32.mrb[0].mxu0
    %v2230 = vadd.f32 0.0, %v2229
    %v2231 = vpop.f32.mrb[0].mxu0
    %v2232 = vpop.f32.mrb[0].mxu0
    %v2233 = vadd.f32 0.0, %v2232
    %v2234 = vpop.f32.mrb[0].mxu0
    %2235 = vmatprep.mubr.bf16.mxu0 0
    %2236 = vmatmul.mubr.bf16.gmra.mrb[0].mxu0 %v2142
    %v2237 = vpop.f32.mrb[0].mxu0
    %v2238 = vadd.f32 0.0, %v2237
    %v2239 = vpop.f32.mrb[0].mxu0
    %v2240 = vpop.f32.mrb[0].mxu0
    %v2241 = vpop.f32.mrb[0].mxu0
    %2242 = vdwg.mxu0
    %v2243 = vld [vmem:[#allocation4] sm:$0xfc]
    %v2244 = vld [vmem:[#allocation4 + $0x8] sm:$0xfc]
    %v2245 = vld [vmem:[#allocation4 + $0x10] sm:$0xfc]
    %v2246 = vld [vmem:[#allocation4 + $0x18] sm:$0xff]
    %v2247 = vld [vmem:[#allocation4 + $0x20] sm:$0xff]
    %v2248 = vld [vmem:[#allocation4 + $0x28] sm:$0xff]
    %v2249 = vld [vmem:[#allocation4 + $0x30] sm:$0x7f]
    %v2250 = vld [vmem:[#allocation4 + $0x38] sm:$0x7f]
    %v2251 = vld [vmem:[#allocation4 + $0x40] sm:$0x7f]
    %v2261 = vrot.slane %v2179, 6
    %v2262 = vrot.slane %v2181, 6
    %v2263 = vrot.slane %v2230, 6
    %v2264 = vrot.slane %v2183, 6
    %v2265 = vsel %vm251, %v2261, %v2264
    %v2266 = vrot.slane %v2185, 6
    %v2267 = vsel %vm251, %v2262, %v2266
    %v2268 = vrot.slane %v2233, 6
    %v2269 = vsel %vm251, %v2263, %v2268
    %v2270 = vrot.slane %v2189, 6
    %v2271 = vsel %vm251, %v2264, %v2270
    %v2272 = vrot.slane %v2191, 6
    %v2273 = vsel %vm251, %v2266, %v2272
    %v2274 = vrot.slane %v2238, 6
    %v2275 = vsel %vm251, %v2268, %v2274
    %v2285 = vadd.f32 %v2243, %v2261
    %v2286 = vadd.f32 %v2244, %v2262
    %v2287 = vadd.f32 %v2245, %v2263
    %v2288 = vadd.f32 %v2246, %v2265
    %v2289 = vadd.f32 %v2247, %v2267
    %v2290 = vadd.f32 %v2248, %v2269
    %v2291 = vadd.f32 %v2249, %v2271
    %v2292 = vadd.f32 %v2250, %v2273
    %v2293 = vadd.f32 %v2251, %v2275
    %2294 = vst [vmem:[#allocation4] sm:$0xfc] %v2285
    %2295 = vst [vmem:[#allocation4 + $0x8] sm:$0xfc] %v2286
    %vm2296 = vcmask 261122
    %2297 = vst.msk [vmem:[#allocation4 + $0x10] sm:$0xfc] %vm2296, %v2287
    %2298 = vst [vmem:[#allocation4 + $0x18] sm:$0xff] %v2288
    %2299 = vst [vmem:[#allocation4 + $0x20] sm:$0xff] %v2289
    %2300 = vst.msk [vmem:[#allocation4 + $0x28] sm:$0xff] %vm1968, %v2290
    %2301 = vst [vmem:[#allocation4 + $0x30] sm:$0x7f] %v2291
    %2302 = vst [vmem:[#allocation4 + $0x38] sm:$0x7f] %v2292
    %vm2303 = vcmask 260096
    %2304 = vst.msk [vmem:[#allocation4 + $0x40] sm:$0x7f] %vm2303, %v2293
    %v2305 = vld [vmem:[%s1960] sm:$0xf]
    %v2306 = vld [vmem:[%s1960 + $0x4] sm:$0xf]
    %v2307 = vld [vmem:[%s1960 + $0x8] sm:$0x7]
    %v2311 = vunpack.c.l.b16 %v2305
    %v2312 = vunpack.c.l.b16 %v2306
    %v2313 = vunpack.c.l.b16 %v2307
    %v2314 = vpack.c.b16 %v2312, %v2311
    %v2315 = vpack.c.b16 %v2313, %v2313
    %v2317 = vsel %vm2137, %v2314, 0
    %v2320 = vsel %vm2137, %v2315, 0
    %2322 = vmatprep.subr.bf16.mxu0 %v2096
    %2323 = vmatpush1.bf16.msra.mxu0 %v2095
    %2324 = vmatprep.subr.bf16.mxu0 %v2099
    %2325 = vmatpush1.bf16.msra.mxu0 %v2098
    %2326 = vmatprep.subr.bf16.mxu0 %v2102
    %2327 = vmatpush1.bf16.msra.mxu0 %v2101
    %2328 = vmatprep.subr.bf16.mxu0 %v2105
    %2329 = vmatpush1.bf16.msra.mxu0 %v2104
    %2330 = vmatprep.subr.bf16.mxu0 %v2108
    %2331 = vmatpush1.bf16.msra.mxu0 %v2107
    %2332 = vmatprep.subr.bf16.mxu0 %v2111
    %2333 = vmatpush1.bf16.msra.mxu0 %v2110
    %2334 = vmatprep.subr.bf16.mxu0 %v2114
    %2335 = vmatpush1.bf16.msra.mxu0 %v2113
    %2336 = vmatprep.subr.bf16.mxu0 0
    %2337 = vmatpush1.bf16.msra.mxu0 0
    %2338 = vmatprep.subr.bf16.mxu0 0
    %2339 = vmatpush1.bf16.msra.mxu0 0
    %2340 = vmatprep.subr.bf16.mxu0 0
    %2341 = vmatpush1.bf16.msra.mxu0 0
    %2342 = vmatprep.subr.bf16.mxu0 0
    %2343 = vmatpush1.bf16.msra.mxu0 0
    %2344 = vmatprep.subr.bf16.mxu0 0
    %2345 = vmatpush1.bf16.msra.mxu0 0
    %2346 = vmatprep.subr.bf16.mxu0 0
    %2347 = vmatpush1.bf16.msra.mxu0 0
    %2348 = vmatprep.subr.bf16.mxu0 0
    %2349 = vmatpush1.bf16.msra.mxu0 0
    %2350 = vmatprep.subr.bf16.mxu0 0
    %2351 = vmatpush1.bf16.msra.mxu0 0
    %2352 = vmatprep.subr.bf16.mxu0 0
    %2353 = vmatpush1.bf16.msra.mxu0 0
    %2354 = vmatprep.mubr.bf16.mxu0 0
    %2355 = vmatmul.mubr.bf16.gmra.mrb[0].mxu0 %v2317
    %v2356 = vpop.f32.mrb[0].mxu0
    %v2357 = vadd.f32 0.0, %v2356
    %v2358 = vpop.f32.mrb[0].mxu0
    %v2359 = vadd.f32 0.0, %v2358
    %v2360 = vpop.f32.mrb[0].mxu0
    %v2361 = vadd.f32 0.0, %v2360
    %v2362 = vpop.f32.mrb[0].mxu0
    %v2363 = vadd.f32 0.0, %v2362
    %2364 = vmatprep.mubr.bf16.mxu0 0
    %2365 = vmatmul.mubr.bf16.gmra.mrb[0].mxu0 %v2320
    %v2366 = vpop.f32.mrb[0].mxu0
    %v2367 = vadd.f32 0.0, %v2366
    %v2368 = vpop.f32.mrb[0].mxu0
    %v2369 = vadd.f32 0.0, %v2368
    %v2370 = vpop.f32.mrb[0].mxu0
    %v2371 = vpop.f32.mrb[0].mxu0
    %2372 = vdwg.mxu0
    %2373 = vmatprep.subr.bf16.mxu0 0
    %2374 = vmatpush1.bf16.msra.mxu0 %v2097
    %2375 = vmatprep.subr.bf16.mxu0 0
    %2376 = vmatpush1.bf16.msra.mxu0 %v2100
    %2377 = vmatprep.subr.bf16.mxu0 0
    %2378 = vmatpush1.bf16.msra.mxu0 %v2103
    %2379 = vmatprep.subr.bf16.mxu0 0
    %2380 = vmatpush1.bf16.msra.mxu0 %v2106
    %2381 = vmatprep.subr.bf16.mxu0 0
    %2382 = vmatpush1.bf16.msra.mxu0 %v2109
    %2383 = vmatprep.subr.bf16.mxu0 0
    %2384 = vmatpush1.bf16.msra.mxu0 %v2112
    %2385 = vmatprep.subr.bf16.mxu0 0
    %2386 = vmatpush1.bf16.msra.mxu0 %v2115
    %2387 = vmatprep.subr.bf16.mxu0 0
    %2388 = vmatpush1.bf16.msra.mxu0 0
    %2389 = vmatprep.subr.bf16.mxu0 0
    %2390 = vmatpush1.bf16.msra.mxu0 0
    %2391 = vmatprep.subr.bf16.mxu0 0
    %2392 = vmatpush1.bf16.msra.mxu0 0
    %2393 = vmatprep.subr.bf16.mxu0 0
    %2394 = vmatpush1.bf16.msra.mxu0 0
    %2395 = vmatprep.subr.bf16.mxu0 0
    %2396 = vmatpush1.bf16.msra.mxu0 0
    %2397 = vmatprep.subr.bf16.mxu0 0
    %2398 = vmatpush1.bf16.msra.mxu0 0
    %2399 = vmatprep.subr.bf16.mxu0 0
    %2400 = vmatpush1.bf16.msra.mxu0 0
    %2401 = vmatprep.subr.bf16.mxu0 0
    %2402 = vmatpush1.bf16.msra.mxu0 0
    %2403 = vmatprep.subr.bf16.mxu0 0
    %2404 = vmatpush1.bf16.msra.mxu0 0
    %2405 = vmatprep.mubr.bf16.mxu0 0
    %2406 = vmatmul.mubr.bf16.gmra.mrb[0].mxu0 %v2317
    %v2407 = vpop.f32.mrb[0].mxu0
    %v2408 = vadd.f32 0.0, %v2407
    %v2409 = vpop.f32.mrb[0].mxu0
    %v2410 = vpop.f32.mrb[0].mxu0
    %v2411 = vadd.f32 0.0, %v2410
    %v2412 = vpop.f32.mrb[0].mxu0
    %2413 = vmatprep.mubr.bf16.mxu0 0
    %2414 = vmatmul.mubr.bf16.gmra.mrb[0].mxu0 %v2320
    %v2415 = vpop.f32.mrb[0].mxu0
    %v2416 = vadd.f32 0.0, %v2415
    %v2417 = vpop.f32.mrb[0].mxu0
    %v2418 = vpop.f32.mrb[0].mxu0
    %v2419 = vpop.f32.mrb[0].mxu0
    %2420 = vdwg.mxu0
    %v2421 = vld [vmem:[#allocation4 + $0x48] sm:$0xfe]
    %v2422 = vld [vmem:[#allocation4 + $0x50] sm:$0xfe]
    %v2423 = vld [vmem:[#allocation4 + $0x58] sm:$0xfe]
    %v2424 = vld [vmem:[#allocation4 + $0x60] sm:$0xff]
    %v2425 = vld [vmem:[#allocation4 + $0x68] sm:$0xff]
    %v2426 = vld [vmem:[#allocation4 + $0x70] sm:$0xff]
    %v2427 = vld [vmem:[#allocation4 + $0x78] sm:$0x3f]
    %v2428 = vld [vmem:[#allocation4 + $0x80] sm:$0x3f]
    %v2429 = vld [vmem:[#allocation4 + $0x88] sm:$0x3f]
    %v2439 = vrot.slane %v2357, 7
    %v2440 = vrot.slane %v2359, 7
    %v2441 = vrot.slane %v2408, 7
    %v2442 = vrot.slane %v2361, 7
    %v2443 = vsel %vm602, %v2439, %v2442
    %v2444 = vrot.slane %v2363, 7
    %v2445 = vsel %vm602, %v2440, %v2444
    %v2446 = vrot.slane %v2411, 7
    %v2447 = vsel %vm602, %v2441, %v2446
    %v2448 = vrot.slane %v2367, 7
    %v2449 = vsel %vm602, %v2442, %v2448
    %v2450 = vrot.slane %v2369, 7
    %v2451 = vsel %vm602, %v2444, %v2450
    %v2452 = vrot.slane %v2416, 7
    %v2453 = vsel %vm602, %v2446, %v2452
    %v2463 = vadd.f32 %v2421, %v2439
    %v2464 = vadd.f32 %v2422, %v2440
    %v2465 = vadd.f32 %v2423, %v2441
    %v2466 = vadd.f32 %v2424, %v2443
    %v2467 = vadd.f32 %v2425, %v2445
    %v2468 = vadd.f32 %v2426, %v2447
    %v2469 = vadd.f32 %v2427, %v2449
    %v2470 = vadd.f32 %v2428, %v2451
    %v2471 = vadd.f32 %v2429, %v2453
    %2472 = vst [vmem:[#allocation4 + $0x48] sm:$0xfe] %v2463
    %2473 = vst [vmem:[#allocation4 + $0x50] sm:$0xfe] %v2464
    %vm2474 = vcmask 261121
    %2475 = vst.msk [vmem:[#allocation4 + $0x58] sm:$0xfe] %vm2474, %v2465
    %2476 = vst [vmem:[#allocation4 + $0x60] sm:$0xff] %v2466
    %2477 = vst [vmem:[#allocation4 + $0x68] sm:$0xff] %v2467
    %2478 = vst.msk [vmem:[#allocation4 + $0x70] sm:$0xff] %vm1968, %v2468
    %2479 = vst [vmem:[#allocation4 + $0x78] sm:$0x3f] %v2469
    %2480 = vst [vmem:[#allocation4 + $0x80] sm:$0x3f] %v2470
    %2481 = vst.msk [vmem:[#allocation4 + $0x88] sm:$0x3f] %vm1984, %v2471
    %s2482 = scalar_lea.vmem %s5, 168
    %v2483 = vld [vmem:[%s2482] sm:$0xff]
    %v2484 = vld [vmem:[%s2482 + $0x8] sm:$0xf]
    %v2485 = vld [vmem:[%s2482 + $0xc] sm:$0xff]
    %v2486 = vld [vmem:[%s2482 + $0x14] sm:$0xf]
    %v2487 = vld [vmem:[%s2482 + $0x18] sm:$0xff]
    %v2488 = vld [vmem:[%s2482 + $0x20] sm:$0xf]
    %v2489 = vld [vmem:[%s2482 + $0x24] sm:$0xff]
    %v2490 = vld [vmem:[%s2482 + $0x2c] sm:$0xf]
    %v2491 = vld [vmem:[%s2482 + $0x30] sm:$0xff]
    %v2492 = vld [vmem:[%s2482 + $0x38] sm:$0xf]
    %v2493 = vld [vmem:[%s2482 + $0x3c] sm:$0xff]
    %v2494 = vld [vmem:[%s2482 + $0x44] sm:$0xf]
    %v2495 = vld [vmem:[%s2482 + $0x48] sm:$0xff]
    %v2496 = vld [vmem:[%s2482 + $0x50] sm:$0xf]
    %v2497 = vld [vmem:[%s2482 + $0x54] sm:$0xff]
    %v2498 = vld [vmem:[%s2482 + $0x5c] sm:$0xf]
    %v2499 = vld [vmem:[%s2482 + $0x60] sm:$0xff]
    %v2500 = vld [vmem:[%s2482 + $0x68] sm:$0xf]
    %v2501 = vld [vmem:[%s2482 + $0x6c] sm:$0xff]
    %v2502 = vld [vmem:[%s2482 + $0x74] sm:$0xf]
    %v2503 = vld [vmem:[%s2482 + $0x78] sm:$0xff]
    %v2504 = vld [vmem:[%s2482 + $0x80] sm:$0xf]
    %v2505 = vld [vmem:[%s2482 + $0x84] sm:$0xff]
    %v2506 = vld [vmem:[%s2482 + $0x8c] sm:$0xf]
    %v2507 = vld [vmem:[%s2482 + $0x90] sm:$0xff]
    %v2508 = vld [vmem:[%s2482 + $0x98] sm:$0xf]
    %v2509 = vld [vmem:[%s2482 + $0x9c] sm:$0xff]
    %v2510 = vld [vmem:[%s2482 + $0xa4] sm:$0xf]
    %v2511 = vld [vmem:[#allocation3] sm:$0xf]
    %v2512 = vld [vmem:[#allocation3 + $0x4] sm:$0xf]
    %v2513 = vld [vmem:[#allocation3 + $0x8] sm:$0x7]
    %v2517 = vunpack.c.l.b16 %v2511
    %v2518 = vunpack.c.l.b16 %v2512
    %v2519 = vunpack.c.l.b16 %v2513
    %v2520 = vpack.c.b16 %v2518, %v2517
    %v2521 = vpack.c.b16 %v2519, %v2519
    %v2550 = vunpack.c.l.b16 %v2483
    %v2551 = vunpack.c.h.b16 %v2483
    %v2552 = vunpack.c.l.b16 %v2484
    %v2553 = vunpack.c.l.b16 %v2485
    %v2554 = vunpack.c.h.b16 %v2485
    %v2555 = vunpack.c.l.b16 %v2486
    %v2556 = vunpack.c.l.b16 %v2487
    %v2557 = vunpack.c.h.b16 %v2487
    %v2558 = vunpack.c.l.b16 %v2488
    %v2559 = vunpack.c.l.b16 %v2489
    %v2560 = vunpack.c.h.b16 %v2489
    %v2561 = vunpack.c.l.b16 %v2490
    %v2562 = vunpack.c.l.b16 %v2491
    %v2563 = vunpack.c.h.b16 %v2491
    %v2564 = vunpack.c.l.b16 %v2492
    %v2565 = vunpack.c.l.b16 %v2493
    %v2566 = vunpack.c.h.b16 %v2493
    %v2567 = vunpack.c.l.b16 %v2494
    %v2568 = vunpack.c.l.b16 %v2495
    %v2569 = vunpack.c.h.b16 %v2495
    %v2570 = vunpack.c.l.b16 %v2496
    %v2571 = vunpack.c.l.b16 %v2497
    %v2572 = vunpack.c.h.b16 %v2497
    %v2573 = vunpack.c.l.b16 %v2498
    %v2574 = vunpack.c.l.b16 %v2499
    %v2575 = vunpack.c.h.b16 %v2499
    %v2576 = vunpack.c.l.b16 %v2500
    %v2577 = vunpack.c.l.b16 %v2501
    %v2578 = vunpack.c.h.b16 %v2501
    %v2579 = vunpack.c.l.b16 %v2502
    %v2580 = vunpack.c.l.b16 %v2503
    %v2581 = vunpack.c.h.b16 %v2503
    %v2582 = vunpack.c.l.b16 %v2504
    %v2583 = vunpack.c.l.b16 %v2505
    %v2584 = vunpack.c.h.b16 %v2505
    %v2585 = vunpack.c.l.b16 %v2506
    %v2586 = vunpack.c.l.b16 %v2507
    %v2587 = vunpack.c.h.b16 %v2507
    %v2588 = vunpack.c.l.b16 %v2508
    %v2589 = vunpack.c.l.b16 %v2509
    %v2590 = vunpack.c.h.b16 %v2509
    %v2591 = vunpack.c.l.b16 %v2510
    %v2592 = vpack.c.b16 %v2553, %v2550
    %v2593 = vpack.c.b16 %v2554, %v2551
    %v2594 = vpack.c.b16 %v2555, %v2552
    %v2595 = vpack.c.b16 %v2559, %v2556
    %v2596 = vpack.c.b16 %v2560, %v2557
    %v2597 = vpack.c.b16 %v2561, %v2558
    %v2598 = vpack.c.b16 %v2565, %v2562
    %v2599 = vpack.c.b16 %v2566, %v2563
    %v2600 = vpack.c.b16 %v2567, %v2564
    %v2601 = vpack.c.b16 %v2571, %v2568
    %v2602 = vpack.c.b16 %v2572, %v2569
    %v2603 = vpack.c.b16 %v2573, %v2570
    %v2604 = vpack.c.b16 %v2577, %v2574
    %v2605 = vpack.c.b16 %v2578, %v2575
    %v2606 = vpack.c.b16 %v2579, %v2576
    %v2607 = vpack.c.b16 %v2583, %v2580
    %v2608 = vpack.c.b16 %v2584, %v2581
    %v2609 = vpack.c.b16 %v2585, %v2582
    %v2610 = vpack.c.b16 %v2589, %v2586
    %v2611 = vpack.c.b16 %v2590, %v2587
    %v2612 = vpack.c.b16 %v2591, %v2588
    %v2635 = vsel %vm2137, %v2520, 0
    %v2638 = vsel %vm2137, %v2521, 0
    %2640 = vmatprep.subr.bf16.mxu0 %v2593
    %2641 = vmatpush1.bf16.msra.mxu0 %v2592
    %2642 = vmatprep.subr.bf16.mxu0 %v2596
    %2643 = vmatpush1.bf16.msra.mxu0 %v2595
    %2644 = vmatprep.subr.bf16.mxu0 %v2599
    %2645 = vmatpush1.bf16.msra.mxu0 %v2598
    %2646 = vmatprep.subr.bf16.mxu0 %v2602
    %2647 = vmatpush1.bf16.msra.mxu0 %v2601
    %2648 = vmatprep.subr.bf16.mxu0 %v2605
    %2649 = vmatpush1.bf16.msra.mxu0 %v2604
    %2650 = vmatprep.subr.bf16.mxu0 %v2608
    %2651 = vmatpush1.bf16.msra.mxu0 %v2607
    %2652 = vmatprep.subr.bf16.mxu0 %v2611
    %2653 = vmatpush1.bf16.msra.mxu0 %v2610
    %2654 = vmatprep.subr.bf16.mxu0 0
    %2655 = vmatpush1.bf16.msra.mxu0 0
    %2656 = vmatprep.subr.bf16.mxu0 0
    %2657 = vmatpush1.bf16.msra.mxu0 0
    %2658 = vmatprep.subr.bf16.mxu0 0
    %2659 = vmatpush1.bf16.msra.mxu0 0
    %2660 = vmatprep.subr.bf16.mxu0 0
    %2661 = vmatpush1.bf16.msra.mxu0 0
    %2662 = vmatprep.subr.bf16.mxu0 0
    %2663 = vmatpush1.bf16.msra.mxu0 0
    %2664 = vmatprep.subr.bf16.mxu0 0
    %2665 = vmatpush1.bf16.msra.mxu0 0
    %2666 = vmatprep.subr.bf16.mxu0 0
    %2667 = vmatpush1.bf16.msra.mxu0 0
    %2668 = vmatprep.subr.bf16.mxu0 0
    %2669 = vmatpush1.bf16.msra.mxu0 0
    %2670 = vmatprep.subr.bf16.mxu0 0
    %2671 = vmatpush1.bf16.msra.mxu0 0
    %2672 = vmatprep.mubr.bf16.mxu0 0
    %2673 = vmatmul.mubr.bf16.gmra.mrb[0].mxu0 %v2635
    %v2674 = vpop.f32.mrb[0].mxu0
    %v2675 = vadd.f32 0.0, %v2674
    %v2676 = vpop.f32.mrb[0].mxu0
    %v2677 = vadd.f32 0.0, %v2676
    %v2678 = vpop.f32.mrb[0].mxu0
    %v2679 = vadd.f32 0.0, %v2678
    %v2680 = vpop.f32.mrb[0].mxu0
    %v2681 = vadd.f32 0.0, %v2680
    %2682 = vmatprep.mubr.bf16.mxu0 0
    %2683 = vmatmul.mubr.bf16.gmra.mrb[0].mxu0 %v2638
    %v2684 = vpop.f32.mrb[0].mxu0
    %v2685 = vadd.f32 0.0, %v2684
    %v2686 = vpop.f32.mrb[0].mxu0
    %v2687 = vadd.f32 0.0, %v2686
    %v2688 = vpop.f32.mrb[0].mxu0
    %v2689 = vpop.f32.mrb[0].mxu0
    %2690 = vdwg.mxu0
    %2691 = vmatprep.subr.bf16.mxu0 0
    %2692 = vmatpush1.bf16.msra.mxu0 %v2594
    %2693 = vmatprep.subr.bf16.mxu0 0
    %2694 = vmatpush1.bf16.msra.mxu0 %v2597
    %2695 = vmatprep.subr.bf16.mxu0 0
    %2696 = vmatpush1.bf16.msra.mxu0 %v2600
    %2697 = vmatprep.subr.bf16.mxu0 0
    %2698 = vmatpush1.bf16.msra.mxu0 %v2603
    %2699 = vmatprep.subr.bf16.mxu0 0
    %2700 = vmatpush1.bf16.msra.mxu0 %v2606
    %2701 = vmatprep.subr.bf16.mxu0 0
    %2702 = vmatpush1.bf16.msra.mxu0 %v2609
    %2703 = vmatprep.subr.bf16.mxu0 0
    %2704 = vmatpush1.bf16.msra.mxu0 %v2612
    %2705 = vmatprep.subr.bf16.mxu0 0
    %2706 = vmatpush1.bf16.msra.mxu0 0
    %2707 = vmatprep.subr.bf16.mxu0 0
    %2708 = vmatpush1.bf16.msra.mxu0 0
    %2709 = vmatprep.subr.bf16.mxu0 0
    %2710 = vmatpush1.bf16.msra.mxu0 0
    %2711 = vmatprep.subr.bf16.mxu0 0
    %2712 = vmatpush1.bf16.msra.mxu0 0
    %2713 = vmatprep.subr.bf16.mxu0 0
    %2714 = vmatpush1.bf16.msra.mxu0 0
    %2715 = vmatprep.subr.bf16.mxu0 0
    %2716 = vmatpush1.bf16.msra.mxu0 0
    %2717 = vmatprep.subr.bf16.mxu0 0
    %2718 = vmatpush1.bf16.msra.mxu0 0
    %2719 = vmatprep.subr.bf16.mxu0 0
    %2720 = vmatpush1.bf16.msra.mxu0 0
    %2721 = vmatprep.subr.bf16.mxu0 0
    %2722 = vmatpush1.bf16.msra.mxu0 0
    %2723 = vmatprep.mubr.bf16.mxu0 0
    %2724 = vmatmul.mubr.bf16.gmra.mrb[0].mxu0 %v2635
    %v2725 = vpop.f32.mrb[0].mxu0
    %v2726 = vadd.f32 0.0, %v2725
    %v2727 = vpop.f32.mrb[0].mxu0
    %v2728 = vpop.f32.mrb[0].mxu0
    %v2729 = vadd.f32 0.0, %v2728
    %v2730 = vpop.f32.mrb[0].mxu0
    %2731 = vmatprep.mubr.bf16.mxu0 0
    %2732 = vmatmul.mubr.bf16.gmra.mrb[0].mxu0 %v2638
    %v2733 = vpop.f32.mrb[0].mxu0
    %v2734 = vadd.f32 0.0, %v2733
    %v2735 = vpop.f32.mrb[0].mxu0
    %v2736 = vpop.f32.mrb[0].mxu0
    %v2737 = vpop.f32.mrb[0].mxu0
    %2738 = vdwg.mxu0
    %v2739 = vld [vmem:[#allocation4] sm:$0xfe]
    %v2740 = vld [vmem:[#allocation4 + $0x8] sm:$0xfe]
    %v2741 = vld [vmem:[#allocation4 + $0x10] sm:$0xfe]
    %v2742 = vld [vmem:[#allocation4 + $0x18] sm:$0xff]
    %v2743 = vld [vmem:[#allocation4 + $0x20] sm:$0xff]
    %v2744 = vld [vmem:[#allocation4 + $0x28] sm:$0xff]
    %v2745 = vld [vmem:[#allocation4 + $0x30] sm:$0x3f]
    %v2746 = vld [vmem:[#allocation4 + $0x38] sm:$0x3f]
    %v2747 = vld [vmem:[#allocation4 + $0x40] sm:$0x3f]
    %v2757 = vrot.slane %v2675, 7
    %v2758 = vrot.slane %v2677, 7
    %v2759 = vrot.slane %v2726, 7
    %v2760 = vrot.slane %v2679, 7
    %v2761 = vsel %vm602, %v2757, %v2760
    %v2762 = vrot.slane %v2681, 7
    %v2763 = vsel %vm602, %v2758, %v2762
    %v2764 = vrot.slane %v2729, 7
    %v2765 = vsel %vm602, %v2759, %v2764
    %v2766 = vrot.slane %v2685, 7
    %v2767 = vsel %vm602, %v2760, %v2766
    %v2768 = vrot.slane %v2687, 7
    %v2769 = vsel %vm602, %v2762, %v2768
    %v2770 = vrot.slane %v2734, 7
    %v2771 = vsel %vm602, %v2764, %v2770
    %v2781 = vadd.f32 %v2739, %v2757
    %v2782 = vadd.f32 %v2740, %v2758
    %v2783 = vadd.f32 %v2741, %v2759
    %v2784 = vadd.f32 %v2742, %v2761
    %v2785 = vadd.f32 %v2743, %v2763
    %v2786 = vadd.f32 %v2744, %v2765
    %v2787 = vadd.f32 %v2745, %v2767
    %v2788 = vadd.f32 %v2746, %v2769
    %v2789 = vadd.f32 %v2747, %v2771
    %2790 = vst [vmem:[#allocation4] sm:$0xfe] %v2781
    %2791 = vst [vmem:[#allocation4 + $0x8] sm:$0xfe] %v2782
    %2792 = vst.msk [vmem:[#allocation4 + $0x10] sm:$0xfe] %vm2474, %v2783
    %2793 = vst [vmem:[#allocation4 + $0x18] sm:$0xff] %v2784
    %2794 = vst [vmem:[#allocation4 + $0x20] sm:$0xff] %v2785
    %2795 = vst.msk [vmem:[#allocation4 + $0x28] sm:$0xff] %vm1968, %v2786
    %2796 = vst [vmem:[#allocation4 + $0x30] sm:$0x3f] %v2787
    %2797 = vst [vmem:[#allocation4 + $0x38] sm:$0x3f] %v2788
    %2798 = vst.msk [vmem:[#allocation4 + $0x40] sm:$0x3f] %vm1984, %v2789
    %v2799 = vld [vmem:[%s1960] sm:$0xf]
    %v2800 = vld [vmem:[%s1960 + $0x4] sm:$0xf]
    %v2801 = vld [vmem:[%s1960 + $0x8] sm:$0x7]
    %v2805 = vunpack.c.l.b16 %v2799
    %v2806 = vunpack.c.l.b16 %v2800
    %v2807 = vunpack.c.l.b16 %v2801
    %v2808 = vpack.c.b16 %v2806, %v2805
    %v2809 = vpack.c.b16 %v2807, %v2807
    %v2811 = vsel %vm2137, %v2808, 0
    %v2814 = vsel %vm2137, %v2809, 0
    %2816 = vmatprep.subr.bf16.mxu0 %v2593
    %2817 = vmatpush1.bf16.msra.mxu0 %v2592
    %2818 = vmatprep.subr.bf16.mxu0 %v2596
    %2819 = vmatpush1.bf16.msra.mxu0 %v2595
    %2820 = vmatprep.subr.bf16.mxu0 %v2599
    %2821 = vmatpush1.bf16.msra.mxu0 %v2598
    %2822 = vmatprep.subr.bf16.mxu0 %v2602
    %2823 = vmatpush1.bf16.msra.mxu0 %v2601
    %2824 = vmatprep.subr.bf16.mxu0 %v2605
    %2825 = vmatpush1.bf16.msra.mxu0 %v2604
    %2826 = vmatprep.subr.bf16.mxu0 %v2608
    %2827 = vmatpush1.bf16.msra.mxu0 %v2607
    %2828 = vmatprep.subr.bf16.mxu0 %v2611
    %2829 = vmatpush1.bf16.msra.mxu0 %v2610
    %2830 = vmatprep.subr.bf16.mxu0 0
    %2831 = vmatpush1.bf16.msra.mxu0 0
    %2832 = vmatprep.subr.bf16.mxu0 0
    %2833 = vmatpush1.bf16.msra.mxu0 0
    %2834 = vmatprep.subr.bf16.mxu0 0
    %2835 = vmatpush1.bf16.msra.mxu0 0
    %2836 = vmatprep.subr.bf16.mxu0 0
    %2837 = vmatpush1.bf16.msra.mxu0 0
    %2838 = vmatprep.subr.bf16.mxu0 0
    %2839 = vmatpush1.bf16.msra.mxu0 0
    %2840 = vmatprep.subr.bf16.mxu0 0
    %2841 = vmatpush1.bf16.msra.mxu0 0
    %2842 = vmatprep.subr.bf16.mxu0 0
    %2843 = vmatpush1.bf16.msra.mxu0 0
    %2844 = vmatprep.subr.bf16.mxu0 0
    %2845 = vmatpush1.bf16.msra.mxu0 0
    %2846 = vmatprep.subr.bf16.mxu0 0
    %2847 = vmatpush1.bf16.msra.mxu0 0
    %2848 = vmatprep.mubr.bf16.mxu0 0
    %2849 = vmatmul.mubr.bf16.gmra.mrb[0].mxu0 %v2811
    %v2850 = vpop.f32.mrb[0].mxu0
    %v2851 = vadd.f32 0.0, %v2850
    %v2852 = vpop.f32.mrb[0].mxu0
    %v2853 = vadd.f32 0.0, %v2852
    %v2854 = vpop.f32.mrb[0].mxu0
    %v2855 = vadd.f32 0.0, %v2854
    %v2856 = vpop.f32.mrb[0].mxu0
    %v2857 = vadd.f32 0.0, %v2856
    %2858 = vmatprep.mubr.bf16.mxu0 0
    %2859 = vmatmul.mubr.bf16.gmra.mrb[0].mxu0 %v2814
    %v2860 = vpop.f32.mrb[0].mxu0
    %v2861 = vadd.f32 0.0, %v2860
    %v2862 = vpop.f32.mrb[0].mxu0
    %v2863 = vadd.f32 0.0, %v2862
    %v2864 = vpop.f32.mrb[0].mxu0
    %v2865 = vpop.f32.mrb[0].mxu0
    %2866 = vdwg.mxu0
    %2867 = vmatprep.subr.bf16.mxu0 0
    %2868 = vmatpush1.bf16.msra.mxu0 %v2594
    %2869 = vmatprep.subr.bf16.mxu0 0
    %2870 = vmatpush1.bf16.msra.mxu0 %v2597
    %2871 = vmatprep.subr.bf16.mxu0 0
    %2872 = vmatpush1.bf16.msra.mxu0 %v2600
    %2873 = vmatprep.subr.bf16.mxu0 0
    %2874 = vmatpush1.bf16.msra.mxu0 %v2603
    %2875 = vmatprep.subr.bf16.mxu0 0
    %2876 = vmatpush1.bf16.msra.mxu0 %v2606
    %2877 = vmatprep.subr.bf16.mxu0 0
    %2878 = vmatpush1.bf16.msra.mxu0 %v2609
    %2879 = vmatprep.subr.bf16.mxu0 0
    %2880 = vmatpush1.bf16.msra.mxu0 %v2612
    %2881 = vmatprep.subr.bf16.mxu0 0
    %2882 = vmatpush1.bf16.msra.mxu0 0
    %2883 = vmatprep.subr.bf16.mxu0 0
    %2884 = vmatpush1.bf16.msra.mxu0 0
    %2885 = vmatprep.subr.bf16.mxu0 0
    %2886 = vmatpush1.bf16.msra.mxu0 0
    %2887 = vmatprep.subr.bf16.mxu0 0
    %2888 = vmatpush1.bf16.msra.mxu0 0
    %2889 = vmatprep.subr.bf16.mxu0 0
    %2890 = vmatpush1.bf16.msra.mxu0 0
    %2891 = vmatprep.subr.bf16.mxu0 0
    %2892 = vmatpush1.bf16.msra.mxu0 0
    %2893 = vmatprep.subr.bf16.mxu0 0
    %2894 = vmatpush1.bf16.msra.mxu0 0
    %2895 = vmatprep.subr.bf16.mxu0 0
    %2896 = vmatpush1.bf16.msra.mxu0 0
    %2897 = vmatprep.subr.bf16.mxu0 0
    %2898 = vmatpush1.bf16.msra.mxu0 0
    %2899 = vmatprep.mubr.bf16.mxu0 0
    %2900 = vmatmul.mubr.bf16.gmra.mrb[0].mxu0 %v2811
    %v2901 = vpop.f32.mrb[0].mxu0
    %v2902 = vadd.f32 0.0, %v2901
    %v2903 = vpop.f32.mrb[0].mxu0
    %v2904 = vpop.f32.mrb[0].mxu0
    %v2905 = vadd.f32 0.0, %v2904
    %v2906 = vpop.f32.mrb[0].mxu0
    %2907 = vmatprep.mubr.bf16.mxu0 0
    %2908 = vmatmul.mubr.bf16.gmra.mrb[0].mxu0 %v2814
    %v2909 = vpop.f32.mrb[0].mxu0
    %v2910 = vadd.f32 0.0, %v2909
    %v2911 = vpop.f32.mrb[0].mxu0
    %v2912 = vpop.f32.mrb[0].mxu0
    %v2913 = vpop.f32.mrb[0].mxu0
    %2914 = vdwg.mxu0
    %v2915 = vld [vmem:[#allocation4 + $0x48] sm:$0xff]
    %v2916 = vld [vmem:[#allocation4 + $0x50] sm:$0xff]
    %v2917 = vld [vmem:[#allocation4 + $0x58] sm:$0xff]
    %v2918 = vld [vmem:[#allocation4 + $0x60] sm:$0xff]
    %v2919 = vld [vmem:[#allocation4 + $0x68] sm:$0xff]
    %v2920 = vld [vmem:[#allocation4 + $0x70] sm:$0xff]
    %v2921 = vld [vmem:[#allocation4 + $0x78] sm:$0x1f]
    %v2922 = vld [vmem:[#allocation4 + $0x80] sm:$0x1f]
    %v2923 = vld [vmem:[#allocation4 + $0x88] sm:$0x1f]
    %v2924 = vadd.f32 %v2915, %v2851
    %v2925 = vadd.f32 %v2916, %v2853
    %v2926 = vadd.f32 %v2917, %v2902
    %v2927 = vadd.f32 %v2918, %v2855
    %v2928 = vadd.f32 %v2919, %v2857
    %v2929 = vadd.f32 %v2920, %v2905
    %v2930 = vadd.f32 %v2921, %v2861
    %v2931 = vadd.f32 %v2922, %v2863
    %v2932 = vadd.f32 %v2923, %v2910
    %2933 = vst [vmem:[#allocation4 + $0x48] sm:$0xff] %v2924
    %2934 = vst [vmem:[#allocation4 + $0x50] sm:$0xff] %v2925
    %2935 = vst.msk [vmem:[#allocation4 + $0x58] sm:$0xff] %vm1968, %v2926
    %2936 = vst [vmem:[#allocation4 + $0x60] sm:$0xff] %v2927
    %2937 = vst [vmem:[#allocation4 + $0x68] sm:$0xff] %v2928
    %2938 = vst.msk [vmem:[#allocation4 + $0x70] sm:$0xff] %vm1968, %v2929
    %2939 = vst [vmem:[#allocation4 + $0x78] sm:$0x1f] %v2930
    %2940 = vst [vmem:[#allocation4 + $0x80] sm:$0x1f] %v2931
    %vm2941 = vcmask 258048
    %2942 = vst.msk [vmem:[#allocation4 + $0x88] sm:$0x1f] %vm2941, %v2932
    %s2943 = scalar_lea.vmem %s5, 336
    %v2944 = vld [vmem:[%s2943] sm:$0xff]
    %v2945 = vld [vmem:[%s2943 + $0x8] sm:$0xf]
    %v2946 = vld [vmem:[%s2943 + $0xc] sm:$0xff]
    %v2947 = vld [vmem:[%s2943 + $0x14] sm:$0xf]
    %v2948 = vld [vmem:[%s2943 + $0x18] sm:$0xff]
    %v2949 = vld [vmem:[%s2943 + $0x20] sm:$0xf]
    %v2950 = vld [vmem:[%s2943 + $0x24] sm:$0xff]
    %v2951 = vld [vmem:[%s2943 + $0x2c] sm:$0xf]
    %v2952 = vld [vmem:[%s2943 + $0x30] sm:$0xff]
    %v2953 = vld [vmem:[%s2943 + $0x38] sm:$0xf]
    %v2954 = vld [vmem:[%s2943 + $0x3c] sm:$0xff]
    %v2955 = vld [vmem:[%s2943 + $0x44] sm:$0xf]
    %v2956 = vld [vmem:[%s2943 + $0x48] sm:$0xff]
    %v2957 = vld [vmem:[%s2943 + $0x50] sm:$0xf]
    %v2958 = vld [vmem:[%s2943 + $0x54] sm:$0xff]
    %v2959 = vld [vmem:[%s2943 + $0x5c] sm:$0xf]
    %v2960 = vld [vmem:[%s2943 + $0x60] sm:$0xff]
    %v2961 = vld [vmem:[%s2943 + $0x68] sm:$0xf]
    %v2962 = vld [vmem:[%s2943 + $0x6c] sm:$0xff]
    %v2963 = vld [vmem:[%s2943 + $0x74] sm:$0xf]
    %v2964 = vld [vmem:[%s2943 + $0x78] sm:$0xff]
    %v2965 = vld [vmem:[%s2943 + $0x80] sm:$0xf]
    %v2966 = vld [vmem:[%s2943 + $0x84] sm:$0xff]
    %v2967 = vld [vmem:[%s2943 + $0x8c] sm:$0xf]
    %v2968 = vld [vmem:[%s2943 + $0x90] sm:$0xff]
    %v2969 = vld [vmem:[%s2943 + $0x98] sm:$0xf]
    %v2970 = vld [vmem:[%s2943 + $0x9c] sm:$0xff]
    %v2971 = vld [vmem:[%s2943 + $0xa4] sm:$0xf]
    %v2972 = vld [vmem:[#allocation3] sm:$0xf]
    %v2973 = vld [vmem:[#allocation3 + $0x4] sm:$0xf]
    %v2974 = vld [vmem:[#allocation3 + $0x8] sm:$0x7]
    %v2978 = vunpack.c.l.b16 %v2972
    %v2979 = vunpack.c.l.b16 %v2973
    %v2980 = vunpack.c.l.b16 %v2974
    %v2981 = vpack.c.b16 %v2979, %v2978
    %v2982 = vpack.c.b16 %v2980, %v2980
    %v3011 = vunpack.c.l.b16 %v2944
    %v3012 = vunpack.c.h.b16 %v2944
    %v3013 = vunpack.c.l.b16 %v2945
    %v3014 = vunpack.c.l.b16 %v2946
    %v3015 = vunpack.c.h.b16 %v2946
    %v3016 = vunpack.c.l.b16 %v2947
    %v3017 = vunpack.c.l.b16 %v2948
    %v3018 = vunpack.c.h.b16 %v2948
    %v3019 = vunpack.c.l.b16 %v2949
    %v3020 = vunpack.c.l.b16 %v2950
    %v3021 = vunpack.c.h.b16 %v2950
    %v3022 = vunpack.c.l.b16 %v2951
    %v3023 = vunpack.c.l.b16 %v2952
    %v3024 = vunpack.c.h.b16 %v2952
    %v3025 = vunpack.c.l.b16 %v2953
    %v3026 = vunpack.c.l.b16 %v2954
    %v3027 = vunpack.c.h.b16 %v2954
    %v3028 = vunpack.c.l.b16 %v2955
    %v3029 = vunpack.c.l.b16 %v2956
    %v3030 = vunpack.c.h.b16 %v2956
    %v3031 = vunpack.c.l.b16 %v2957
    %v3032 = vunpack.c.l.b16 %v2958
    %v3033 = vunpack.c.h.b16 %v2958
    %v3034 = vunpack.c.l.b16 %v2959
    %v3035 = vunpack.c.l.b16 %v2960
    %v3036 = vunpack.c.h.b16 %v2960
    %v3037 = vunpack.c.l.b16 %v2961
    %v3038 = vunpack.c.l.b16 %v2962
    %v3039 = vunpack.c.h.b16 %v2962
    %v3040 = vunpack.c.l.b16 %v2963
    %v3041 = vunpack.c.l.b16 %v2964
    %v3042 = vunpack.c.h.b16 %v2964
    %v3043 = vunpack.c.l.b16 %v2965
    %v3044 = vunpack.c.l.b16 %v2966
    %v3045 = vunpack.c.h.b16 %v2966
    %v3046 = vunpack.c.l.b16 %v2967
    %v3047 = vunpack.c.l.b16 %v2968
    %v3048 = vunpack.c.h.b16 %v2968
    %v3049 = vunpack.c.l.b16 %v2969
    %v3050 = vunpack.c.l.b16 %v2970
    %v3051 = vunpack.c.h.b16 %v2970
    %v3052 = vunpack.c.l.b16 %v2971
    %v3053 = vpack.c.b16 %v3014, %v3011
    %v3054 = vpack.c.b16 %v3015, %v3012
    %v3055 = vpack.c.b16 %v3016, %v3013
    %v3056 = vpack.c.b16 %v3020, %v3017
    %v3057 = vpack.c.b16 %v3021, %v3018
    %v3058 = vpack.c.b16 %v3022, %v3019
    %v3059 = vpack.c.b16 %v3026, %v3023
    %v3060 = vpack.c.b16 %v3027, %v3024
    %v3061 = vpack.c.b16 %v3028, %v3025
    %v3062 = vpack.c.b16 %v3032, %v3029
    %v3063 = vpack.c.b16 %v3033, %v3030
    %v3064 = vpack.c.b16 %v3034, %v3031
    %v3065 = vpack.c.b16 %v3038, %v3035
    %v3066 = vpack.c.b16 %v3039, %v3036
    %v3067 = vpack.c.b16 %v3040, %v3037
    %v3068 = vpack.c.b16 %v3044, %v3041
    %v3069 = vpack.c.b16 %v3045, %v3042
    %v3070 = vpack.c.b16 %v3046, %v3043
    %v3071 = vpack.c.b16 %v3050, %v3047
    %v3072 = vpack.c.b16 %v3051, %v3048
    %v3073 = vpack.c.b16 %v3052, %v3049
    %v3096 = vsel %vm2137, %v2981, 0
    %v3099 = vsel %vm2137, %v2982, 0
    %3101 = vmatprep.subr.bf16.mxu0 %v3054
    %3102 = vmatpush1.bf16.msra.mxu0 %v3053
    %3103 = vmatprep.subr.bf16.mxu0 %v3057
    %3104 = vmatpush1.bf16.msra.mxu0 %v3056
    %3105 = vmatprep.subr.bf16.mxu0 %v3060
    %3106 = vmatpush1.bf16.msra.mxu0 %v3059
    %3107 = vmatprep.subr.bf16.mxu0 %v3063
    %3108 = vmatpush1.bf16.msra.mxu0 %v3062
    %3109 = vmatprep.subr.bf16.mxu0 %v3066
    %3110 = vmatpush1.bf16.msra.mxu0 %v3065
    %3111 = vmatprep.subr.bf16.mxu0 %v3069
    %3112 = vmatpush1.bf16.msra.mxu0 %v3068
    %3113 = vmatprep.subr.bf16.mxu0 %v3072
    %3114 = vmatpush1.bf16.msra.mxu0 %v3071
    %3115 = vmatprep.subr.bf16.mxu0 0
    %3116 = vmatpush1.bf16.msra.mxu0 0
    %3117 = vmatprep.subr.bf16.mxu0 0
    %3118 = vmatpush1.bf16.msra.mxu0 0
    %3119 = vmatprep.subr.bf16.mxu0 0
    %3120 = vmatpush1.bf16.msra.mxu0 0
    %3121 = vmatprep.subr.bf16.mxu0 0
    %3122 = vmatpush1.bf16.msra.mxu0 0
    %3123 = vmatprep.subr.bf16.mxu0 0
    %3124 = vmatpush1.bf16.msra.mxu0 0
    %3125 = vmatprep.subr.bf16.mxu0 0
    %3126 = vmatpush1.bf16.msra.mxu0 0
    %3127 = vmatprep.subr.bf16.mxu0 0
    %3128 = vmatpush1.bf16.msra.mxu0 0
    %3129 = vmatprep.subr.bf16.mxu0 0
    %3130 = vmatpush1.bf16.msra.mxu0 0
    %3131 = vmatprep.subr.bf16.mxu0 0
    %3132 = vmatpush1.bf16.msra.mxu0 0
    %3133 = vmatprep.mubr.bf16.mxu0 0
    %3134 = vmatmul.mubr.bf16.gmra.mrb[0].mxu0 %v3096
    %v3135 = vpop.f32.mrb[0].mxu0
    %v3136 = vadd.f32 0.0, %v3135
    %v3137 = vpop.f32.mrb[0].mxu0
    %v3138 = vadd.f32 0.0, %v3137
    %v3139 = vpop.f32.mrb[0].mxu0
    %v3140 = vadd.f32 0.0, %v3139
    %v3141 = vpop.f32.mrb[0].mxu0
    %v3142 = vadd.f32 0.0, %v3141
    %3143 = vmatprep.mubr.bf16.mxu0 0
    %3144 = vmatmul.mubr.bf16.gmra.mrb[0].mxu0 %v3099
    %v3145 = vpop.f32.mrb[0].mxu0
    %v3146 = vadd.f32 0.0, %v3145
    %v3147 = vpop.f32.mrb[0].mxu0
    %v3148 = vadd.f32 0.0, %v3147
    %v3149 = vpop.f32.mrb[0].mxu0
    %v3150 = vpop.f32.mrb[0].mxu0
    %3151 = vdwg.mxu0
    %3152 = vmatprep.subr.bf16.mxu0 0
    %3153 = vmatpush1.bf16.msra.mxu0 %v3055
    %3154 = vmatprep.subr.bf16.mxu0 0
    %3155 = vmatpush1.bf16.msra.mxu0 %v3058
    %3156 = vmatprep.subr.bf16.mxu0 0
    %3157 = vmatpush1.bf16.msra.mxu0 %v3061
    %3158 = vmatprep.subr.bf16.mxu0 0
    %3159 = vmatpush1.bf16.msra.mxu0 %v3064
    %3160 = vmatprep.subr.bf16.mxu0 0
    %3161 = vmatpush1.bf16.msra.mxu0 %v3067
    %3162 = vmatprep.subr.bf16.mxu0 0
    %3163 = vmatpush1.bf16.msra.mxu0 %v3070
    %3164 = vmatprep.subr.bf16.mxu0 0
    %3165 = vmatpush1.bf16.msra.mxu0 %v3073
    %3166 = vmatprep.subr.bf16.mxu0 0
    %3167 = vmatpush1.bf16.msra.mxu0 0
    %3168 = vmatprep.subr.bf16.mxu0 0
    %3169 = vmatpush1.bf16.msra.mxu0 0
    %3170 = vmatprep.subr.bf16.mxu0 0
    %3171 = vmatpush1.bf16.msra.mxu0 0
    %3172 = vmatprep.subr.bf16.mxu0 0
    %3173 = vmatpush1.bf16.msra.mxu0 0
    %3174 = vmatprep.subr.bf16.mxu0 0
    %3175 = vmatpush1.bf16.msra.mxu0 0
    %3176 = vmatprep.subr.bf16.mxu0 0
    %3177 = vmatpush1.bf16.msra.mxu0 0
    %3178 = vmatprep.subr.bf16.mxu0 0
    %3179 = vmatpush1.bf16.msra.mxu0 0
    %3180 = vmatprep.subr.bf16.mxu0 0
    %3181 = vmatpush1.bf16.msra.mxu0 0
    %3182 = vmatprep.subr.bf16.mxu0 0
    %3183 = vmatpush1.bf16.msra.mxu0 0
    %3184 = vmatprep.mubr.bf16.mxu0 0
    %3185 = vmatmul.mubr.bf16.gmra.mrb[0].mxu0 %v3096
    %v3186 = vpop.f32.mrb[0].mxu0
    %v3187 = vadd.f32 0.0, %v3186
    %v3188 = vpop.f32.mrb[0].mxu0
    %v3189 = vpop.f32.mrb[0].mxu0
    %v3190 = vadd.f32 0.0, %v3189
    %v3191 = vpop.f32.mrb[0].mxu0
    %3192 = vmatprep.mubr.bf16.mxu0 0
    %3193 = vmatmul.mubr.bf16.gmra.mrb[0].mxu0 %v3099
    %v3194 = vpop.f32.mrb[0].mxu0
    %v3195 = vadd.f32 0.0, %v3194
    %v3196 = vpop.f32.mrb[0].mxu0
    %v3197 = vpop.f32.mrb[0].mxu0
    %v3198 = vpop.f32.mrb[0].mxu0
    %3199 = vdwg.mxu0
    %v3200 = vld [vmem:[#allocation4] sm:$0xff]
    %v3201 = vld [vmem:[#allocation4 + $0x8] sm:$0xff]
    %v3202 = vld [vmem:[#allocation4 + $0x10] sm:$0xff]
    %v3203 = vld [vmem:[#allocation4 + $0x18] sm:$0xff]
    %v3204 = vld [vmem:[#allocation4 + $0x20] sm:$0xff]
    %v3205 = vld [vmem:[#allocation4 + $0x28] sm:$0xff]
    %v3206 = vld [vmem:[#allocation4 + $0x30] sm:$0x1f]
    %v3207 = vld [vmem:[#allocation4 + $0x38] sm:$0x1f]
    %v3208 = vld [vmem:[#allocation4 + $0x40] sm:$0x1f]
    %v3209 = vadd.f32 %v3200, %v3136
    %v3210 = vadd.f32 %v3201, %v3138
    %v3211 = vadd.f32 %v3202, %v3187
    %v3212 = vadd.f32 %v3203, %v3140
    %v3213 = vadd.f32 %v3204, %v3142
    %v3214 = vadd.f32 %v3205, %v3190
    %v3215 = vadd.f32 %v3206, %v3146
    %v3216 = vadd.f32 %v3207, %v3148
    %v3217 = vadd.f32 %v3208, %v3195
    %3218 = vst [vmem:[#allocation4] sm:$0xff] %v3209
    %3219 = vst [vmem:[#allocation4 + $0x8] sm:$0xff] %v3210
    %3220 = vst.msk [vmem:[#allocation4 + $0x10] sm:$0xff] %vm1968, %v3211
    %3221 = vst [vmem:[#allocation4 + $0x18] sm:$0xff] %v3212
    %3222 = vst [vmem:[#allocation4 + $0x20] sm:$0xff] %v3213
    %3223 = vst.msk [vmem:[#allocation4 + $0x28] sm:$0xff] %vm1968, %v3214
    %3224 = vst [vmem:[#allocation4 + $0x30] sm:$0x1f] %v3215
    %3225 = vst [vmem:[#allocation4 + $0x38] sm:$0x1f] %v3216
    %3226 = vst.msk [vmem:[#allocation4 + $0x40] sm:$0x1f] %vm2941, %v3217
    %v3227 = vld [vmem:[%s1960] sm:$0xf]
    %v3228 = vld [vmem:[%s1960 + $0x4] sm:$0xf]
    %v3229 = vld [vmem:[%s1960 + $0x8] sm:$0x7]
    %v3233 = vunpack.c.l.b16 %v3227
    %v3234 = vunpack.c.l.b16 %v3228
    %v3235 = vunpack.c.l.b16 %v3229
    %v3236 = vpack.c.b16 %v3234, %v3233
    %v3237 = vpack.c.b16 %v3235, %v3235
    %v3239 = vsel %vm2137, %v3236, 0
    %v3242 = vsel %vm2137, %v3237, 0
    %3244 = vmatprep.subr.bf16.mxu0 %v3054
    %3245 = vmatpush1.bf16.msra.mxu0 %v3053
    %3246 = vmatprep.subr.bf16.mxu0 %v3057
    %3247 = vmatpush1.bf16.msra.mxu0 %v3056
    %3248 = vmatprep.subr.bf16.mxu0 %v3060
    %3249 = vmatpush1.bf16.msra.mxu0 %v3059
    %3250 = vmatprep.subr.bf16.mxu0 %v3063
    %3251 = vmatpush1.bf16.msra.mxu0 %v3062
    %3252 = vmatprep.subr.bf16.mxu0 %v3066
    %3253 = vmatpush1.bf16.msra.mxu0 %v3065
    %3254 = vmatprep.subr.bf16.mxu0 %v3069
    %3255 = vmatpush1.bf16.msra.mxu0 %v3068
    %3256 = vmatprep.subr.bf16.mxu0 %v3072
    %3257 = vmatpush1.bf16.msra.mxu0 %v3071
    %3258 = vmatprep.subr.bf16.mxu0 0
    %3259 = vmatpush1.bf16.msra.mxu0 0
    %3260 = vmatprep.subr.bf16.mxu0 0
    %3261 = vmatpush1.bf16.msra.mxu0 0
    %3262 = vmatprep.subr.bf16.mxu0 0
    %3263 = vmatpush1.bf16.msra.mxu0 0
    %3264 = vmatprep.subr.bf16.mxu0 0
    %3265 = vmatpush1.bf16.msra.mxu0 0
    %3266 = vmatprep.subr.bf16.mxu0 0
    %3267 = vmatpush1.bf16.msra.mxu0 0
    %3268 = vmatprep.subr.bf16.mxu0 0
    %3269 = vmatpush1.bf16.msra.mxu0 0
    %3270 = vmatprep.subr.bf16.mxu0 0
    %3271 = vmatpush1.bf16.msra.mxu0 0
    %3272 = vmatprep.subr.bf16.mxu0 0
    %3273 = vmatpush1.bf16.msra.mxu0 0
    %3274 = vmatprep.subr.bf16.mxu0 0
    %3275 = vmatpush1.bf16.msra.mxu0 0
    %3276 = vmatprep.mubr.bf16.mxu0 0
    %3277 = vmatmul.mubr.bf16.gmra.mrb[0].mxu0 %v3239
    %v3278 = vpop.f32.mrb[0].mxu0
    %v3279 = vadd.f32 0.0, %v3278
    %v3280 = vpop.f32.mrb[0].mxu0
    %v3281 = vadd.f32 0.0, %v3280
    %v3282 = vpop.f32.mrb[0].mxu0
    %v3283 = vadd.f32 0.0, %v3282
    %v3284 = vpop.f32.mrb[0].mxu0
    %v3285 = vadd.f32 0.0, %v3284
    %3286 = vmatprep.mubr.bf16.mxu0 0
    %3287 = vmatmul.mubr.bf16.gmra.mrb[0].mxu0 %v3242
    %v3288 = vpop.f32.mrb[0].mxu0
    %v3289 = vadd.f32 0.0, %v3288
    %v3290 = vpop.f32.mrb[0].mxu0
    %v3291 = vadd.f32 0.0, %v3290
    %v3292 = vpop.f32.mrb[0].mxu0
    %v3293 = vpop.f32.mrb[0].mxu0
    %3294 = vdwg.mxu0
    %3295 = vmatprep.subr.bf16.mxu0 0
    %3296 = vmatpush1.bf16.msra.mxu0 %v3055
    %3297 = vmatprep.subr.bf16.mxu0 0
    %3298 = vmatpush1.bf16.msra.mxu0 %v3058
    %3299 = vmatprep.subr.bf16.mxu0 0
    %3300 = vmatpush1.bf16.msra.mxu0 %v3061
    %3301 = vmatprep.subr.bf16.mxu0 0
    %3302 = vmatpush1.bf16.msra.mxu0 %v3064
    %3303 = vmatprep.subr.bf16.mxu0 0
    %3304 = vmatpush1.bf16.msra.mxu0 %v3067
    %3305 = vmatprep.subr.bf16.mxu0 0
    %3306 = vmatpush1.bf16.msra.mxu0 %v3070
    %3307 = vmatprep.subr.bf16.mxu0 0
    %3308 = vmatpush1.bf16.msra.mxu0 %v3073
    %3309 = vmatprep.subr.bf16.mxu0 0
    %3310 = vmatpush1.bf16.msra.mxu0 0
    %3311 = vmatprep.subr.bf16.mxu0 0
    %3312 = vmatpush1.bf16.msra.mxu0 0
    %3313 = vmatprep.subr.bf16.mxu0 0
    %3314 = vmatpush1.bf16.msra.mxu0 0
    %3315 = vmatprep.subr.bf16.mxu0 0
    %3316 = vmatpush1.bf16.msra.mxu0 0
    %3317 = vmatprep.subr.bf16.mxu0 0
    %3318 = vmatpush1.bf16.msra.mxu0 0
    %3319 = vmatprep.subr.bf16.mxu0 0
    %3320 = vmatpush1.bf16.msra.mxu0 0
    %3321 = vmatprep.subr.bf16.mxu0 0
    %3322 = vmatpush1.bf16.msra.mxu0 0
    %3323 = vmatprep.subr.bf16.mxu0 0
    %3324 = vmatpush1.bf16.msra.mxu0 0
    %3325 = vmatprep.subr.bf16.mxu0 0
    %3326 = vmatpush1.bf16.msra.mxu0 0
    %3327 = vmatprep.mubr.bf16.mxu0 0
    %3328 = vmatmul.mubr.bf16.gmra.mrb[0].mxu0 %v3239
    %v3329 = vpop.f32.mrb[0].mxu0
    %v3330 = vadd.f32 0.0, %v3329
    %v3331 = vpop.f32.mrb[0].mxu0
    %v3332 = vpop.f32.mrb[0].mxu0
    %v3333 = vadd.f32 0.0, %v3332
    %v3334 = vpop.f32.mrb[0].mxu0
    %3335 = vmatprep.mubr.bf16.mxu0 0
    %3336 = vmatmul.mubr.bf16.gmra.mrb[0].mxu0 %v3242
    %v3337 = vpop.f32.mrb[0].mxu0
    %v3338 = vadd.f32 0.0, %v3337
    %v3339 = vpop.f32.mrb[0].mxu0
    %v3340 = vpop.f32.mrb[0].mxu0
    %v3341 = vpop.f32.mrb[0].mxu0
    %3342 = vdwg.mxu0
    %v3343 = vld [vmem:[#allocation4 + $0x30] sm:$0x80]
    %v3344 = vld [vmem:[#allocation4 + $0x38] sm:$0x80]
    %v3345 = vld [vmem:[#allocation4 + $0x40] sm:$0x80]
    %v3346 = vld [vmem:[#allocation4 + $0x48] sm:$0xff]
    %v3347 = vld [vmem:[#allocation4 + $0x50] sm:$0xff]
    %v3348 = vld [vmem:[#allocation4 + $0x58] sm:$0xff]
    %v3349 = vld [vmem:[#allocation4 + $0x60] sm:$0xff]
    %v3350 = vld [vmem:[#allocation4 + $0x68] sm:$0xff]
    %v3351 = vld [vmem:[#allocation4 + $0x70] sm:$0xff]
    %v3352 = vld [vmem:[#allocation4 + $0x78] sm:$0xf]
    %v3353 = vld [vmem:[#allocation4 + $0x80] sm:$0xf]
    %v3354 = vld [vmem:[#allocation4 + $0x88] sm:$0xf]
    %vm3364 = vcmask 1046528
    %v3365 = vrot.slane %v3279, 1
    %v3366 = vrot.slane %v3281, 1
    %v3367 = vrot.slane %v3330, 1
    %v3368 = vrot.slane %v3283, 1
    %v3369 = vsel %vm3364, %v3365, %v3368
    %v3370 = vrot.slane %v3285, 1
    %v3371 = vsel %vm3364, %v3366, %v3370
    %v3372 = vrot.slane %v3333, 1
    %v3373 = vsel %vm3364, %v3367, %v3372
    %v3374 = vrot.slane %v3289, 1
    %v3375 = vsel %vm3364, %v3368, %v3374
    %v3376 = vrot.slane %v3291, 1
    %v3377 = vsel %vm3364, %v3370, %v3376
    %v3378 = vrot.slane %v3338, 1
    %v3379 = vsel %vm3364, %v3372, %v3378
    %v3392 = vadd.f32 %v3343, %v3365
    %v3393 = vadd.f32 %v3344, %v3366
    %v3394 = vadd.f32 %v3345, %v3367
    %v3395 = vadd.f32 %v3346, %v3369
    %v3396 = vadd.f32 %v3347, %v3371
    %v3397 = vadd.f32 %v3348, %v3373
    %v3398 = vadd.f32 %v3349, %v3375
    %v3399 = vadd.f32 %v3350, %v3377
    %v3400 = vadd.f32 %v3351, %v3379
    %v3401 = vadd.f32 %v3352, %v3374
    %v3402 = vadd.f32 %v3353, %v3376
    %v3403 = vadd.f32 %v3354, %v3378
    %3404 = vst [vmem:[#allocation4 + $0x30] sm:$0x80] %v3392
    %3405 = vst [vmem:[#allocation4 + $0x38] sm:$0x80] %v3393
    %vm3406 = vcmask 261127
    %3407 = vst.msk [vmem:[#allocation4 + $0x40] sm:$0x80] %vm3406, %v3394
    %3408 = vst [vmem:[#allocation4 + $0x48] sm:$0xff] %v3395
    %3409 = vst [vmem:[#allocation4 + $0x50] sm:$0xff] %v3396
    %3410 = vst.msk [vmem:[#allocation4 + $0x58] sm:$0xff] %vm1968, %v3397
    %3411 = vst [vmem:[#allocation4 + $0x60] sm:$0xff] %v3398
    %3412 = vst [vmem:[#allocation4 + $0x68] sm:$0xff] %v3399
    %3413 = vst.msk [vmem:[#allocation4 + $0x70] sm:$0xff] %vm1968, %v3400
    %3414 = vst [vmem:[#allocation4 + $0x78] sm:$0xf] %v3401
    %3415 = vst [vmem:[#allocation4 + $0x80] sm:$0xf] %v3402
    %vm3416 = vcmask 257024
    %3417 = vst.msk [vmem:[#allocation4 + $0x88] sm:$0xf] %vm3416, %v3403
    %v3418 = vld [vmem:[#allocation4] sm:$0xff]
    %v3419 = vld [vmem:[#allocation4 + $0x8] sm:$0xff]
    %v3420 = vld [vmem:[#allocation4 + $0x10] sm:$0xff]
    %v3421 = vld [vmem:[#allocation4 + $0x18] sm:$0xff]
    %v3422 = vld [vmem:[#allocation4 + $0x20] sm:$0xff]
    %v3423 = vld [vmem:[#allocation4 + $0x28] sm:$0xff]
    %v3424 = vld [vmem:[#allocation4 + $0x30] sm:$0xff]
    %v3425 = vld [vmem:[#allocation4 + $0x38] sm:$0xff]
    %v3426 = vld [vmem:[#allocation4 + $0x40] sm:$0xff]
    %v3427 = vld [vmem:[#allocation4 + $0x48] sm:$0xff]
    %v3428 = vld [vmem:[#allocation4 + $0x50] sm:$0xff]
    %v3429 = vld [vmem:[#allocation4 + $0x58] sm:$0xff]
    %v3430 = vld [vmem:[#allocation4 + $0x60] sm:$0xff]
    %v3431 = vld [vmem:[#allocation4 + $0x68] sm:$0xff]
    %v3432 = vld [vmem:[#allocation4 + $0x70] sm:$0xff]
    %v3433 = vld [vmem:[#allocation4 + $0x78] sm:$0x3f]
    %v3434 = vld [vmem:[#allocation4 + $0x80] sm:$0x3f]
    %v3435 = vld [vmem:[#allocation4 + $0x88] sm:$0x3f]
    %v3436 = vld [vmem:[%s6] sm:$0x7]
    %v3438 = vlaneseq
    %v3439 = vshrl.u32 %v3438, 7
    %v3440 = vsub.s32 0, %v3439
    %v3441 = vrot.slane %v3436, %v3440
    %v3442 = vlaneseq
    %v3443 = vshrl.u32 %v3442, 7
    %v3444 = vsub.s32 1, %v3443
    %v3445 = vrot.slane %v3436, %v3444
    %v3446 = vlaneseq
    %v3447 = vshrl.u32 %v3446, 7
    %v3448 = vsub.s32 2, %v3447
    %v3449 = vrot.slane %v3436, %v3448
    %v3453 = vadd.f32 %v3418, %v3441
    %v3454 = vadd.f32 %v3419, %v3445
    %v3455 = vadd.f32 %v3420, %v3449
    %v3456 = vadd.f32 %v3421, %v3441
    %v3457 = vadd.f32 %v3422, %v3445
    %v3458 = vadd.f32 %v3423, %v3449
    %v3459 = vadd.f32 %v3424, %v3441
    %v3460 = vadd.f32 %v3425, %v3445
    %v3461 = vadd.f32 %v3426, %v3449
    %v3462 = vadd.f32 %v3427, %v3441
    %v3463 = vadd.f32 %v3428, %v3445
    %v3464 = vadd.f32 %v3429, %v3449
    %v3465 = vadd.f32 %v3430, %v3441
    %v3466 = vadd.f32 %v3431, %v3445
    %v3467 = vadd.f32 %v3432, %v3449
    %v3468 = vadd.f32 %v3433, %v3441
    %v3469 = vadd.f32 %v3434, %v3445
    %v3470 = vadd.f32 %v3435, %v3449
    %v3471 = vmax.f32 %v3453, 0.0
    %v3472 = vmax.f32 %v3454, 0.0
    %v3473 = vmax.f32 %v3455, 0.0
    %v3474 = vmax.f32 %v3456, 0.0
    %v3475 = vmax.f32 %v3457, 0.0
    %v3476 = vmax.f32 %v3458, 0.0
    %v3477 = vmax.f32 %v3459, 0.0
    %v3478 = vmax.f32 %v3460, 0.0
    %v3479 = vmax.f32 %v3461, 0.0
    %v3480 = vmax.f32 %v3462, 0.0
    %v3481 = vmax.f32 %v3463, 0.0
    %v3482 = vmax.f32 %v3464, 0.0
    %v3483 = vmax.f32 %v3465, 0.0
    %v3484 = vmax.f32 %v3466, 0.0
    %v3485 = vmax.f32 %v3467, 0.0
    %v3486 = vmax.f32 %v3468, 0.0
    %v3487 = vmax.f32 %v3469, 0.0
    %v3488 = vmax.f32 %v3470, 0.0
    %v3489 = vld [vmem:[%s7] sm:$0xff]
    %v3490 = vld [vmem:[%s7 + $0x8] sm:$0xff]
    %v3491 = vld [vmem:[%s7 + $0x10] sm:$0xff]
    %v3492 = vld [vmem:[%s7 + $0x18] sm:$0xff]
    %v3493 = vld [vmem:[%s7 + $0x20] sm:$0xff]
    %v3494 = vld [vmem:[%s7 + $0x28] sm:$0xff]
    %v3495 = vld [vmem:[%s7 + $0x30] sm:$0xff]
    %v3496 = vld [vmem:[%s7 + $0x38] sm:$0xff]
    %v3497 = vld [vmem:[%s7 + $0x40] sm:$0xff]
    %v3498 = vld [vmem:[%s7 + $0x48] sm:$0xff]
    %v3499 = vld [vmem:[%s7 + $0x50] sm:$0xff]
    %v3500 = vld [vmem:[%s7 + $0x58] sm:$0xff]
    %v3501 = vld [vmem:[%s7 + $0x60] sm:$0xff]
    %v3502 = vld [vmem:[%s7 + $0x68] sm:$0xff]
    %v3503 = vld [vmem:[%s7 + $0x70] sm:$0xff]
    %v3504 = vld [vmem:[%s7 + $0x78] sm:$0xff]
    %v3505 = vld [vmem:[%s7 + $0x80] sm:$0xff]
    %v3506 = vld [vmem:[%s7 + $0x88] sm:$0xff]
    %v3507 = vld [vmem:[%s7 + $0x90] sm:$0xff]
    %v3508 = vld [vmem:[%s7 + $0x98] sm:$0xff]
    %v3509 = vld [vmem:[%s7 + $0xa0] sm:$0xff]
    %v3510 = vld [vmem:[%s7 + $0xa8] sm:$0xff]
    %v3511 = vld [vmem:[%s7 + $0xb0] sm:$0xff]
    %v3512 = vld [vmem:[%s7 + $0xb8] sm:$0xff]
    %v3513 = vld [vmem:[%s7 + $0xc0] sm:$0xff]
    %v3514 = vld [vmem:[%s7 + $0xc8] sm:$0xff]
    %v3515 = vld [vmem:[%s7 + $0xd0] sm:$0xff]
    %v3516 = vld [vmem:[%s7 + $0xd8] sm:$0xff]
    %v3517 = vld [vmem:[%s7 + $0xe0] sm:$0xff]
    %v3518 = vld [vmem:[%s7 + $0xe8] sm:$0xff]
    %v3519 = vld [vmem:[%s7 + $0xf0] sm:$0xff]
    %v3520 = vld [vmem:[%s7 + $0xf8] sm:$0xff]
    %v3521 = vld [vmem:[%s7 + $0x100] sm:$0xff]
    %v3522 = vld [vmem:[%s7 + $0x108] sm:$0xff]
    %v3523 = vld [vmem:[%s7 + $0x110] sm:$0xff]
    %v3524 = vld [vmem:[%s7 + $0x118] sm:$0xff]
    %v3526 = vsel %vm1968, %v3473, 0
    %v3529 = vsel %vm1968, %v3476, 0
    %v3532 = vsel %vm1968, %v3479, 0
    %v3535 = vsel %vm1968, %v3482, 0
    %v3538 = vsel %vm1968, %v3485, 0
    %v3541 = vsel %vm1968, %v3488, 0
    %3543 = vmatprep.subr.mxu0 0.0
    %3544 = vmatpush1.msra.mxu0 %v3489
    %3545 = vmatprep.subr.mxu0 0.0
    %3546 = vmatpush1.msra.mxu0 %v3490
    %3547 = vmatprep.subr.mxu0 0.0
    %3548 = vmatpush1.msra.mxu0 %v3491
    %3549 = vmatprep.subr.mxu0 0.0
    %3550 = vmatpush1.msra.mxu0 %v3492
    %3551 = vmatprep.subr.mxu0 0.0
    %3552 = vmatpush1.msra.mxu0 %v3493
    %3553 = vmatprep.subr.mxu0 0.0
    %3554 = vmatpush1.msra.mxu0 %v3494
    %3555 = vmatprep.subr.mxu0 0.0
    %3556 = vmatpush1.msra.mxu0 %v3495
    %3557 = vmatprep.subr.mxu0 0.0
    %3558 = vmatpush1.msra.mxu0 %v3496
    %3559 = vmatprep.subr.mxu0 0.0
    %3560 = vmatpush1.msra.mxu0 %v3497
    %3561 = vmatprep.subr.mxu0 0.0
    %3562 = vmatpush1.msra.mxu0 %v3498
    %3563 = vmatprep.subr.mxu0 0.0
    %3564 = vmatpush1.msra.mxu0 %v3499
    %3565 = vmatprep.subr.mxu0 0.0
    %3566 = vmatpush1.msra.mxu0 %v3500
    %3567 = vmatprep.subr.mxu0 0.0
    %3568 = vmatpush1.msra.mxu0 %v3501
    %3569 = vmatprep.subr.mxu0 0.0
    %3570 = vmatpush1.msra.mxu0 %v3502
    %3571 = vmatprep.subr.mxu0 0.0
    %3572 = vmatpush1.msra.mxu0 %v3503
    %3573 = vmatprep.subr.mxu0 0.0
    %3574 = vmatpush1.msra.mxu0 %v3504
    %3575 = vmatprep.subr.mxu0 0.0
    %3576 = vmatpush1.msra.mxu0 %v3505
    %3577 = vmatprep.subr.mxu0 0.0
    %3578 = vmatpush1.msra.mxu0 %v3506
    %3579 = vmatprep.subr.mxu0 0.0
    %3580 = vmatpush1.msra.mxu0 %v3507
    %3581 = vmatprep.subr.mxu0 0.0
    %3582 = vmatpush1.msra.mxu0 %v3508
    %3583 = vmatprep.subr.mxu0 0.0
    %3584 = vmatpush1.msra.mxu0 %v3509
    %3585 = vmatprep.subr.mxu0 0.0
    %3586 = vmatpush1.msra.mxu0 %v3510
    %3587 = vmatprep.subr.mxu0 0.0
    %3588 = vmatpush1.msra.mxu0 %v3511
    %3589 = vmatprep.subr.mxu0 0.0
    %3590 = vmatpush1.msra.mxu0 %v3512
    %3591 = vmatprep.subr.mxu0 0.0
    %3592 = vmatpush1.msra.mxu0 %v3513
    %3593 = vmatprep.subr.mxu0 0.0
    %3594 = vmatpush1.msra.mxu0 %v3514
    %3595 = vmatprep.subr.mxu0 0.0
    %3596 = vmatpush1.msra.mxu0 %v3515
    %3597 = vmatprep.subr.mxu0 0.0
    %3598 = vmatpush1.msra.mxu0 %v3516
    %3599 = vmatprep.subr.mxu0 0.0
    %3600 = vmatpush1.msra.mxu0 %v3517
    %3601 = vmatprep.subr.mxu0 0.0
    %3602 = vmatpush1.msra.mxu0 %v3518
    %3603 = vmatprep.subr.mxu0 0.0
    %3604 = vmatpush1.msra.mxu0 %v3519
    %3605 = vmatprep.subr.mxu0 0.0
    %3606 = vmatpush1.msra.mxu0 %v3520
    %3607 = vmatprep.mubr.f32.mxu0 %v3472
    %3608 = vmatmul.mubr.f32.gmra.mrb[0].mxu0 %v3471
    %v3609 = vpop.f32.mrb[0].mxu0
    %v3610 = vadd.f32 0.0, %v3609
    %v3611 = vpop.f32.mrb[0].mxu0
    %3612 = vmatprep.mubr.f32.mxu0 %v3475
    %3613 = vmatmul.mubr.f32.gmra.mrb[0].mxu0 %v3474
    %v3614 = vpop.f32.mrb[0].mxu0
    %v3615 = vadd.f32 0.0, %v3614
    %v3616 = vpop.f32.mrb[0].mxu0
    %3617 = vmatprep.mubr.f32.mxu0 %v3478
    %3618 = vmatmul.mubr.f32.gmra.mrb[0].mxu0 %v3477
    %v3619 = vpop.f32.mrb[0].mxu0
    %v3620 = vadd.f32 0.0, %v3619
    %v3621 = vpop.f32.mrb[0].mxu0
    %3622 = vmatprep.mubr.f32.mxu0 %v3481
    %3623 = vmatmul.mubr.f32.gmra.mrb[0].mxu0 %v3480
    %v3624 = vpop.f32.mrb[0].mxu0
    %v3625 = vadd.f32 0.0, %v3624
    %v3626 = vpop.f32.mrb[0].mxu0
    %3627 = vmatprep.mubr.f32.mxu0 %v3484
    %3628 = vmatmul.mubr.f32.gmra.mrb[0].mxu0 %v3483
    %v3629 = vpop.f32.mrb[0].mxu0
    %v3630 = vadd.f32 0.0, %v3629
    %v3631 = vpop.f32.mrb[0].mxu0
    %3632 = vmatprep.mubr.f32.mxu0 %v3487
    %3633 = vmatmul.mubr.f32.gmra.mrb[0].mxu0 %v3486
    %v3634 = vpop.f32.mrb[0].mxu0
    %v3635 = vadd.f32 0.0, %v3634
    %v3636 = vpop.f32.mrb[0].mxu0
    %3637 = vdwg.mxu0
    %3638 = vmatprep.subr.mxu0 0.0
    %3639 = vmatpush1.msra.mxu0 %v3521
    %3640 = vmatprep.subr.mxu0 0.0
    %3641 = vmatpush1.msra.mxu0 %v3522
    %3642 = vmatprep.subr.mxu0 0.0
    %3643 = vmatpush1.msra.mxu0 %v3523
    %3644 = vmatprep.subr.mxu0 0.0
    %3645 = vmatpush1.msra.mxu0 %v3524
    %3646 = vmatprep.subr.mxu0 0.0
    %3647 = vmatpush1.msra.mxu0 0.0
    %3648 = vmatprep.subr.mxu0 0.0
    %3649 = vmatpush1.msra.mxu0 0.0
    %3650 = vmatprep.subr.mxu0 0.0
    %3651 = vmatpush1.msra.mxu0 0.0
    %3652 = vmatprep.subr.mxu0 0.0
    %3653 = vmatpush1.msra.mxu0 0.0
    %3654 = vmatprep.subr.mxu0 0.0
    %3655 = vmatpush1.msra.mxu0 0.0
    %3656 = vmatprep.subr.mxu0 0.0
    %3657 = vmatpush1.msra.mxu0 0.0
    %3658 = vmatprep.subr.mxu0 0.0
    %3659 = vmatpush1.msra.mxu0 0.0
    %3660 = vmatprep.subr.mxu0 0.0
    %3661 = vmatpush1.msra.mxu0 0.0
    %3662 = vmatprep.subr.mxu0 0.0
    %3663 = vmatpush1.msra.mxu0 0.0
    %3664 = vmatprep.subr.mxu0 0.0
    %3665 = vmatpush1.msra.mxu0 0.0
    %3666 = vmatprep.subr.mxu0 0.0
    %3667 = vmatpush1.msra.mxu0 0.0
    %3668 = vmatprep.subr.mxu0 0.0
    %3669 = vmatpush1.msra.mxu0 0.0
    %3670 = vmatprep.subr.mxu0 0.0
    %3671 = vmatpush1.msra.mxu0 0.0
    %3672 = vmatprep.subr.mxu0 0.0
    %3673 = vmatpush1.msra.mxu0 0.0
    %3674 = vmatprep.subr.mxu0 0.0
    %3675 = vmatpush1.msra.mxu0 0.0
    %3676 = vmatprep.subr.mxu0 0.0
    %3677 = vmatpush1.msra.mxu0 0.0
    %3678 = vmatprep.subr.mxu0 0.0
    %3679 = vmatpush1.msra.mxu0 0.0
    %3680 = vmatprep.subr.mxu0 0.0
    %3681 = vmatpush1.msra.mxu0 0.0
    %3682 = vmatprep.subr.mxu0 0.0
    %3683 = vmatpush1.msra.mxu0 0.0
    %3684 = vmatprep.subr.mxu0 0.0
    %3685 = vmatpush1.msra.mxu0 0.0
    %3686 = vmatprep.subr.mxu0 0.0
    %3687 = vmatpush1.msra.mxu0 0.0
    %3688 = vmatprep.subr.mxu0 0.0
    %3689 = vmatpush1.msra.mxu0 0.0
    %3690 = vmatprep.subr.mxu0 0.0
    %3691 = vmatpush1.msra.mxu0 0.0
    %3692 = vmatprep.subr.mxu0 0.0
    %3693 = vmatpush1.msra.mxu0 0.0
    %3694 = vmatprep.subr.mxu0 0.0
    %3695 = vmatpush1.msra.mxu0 0.0
    %3696 = vmatprep.subr.mxu0 0.0
    %3697 = vmatpush1.msra.mxu0 0.0
    %3698 = vmatprep.subr.mxu0 0.0
    %3699 = vmatpush1.msra.mxu0 0.0
    %3700 = vmatprep.subr.mxu0 0.0
    %3701 = vmatpush1.msra.mxu0 0.0
    %3702 = vmatprep.mubr.f32.mxu0 0.0
    %3703 = vmatmul.mubr.f32.gmra.mrb[0].mxu0 %v3526
    %v3704 = vpop.f32.mrb[0].mxu0
    %v3705 = vadd.f32 %v3610, %v3704
    %v3706 = vpop.f32.mrb[0].mxu0
    %3707 = vmatprep.mubr.f32.mxu0 0.0
    %3708 = vmatmul.mubr.f32.gmra.mrb[0].mxu0 %v3529
    %v3709 = vpop.f32.mrb[0].mxu0
    %v3710 = vadd.f32 %v3615, %v3709
    %v3711 = vpop.f32.mrb[0].mxu0
    %3712 = vmatprep.mubr.f32.mxu0 0.0
    %3713 = vmatmul.mubr.f32.gmra.mrb[0].mxu0 %v3532
    %v3714 = vpop.f32.mrb[0].mxu0
    %v3715 = vadd.f32 %v3620, %v3714
    %v3716 = vpop.f32.mrb[0].mxu0
    %3717 = vmatprep.mubr.f32.mxu0 0.0
    %3718 = vmatmul.mubr.f32.gmra.mrb[0].mxu0 %v3535
    %v3719 = vpop.f32.mrb[0].mxu0
    %v3720 = vadd.f32 %v3625, %v3719
    %v3721 = vpop.f32.mrb[0].mxu0
    %3722 = vmatprep.mubr.f32.mxu0 0.0
    %3723 = vmatmul.mubr.f32.gmra.mrb[0].mxu0 %v3538
    %v3724 = vpop.f32.mrb[0].mxu0
    %v3725 = vadd.f32 %v3630, %v3724
    %v3726 = vpop.f32.mrb[0].mxu0
    %3727 = vmatprep.mubr.f32.mxu0 0.0
    %3728 = vmatmul.mubr.f32.gmra.mrb[0].mxu0 %v3541
    %v3729 = vpop.f32.mrb[0].mxu0
    %v3730 = vadd.f32 %v3635, %v3729
    %v3731 = vpop.f32.mrb[0].mxu0
    %3732 = vdwg.mxu0
    %s3733 = scalar_lea.vmem %s7, 288
    %v3734 = vld [vmem:[%s3733] sm:$0xff]
    %v3735 = vld [vmem:[%s3733 + $0x8] sm:$0xff]
    %v3736 = vld [vmem:[%s3733 + $0x10] sm:$0xff]
    %v3737 = vld [vmem:[%s3733 + $0x18] sm:$0xff]
    %v3738 = vld [vmem:[%s3733 + $0x20] sm:$0xff]
    %v3739 = vld [vmem:[%s3733 + $0x28] sm:$0xff]
    %v3740 = vld [vmem:[%s3733 + $0x30] sm:$0xff]
    %v3741 = vld [vmem:[%s3733 + $0x38] sm:$0xff]
    %v3742 = vld [vmem:[%s3733 + $0x40] sm:$0xff]
    %v3743 = vld [vmem:[%s3733 + $0x48] sm:$0xff]
    %v3744 = vld [vmem:[%s3733 + $0x50] sm:$0xff]
    %v3745 = vld [vmem:[%s3733 + $0x58] sm:$0xff]
    %v3746 = vld [vmem:[%s3733 + $0x60] sm:$0xff]
    %v3747 = vld [vmem:[%s3733 + $0x68] sm:$0xff]
    %v3748 = vld [vmem:[%s3733 + $0x70] sm:$0xff]
    %v3749 = vld [vmem:[%s3733 + $0x78] sm:$0xff]
    %v3750 = vld [vmem:[%s3733 + $0x80] sm:$0xff]
    %v3751 = vld [vmem:[%s3733 + $0x88] sm:$0xff]
    %v3752 = vld [vmem:[%s3733 + $0x90] sm:$0xff]
    %v3753 = vld [vmem:[%s3733 + $0x98] sm:$0xff]
    %v3754 = vld [vmem:[%s3733 + $0xa0] sm:$0xff]
    %v3755 = vld [vmem:[%s3733 + $0xa8] sm:$0xff]
    %v3756 = vld [vmem:[%s3733 + $0xb0] sm:$0xff]
    %v3757 = vld [vmem:[%s3733 + $0xb8] sm:$0xff]
    %v3758 = vld [vmem:[%s3733 + $0xc0] sm:$0xff]
    %v3759 = vld [vmem:[%s3733 + $0xc8] sm:$0xff]
    %v3760 = vld [vmem:[%s3733 + $0xd0] sm:$0xff]
    %v3761 = vld [vmem:[%s3733 + $0xd8] sm:$0xff]
    %v3762 = vld [vmem:[%s3733 + $0xe0] sm:$0xff]
    %v3763 = vld [vmem:[%s3733 + $0xe8] sm:$0xff]
    %v3764 = vld [vmem:[%s3733 + $0xf0] sm:$0xff]
    %v3765 = vld [vmem:[%s3733 + $0xf8] sm:$0xff]
    %v3766 = vld [vmem:[%s3733 + $0x100] sm:$0xff]
    %v3767 = vld [vmem:[%s3733 + $0x108] sm:$0xff]
    %v3768 = vld [vmem:[%s3733 + $0x110] sm:$0xff]
    %v3769 = vld [vmem:[%s3733 + $0x118] sm:$0xff]
    %3770 = vmatprep.subr.mxu0 0.0
    %3771 = vmatpush1.msra.mxu0 %v3734
    %3772 = vmatprep.subr.mxu0 0.0
    %3773 = vmatpush1.msra.mxu0 %v3735
    %3774 = vmatprep.subr.mxu0 0.0
    %3775 = vmatpush1.msra.mxu0 %v3736
    %3776 = vmatprep.subr.mxu0 0.0
    %3777 = vmatpush1.msra.mxu0 %v3737
    %3778 = vmatprep.subr.mxu0 0.0
    %3779 = vmatpush1.msra.mxu0 %v3738
    %3780 = vmatprep.subr.mxu0 0.0
    %3781 = vmatpush1.msra.mxu0 %v3739
    %3782 = vmatprep.subr.mxu0 0.0
    %3783 = vmatpush1.msra.mxu0 %v3740
    %3784 = vmatprep.subr.mxu0 0.0
    %3785 = vmatpush1.msra.mxu0 %v3741
    %3786 = vmatprep.subr.mxu0 0.0
    %3787 = vmatpush1.msra.mxu0 %v3742
    %3788 = vmatprep.subr.mxu0 0.0
    %3789 = vmatpush1.msra.mxu0 %v3743
    %3790 = vmatprep.subr.mxu0 0.0
    %3791 = vmatpush1.msra.mxu0 %v3744
    %3792 = vmatprep.subr.mxu0 0.0
    %3793 = vmatpush1.msra.mxu0 %v3745
    %3794 = vmatprep.subr.mxu0 0.0
    %3795 = vmatpush1.msra.mxu0 %v3746
    %3796 = vmatprep.subr.mxu0 0.0
    %3797 = vmatpush1.msra.mxu0 %v3747
    %3798 = vmatprep.subr.mxu0 0.0
    %3799 = vmatpush1.msra.mxu0 %v3748
    %3800 = vmatprep.subr.mxu0 0.0
    %3801 = vmatpush1.msra.mxu0 %v3749
    %3802 = vmatprep.subr.mxu0 0.0
    %3803 = vmatpush1.msra.mxu0 %v3750
    %3804 = vmatprep.subr.mxu0 0.0
    %3805 = vmatpush1.msra.mxu0 %v3751
    %3806 = vmatprep.subr.mxu0 0.0
    %3807 = vmatpush1.msra.mxu0 %v3752
    %3808 = vmatprep.subr.mxu0 0.0
    %3809 = vmatpush1.msra.mxu0 %v3753
    %3810 = vmatprep.subr.mxu0 0.0
    %3811 = vmatpush1.msra.mxu0 %v3754
    %3812 = vmatprep.subr.mxu0 0.0
    %3813 = vmatpush1.msra.mxu0 %v3755
    %3814 = vmatprep.subr.mxu0 0.0
    %3815 = vmatpush1.msra.mxu0 %v3756
    %3816 = vmatprep.subr.mxu0 0.0
    %3817 = vmatpush1.msra.mxu0 %v3757
    %3818 = vmatprep.subr.mxu0 0.0
    %3819 = vmatpush1.msra.mxu0 %v3758
    %3820 = vmatprep.subr.mxu0 0.0
    %3821 = vmatpush1.msra.mxu0 %v3759
    %3822 = vmatprep.subr.mxu0 0.0
    %3823 = vmatpush1.msra.mxu0 %v3760
    %3824 = vmatprep.subr.mxu0 0.0
    %3825 = vmatpush1.msra.mxu0 %v3761
    %3826 = vmatprep.subr.mxu0 0.0
    %3827 = vmatpush1.msra.mxu0 %v3762
    %3828 = vmatprep.subr.mxu0 0.0
    %3829 = vmatpush1.msra.mxu0 %v3763
    %3830 = vmatprep.subr.mxu0 0.0
    %3831 = vmatpush1.msra.mxu0 %v3764
    %3832 = vmatprep.subr.mxu0 0.0
    %3833 = vmatpush1.msra.mxu0 %v3765
    %3834 = vmatprep.mubr.f32.mxu0 %v3472
    %3835 = vmatmul.mubr.f32.gmra.mrb[0].mxu0 %v3471
    %v3836 = vpop.f32.mrb[0].mxu0
    %v3837 = vadd.f32 0.0, %v3836
    %v3838 = vpop.f32.mrb[0].mxu0
    %3839 = vmatprep.mubr.f32.mxu0 %v3475
    %3840 = vmatmul.mubr.f32.gmra.mrb[0].mxu0 %v3474
    %v3841 = vpop.f32.mrb[0].mxu0
    %v3842 = vadd.f32 0.0, %v3841
    %v3843 = vpop.f32.mrb[0].mxu0
    %3844 = vmatprep.mubr.f32.mxu0 %v3478
    %3845 = vmatmul.mubr.f32.gmra.mrb[0].mxu0 %v3477
    %v3846 = vpop.f32.mrb[0].mxu0
    %v3847 = vadd.f32 0.0, %v3846
    %v3848 = vpop.f32.mrb[0].mxu0
    %3849 = vmatprep.mubr.f32.mxu0 %v3481
    %3850 = vmatmul.mubr.f32.gmra.mrb[0].mxu0 %v3480
    %v3851 = vpop.f32.mrb[0].mxu0
    %v3852 = vadd.f32 0.0, %v3851
    %v3853 = vpop.f32.mrb[0].mxu0
    %3854 = vmatprep.mubr.f32.mxu0 %v3484
    %3855 = vmatmul.mubr.f32.gmra.mrb[0].mxu0 %v3483
    %v3856 = vpop.f32.mrb[0].mxu0
    %v3857 = vadd.f32 0.0, %v3856
    %v3858 = vpop.f32.mrb[0].mxu0
    %3859 = vmatprep.mubr.f32.mxu0 %v3487
    %3860 = vmatmul.mubr.f32.gmra.mrb[0].mxu0 %v3486
    %v3861 = vpop.f32.mrb[0].mxu0
    %v3862 = vadd.f32 0.0, %v3861
    %v3863 = vpop.f32.mrb[0].mxu0
    %3864 = vdwg.mxu0
    %3865 = vmatprep.subr.mxu0 0.0
    %3866 = vmatpush1.msra.mxu0 %v3766
    %3867 = vmatprep.subr.mxu0 0.0
    %3868 = vmatpush1.msra.mxu0 %v3767
    %3869 = vmatprep.subr.mxu0 0.0
    %3870 = vmatpush1.msra.mxu0 %v3768
    %3871 = vmatprep.subr.mxu0 0.0
    %3872 = vmatpush1.msra.mxu0 %v3769
    %3873 = vmatprep.subr.mxu0 0.0
    %3874 = vmatpush1.msra.mxu0 0.0
    %3875 = vmatprep.subr.mxu0 0.0
    %3876 = vmatpush1.msra.mxu0 0.0
    %3877 = vmatprep.subr.mxu0 0.0
    %3878 = vmatpush1.msra.mxu0 0.0
    %3879 = vmatprep.subr.mxu0 0.0
    %3880 = vmatpush1.msra.mxu0 0.0
    %3881 = vmatprep.subr.mxu0 0.0
    %3882 = vmatpush1.msra.mxu0 0.0
    %3883 = vmatprep.subr.mxu0 0.0
    %3884 = vmatpush1.msra.mxu0 0.0
    %3885 = vmatprep.subr.mxu0 0.0
    %3886 = vmatpush1.msra.mxu0 0.0
    %3887 = vmatprep.subr.mxu0 0.0
    %3888 = vmatpush1.msra.mxu0 0.0
    %3889 = vmatprep.subr.mxu0 0.0
    %3890 = vmatpush1.msra.mxu0 0.0
    %3891 = vmatprep.subr.mxu0 0.0
    %3892 = vmatpush1.msra.mxu0 0.0
    %3893 = vmatprep.subr.mxu0 0.0
    %3894 = vmatpush1.msra.mxu0 0.0
    %3895 = vmatprep.subr.mxu0 0.0
    %3896 = vmatpush1.msra.mxu0 0.0
    %3897 = vmatprep.subr.mxu0 0.0
    %3898 = vmatpush1.msra.mxu0 0.0
    %3899 = vmatprep.subr.mxu0 0.0
    %3900 = vmatpush1.msra.mxu0 0.0
    %3901 = vmatprep.subr.mxu0 0.0
    %3902 = vmatpush1.msra.mxu0 0.0
    %3903 = vmatprep.subr.mxu0 0.0
    %3904 = vmatpush1.msra.mxu0 0.0
    %3905 = vmatprep.subr.mxu0 0.0
    %3906 = vmatpush1.msra.mxu0 0.0
    %3907 = vmatprep.subr.mxu0 0.0
    %3908 = vmatpush1.msra.mxu0 0.0
    %3909 = vmatprep.subr.mxu0 0.0
    %3910 = vmatpush1.msra.mxu0 0.0
    %3911 = vmatprep.subr.mxu0 0.0
    %3912 = vmatpush1.msra.mxu0 0.0
    %3913 = vmatprep.subr.mxu0 0.0
    %3914 = vmatpush1.msra.mxu0 0.0
    %3915 = vmatprep.subr.mxu0 0.0
    %3916 = vmatpush1.msra.mxu0 0.0
    %3917 = vmatprep.subr.mxu0 0.0
    %3918 = vmatpush1.msra.mxu0 0.0
    %3919 = vmatprep.subr.mxu0 0.0
    %3920 = vmatpush1.msra.mxu0 0.0
    %3921 = vmatprep.subr.mxu0 0.0
    %3922 = vmatpush1.msra.mxu0 0.0
    %3923 = vmatprep.subr.mxu0 0.0
    %3924 = vmatpush1.msra.mxu0 0.0
    %3925 = vmatprep.subr.mxu0 0.0
    %3926 = vmatpush1.msra.mxu0 0.0
    %3927 = vmatprep.subr.mxu0 0.0
    %3928 = vmatpush1.msra.mxu0 0.0
    %3929 = vmatprep.mubr.f32.mxu0 0.0
    %3930 = vmatmul.mubr.f32.gmra.mrb[0].mxu0 %v3526
    %v3931 = vpop.f32.mrb[0].mxu0
    %v3932 = vadd.f32 %v3837, %v3931
    %v3933 = vpop.f32.mrb[0].mxu0
    %3934 = vmatprep.mubr.f32.mxu0 0.0
    %3935 = vmatmul.mubr.f32.gmra.mrb[0].mxu0 %v3529
    %v3936 = vpop.f32.mrb[0].mxu0
    %v3937 = vadd.f32 %v3842, %v3936
    %v3938 = vpop.f32.mrb[0].mxu0
    %3939 = vmatprep.mubr.f32.mxu0 0.0
    %3940 = vmatmul.mubr.f32.gmra.mrb[0].mxu0 %v3532
    %v3941 = vpop.f32.mrb[0].mxu0
    %v3942 = vadd.f32 %v3847, %v3941
    %v3943 = vpop.f32.mrb[0].mxu0
    %3944 = vmatprep.mubr.f32.mxu0 0.0
    %3945 = vmatmul.mubr.f32.gmra.mrb[0].mxu0 %v3535
    %v3946 = vpop.f32.mrb[0].mxu0
    %v3947 = vadd.f32 %v3852, %v3946
    %v3948 = vpop.f32.mrb[0].mxu0
    %3949 = vmatprep.mubr.f32.mxu0 0.0
    %3950 = vmatmul.mubr.f32.gmra.mrb[0].mxu0 %v3538
    %v3951 = vpop.f32.mrb[0].mxu0
    %v3952 = vadd.f32 %v3857, %v3951
    %v3953 = vpop.f32.mrb[0].mxu0
    %3954 = vmatprep.mubr.f32.mxu0 0.0
    %3955 = vmatmul.mubr.f32.gmra.mrb[0].mxu0 %v3541
    %v3956 = vpop.f32.mrb[0].mxu0
    %v3957 = vadd.f32 %v3862, %v3956
    %v3958 = vpop.f32.mrb[0].mxu0
    %3959 = vdwg.mxu0
    %v3960 = vmax.f32 %v3705, %v3932
    %v3961 = vmax.f32 %v3710, %v3937
    %v3962 = vmax.f32 %v3715, %v3942
    %v3963 = vmax.f32 %v3720, %v3947
    %v3964 = vmax.f32 %v3725, %v3952
    %v3965 = vmax.f32 %v3730, %v3957
    %v3966 = vld [vmem:[#allocation12] sm:$0xff]
    %v3967 = vld [vmem:[#allocation12 + $0x8] sm:$0x7]
    %vm3968 = vcmask 375808
    %v3970 = vsel %vm3968, %v3966, 0
    %v3973 = vsel %vm3968, %v3967, 0
    %v3976 = vsel %vm161, %v3965, 0
    %3978 = vmatprep.subr.mxu0 0.0
    %3979 = vmatpush1.msra.mxu0 %v3960
    %3980 = vmatprep.subr.mxu0 0.0
    %3981 = vmatpush1.msra.mxu0 %v3961
    %3982 = vmatprep.subr.mxu0 0.0
    %3983 = vmatpush1.msra.mxu0 %v3962
    %3984 = vmatprep.subr.mxu0 0.0
    %3985 = vmatpush1.msra.mxu0 %v3963
    %3986 = vmatprep.subr.mxu0 0.0
    %3987 = vmatpush1.msra.mxu0 %v3964
    %3988 = vmatprep.subr.mxu0 0.0
    %3989 = vmatpush1.msra.mxu0 %v3976
    %3990 = vmatprep.subr.mxu0 0.0
    %3991 = vmatpush1.msra.mxu0 0.0
    %3992 = vmatprep.subr.mxu0 0.0
    %3993 = vmatpush1.msra.mxu0 0.0
    %3994 = vmatprep.subr.mxu0 0.0
    %3995 = vmatpush1.msra.mxu0 0.0
    %3996 = vmatprep.subr.mxu0 0.0
    %3997 = vmatpush1.msra.mxu0 0.0
    %3998 = vmatprep.subr.mxu0 0.0
    %3999 = vmatpush1.msra.mxu0 0.0
    %4000 = vmatprep.subr.mxu0 0.0
    %4001 = vmatpush1.msra.mxu0 0.0
    %4002 = vmatprep.subr.mxu0 0.0
    %4003 = vmatpush1.msra.mxu0 0.0
    %4004 = vmatprep.subr.mxu0 0.0
    %4005 = vmatpush1.msra.mxu0 0.0
    %4006 = vmatprep.subr.mxu0 0.0
    %4007 = vmatpush1.msra.mxu0 0.0
    %4008 = vmatprep.subr.mxu0 0.0
    %4009 = vmatpush1.msra.mxu0 0.0
    %4010 = vmatprep.subr.mxu0 0.0
    %4011 = vmatpush1.msra.mxu0 0.0
    %4012 = vmatprep.subr.mxu0 0.0
    %4013 = vmatpush1.msra.mxu0 0.0
    %4014 = vmatprep.subr.mxu0 0.0
    %4015 = vmatpush1.msra.mxu0 0.0
    %4016 = vmatprep.subr.mxu0 0.0
    %4017 = vmatpush1.msra.mxu0 0.0
    %4018 = vmatprep.subr.mxu0 0.0
    %4019 = vmatpush1.msra.mxu0 0.0
    %4020 = vmatprep.subr.mxu0 0.0
    %4021 = vmatpush1.msra.mxu0 0.0
    %4022 = vmatprep.subr.mxu0 0.0
    %4023 = vmatpush1.msra.mxu0 0.0
    %4024 = vmatprep.subr.mxu0 0.0
    %4025 = vmatpush1.msra.mxu0 0.0
    %4026 = vmatprep.subr.mxu0 0.0
    %4027 = vmatpush1.msra.mxu0 0.0
    %4028 = vmatprep.subr.mxu0 0.0
    %4029 = vmatpush1.msra.mxu0 0.0
    %4030 = vmatprep.subr.mxu0 0.0
    %4031 = vmatpush1.msra.mxu0 0.0
    %4032 = vmatprep.subr.mxu0 0.0
    %4033 = vmatpush1.msra.mxu0 0.0
    %4034 = vmatprep.subr.mxu0 0.0
    %4035 = vmatpush1.msra.mxu0 0.0
    %4036 = vmatprep.subr.mxu0 0.0
    %4037 = vmatpush1.msra.mxu0 0.0
    %4038 = vmatprep.subr.mxu0 0.0
    %4039 = vmatpush1.msra.mxu0 0.0
    %4040 = vmatprep.subr.mxu0 0.0
    %4041 = vmatpush1.msra.mxu0 0.0
    %4042 = vmatprep.mubr.f32.mxu0 0.0
    %4043 = vmatmul.mubr.f32.gmra.mrb[0].mxu0 %v3970
    %v4044 = vpop.f32.mrb[0].mxu0
    %v4045 = vadd.f32 0.0, %v4044
    %v4046 = vpop.f32.mrb[0].mxu0
    %4047 = vmatprep.mubr.f32.mxu0 0.0
    %4048 = vmatmul.mubr.f32.gmra.mrb[0].mxu0 %v3973
    %v4049 = vpop.f32.mrb[0].mxu0
    %v4050 = vadd.f32 0.0, %v4049
    %v4051 = vpop.f32.mrb[0].mxu0
    %4052 = vdwg.mxu0
    %s4053 = scalar_lea.vmem [#allocation12], 32
    %v4054 = vld [vmem:[%s4053] sm:$0xff]
    %v4055 = vld [vmem:[%s4053 + $0x8] sm:$0x7]
    %v4057 = vsel %vm3968, %v4054, 0
    %v4060 = vsel %vm3968, %v4055, 0
    %4062 = vmatprep.subr.mxu0 0.0
    %4063 = vmatpush1.msra.mxu0 %v3960
    %4064 = vmatprep.subr.mxu0 0.0
    %4065 = vmatpush1.msra.mxu0 %v3961
    %4066 = vmatprep.subr.mxu0 0.0
    %4067 = vmatpush1.msra.mxu0 %v3962
    %4068 = vmatprep.subr.mxu0 0.0
    %4069 = vmatpush1.msra.mxu0 %v3963
    %4070 = vmatprep.subr.mxu0 0.0
    %4071 = vmatpush1.msra.mxu0 %v3964
    %4072 = vmatprep.subr.mxu0 0.0
    %4073 = vmatpush1.msra.mxu0 %v3976
    %4074 = vmatprep.subr.mxu0 0.0
    %4075 = vmatpush1.msra.mxu0 0.0
    %4076 = vmatprep.subr.mxu0 0.0
    %4077 = vmatpush1.msra.mxu0 0.0
    %4078 = vmatprep.subr.mxu0 0.0
    %4079 = vmatpush1.msra.mxu0 0.0
    %4080 = vmatprep.subr.mxu0 0.0
    %4081 = vmatpush1.msra.mxu0 0.0
    %4082 = vmatprep.subr.mxu0 0.0
    %4083 = vmatpush1.msra.mxu0 0.0
    %4084 = vmatprep.subr.mxu0 0.0
    %4085 = vmatpush1.msra.mxu0 0.0
    %4086 = vmatprep.subr.mxu0 0.0
    %4087 = vmatpush1.msra.mxu0 0.0
    %4088 = vmatprep.subr.mxu0 0.0
    %4089 = vmatpush1.msra.mxu0 0.0
    %4090 = vmatprep.subr.mxu0 0.0
    %4091 = vmatpush1.msra.mxu0 0.0
    %4092 = vmatprep.subr.mxu0 0.0
    %4093 = vmatpush1.msra.mxu0 0.0
    %4094 = vmatprep.subr.mxu0 0.0
    %4095 = vmatpush1.msra.mxu0 0.0
    %4096 = vmatprep.subr.mxu0 0.0
    %4097 = vmatpush1.msra.mxu0 0.0
    %4098 = vmatprep.subr.mxu0 0.0
    %4099 = vmatpush1.msra.mxu0 0.0
    %4100 = vmatprep.subr.mxu0 0.0
    %4101 = vmatpush1.msra.mxu0 0.0
    %4102 = vmatprep.subr.mxu0 0.0
    %4103 = vmatpush1.msra.mxu0 0.0
    %4104 = vmatprep.subr.mxu0 0.0
    %4105 = vmatpush1.msra.mxu0 0.0
    %4106 = vmatprep.subr.mxu0 0.0
    %4107 = vmatpush1.msra.mxu0 0.0
    %4108 = vmatprep.subr.mxu0 0.0
    %4109 = vmatpush1.msra.mxu0 0.0
    %4110 = vmatprep.subr.mxu0 0.0
    %4111 = vmatpush1.msra.mxu0 0.0
    %4112 = vmatprep.subr.mxu0 0.0
    %4113 = vmatpush1.msra.mxu0 0.0
    %4114 = vmatprep.subr.mxu0 0.0
    %4115 = vmatpush1.msra.mxu0 0.0
    %4116 = vmatprep.subr.mxu0 0.0
    %4117 = vmatpush1.msra.mxu0 0.0
    %4118 = vmatprep.subr.mxu0 0.0
    %4119 = vmatpush1.msra.mxu0 0.0
    %4120 = vmatprep.subr.mxu0 0.0
    %4121 = vmatpush1.msra.mxu0 0.0
    %4122 = vmatprep.subr.mxu0 0.0
    %4123 = vmatpush1.msra.mxu0 0.0
    %4124 = vmatprep.subr.mxu0 0.0
    %4125 = vmatpush1.msra.mxu0 0.0
    %4126 = vmatprep.mubr.f32.mxu0 0.0
    %4127 = vmatmul.mubr.f32.gmra.mrb[0].mxu0 %v4057
    %v4128 = vpop.f32.mrb[0].mxu0
    %v4129 = vadd.f32 0.0, %v4128
    %v4130 = vpop.f32.mrb[0].mxu0
    %4131 = vmatprep.mubr.f32.mxu0 0.0
    %4132 = vmatmul.mubr.f32.gmra.mrb[0].mxu0 %v4060
    %v4133 = vpop.f32.mrb[0].mxu0
    %v4134 = vadd.f32 0.0, %v4133
    %v4135 = vpop.f32.mrb[0].mxu0
    %4136 = vdwg.mxu0
    %v4137 = vmax.f32 %v4045, %v4129
    %v4138 = vmax.f32 %v4050, %v4134
    %v4139 = vpack.c.bf16 %v4138, %v4137
    %v4141 = vunpack.c.l.b16 %v4139
    %v4142 = vunpack.c.h.b16 %v4139
    %v4143 = vpack.c.b16 %v4141, %v4141
    %v4144 = vpack.c.b16 %v4142, %v4142
    %4147 = vst [vmem:[#allocation5] sm:$0xf] %v4143
    %vm4148 = vcmask 1041408
    %vm4149 = vsmask.f32 1280
    %vm4150 = vmand %vm4148, %vm4149
    %v4151 = vld [vmem:[#allocation5 + $0x4] sm:$0x3]
    %v4152 = vsel %vm4150, %v4144, %v4151
    %4153 = vst [vmem:[#allocation5 + $0x4] sm:$0x3] %v4152
    %s4154 = scalar_lea.vmem [#allocation12], 16
    %v4155 = vld [vmem:[%s4154] sm:$0xff]
    %v4156 = vld [vmem:[%s4154 + $0x8] sm:$0x7]
    %v4158 = vsel %vm3968, %v4155, 0
    %v4161 = vsel %vm3968, %v4156, 0
    %4163 = vmatprep.subr.mxu0 0.0
    %4164 = vmatpush1.msra.mxu0 %v3960
    %4165 = vmatprep.subr.mxu0 0.0
    %4166 = vmatpush1.msra.mxu0 %v3961
    %4167 = vmatprep.subr.mxu0 0.0
    %4168 = vmatpush1.msra.mxu0 %v3962
    %4169 = vmatprep.subr.mxu0 0.0
    %4170 = vmatpush1.msra.mxu0 %v3963
    %4171 = vmatprep.subr.mxu0 0.0
    %4172 = vmatpush1.msra.mxu0 %v3964
    %4173 = vmatprep.subr.mxu0 0.0
    %4174 = vmatpush1.msra.mxu0 %v3976
    %4175 = vmatprep.subr.mxu0 0.0
    %4176 = vmatpush1.msra.mxu0 0.0
    %4177 = vmatprep.subr.mxu0 0.0
    %4178 = vmatpush1.msra.mxu0 0.0
    %4179 = vmatprep.subr.mxu0 0.0
    %4180 = vmatpush1.msra.mxu0 0.0
    %4181 = vmatprep.subr.mxu0 0.0
    %4182 = vmatpush1.msra.mxu0 0.0
    %4183 = vmatprep.subr.mxu0 0.0
    %4184 = vmatpush1.msra.mxu0 0.0
    %4185 = vmatprep.subr.mxu0 0.0
    %4186 = vmatpush1.msra.mxu0 0.0
    %4187 = vmatprep.subr.mxu0 0.0
    %4188 = vmatpush1.msra.mxu0 0.0
    %4189 = vmatprep.subr.mxu0 0.0
    %4190 = vmatpush1.msra.mxu0 0.0
    %4191 = vmatprep.subr.mxu0 0.0
    %4192 = vmatpush1.msra.mxu0 0.0
    %4193 = vmatprep.subr.mxu0 0.0
    %4194 = vmatpush1.msra.mxu0 0.0
    %4195 = vmatprep.subr.mxu0 0.0
    %4196 = vmatpush1.msra.mxu0 0.0
    %4197 = vmatprep.subr.mxu0 0.0
    %4198 = vmatpush1.msra.mxu0 0.0
    %4199 = vmatprep.subr.mxu0 0.0
    %4200 = vmatpush1.msra.mxu0 0.0
    %4201 = vmatprep.subr.mxu0 0.0
    %4202 = vmatpush1.msra.mxu0 0.0
    %4203 = vmatprep.subr.mxu0 0.0
    %4204 = vmatpush1.msra.mxu0 0.0
    %4205 = vmatprep.subr.mxu0 0.0
    %4206 = vmatpush1.msra.mxu0 0.0
    %4207 = vmatprep.subr.mxu0 0.0
    %4208 = vmatpush1.msra.mxu0 0.0
    %4209 = vmatprep.subr.mxu0 0.0
    %4210 = vmatpush1.msra.mxu0 0.0
    %4211 = vmatprep.subr.mxu0 0.0
    %4212 = vmatpush1.msra.mxu0 0.0
    %4213 = vmatprep.subr.mxu0 0.0
    %4214 = vmatpush1.msra.mxu0 0.0
    %4215 = vmatprep.subr.mxu0 0.0
    %4216 = vmatpush1.msra.mxu0 0.0
    %4217 = vmatprep.subr.mxu0 0.0
    %4218 = vmatpush1.msra.mxu0 0.0
    %4219 = vmatprep.subr.mxu0 0.0
    %4220 = vmatpush1.msra.mxu0 0.0
    %4221 = vmatprep.subr.mxu0 0.0
    %4222 = vmatpush1.msra.mxu0 0.0
    %4223 = vmatprep.subr.mxu0 0.0
    %4224 = vmatpush1.msra.mxu0 0.0
    %4225 = vmatprep.subr.mxu0 0.0
    %4226 = vmatpush1.msra.mxu0 0.0
    %4227 = vmatprep.mubr.f32.mxu0 0.0
    %4228 = vmatmul.mubr.f32.gmra.mrb[0].mxu0 %v4158
    %v4229 = vpop.f32.mrb[0].mxu0
    %v4230 = vadd.f32 0.0, %v4229
    %v4231 = vpop.f32.mrb[0].mxu0
    %4232 = vmatprep.mubr.f32.mxu0 0.0
    %4233 = vmatmul.mubr.f32.gmra.mrb[0].mxu0 %v4161
    %v4234 = vpop.f32.mrb[0].mxu0
    %v4235 = vadd.f32 0.0, %v4234
    %v4236 = vpop.f32.mrb[0].mxu0
    %4237 = vdwg.mxu0
    %s4238 = scalar_lea.vmem [#allocation12], 48
    %v4239 = vld [vmem:[%s4238] sm:$0xff]
    %v4240 = vld [vmem:[%s4238 + $0x8] sm:$0x7]
    %v4242 = vsel %vm3968, %v4239, 0
    %v4245 = vsel %vm3968, %v4240, 0
    %4247 = vmatprep.subr.mxu0 0.0
    %4248 = vmatpush1.msra.mxu0 %v3960
    %4249 = vmatprep.subr.mxu0 0.0
    %4250 = vmatpush1.msra.mxu0 %v3961
    %4251 = vmatprep.subr.mxu0 0.0
    %4252 = vmatpush1.msra.mxu0 %v3962
    %4253 = vmatprep.subr.mxu0 0.0
    %4254 = vmatpush1.msra.mxu0 %v3963
    %4255 = vmatprep.subr.mxu0 0.0
    %4256 = vmatpush1.msra.mxu0 %v3964
    %4257 = vmatprep.subr.mxu0 0.0
    %4258 = vmatpush1.msra.mxu0 %v3976
    %4259 = vmatprep.subr.mxu0 0.0
    %4260 = vmatpush1.msra.mxu0 0.0
    %4261 = vmatprep.subr.mxu0 0.0
    %4262 = vmatpush1.msra.mxu0 0.0
    %4263 = vmatprep.subr.mxu0 0.0
    %4264 = vmatpush1.msra.mxu0 0.0
    %4265 = vmatprep.subr.mxu0 0.0
    %4266 = vmatpush1.msra.mxu0 0.0
    %4267 = vmatprep.subr.mxu0 0.0
    %4268 = vmatpush1.msra.mxu0 0.0
    %4269 = vmatprep.subr.mxu0 0.0
    %4270 = vmatpush1.msra.mxu0 0.0
    %4271 = vmatprep.subr.mxu0 0.0
    %4272 = vmatpush1.msra.mxu0 0.0
    %4273 = vmatprep.subr.mxu0 0.0
    %4274 = vmatpush1.msra.mxu0 0.0
    %4275 = vmatprep.subr.mxu0 0.0
    %4276 = vmatpush1.msra.mxu0 0.0
    %4277 = vmatprep.subr.mxu0 0.0
    %4278 = vmatpush1.msra.mxu0 0.0
    %4279 = vmatprep.subr.mxu0 0.0
    %4280 = vmatpush1.msra.mxu0 0.0
    %4281 = vmatprep.subr.mxu0 0.0
    %4282 = vmatpush1.msra.mxu0 0.0
    %4283 = vmatprep.subr.mxu0 0.0
    %4284 = vmatpush1.msra.mxu0 0.0
    %4285 = vmatprep.subr.mxu0 0.0
    %4286 = vmatpush1.msra.mxu0 0.0
    %4287 = vmatprep.subr.mxu0 0.0
    %4288 = vmatpush1.msra.mxu0 0.0
    %4289 = vmatprep.subr.mxu0 0.0
    %4290 = vmatpush1.msra.mxu0 0.0
    %4291 = vmatprep.subr.mxu0 0.0
    %4292 = vmatpush1.msra.mxu0 0.0
    %4293 = vmatprep.subr.mxu0 0.0
    %4294 = vmatpush1.msra.mxu0 0.0
    %4295 = vmatprep.subr.mxu0 0.0
    %4296 = vmatpush1.msra.mxu0 0.0
    %4297 = vmatprep.subr.mxu0 0.0
    %4298 = vmatpush1.msra.mxu0 0.0
    %4299 = vmatprep.subr.mxu0 0.0
    %4300 = vmatpush1.msra.mxu0 0.0
    %4301 = vmatprep.subr.mxu0 0.0
    %4302 = vmatpush1.msra.mxu0 0.0
    %4303 = vmatprep.subr.mxu0 0.0
    %4304 = vmatpush1.msra.mxu0 0.0
    %4305 = vmatprep.subr.mxu0 0.0
    %4306 = vmatpush1.msra.mxu0 0.0
    %4307 = vmatprep.subr.mxu0 0.0
    %4308 = vmatpush1.msra.mxu0 0.0
    %4309 = vmatprep.subr.mxu0 0.0
    %4310 = vmatpush1.msra.mxu0 0.0
    %4311 = vmatprep.mubr.f32.mxu0 0.0
    %4312 = vmatmul.mubr.f32.gmra.mrb[0].mxu0 %v4242
    %v4313 = vpop.f32.mrb[0].mxu0
    %v4314 = vadd.f32 0.0, %v4313
    %v4315 = vpop.f32.mrb[0].mxu0
    %4316 = vmatprep.mubr.f32.mxu0 0.0
    %4317 = vmatmul.mubr.f32.gmra.mrb[0].mxu0 %v4245
    %v4318 = vpop.f32.mrb[0].mxu0
    %v4319 = vadd.f32 0.0, %v4318
    %v4320 = vpop.f32.mrb[0].mxu0
    %4321 = vdwg.mxu0
    %v4322 = vmax.f32 %v4230, %v4314
    %v4323 = vmax.f32 %v4235, %v4319
    %v4324 = vpack.c.bf16 %v4323, %v4322
    %v4326 = vunpack.c.l.b16 %v4324
    %v4327 = vunpack.c.h.b16 %v4324
    %v4328 = vpack.c.b16 %v4326, %v4326
    %v4329 = vpack.c.b16 %v4327, %v4327
    %s4332 = scalar_lea.vmem [#allocation5], 8
    %4333 = vst [vmem:[%s4332] sm:$0xf] %v4328
    %v4334 = vld [vmem:[%s4332 + $0x4] sm:$0x3]
    %v4335 = vsel %vm4150, %v4329, %v4334
    %4336 = vst [vmem:[%s4332 + $0x4] sm:$0x3] %v4335
    %4337 = vst [vmem:[#allocation6] sm:$0xff] 0.0
    %4338 = vst [vmem:[#allocation6 + $0x8] sm:$0xff] 0.0
    %4339 = vst [vmem:[#allocation6 + $0x10] sm:$0xff] 0.0
    %4340 = vst [vmem:[#allocation6 + $0x18] sm:$0xff] 0.0
    %4341 = vst [vmem:[#allocation6 + $0x20] sm:$0xff] 0.0
    %4342 = vst [vmem:[#allocation6 + $0x28] sm:$0xff] 0.0
    %4343 = vst [vmem:[#allocation6 + $0x30] sm:$0xff] 0.0
    %4344 = vst [vmem:[#allocation6 + $0x38] sm:$0xff] 0.0
    %4345 = vst [vmem:[#allocation6 + $0x40] sm:$0xff] 0.0
    %4346 = vst [vmem:[#allocation6 + $0x48] sm:$0x3] 0.0
    %4347 = vst [vmem:[#allocation6 + $0x50] sm:$0x3] 0.0
    %4348 = vst [vmem:[#allocation6 + $0x58] sm:$0x3] 0.0
    %v4349 = vld [vmem:[%s9] sm:$0xff]
    %v4350 = vld [vmem:[%s9 + $0x8] sm:$0xf]
    %v4351 = vld [vmem:[%s9 + $0xc] sm:$0xff]
    %v4352 = vld [vmem:[%s9 + $0x14] sm:$0xf]
    %v4353 = vld [vmem:[%s9 + $0x18] sm:$0xff]
    %v4354 = vld [vmem:[%s9 + $0x20] sm:$0xf]
    %v4355 = vld [vmem:[%s9 + $0x24] sm:$0xff]
    %v4356 = vld [vmem:[%s9 + $0x2c] sm:$0xf]
    %v4357 = vld [vmem:[%s9 + $0x30] sm:$0xff]
    %v4358 = vld [vmem:[%s9 + $0x38] sm:$0xf]
    %v4359 = vld [vmem:[%s9 + $0x3c] sm:$0xff]
    %v4360 = vld [vmem:[%s9 + $0x44] sm:$0xf]
    %v4361 = vld [vmem:[%s9 + $0x48] sm:$0xff]
    %v4362 = vld [vmem:[%s9 + $0x50] sm:$0xf]
    %v4363 = vld [vmem:[%s9 + $0x54] sm:$0xff]
    %v4364 = vld [vmem:[%s9 + $0x5c] sm:$0xf]
    %v4365 = vld [vmem:[%s9 + $0x60] sm:$0xff]
    %v4366 = vld [vmem:[%s9 + $0x68] sm:$0xf]
    %v4367 = vld [vmem:[%s9 + $0x6c] sm:$0xff]
    %v4368 = vld [vmem:[%s9 + $0x74] sm:$0xf]
    %v4369 = vld [vmem:[%s9 + $0x78] sm:$0xff]
    %v4370 = vld [vmem:[%s9 + $0x80] sm:$0xf]
    %v4371 = vld [vmem:[%s9 + $0x84] sm:$0xff]
    %v4372 = vld [vmem:[%s9 + $0x8c] sm:$0xf]
    %v4373 = vld [vmem:[%s9 + $0x90] sm:$0xff]
    %v4374 = vld [vmem:[%s9 + $0x98] sm:$0xf]
    %v4375 = vld [vmem:[%s9 + $0x9c] sm:$0xff]
    %v4376 = vld [vmem:[%s9 + $0xa4] sm:$0xf]
    %v4377 = vld [vmem:[%s9 + $0xa8] sm:$0xff]
    %v4378 = vld [vmem:[%s9 + $0xb0] sm:$0xf]
    %v4379 = vld [vmem:[%s9 + $0xb4] sm:$0xff]
    %v4380 = vld [vmem:[%s9 + $0xbc] sm:$0xf]
    %v4381 = vld [vmem:[#allocation5] sm:$0xf]
    %v4382 = vld [vmem:[#allocation5 + $0x4] sm:$0x3]
    %v4385 = vunpack.c.l.b16 %v4381
    %v4386 = vunpack.c.l.b16 %v4382
    %v4387 = vpack.c.b16 %v4386, %v4385
    %v4421 = vunpack.c.l.b16 %v4349
    %v4422 = vunpack.c.h.b16 %v4349
    %v4423 = vunpack.c.l.b16 %v4350
    %v4424 = vunpack.c.l.b16 %v4351
    %v4425 = vunpack.c.h.b16 %v4351
    %v4426 = vunpack.c.l.b16 %v4352
    %v4427 = vunpack.c.l.b16 %v4353
    %v4428 = vunpack.c.h.b16 %v4353
    %v4429 = vunpack.c.l.b16 %v4354
    %v4430 = vunpack.c.l.b16 %v4355
    %v4431 = vunpack.c.h.b16 %v4355
    %v4432 = vunpack.c.l.b16 %v4356
    %v4433 = vunpack.c.l.b16 %v4357
    %v4434 = vunpack.c.h.b16 %v4357
    %v4435 = vunpack.c.l.b16 %v4358
    %v4436 = vunpack.c.l.b16 %v4359
    %v4437 = vunpack.c.h.b16 %v4359
    %v4438 = vunpack.c.l.b16 %v4360
    %v4439 = vunpack.c.l.b16 %v4361
    %v4440 = vunpack.c.h.b16 %v4361
    %v4441 = vunpack.c.l.b16 %v4362
    %v4442 = vunpack.c.l.b16 %v4363
    %v4443 = vunpack.c.h.b16 %v4363
    %v4444 = vunpack.c.l.b16 %v4364
    %v4445 = vunpack.c.l.b16 %v4365
    %v4446 = vunpack.c.h.b16 %v4365
    %v4447 = vunpack.c.l.b16 %v4366
    %v4448 = vunpack.c.l.b16 %v4367
    %v4449 = vunpack.c.h.b16 %v4367
    %v4450 = vunpack.c.l.b16 %v4368
    %v4451 = vunpack.c.l.b16 %v4369
    %v4452 = vunpack.c.h.b16 %v4369
    %v4453 = vunpack.c.l.b16 %v4370
    %v4454 = vunpack.c.l.b16 %v4371
    %v4455 = vunpack.c.h.b16 %v4371
    %v4456 = vunpack.c.l.b16 %v4372
    %v4457 = vunpack.c.l.b16 %v4373
    %v4458 = vunpack.c.h.b16 %v4373
    %v4459 = vunpack.c.l.b16 %v4374
    %v4460 = vunpack.c.l.b16 %v4375
    %v4461 = vunpack.c.h.b16 %v4375
    %v4462 = vunpack.c.l.b16 %v4376
    %v4463 = vunpack.c.l.b16 %v4377
    %v4464 = vunpack.c.h.b16 %v4377
    %v4465 = vunpack.c.l.b16 %v4378
    %v4466 = vunpack.c.l.b16 %v4379
    %v4467 = vunpack.c.h.b16 %v4379
    %v4468 = vunpack.c.l.b16 %v4380
    %v4469 = vpack.c.b16 %v4424, %v4421
    %v4470 = vpack.c.b16 %v4425, %v4422
    %v4471 = vpack.c.b16 %v4426, %v4423
    %v4472 = vpack.c.b16 %v4430, %v4427
    %v4473 = vpack.c.b16 %v4431, %v4428
    %v4474 = vpack.c.b16 %v4432, %v4429
    %v4475 = vpack.c.b16 %v4436, %v4433
    %v4476 = vpack.c.b16 %v4437, %v4434
    %v4477 = vpack.c.b16 %v4438, %v4435
    %v4478 = vpack.c.b16 %v4442, %v4439
    %v4479 = vpack.c.b16 %v4443, %v4440
    %v4480 = vpack.c.b16 %v4444, %v4441
    %v4481 = vpack.c.b16 %v4448, %v4445
    %v4482 = vpack.c.b16 %v4449, %v4446
    %v4483 = vpack.c.b16 %v4450, %v4447
    %v4484 = vpack.c.b16 %v4454, %v4451
    %v4485 = vpack.c.b16 %v4455, %v4452
    %v4486 = vpack.c.b16 %v4456, %v4453
    %v4487 = vpack.c.b16 %v4460, %v4457
    %v4488 = vpack.c.b16 %v4461, %v4458
    %v4489 = vpack.c.b16 %v4462, %v4459
    %v4490 = vpack.c.b16 %v4466, %v4463
    %v4491 = vpack.c.b16 %v4467, %v4464
    %v4492 = vpack.c.b16 %v4468, %v4465
    %4517 = vmatprep.subr.bf16.mxu0 %v4470
    %4518 = vmatpush1.bf16.msra.mxu0 %v4469
    %4519 = vmatprep.subr.bf16.mxu0 %v4473
    %4520 = vmatpush1.bf16.msra.mxu0 %v4472
    %4521 = vmatprep.subr.bf16.mxu0 %v4476
    %4522 = vmatpush1.bf16.msra.mxu0 %v4475
    %4523 = vmatprep.subr.bf16.mxu0 %v4479
    %4524 = vmatpush1.bf16.msra.mxu0 %v4478
    %4525 = vmatprep.subr.bf16.mxu0 %v4482
    %4526 = vmatpush1.bf16.msra.mxu0 %v4481
    %4527 = vmatprep.subr.bf16.mxu0 %v4485
    %4528 = vmatpush1.bf16.msra.mxu0 %v4484
    %4529 = vmatprep.subr.bf16.mxu0 %v4488
    %4530 = vmatpush1.bf16.msra.mxu0 %v4487
    %4531 = vmatprep.subr.bf16.mxu0 %v4491
    %4532 = vmatpush1.bf16.msra.mxu0 %v4490
    %4533 = vmatprep.subr.bf16.mxu0 0
    %4534 = vmatpush1.bf16.msra.mxu0 0
    %4535 = vmatprep.subr.bf16.mxu0 0
    %4536 = vmatpush1.bf16.msra.mxu0 0
    %4537 = vmatprep.subr.bf16.mxu0 0
    %4538 = vmatpush1.bf16.msra.mxu0 0
    %4539 = vmatprep.subr.bf16.mxu0 0
    %4540 = vmatpush1.bf16.msra.mxu0 0
    %4541 = vmatprep.subr.bf16.mxu0 0
    %4542 = vmatpush1.bf16.msra.mxu0 0
    %4543 = vmatprep.subr.bf16.mxu0 0
    %4544 = vmatpush1.bf16.msra.mxu0 0
    %4545 = vmatprep.subr.bf16.mxu0 0
    %4546 = vmatpush1.bf16.msra.mxu0 0
    %4547 = vmatprep.subr.bf16.mxu0 0
    %4548 = vmatpush1.bf16.msra.mxu0 0
    %4549 = vmatprep.mubr.bf16.mxu0 0
    %4550 = vmatmul.mubr.bf16.gmra.mrb[0].mxu0 %v4387
    %v4551 = vpop.f32.mrb[0].mxu0
    %v4552 = vadd.f32 0.0, %v4551
    %v4553 = vpop.f32.mrb[0].mxu0
    %v4554 = vadd.f32 0.0, %v4553
    %v4555 = vpop.f32.mrb[0].mxu0
    %v4556 = vadd.f32 0.0, %v4555
    %v4557 = vpop.f32.mrb[0].mxu0
    %v4558 = vadd.f32 0.0, %v4557
    %4559 = vdwg.mxu0
    %4560 = vmatprep.subr.bf16.mxu0 0
    %4561 = vmatpush1.bf16.msra.mxu0 %v4471
    %4562 = vmatprep.subr.bf16.mxu0 0
    %4563 = vmatpush1.bf16.msra.mxu0 %v4474
    %4564 = vmatprep.subr.bf16.mxu0 0
    %4565 = vmatpush1.bf16.msra.mxu0 %v4477
    %4566 = vmatprep.subr.bf16.mxu0 0
    %4567 = vmatpush1.bf16.msra.mxu0 %v4480
    %4568 = vmatprep.subr.bf16.mxu0 0
    %4569 = vmatpush1.bf16.msra.mxu0 %v4483
    %4570 = vmatprep.subr.bf16.mxu0 0
    %4571 = vmatpush1.bf16.msra.mxu0 %v4486
    %4572 = vmatprep.subr.bf16.mxu0 0
    %4573 = vmatpush1.bf16.msra.mxu0 %v4489
    %4574 = vmatprep.subr.bf16.mxu0 0
    %4575 = vmatpush1.bf16.msra.mxu0 %v4492
    %4576 = vmatprep.subr.bf16.mxu0 0
    %4577 = vmatpush1.bf16.msra.mxu0 0
    %4578 = vmatprep.subr.bf16.mxu0 0
    %4579 = vmatpush1.bf16.msra.mxu0 0
    %4580 = vmatprep.subr.bf16.mxu0 0
    %4581 = vmatpush1.bf16.msra.mxu0 0
    %4582 = vmatprep.subr.bf16.mxu0 0
    %4583 = vmatpush1.bf16.msra.mxu0 0
    %4584 = vmatprep.subr.bf16.mxu0 0
    %4585 = vmatpush1.bf16.msra.mxu0 0
    %4586 = vmatprep.subr.bf16.mxu0 0
    %4587 = vmatpush1.bf16.msra.mxu0 0
    %4588 = vmatprep.subr.bf16.mxu0 0
    %4589 = vmatpush1.bf16.msra.mxu0 0
    %4590 = vmatprep.subr.bf16.mxu0 0
    %4591 = vmatpush1.bf16.msra.mxu0 0
    %4592 = vmatprep.mubr.bf16.mxu0 0
    %4593 = vmatmul.mubr.bf16.gmra.mrb[0].mxu0 %v4387
    %v4594 = vpop.f32.mrb[0].mxu0
    %v4595 = vadd.f32 0.0, %v4594
    %v4596 = vpop.f32.mrb[0].mxu0
    %v4597 = vpop.f32.mrb[0].mxu0
    %v4598 = vadd.f32 0.0, %v4597
    %v4599 = vpop.f32.mrb[0].mxu0
    %4600 = vdwg.mxu0
    %v4601 = vld [vmem:[#allocation6] sm:$0xfc]
    %v4602 = vld [vmem:[#allocation6 + $0x8] sm:$0xfc]
    %v4603 = vld [vmem:[#allocation6 + $0x10] sm:$0xfc]
    %v4604 = vld [vmem:[#allocation6 + $0x18] sm:$0x1f]
    %v4605 = vld [vmem:[#allocation6 + $0x20] sm:$0x1f]
    %v4606 = vld [vmem:[#allocation6 + $0x28] sm:$0x1f]
    %v4613 = vrot.slane %v4552, 6
    %v4614 = vrot.slane %v4554, 6
    %v4615 = vrot.slane %v4595, 6
    %v4616 = vrot.slane %v4556, 6
    %v4617 = vsel %vm251, %v4613, %v4616
    %v4618 = vrot.slane %v4558, 6
    %v4619 = vsel %vm251, %v4614, %v4618
    %v4620 = vrot.slane %v4598, 6
    %v4621 = vsel %vm251, %v4615, %v4620
    %v4628 = vadd.f32 %v4601, %v4613
    %v4629 = vadd.f32 %v4602, %v4614
    %v4630 = vadd.f32 %v4603, %v4615
    %v4631 = vadd.f32 %v4604, %v4617
    %v4632 = vadd.f32 %v4605, %v4619
    %v4633 = vadd.f32 %v4606, %v4621
    %4634 = vst [vmem:[#allocation6] sm:$0xfc] %v4628
    %4635 = vst [vmem:[#allocation6 + $0x8] sm:$0xfc] %v4629
    %4636 = vst [vmem:[#allocation6 + $0x10] sm:$0xfc] %v4630
    %4637 = vst [vmem:[#allocation6 + $0x18] sm:$0x1f] %v4631
    %4638 = vst [vmem:[#allocation6 + $0x20] sm:$0x1f] %v4632
    %4639 = vst [vmem:[#allocation6 + $0x28] sm:$0x1f] %v4633
    %v4640 = vld [vmem:[%s4332] sm:$0xf]
    %v4641 = vld [vmem:[%s4332 + $0x4] sm:$0x3]
    %v4644 = vunpack.c.l.b16 %v4640
    %v4645 = vunpack.c.l.b16 %v4641
    %v4646 = vpack.c.b16 %v4645, %v4644
    %4648 = vmatprep.subr.bf16.mxu0 %v4470
    %4649 = vmatpush1.bf16.msra.mxu0 %v4469
    %4650 = vmatprep.subr.bf16.mxu0 %v4473
    %4651 = vmatpush1.bf16.msra.mxu0 %v4472
    %4652 = vmatprep.subr.bf16.mxu0 %v4476
    %4653 = vmatpush1.bf16.msra.mxu0 %v4475
    %4654 = vmatprep.subr.bf16.mxu0 %v4479
    %4655 = vmatpush1.bf16.msra.mxu0 %v4478
    %4656 = vmatprep.subr.bf16.mxu0 %v4482
    %4657 = vmatpush1.bf16.msra.mxu0 %v4481
    %4658 = vmatprep.subr.bf16.mxu0 %v4485
    %4659 = vmatpush1.bf16.msra.mxu0 %v4484
    %4660 = vmatprep.subr.bf16.mxu0 %v4488
    %4661 = vmatpush1.bf16.msra.mxu0 %v4487
    %4662 = vmatprep.subr.bf16.mxu0 %v4491
    %4663 = vmatpush1.bf16.msra.mxu0 %v4490
    %4664 = vmatprep.subr.bf16.mxu0 0
    %4665 = vmatpush1.bf16.msra.mxu0 0
    %4666 = vmatprep.subr.bf16.mxu0 0
    %4667 = vmatpush1.bf16.msra.mxu0 0
    %4668 = vmatprep.subr.bf16.mxu0 0
    %4669 = vmatpush1.bf16.msra.mxu0 0
    %4670 = vmatprep.subr.bf16.mxu0 0
    %4671 = vmatpush1.bf16.msra.mxu0 0
    %4672 = vmatprep.subr.bf16.mxu0 0
    %4673 = vmatpush1.bf16.msra.mxu0 0
    %4674 = vmatprep.subr.bf16.mxu0 0
    %4675 = vmatpush1.bf16.msra.mxu0 0
    %4676 = vmatprep.subr.bf16.mxu0 0
    %4677 = vmatpush1.bf16.msra.mxu0 0
    %4678 = vmatprep.subr.bf16.mxu0 0
    %4679 = vmatpush1.bf16.msra.mxu0 0
    %4680 = vmatprep.mubr.bf16.mxu0 0
    %4681 = vmatmul.mubr.bf16.gmra.mrb[0].mxu0 %v4646
    %v4682 = vpop.f32.mrb[0].mxu0
    %v4683 = vadd.f32 0.0, %v4682
    %v4684 = vpop.f32.mrb[0].mxu0
    %v4685 = vadd.f32 0.0, %v4684
    %v4686 = vpop.f32.mrb[0].mxu0
    %v4687 = vadd.f32 0.0, %v4686
    %v4688 = vpop.f32.mrb[0].mxu0
    %v4689 = vadd.f32 0.0, %v4688
    %4690 = vdwg.mxu0
    %4691 = vmatprep.subr.bf16.mxu0 0
    %4692 = vmatpush1.bf16.msra.mxu0 %v4471
    %4693 = vmatprep.subr.bf16.mxu0 0
    %4694 = vmatpush1.bf16.msra.mxu0 %v4474
    %4695 = vmatprep.subr.bf16.mxu0 0
    %4696 = vmatpush1.bf16.msra.mxu0 %v4477
    %4697 = vmatprep.subr.bf16.mxu0 0
    %4698 = vmatpush1.bf16.msra.mxu0 %v4480
    %4699 = vmatprep.subr.bf16.mxu0 0
    %4700 = vmatpush1.bf16.msra.mxu0 %v4483
    %4701 = vmatprep.subr.bf16.mxu0 0
    %4702 = vmatpush1.bf16.msra.mxu0 %v4486
    %4703 = vmatprep.subr.bf16.mxu0 0
    %4704 = vmatpush1.bf16.msra.mxu0 %v4489
    %4705 = vmatprep.subr.bf16.mxu0 0
    %4706 = vmatpush1.bf16.msra.mxu0 %v4492
    %4707 = vmatprep.subr.bf16.mxu0 0
    %4708 = vmatpush1.bf16.msra.mxu0 0
    %4709 = vmatprep.subr.bf16.mxu0 0
    %4710 = vmatpush1.bf16.msra.mxu0 0
    %4711 = vmatprep.subr.bf16.mxu0 0
    %4712 = vmatpush1.bf16.msra.mxu0 0
    %4713 = vmatprep.subr.bf16.mxu0 0
    %4714 = vmatpush1.bf16.msra.mxu0 0
    %4715 = vmatprep.subr.bf16.mxu0 0
    %4716 = vmatpush1.bf16.msra.mxu0 0
    %4717 = vmatprep.subr.bf16.mxu0 0
    %4718 = vmatpush1.bf16.msra.mxu0 0
    %4719 = vmatprep.subr.bf16.mxu0 0
    %4720 = vmatpush1.bf16.msra.mxu0 0
    %4721 = vmatprep.subr.bf16.mxu0 0
    %4722 = vmatpush1.bf16.msra.mxu0 0
    %4723 = vmatprep.mubr.bf16.mxu0 0
    %4724 = vmatmul.mubr.bf16.gmra.mrb[0].mxu0 %v4646
    %v4725 = vpop.f32.mrb[0].mxu0
    %v4726 = vadd.f32 0.0, %v4725
    %v4727 = vpop.f32.mrb[0].mxu0
    %v4728 = vpop.f32.mrb[0].mxu0
    %v4729 = vadd.f32 0.0, %v4728
    %v4730 = vpop.f32.mrb[0].mxu0
    %4731 = vdwg.mxu0
    %v4732 = vld [vmem:[#allocation6 + $0x18] sm:$0x80]
    %v4733 = vld [vmem:[#allocation6 + $0x20] sm:$0x80]
    %v4734 = vld [vmem:[#allocation6 + $0x28] sm:$0x80]
    %v4735 = vld [vmem:[#allocation6 + $0x30] sm:$0xff]
    %v4736 = vld [vmem:[#allocation6 + $0x38] sm:$0xff]
    %v4737 = vld [vmem:[#allocation6 + $0x40] sm:$0xff]
    %v4738 = vld [vmem:[#allocation6 + $0x48] sm:$0x3]
    %v4739 = vld [vmem:[#allocation6 + $0x50] sm:$0x3]
    %v4740 = vld [vmem:[#allocation6 + $0x58] sm:$0x3]
    %v4747 = vrot.slane %v4683, 1
    %v4748 = vrot.slane %v4685, 1
    %v4749 = vrot.slane %v4726, 1
    %v4750 = vrot.slane %v4687, 1
    %v4751 = vsel %vm3364, %v4747, %v4750
    %v4752 = vrot.slane %v4689, 1
    %v4753 = vsel %vm3364, %v4748, %v4752
    %v4754 = vrot.slane %v4729, 1
    %v4755 = vsel %vm3364, %v4749, %v4754
    %v4765 = vadd.f32 %v4732, %v4747
    %v4766 = vadd.f32 %v4733, %v4748
    %v4767 = vadd.f32 %v4734, %v4749
    %v4768 = vadd.f32 %v4735, %v4751
    %v4769 = vadd.f32 %v4736, %v4753
    %v4770 = vadd.f32 %v4737, %v4755
    %v4771 = vadd.f32 %v4738, %v4750
    %v4772 = vadd.f32 %v4739, %v4752
    %v4773 = vadd.f32 %v4740, %v4754
    %4774 = vst [vmem:[#allocation6 + $0x18] sm:$0x80] %v4765
    %4775 = vst [vmem:[#allocation6 + $0x20] sm:$0x80] %v4766
    %4776 = vst [vmem:[#allocation6 + $0x28] sm:$0x80] %v4767
    %4777 = vst [vmem:[#allocation6 + $0x30] sm:$0xff] %v4768
    %4778 = vst [vmem:[#allocation6 + $0x38] sm:$0xff] %v4769
    %4779 = vst [vmem:[#allocation6 + $0x40] sm:$0xff] %v4770
    %4780 = vst [vmem:[#allocation6 + $0x48] sm:$0x3] %v4771
    %4781 = vst [vmem:[#allocation6 + $0x50] sm:$0x3] %v4772
    %4782 = vst [vmem:[#allocation6 + $0x58] sm:$0x3] %v4773
    %s4783 = scalar_lea.vmem %s9, 192
    %v4784 = vld [vmem:[%s4783] sm:$0xff]
    %v4785 = vld [vmem:[%s4783 + $0x8] sm:$0xf]
    %v4786 = vld [vmem:[%s4783 + $0xc] sm:$0xff]
    %v4787 = vld [vmem:[%s4783 + $0x14] sm:$0xf]
    %v4788 = vld [vmem:[%s4783 + $0x18] sm:$0xff]
    %v4789 = vld [vmem:[%s4783 + $0x20] sm:$0xf]
    %v4790 = vld [vmem:[%s4783 + $0x24] sm:$0xff]
    %v4791 = vld [vmem:[%s4783 + $0x2c] sm:$0xf]
    %v4792 = vld [vmem:[%s4783 + $0x30] sm:$0xff]
    %v4793 = vld [vmem:[%s4783 + $0x38] sm:$0xf]
    %v4794 = vld [vmem:[%s4783 + $0x3c] sm:$0xff]
    %v4795 = vld [vmem:[%s4783 + $0x44] sm:$0xf]
    %v4796 = vld [vmem:[%s4783 + $0x48] sm:$0xff]
    %v4797 = vld [vmem:[%s4783 + $0x50] sm:$0xf]
    %v4798 = vld [vmem:[%s4783 + $0x54] sm:$0xff]
    %v4799 = vld [vmem:[%s4783 + $0x5c] sm:$0xf]
    %v4800 = vld [vmem:[%s4783 + $0x60] sm:$0xff]
    %v4801 = vld [vmem:[%s4783 + $0x68] sm:$0xf]
    %v4802 = vld [vmem:[%s4783 + $0x6c] sm:$0xff]
    %v4803 = vld [vmem:[%s4783 + $0x74] sm:$0xf]
    %v4804 = vld [vmem:[%s4783 + $0x78] sm:$0xff]
    %v4805 = vld [vmem:[%s4783 + $0x80] sm:$0xf]
    %v4806 = vld [vmem:[%s4783 + $0x84] sm:$0xff]
    %v4807 = vld [vmem:[%s4783 + $0x8c] sm:$0xf]
    %v4808 = vld [vmem:[%s4783 + $0x90] sm:$0xff]
    %v4809 = vld [vmem:[%s4783 + $0x98] sm:$0xf]
    %v4810 = vld [vmem:[%s4783 + $0x9c] sm:$0xff]
    %v4811 = vld [vmem:[%s4783 + $0xa4] sm:$0xf]
    %v4812 = vld [vmem:[%s4783 + $0xa8] sm:$0xff]
    %v4813 = vld [vmem:[%s4783 + $0xb0] sm:$0xf]
    %v4814 = vld [vmem:[%s4783 + $0xb4] sm:$0xff]
    %v4815 = vld [vmem:[%s4783 + $0xbc] sm:$0xf]
    %v4816 = vld [vmem:[#allocation5] sm:$0xf]
    %v4817 = vld [vmem:[#allocation5 + $0x4] sm:$0x3]
    %v4820 = vunpack.c.l.b16 %v4816
    %v4821 = vunpack.c.l.b16 %v4817
    %v4822 = vpack.c.b16 %v4821, %v4820
    %v4856 = vunpack.c.l.b16 %v4784
    %v4857 = vunpack.c.h.b16 %v4784
    %v4858 = vunpack.c.l.b16 %v4785
    %v4859 = vunpack.c.l.b16 %v4786
    %v4860 = vunpack.c.h.b16 %v4786
    %v4861 = vunpack.c.l.b16 %v4787
    %v4862 = vunpack.c.l.b16 %v4788
    %v4863 = vunpack.c.h.b16 %v4788
    %v4864 = vunpack.c.l.b16 %v4789
    %v4865 = vunpack.c.l.b16 %v4790
    %v4866 = vunpack.c.h.b16 %v4790
    %v4867 = vunpack.c.l.b16 %v4791
    %v4868 = vunpack.c.l.b16 %v4792
    %v4869 = vunpack.c.h.b16 %v4792
    %v4870 = vunpack.c.l.b16 %v4793
    %v4871 = vunpack.c.l.b16 %v4794
    %v4872 = vunpack.c.h.b16 %v4794
    %v4873 = vunpack.c.l.b16 %v4795
    %v4874 = vunpack.c.l.b16 %v4796
    %v4875 = vunpack.c.h.b16 %v4796
    %v4876 = vunpack.c.l.b16 %v4797
    %v4877 = vunpack.c.l.b16 %v4798
    %v4878 = vunpack.c.h.b16 %v4798
    %v4879 = vunpack.c.l.b16 %v4799
    %v4880 = vunpack.c.l.b16 %v4800
    %v4881 = vunpack.c.h.b16 %v4800
    %v4882 = vunpack.c.l.b16 %v4801
    %v4883 = vunpack.c.l.b16 %v4802
    %v4884 = vunpack.c.h.b16 %v4802
    %v4885 = vunpack.c.l.b16 %v4803
    %v4886 = vunpack.c.l.b16 %v4804
    %v4887 = vunpack.c.h.b16 %v4804
    %v4888 = vunpack.c.l.b16 %v4805
    %v4889 = vunpack.c.l.b16 %v4806
    %v4890 = vunpack.c.h.b16 %v4806
    %v4891 = vunpack.c.l.b16 %v4807
    %v4892 = vunpack.c.l.b16 %v4808
    %v4893 = vunpack.c.h.b16 %v4808
    %v4894 = vunpack.c.l.b16 %v4809
    %v4895 = vunpack.c.l.b16 %v4810
    %v4896 = vunpack.c.h.b16 %v4810
    %v4897 = vunpack.c.l.b16 %v4811
    %v4898 = vunpack.c.l.b16 %v4812
    %v4899 = vunpack.c.h.b16 %v4812
    %v4900 = vunpack.c.l.b16 %v4813
    %v4901 = vunpack.c.l.b16 %v4814
    %v4902 = vunpack.c.h.b16 %v4814
    %v4903 = vunpack.c.l.b16 %v4815
    %v4904 = vpack.c.b16 %v4859, %v4856
    %v4905 = vpack.c.b16 %v4860, %v4857
    %v4906 = vpack.c.b16 %v4861, %v4858
    %v4907 = vpack.c.b16 %v4865, %v4862
    %v4908 = vpack.c.b16 %v4866, %v4863
    %v4909 = vpack.c.b16 %v4867, %v4864
    %v4910 = vpack.c.b16 %v4871, %v4868
    %v4911 = vpack.c.b16 %v4872, %v4869
    %v4912 = vpack.c.b16 %v4873, %v4870
    %v4913 = vpack.c.b16 %v4877, %v4874
    %v4914 = vpack.c.b16 %v4878, %v4875
    %v4915 = vpack.c.b16 %v4879, %v4876
    %v4916 = vpack.c.b16 %v4883, %v4880
    %v4917 = vpack.c.b16 %v4884, %v4881
    %v4918 = vpack.c.b16 %v4885, %v4882
    %v4919 = vpack.c.b16 %v4889, %v4886
    %v4920 = vpack.c.b16 %v4890, %v4887
    %v4921 = vpack.c.b16 %v4891, %v4888
    %v4922 = vpack.c.b16 %v4895, %v4892
    %v4923 = vpack.c.b16 %v4896, %v4893
    %v4924 = vpack.c.b16 %v4897, %v4894
    %v4925 = vpack.c.b16 %v4901, %v4898
    %v4926 = vpack.c.b16 %v4902, %v4899
    %v4927 = vpack.c.b16 %v4903, %v4900
    %4952 = vmatprep.subr.bf16.mxu0 %v4905
    %4953 = vmatpush1.bf16.msra.mxu0 %v4904
    %4954 = vmatprep.subr.bf16.mxu0 %v4908
    %4955 = vmatpush1.bf16.msra.mxu0 %v4907
    %4956 = vmatprep.subr.bf16.mxu0 %v4911
    %4957 = vmatpush1.bf16.msra.mxu0 %v4910
    %4958 = vmatprep.subr.bf16.mxu0 %v4914
    %4959 = vmatpush1.bf16.msra.mxu0 %v4913
    %4960 = vmatprep.subr.bf16.mxu0 %v4917
    %4961 = vmatpush1.bf16.msra.mxu0 %v4916
    %4962 = vmatprep.subr.bf16.mxu0 %v4920
    %4963 = vmatpush1.bf16.msra.mxu0 %v4919
    %4964 = vmatprep.subr.bf16.mxu0 %v4923
    %4965 = vmatpush1.bf16.msra.mxu0 %v4922
    %4966 = vmatprep.subr.bf16.mxu0 %v4926
    %4967 = vmatpush1.bf16.msra.mxu0 %v4925
    %4968 = vmatprep.subr.bf16.mxu0 0
    %4969 = vmatpush1.bf16.msra.mxu0 0
    %4970 = vmatprep.subr.bf16.mxu0 0
    %4971 = vmatpush1.bf16.msra.mxu0 0
    %4972 = vmatprep.subr.bf16.mxu0 0
    %4973 = vmatpush1.bf16.msra.mxu0 0
    %4974 = vmatprep.subr.bf16.mxu0 0
    %4975 = vmatpush1.bf16.msra.mxu0 0
    %4976 = vmatprep.subr.bf16.mxu0 0
    %4977 = vmatpush1.bf16.msra.mxu0 0
    %4978 = vmatprep.subr.bf16.mxu0 0
    %4979 = vmatpush1.bf16.msra.mxu0 0
    %4980 = vmatprep.subr.bf16.mxu0 0
    %4981 = vmatpush1.bf16.msra.mxu0 0
    %4982 = vmatprep.subr.bf16.mxu0 0
    %4983 = vmatpush1.bf16.msra.mxu0 0
    %4984 = vmatprep.mubr.bf16.mxu0 0
    %4985 = vmatmul.mubr.bf16.gmra.mrb[0].mxu0 %v4822
    %v4986 = vpop.f32.mrb[0].mxu0
    %v4987 = vadd.f32 0.0, %v4986
    %v4988 = vpop.f32.mrb[0].mxu0
    %v4989 = vadd.f32 0.0, %v4988
    %v4990 = vpop.f32.mrb[0].mxu0
    %v4991 = vadd.f32 0.0, %v4990
    %v4992 = vpop.f32.mrb[0].mxu0
    %v4993 = vadd.f32 0.0, %v4992
    %4994 = vdwg.mxu0
    %4995 = vmatprep.subr.bf16.mxu0 0
    %4996 = vmatpush1.bf16.msra.mxu0 %v4906
    %4997 = vmatprep.subr.bf16.mxu0 0
    %4998 = vmatpush1.bf16.msra.mxu0 %v4909
    %4999 = vmatprep.subr.bf16.mxu0 0
    %5000 = vmatpush1.bf16.msra.mxu0 %v4912
    %5001 = vmatprep.subr.bf16.mxu0 0
    %5002 = vmatpush1.bf16.msra.mxu0 %v4915
    %5003 = vmatprep.subr.bf16.mxu0 0
    %5004 = vmatpush1.bf16.msra.mxu0 %v4918
    %5005 = vmatprep.subr.bf16.mxu0 0
    %5006 = vmatpush1.bf16.msra.mxu0 %v4921
    %5007 = vmatprep.subr.bf16.mxu0 0
    %5008 = vmatpush1.bf16.msra.mxu0 %v4924
    %5009 = vmatprep.subr.bf16.mxu0 0
    %5010 = vmatpush1.bf16.msra.mxu0 %v4927
    %5011 = vmatprep.subr.bf16.mxu0 0
    %5012 = vmatpush1.bf16.msra.mxu0 0
    %5013 = vmatprep.subr.bf16.mxu0 0
    %5014 = vmatpush1.bf16.msra.mxu0 0
    %5015 = vmatprep.subr.bf16.mxu0 0
    %5016 = vmatpush1.bf16.msra.mxu0 0
    %5017 = vmatprep.subr.bf16.mxu0 0
    %5018 = vmatpush1.bf16.msra.mxu0 0
    %5019 = vmatprep.subr.bf16.mxu0 0
    %5020 = vmatpush1.bf16.msra.mxu0 0
    %5021 = vmatprep.subr.bf16.mxu0 0
    %5022 = vmatpush1.bf16.msra.mxu0 0
    %5023 = vmatprep.subr.bf16.mxu0 0
    %5024 = vmatpush1.bf16.msra.mxu0 0
    %5025 = vmatprep.subr.bf16.mxu0 0
    %5026 = vmatpush1.bf16.msra.mxu0 0
    %5027 = vmatprep.mubr.bf16.mxu0 0
    %5028 = vmatmul.mubr.bf16.gmra.mrb[0].mxu0 %v4822
    %v5029 = vpop.f32.mrb[0].mxu0
    %v5030 = vadd.f32 0.0, %v5029
    %v5031 = vpop.f32.mrb[0].mxu0
    %v5032 = vpop.f32.mrb[0].mxu0
    %v5033 = vadd.f32 0.0, %v5032
    %v5034 = vpop.f32.mrb[0].mxu0
    %5035 = vdwg.mxu0
    %v5036 = vld [vmem:[#allocation6] sm:$0xfe]
    %v5037 = vld [vmem:[#allocation6 + $0x8] sm:$0xfe]
    %v5038 = vld [vmem:[#allocation6 + $0x10] sm:$0xfe]
    %v5039 = vld [vmem:[#allocation6 + $0x18] sm:$0xf]
    %v5040 = vld [vmem:[#allocation6 + $0x20] sm:$0xf]
    %v5041 = vld [vmem:[#allocation6 + $0x28] sm:$0xf]
    %v5048 = vrot.slane %v4987, 7
    %v5049 = vrot.slane %v4989, 7
    %v5050 = vrot.slane %v5030, 7
    %v5051 = vrot.slane %v4991, 7
    %v5052 = vsel %vm602, %v5048, %v5051
    %v5053 = vrot.slane %v4993, 7
    %v5054 = vsel %vm602, %v5049, %v5053
    %v5055 = vrot.slane %v5033, 7
    %v5056 = vsel %vm602, %v5050, %v5055
    %v5063 = vadd.f32 %v5036, %v5048
    %v5064 = vadd.f32 %v5037, %v5049
    %v5065 = vadd.f32 %v5038, %v5050
    %v5066 = vadd.f32 %v5039, %v5052
    %v5067 = vadd.f32 %v5040, %v5054
    %v5068 = vadd.f32 %v5041, %v5056
    %5069 = vst [vmem:[#allocation6] sm:$0xfe] %v5063
    %5070 = vst [vmem:[#allocation6 + $0x8] sm:$0xfe] %v5064
    %5071 = vst [vmem:[#allocation6 + $0x10] sm:$0xfe] %v5065
    %5072 = vst [vmem:[#allocation6 + $0x18] sm:$0xf] %v5066
    %5073 = vst [vmem:[#allocation6 + $0x20] sm:$0xf] %v5067
    %5074 = vst [vmem:[#allocation6 + $0x28] sm:$0xf] %v5068
    %v5075 = vld [vmem:[%s4332] sm:$0xf]
    %v5076 = vld [vmem:[%s4332 + $0x4] sm:$0x3]
    %v5079 = vunpack.c.l.b16 %v5075
    %v5080 = vunpack.c.l.b16 %v5076
    %v5081 = vpack.c.b16 %v5080, %v5079
    %5083 = vmatprep.subr.bf16.mxu0 %v4905
    %5084 = vmatpush1.bf16.msra.mxu0 %v4904
    %5085 = vmatprep.subr.bf16.mxu0 %v4908
    %5086 = vmatpush1.bf16.msra.mxu0 %v4907
    %5087 = vmatprep.subr.bf16.mxu0 %v4911
    %5088 = vmatpush1.bf16.msra.mxu0 %v4910
    %5089 = vmatprep.subr.bf16.mxu0 %v4914
    %5090 = vmatpush1.bf16.msra.mxu0 %v4913
    %5091 = vmatprep.subr.bf16.mxu0 %v4917
    %5092 = vmatpush1.bf16.msra.mxu0 %v4916
    %5093 = vmatprep.subr.bf16.mxu0 %v4920
    %5094 = vmatpush1.bf16.msra.mxu0 %v4919
    %5095 = vmatprep.subr.bf16.mxu0 %v4923
    %5096 = vmatpush1.bf16.msra.mxu0 %v4922
    %5097 = vmatprep.subr.bf16.mxu0 %v4926
    %5098 = vmatpush1.bf16.msra.mxu0 %v4925
    %5099 = vmatprep.subr.bf16.mxu0 0
    %5100 = vmatpush1.bf16.msra.mxu0 0
    %5101 = vmatprep.subr.bf16.mxu0 0
    %5102 = vmatpush1.bf16.msra.mxu0 0
    %5103 = vmatprep.subr.bf16.mxu0 0
    %5104 = vmatpush1.bf16.msra.mxu0 0
    %5105 = vmatprep.subr.bf16.mxu0 0
    %5106 = vmatpush1.bf16.msra.mxu0 0
    %5107 = vmatprep.subr.bf16.mxu0 0
    %5108 = vmatpush1.bf16.msra.mxu0 0
    %5109 = vmatprep.subr.bf16.mxu0 0
    %5110 = vmatpush1.bf16.msra.mxu0 0
    %5111 = vmatprep.subr.bf16.mxu0 0
    %5112 = vmatpush1.bf16.msra.mxu0 0
    %5113 = vmatprep.subr.bf16.mxu0 0
    %5114 = vmatpush1.bf16.msra.mxu0 0
    %5115 = vmatprep.mubr.bf16.mxu0 0
    %5116 = vmatmul.mubr.bf16.gmra.mrb[0].mxu0 %v5081
    %v5117 = vpop.f32.mrb[0].mxu0
    %v5118 = vadd.f32 0.0, %v5117
    %v5119 = vpop.f32.mrb[0].mxu0
    %v5120 = vadd.f32 0.0, %v5119
    %v5121 = vpop.f32.mrb[0].mxu0
    %v5122 = vadd.f32 0.0, %v5121
    %v5123 = vpop.f32.mrb[0].mxu0
    %v5124 = vadd.f32 0.0, %v5123
    %5125 = vdwg.mxu0
    %5126 = vmatprep.subr.bf16.mxu0 0
    %5127 = vmatpush1.bf16.msra.mxu0 %v4906
    %5128 = vmatprep.subr.bf16.mxu0 0
    %5129 = vmatpush1.bf16.msra.mxu0 %v4909
    %5130 = vmatprep.subr.bf16.mxu0 0
    %5131 = vmatpush1.bf16.msra.mxu0 %v4912
    %5132 = vmatprep.subr.bf16.mxu0 0
    %5133 = vmatpush1.bf16.msra.mxu0 %v4915
    %5134 = vmatprep.subr.bf16.mxu0 0
    %5135 = vmatpush1.bf16.msra.mxu0 %v4918
    %5136 = vmatprep.subr.bf16.mxu0 0
    %5137 = vmatpush1.bf16.msra.mxu0 %v4921
    %5138 = vmatprep.subr.bf16.mxu0 0
    %5139 = vmatpush1.bf16.msra.mxu0 %v4924
    %5140 = vmatprep.subr.bf16.mxu0 0
    %5141 = vmatpush1.bf16.msra.mxu0 %v4927
    %5142 = vmatprep.subr.bf16.mxu0 0
    %5143 = vmatpush1.bf16.msra.mxu0 0
    %5144 = vmatprep.subr.bf16.mxu0 0
    %5145 = vmatpush1.bf16.msra.mxu0 0
    %5146 = vmatprep.subr.bf16.mxu0 0
    %5147 = vmatpush1.bf16.msra.mxu0 0
    %5148 = vmatprep.subr.bf16.mxu0 0
    %5149 = vmatpush1.bf16.msra.mxu0 0
    %5150 = vmatprep.subr.bf16.mxu0 0
    %5151 = vmatpush1.bf16.msra.mxu0 0
    %5152 = vmatprep.subr.bf16.mxu0 0
    %5153 = vmatpush1.bf16.msra.mxu0 0
    %5154 = vmatprep.subr.bf16.mxu0 0
    %5155 = vmatpush1.bf16.msra.mxu0 0
    %5156 = vmatprep.subr.bf16.mxu0 0
    %5157 = vmatpush1.bf16.msra.mxu0 0
    %5158 = vmatprep.mubr.bf16.mxu0 0
    %5159 = vmatmul.mubr.bf16.gmra.mrb[0].mxu0 %v5081
    %v5160 = vpop.f32.mrb[0].mxu0
    %v5161 = vadd.f32 0.0, %v5160
    %v5162 = vpop.f32.mrb[0].mxu0
    %v5163 = vpop.f32.mrb[0].mxu0
    %v5164 = vadd.f32 0.0, %v5163
    %v5165 = vpop.f32.mrb[0].mxu0
    %5166 = vdwg.mxu0
    %v5167 = vld [vmem:[#allocation6 + $0x18] sm:$0xc0]
    %v5168 = vld [vmem:[#allocation6 + $0x20] sm:$0xc0]
    %v5169 = vld [vmem:[#allocation6 + $0x28] sm:$0xc0]
    %v5170 = vld [vmem:[#allocation6 + $0x30] sm:$0xff]
    %v5171 = vld [vmem:[#allocation6 + $0x38] sm:$0xff]
    %v5172 = vld [vmem:[#allocation6 + $0x40] sm:$0xff]
    %v5173 = vld [vmem:[#allocation6 + $0x48] sm:$0x1]
    %v5174 = vld [vmem:[#allocation6 + $0x50] sm:$0x1]
    %v5175 = vld [vmem:[#allocation6 + $0x58] sm:$0x1]
    %v5182 = vrot.slane %v5118, 2
    %v5183 = vrot.slane %v5120, 2
    %v5184 = vrot.slane %v5161, 2
    %v5185 = vrot.slane %v5122, 2
    %v5186 = vsel %vm161, %v5182, %v5185
    %v5187 = vrot.slane %v5124, 2
    %v5188 = vsel %vm161, %v5183, %v5187
    %v5189 = vrot.slane %v5164, 2
    %v5190 = vsel %vm161, %v5184, %v5189
    %v5200 = vadd.f32 %v5167, %v5182
    %v5201 = vadd.f32 %v5168, %v5183
    %v5202 = vadd.f32 %v5169, %v5184
    %v5203 = vadd.f32 %v5170, %v5186
    %v5204 = vadd.f32 %v5171, %v5188
    %v5205 = vadd.f32 %v5172, %v5190
    %v5206 = vadd.f32 %v5173, %v5185
    %v5207 = vadd.f32 %v5174, %v5187
    %v5208 = vadd.f32 %v5175, %v5189
    %5209 = vst [vmem:[#allocation6 + $0x18] sm:$0xc0] %v5200
    %5210 = vst [vmem:[#allocation6 + $0x20] sm:$0xc0] %v5201
    %5211 = vst [vmem:[#allocation6 + $0x28] sm:$0xc0] %v5202
    %5212 = vst [vmem:[#allocation6 + $0x30] sm:$0xff] %v5203
    %5213 = vst [vmem:[#allocation6 + $0x38] sm:$0xff] %v5204
    %5214 = vst [vmem:[#allocation6 + $0x40] sm:$0xff] %v5205
    %5215 = vst [vmem:[#allocation6 + $0x48] sm:$0x1] %v5206
    %5216 = vst [vmem:[#allocation6 + $0x50] sm:$0x1] %v5207
    %5217 = vst [vmem:[#allocation6 + $0x58] sm:$0x1] %v5208
    %s5218 = scalar_lea.vmem %s9, 384
    %v5219 = vld [vmem:[%s5218] sm:$0xff]
    %v5220 = vld [vmem:[%s5218 + $0x8] sm:$0xf]
    %v5221 = vld [vmem:[%s5218 + $0xc] sm:$0xff]
    %v5222 = vld [vmem:[%s5218 + $0x14] sm:$0xf]
    %v5223 = vld [vmem:[%s5218 + $0x18] sm:$0xff]
    %v5224 = vld [vmem:[%s5218 + $0x20] sm:$0xf]
    %v5225 = vld [vmem:[%s5218 + $0x24] sm:$0xff]
    %v5226 = vld [vmem:[%s5218 + $0x2c] sm:$0xf]
    %v5227 = vld [vmem:[%s5218 + $0x30] sm:$0xff]
    %v5228 = vld [vmem:[%s5218 + $0x38] sm:$0xf]
    %v5229 = vld [vmem:[%s5218 + $0x3c] sm:$0xff]
    %v5230 = vld [vmem:[%s5218 + $0x44] sm:$0xf]
    %v5231 = vld [vmem:[%s5218 + $0x48] sm:$0xff]
    %v5232 = vld [vmem:[%s5218 + $0x50] sm:$0xf]
    %v5233 = vld [vmem:[%s5218 + $0x54] sm:$0xff]
    %v5234 = vld [vmem:[%s5218 + $0x5c] sm:$0xf]
    %v5235 = vld [vmem:[%s5218 + $0x60] sm:$0xff]
    %v5236 = vld [vmem:[%s5218 + $0x68] sm:$0xf]
    %v5237 = vld [vmem:[%s5218 + $0x6c] sm:$0xff]
    %v5238 = vld [vmem:[%s5218 + $0x74] sm:$0xf]
    %v5239 = vld [vmem:[%s5218 + $0x78] sm:$0xff]
    %v5240 = vld [vmem:[%s5218 + $0x80] sm:$0xf]
    %v5241 = vld [vmem:[%s5218 + $0x84] sm:$0xff]
    %v5242 = vld [vmem:[%s5218 + $0x8c] sm:$0xf]
    %v5243 = vld [vmem:[%s5218 + $0x90] sm:$0xff]
    %v5244 = vld [vmem:[%s5218 + $0x98] sm:$0xf]
    %v5245 = vld [vmem:[%s5218 + $0x9c] sm:$0xff]
    %v5246 = vld [vmem:[%s5218 + $0xa4] sm:$0xf]
    %v5247 = vld [vmem:[%s5218 + $0xa8] sm:$0xff]
    %v5248 = vld [vmem:[%s5218 + $0xb0] sm:$0xf]
    %v5249 = vld [vmem:[%s5218 + $0xb4] sm:$0xff]
    %v5250 = vld [vmem:[%s5218 + $0xbc] sm:$0xf]
    %v5251 = vld [vmem:[#allocation5] sm:$0xf]
    %v5252 = vld [vmem:[#allocation5 + $0x4] sm:$0x3]
    %v5255 = vunpack.c.l.b16 %v5251
    %v5256 = vunpack.c.l.b16 %v5252
    %v5257 = vpack.c.b16 %v5256, %v5255
    %v5291 = vunpack.c.l.b16 %v5219
    %v5292 = vunpack.c.h.b16 %v5219
    %v5293 = vunpack.c.l.b16 %v5220
    %v5294 = vunpack.c.l.b16 %v5221
    %v5295 = vunpack.c.h.b16 %v5221
    %v5296 = vunpack.c.l.b16 %v5222
    %v5297 = vunpack.c.l.b16 %v5223
    %v5298 = vunpack.c.h.b16 %v5223
    %v5299 = vunpack.c.l.b16 %v5224
    %v5300 = vunpack.c.l.b16 %v5225
    %v5301 = vunpack.c.h.b16 %v5225
    %v5302 = vunpack.c.l.b16 %v5226
    %v5303 = vunpack.c.l.b16 %v5227
    %v5304 = vunpack.c.h.b16 %v5227
    %v5305 = vunpack.c.l.b16 %v5228
    %v5306 = vunpack.c.l.b16 %v5229
    %v5307 = vunpack.c.h.b16 %v5229
    %v5308 = vunpack.c.l.b16 %v5230
    %v5309 = vunpack.c.l.b16 %v5231
    %v5310 = vunpack.c.h.b16 %v5231
    %v5311 = vunpack.c.l.b16 %v5232
    %v5312 = vunpack.c.l.b16 %v5233
    %v5313 = vunpack.c.h.b16 %v5233
    %v5314 = vunpack.c.l.b16 %v5234
    %v5315 = vunpack.c.l.b16 %v5235
    %v5316 = vunpack.c.h.b16 %v5235
    %v5317 = vunpack.c.l.b16 %v5236
    %v5318 = vunpack.c.l.b16 %v5237
    %v5319 = vunpack.c.h.b16 %v5237
    %v5320 = vunpack.c.l.b16 %v5238
    %v5321 = vunpack.c.l.b16 %v5239
    %v5322 = vunpack.c.h.b16 %v5239
    %v5323 = vunpack.c.l.b16 %v5240
    %v5324 = vunpack.c.l.b16 %v5241
    %v5325 = vunpack.c.h.b16 %v5241
    %v5326 = vunpack.c.l.b16 %v5242
    %v5327 = vunpack.c.l.b16 %v5243
    %v5328 = vunpack.c.h.b16 %v5243
    %v5329 = vunpack.c.l.b16 %v5244
    %v5330 = vunpack.c.l.b16 %v5245
    %v5331 = vunpack.c.h.b16 %v5245
    %v5332 = vunpack.c.l.b16 %v5246
    %v5333 = vunpack.c.l.b16 %v5247
    %v5334 = vunpack.c.h.b16 %v5247
    %v5335 = vunpack.c.l.b16 %v5248
    %v5336 = vunpack.c.l.b16 %v5249
    %v5337 = vunpack.c.h.b16 %v5249
    %v5338 = vunpack.c.l.b16 %v5250
    %v5339 = vpack.c.b16 %v5294, %v5291
    %v5340 = vpack.c.b16 %v5295, %v5292
    %v5341 = vpack.c.b16 %v5296, %v5293
    %v5342 = vpack.c.b16 %v5300, %v5297
    %v5343 = vpack.c.b16 %v5301, %v5298
    %v5344 = vpack.c.b16 %v5302, %v5299
    %v5345 = vpack.c.b16 %v5306, %v5303
    %v5346 = vpack.c.b16 %v5307, %v5304
    %v5347 = vpack.c.b16 %v5308, %v5305
    %v5348 = vpack.c.b16 %v5312, %v5309
    %v5349 = vpack.c.b16 %v5313, %v5310
    %v5350 = vpack.c.b16 %v5314, %v5311
    %v5351 = vpack.c.b16 %v5318, %v5315
    %v5352 = vpack.c.b16 %v5319, %v5316
    %v5353 = vpack.c.b16 %v5320, %v5317
    %v5354 = vpack.c.b16 %v5324, %v5321
    %v5355 = vpack.c.b16 %v5325, %v5322
    %v5356 = vpack.c.b16 %v5326, %v5323
    %v5357 = vpack.c.b16 %v5330, %v5327
    %v5358 = vpack.c.b16 %v5331, %v5328
    %v5359 = vpack.c.b16 %v5332, %v5329
    %v5360 = vpack.c.b16 %v5336, %v5333
    %v5361 = vpack.c.b16 %v5337, %v5334
    %v5362 = vpack.c.b16 %v5338, %v5335
    %5387 = vmatprep.subr.bf16.mxu0 %v5340
    %5388 = vmatpush1.bf16.msra.mxu0 %v5339
    %5389 = vmatprep.subr.bf16.mxu0 %v5343
    %5390 = vmatpush1.bf16.msra.mxu0 %v5342
    %5391 = vmatprep.subr.bf16.mxu0 %v5346
    %5392 = vmatpush1.bf16.msra.mxu0 %v5345
    %5393 = vmatprep.subr.bf16.mxu0 %v5349
    %5394 = vmatpush1.bf16.msra.mxu0 %v5348
    %5395 = vmatprep.subr.bf16.mxu0 %v5352
    %5396 = vmatpush1.bf16.msra.mxu0 %v5351
    %5397 = vmatprep.subr.bf16.mxu0 %v5355
    %5398 = vmatpush1.bf16.msra.mxu0 %v5354
    %5399 = vmatprep.subr.bf16.mxu0 %v5358
    %5400 = vmatpush1.bf16.msra.mxu0 %v5357
    %5401 = vmatprep.subr.bf16.mxu0 %v5361
    %5402 = vmatpush1.bf16.msra.mxu0 %v5360
    %5403 = vmatprep.subr.bf16.mxu0 0
    %5404 = vmatpush1.bf16.msra.mxu0 0
    %5405 = vmatprep.subr.bf16.mxu0 0
    %5406 = vmatpush1.bf16.msra.mxu0 0
    %5407 = vmatprep.subr.bf16.mxu0 0
    %5408 = vmatpush1.bf16.msra.mxu0 0
    %5409 = vmatprep.subr.bf16.mxu0 0
    %5410 = vmatpush1.bf16.msra.mxu0 0
    %5411 = vmatprep.subr.bf16.mxu0 0
    %5412 = vmatpush1.bf16.msra.mxu0 0
    %5413 = vmatprep.subr.bf16.mxu0 0
    %5414 = vmatpush1.bf16.msra.mxu0 0
    %5415 = vmatprep.subr.bf16.mxu0 0
    %5416 = vmatpush1.bf16.msra.mxu0 0
    %5417 = vmatprep.subr.bf16.mxu0 0
    %5418 = vmatpush1.bf16.msra.mxu0 0
    %5419 = vmatprep.mubr.bf16.mxu0 0
    %5420 = vmatmul.mubr.bf16.gmra.mrb[0].mxu0 %v5257
    %v5421 = vpop.f32.mrb[0].mxu0
    %v5422 = vadd.f32 0.0, %v5421
    %v5423 = vpop.f32.mrb[0].mxu0
    %v5424 = vadd.f32 0.0, %v5423
    %v5425 = vpop.f32.mrb[0].mxu0
    %v5426 = vadd.f32 0.0, %v5425
    %v5427 = vpop.f32.mrb[0].mxu0
    %v5428 = vadd.f32 0.0, %v5427
    %5429 = vdwg.mxu0
    %5430 = vmatprep.subr.bf16.mxu0 0
    %5431 = vmatpush1.bf16.msra.mxu0 %v5341
    %5432 = vmatprep.subr.bf16.mxu0 0
    %5433 = vmatpush1.bf16.msra.mxu0 %v5344
    %5434 = vmatprep.subr.bf16.mxu0 0
    %5435 = vmatpush1.bf16.msra.mxu0 %v5347
    %5436 = vmatprep.subr.bf16.mxu0 0
    %5437 = vmatpush1.bf16.msra.mxu0 %v5350
    %5438 = vmatprep.subr.bf16.mxu0 0
    %5439 = vmatpush1.bf16.msra.mxu0 %v5353
    %5440 = vmatprep.subr.bf16.mxu0 0
    %5441 = vmatpush1.bf16.msra.mxu0 %v5356
    %5442 = vmatprep.subr.bf16.mxu0 0
    %5443 = vmatpush1.bf16.msra.mxu0 %v5359
    %5444 = vmatprep.subr.bf16.mxu0 0
    %5445 = vmatpush1.bf16.msra.mxu0 %v5362
    %5446 = vmatprep.subr.bf16.mxu0 0
    %5447 = vmatpush1.bf16.msra.mxu0 0
    %5448 = vmatprep.subr.bf16.mxu0 0
    %5449 = vmatpush1.bf16.msra.mxu0 0
    %5450 = vmatprep.subr.bf16.mxu0 0
    %5451 = vmatpush1.bf16.msra.mxu0 0
    %5452 = vmatprep.subr.bf16.mxu0 0
    %5453 = vmatpush1.bf16.msra.mxu0 0
    %5454 = vmatprep.subr.bf16.mxu0 0
    %5455 = vmatpush1.bf16.msra.mxu0 0
    %5456 = vmatprep.subr.bf16.mxu0 0
    %5457 = vmatpush1.bf16.msra.mxu0 0
    %5458 = vmatprep.subr.bf16.mxu0 0
    %5459 = vmatpush1.bf16.msra.mxu0 0
    %5460 = vmatprep.subr.bf16.mxu0 0
    %5461 = vmatpush1.bf16.msra.mxu0 0
    %5462 = vmatprep.mubr.bf16.mxu0 0
    %5463 = vmatmul.mubr.bf16.gmra.mrb[0].mxu0 %v5257
    %v5464 = vpop.f32.mrb[0].mxu0
    %v5465 = vadd.f32 0.0, %v5464
    %v5466 = vpop.f32.mrb[0].mxu0
    %v5467 = vpop.f32.mrb[0].mxu0
    %v5468 = vadd.f32 0.0, %v5467
    %v5469 = vpop.f32.mrb[0].mxu0
    %5470 = vdwg.mxu0
    %v5471 = vld [vmem:[#allocation6] sm:$0xff]
    %v5472 = vld [vmem:[#allocation6 + $0x8] sm:$0xff]
    %v5473 = vld [vmem:[#allocation6 + $0x10] sm:$0xff]
    %v5474 = vld [vmem:[#allocation6 + $0x18] sm:$0x7]
    %v5475 = vld [vmem:[#allocation6 + $0x20] sm:$0x7]
    %v5476 = vld [vmem:[#allocation6 + $0x28] sm:$0x7]
    %v5477 = vadd.f32 %v5471, %v5422
    %v5478 = vadd.f32 %v5472, %v5424
    %v5479 = vadd.f32 %v5473, %v5465
    %v5480 = vadd.f32 %v5474, %v5426
    %v5481 = vadd.f32 %v5475, %v5428
    %v5482 = vadd.f32 %v5476, %v5468
    %5483 = vst [vmem:[#allocation6] sm:$0xff] %v5477
    %5484 = vst [vmem:[#allocation6 + $0x8] sm:$0xff] %v5478
    %5485 = vst [vmem:[#allocation6 + $0x10] sm:$0xff] %v5479
    %5486 = vst [vmem:[#allocation6 + $0x18] sm:$0x7] %v5480
    %5487 = vst [vmem:[#allocation6 + $0x20] sm:$0x7] %v5481
    %5488 = vst [vmem:[#allocation6 + $0x28] sm:$0x7] %v5482
    %v5489 = vld [vmem:[%s4332] sm:$0xf]
    %v5490 = vld [vmem:[%s4332 + $0x4] sm:$0x3]
    %v5493 = vunpack.c.l.b16 %v5489
    %v5494 = vunpack.c.l.b16 %v5490
    %v5495 = vpack.c.b16 %v5494, %v5493
    %5497 = vmatprep.subr.bf16.mxu0 %v5340
    %5498 = vmatpush1.bf16.msra.mxu0 %v5339
    %5499 = vmatprep.subr.bf16.mxu0 %v5343
    %5500 = vmatpush1.bf16.msra.mxu0 %v5342
    %5501 = vmatprep.subr.bf16.mxu0 %v5346
    %5502 = vmatpush1.bf16.msra.mxu0 %v5345
    %5503 = vmatprep.subr.bf16.mxu0 %v5349
    %5504 = vmatpush1.bf16.msra.mxu0 %v5348
    %5505 = vmatprep.subr.bf16.mxu0 %v5352
    %5506 = vmatpush1.bf16.msra.mxu0 %v5351
    %5507 = vmatprep.subr.bf16.mxu0 %v5355
    %5508 = vmatpush1.bf16.msra.mxu0 %v5354
    %5509 = vmatprep.subr.bf16.mxu0 %v5358
    %5510 = vmatpush1.bf16.msra.mxu0 %v5357
    %5511 = vmatprep.subr.bf16.mxu0 %v5361
    %5512 = vmatpush1.bf16.msra.mxu0 %v5360
    %5513 = vmatprep.subr.bf16.mxu0 0
    %5514 = vmatpush1.bf16.msra.mxu0 0
    %5515 = vmatprep.subr.bf16.mxu0 0
    %5516 = vmatpush1.bf16.msra.mxu0 0
    %5517 = vmatprep.subr.bf16.mxu0 0
    %5518 = vmatpush1.bf16.msra.mxu0 0
    %5519 = vmatprep.subr.bf16.mxu0 0
    %5520 = vmatpush1.bf16.msra.mxu0 0
    %5521 = vmatprep.subr.bf16.mxu0 0
    %5522 = vmatpush1.bf16.msra.mxu0 0
    %5523 = vmatprep.subr.bf16.mxu0 0
    %5524 = vmatpush1.bf16.msra.mxu0 0
    %5525 = vmatprep.subr.bf16.mxu0 0
    %5526 = vmatpush1.bf16.msra.mxu0 0
    %5527 = vmatprep.subr.bf16.mxu0 0
    %5528 = vmatpush1.bf16.msra.mxu0 0
    %5529 = vmatprep.mubr.bf16.mxu0 0
    %5530 = vmatmul.mubr.bf16.gmra.mrb[0].mxu0 %v5495
    %v5531 = vpop.f32.mrb[0].mxu0
    %v5532 = vadd.f32 0.0, %v5531
    %v5533 = vpop.f32.mrb[0].mxu0
    %v5534 = vadd.f32 0.0, %v5533
    %v5535 = vpop.f32.mrb[0].mxu0
    %v5536 = vadd.f32 0.0, %v5535
    %v5537 = vpop.f32.mrb[0].mxu0
    %v5538 = vadd.f32 0.0, %v5537
    %5539 = vdwg.mxu0
    %5540 = vmatprep.subr.bf16.mxu0 0
    %5541 = vmatpush1.bf16.msra.mxu0 %v5341
    %5542 = vmatprep.subr.bf16.mxu0 0
    %5543 = vmatpush1.bf16.msra.mxu0 %v5344
    %5544 = vmatprep.subr.bf16.mxu0 0
    %5545 = vmatpush1.bf16.msra.mxu0 %v5347
    %5546 = vmatprep.subr.bf16.mxu0 0
    %5547 = vmatpush1.bf16.msra.mxu0 %v5350
    %5548 = vmatprep.subr.bf16.mxu0 0
    %5549 = vmatpush1.bf16.msra.mxu0 %v5353
    %5550 = vmatprep.subr.bf16.mxu0 0
    %5551 = vmatpush1.bf16.msra.mxu0 %v5356
    %5552 = vmatprep.subr.bf16.mxu0 0
    %5553 = vmatpush1.bf16.msra.mxu0 %v5359
    %5554 = vmatprep.subr.bf16.mxu0 0
    %5555 = vmatpush1.bf16.msra.mxu0 %v5362
    %5556 = vmatprep.subr.bf16.mxu0 0
    %5557 = vmatpush1.bf16.msra.mxu0 0
    %5558 = vmatprep.subr.bf16.mxu0 0
    %5559 = vmatpush1.bf16.msra.mxu0 0
    %5560 = vmatprep.subr.bf16.mxu0 0
    %5561 = vmatpush1.bf16.msra.mxu0 0
    %5562 = vmatprep.subr.bf16.mxu0 0
    %5563 = vmatpush1.bf16.msra.mxu0 0
    %5564 = vmatprep.subr.bf16.mxu0 0
    %5565 = vmatpush1.bf16.msra.mxu0 0
    %5566 = vmatprep.subr.bf16.mxu0 0
    %5567 = vmatpush1.bf16.msra.mxu0 0
    %5568 = vmatprep.subr.bf16.mxu0 0
    %5569 = vmatpush1.bf16.msra.mxu0 0
    %5570 = vmatprep.subr.bf16.mxu0 0
    %5571 = vmatpush1.bf16.msra.mxu0 0
    %5572 = vmatprep.mubr.bf16.mxu0 0
    %5573 = vmatmul.mubr.bf16.gmra.mrb[0].mxu0 %v5495
    %v5574 = vpop.f32.mrb[0].mxu0
    %v5575 = vadd.f32 0.0, %v5574
    %v5576 = vpop.f32.mrb[0].mxu0
    %v5577 = vpop.f32.mrb[0].mxu0
    %v5578 = vadd.f32 0.0, %v5577
    %v5579 = vpop.f32.mrb[0].mxu0
    %5580 = vdwg.mxu0
    %v5581 = vld [vmem:[#allocation6 + $0x18] sm:$0xe0]
    %v5582 = vld [vmem:[#allocation6 + $0x20] sm:$0xe0]
    %v5583 = vld [vmem:[#allocation6 + $0x28] sm:$0xe0]
    %v5584 = vld [vmem:[#allocation6 + $0x30] sm:$0xff]
    %v5585 = vld [vmem:[#allocation6 + $0x38] sm:$0xff]
    %v5586 = vld [vmem:[#allocation6 + $0x40] sm:$0xff]
    %vm5593 = vcmask 1044480
    %v5594 = vrot.slane %v5532, 3
    %v5595 = vrot.slane %v5534, 3
    %v5596 = vrot.slane %v5575, 3
    %v5597 = vrot.slane %v5536, 3
    %v5598 = vsel %vm5593, %v5594, %v5597
    %v5599 = vrot.slane %v5538, 3
    %v5600 = vsel %vm5593, %v5595, %v5599
    %v5601 = vrot.slane %v5578, 3
    %v5602 = vsel %vm5593, %v5596, %v5601
    %v5609 = vadd.f32 %v5581, %v5594
    %v5610 = vadd.f32 %v5582, %v5595
    %v5611 = vadd.f32 %v5583, %v5596
    %v5612 = vadd.f32 %v5584, %v5598
    %v5613 = vadd.f32 %v5585, %v5600
    %v5614 = vadd.f32 %v5586, %v5602
    %5615 = vst [vmem:[#allocation6 + $0x18] sm:$0xe0] %v5609
    %5616 = vst [vmem:[#allocation6 + $0x20] sm:$0xe0] %v5610
    %5617 = vst [vmem:[#allocation6 + $0x28] sm:$0xe0] %v5611
    %5618 = vst [vmem:[#allocation6 + $0x30] sm:$0xff] %v5612
    %5619 = vst [vmem:[#allocation6 + $0x38] sm:$0xff] %v5613
    %5620 = vst [vmem:[#allocation6 + $0x40] sm:$0xff] %v5614
    %v5621 = vld [vmem:[#allocation6] sm:$0xff]
    %v5622 = vld [vmem:[#allocation6 + $0x8] sm:$0xff]
    %v5623 = vld [vmem:[#allocation6 + $0x10] sm:$0xff]
    %v5624 = vld [vmem:[#allocation6 + $0x18] sm:$0xff]
    %v5625 = vld [vmem:[#allocation6 + $0x20] sm:$0xff]
    %v5626 = vld [vmem:[#allocation6 + $0x28] sm:$0xff]
    %v5627 = vld [vmem:[#allocation6 + $0x30] sm:$0xff]
    %v5628 = vld [vmem:[#allocation6 + $0x38] sm:$0xff]
    %v5629 = vld [vmem:[#allocation6 + $0x40] sm:$0xff]
    %v5630 = vld [vmem:[#allocation6 + $0x48] sm:$0x3]
    %v5631 = vld [vmem:[#allocation6 + $0x50] sm:$0x3]
    %v5632 = vld [vmem:[#allocation6 + $0x58] sm:$0x3]
    %v5633 = vld [vmem:[%s10] sm:$0x7]
    %v5635 = vlaneseq
    %v5636 = vshrl.u32 %v5635, 7
    %v5637 = vsub.s32 0, %v5636
    %v5638 = vrot.slane %v5633, %v5637
    %v5639 = vlaneseq
    %v5640 = vshrl.u32 %v5639, 7
    %v5641 = vsub.s32 1, %v5640
    %v5642 = vrot.slane %v5633, %v5641
    %v5643 = vlaneseq
    %v5644 = vshrl.u32 %v5643, 7
    %v5645 = vsub.s32 2, %v5644
    %v5646 = vrot.slane %v5633, %v5645
    %v5650 = vadd.f32 %v5621, %v5638
    %v5651 = vadd.f32 %v5622, %v5642
    %v5652 = vadd.f32 %v5623, %v5646
    %v5653 = vadd.f32 %v5624, %v5638
    %v5654 = vadd.f32 %v5625, %v5642
    %v5655 = vadd.f32 %v5626, %v5646
    %v5656 = vadd.f32 %v5627, %v5638
    %v5657 = vadd.f32 %v5628, %v5642
    %v5658 = vadd.f32 %v5629, %v5646
    %v5659 = vadd.f32 %v5630, %v5638
    %v5660 = vadd.f32 %v5631, %v5642
    %v5661 = vadd.f32 %v5632, %v5646
    %v5662 = vmax.f32 %v5650, 0.0
    %v5663 = vmax.f32 %v5651, 0.0
    %v5664 = vmax.f32 %v5652, 0.0
    %v5665 = vmax.f32 %v5653, 0.0
    %v5666 = vmax.f32 %v5654, 0.0
    %v5667 = vmax.f32 %v5655, 0.0
    %v5668 = vmax.f32 %v5656, 0.0
    %v5669 = vmax.f32 %v5657, 0.0
    %v5670 = vmax.f32 %v5658, 0.0
    %v5671 = vmax.f32 %v5659, 0.0
    %v5672 = vmax.f32 %v5660, 0.0
    %v5673 = vmax.f32 %v5661, 0.0
    %v5674 = vld [vmem:[%s11] sm:$0xff]
    %v5675 = vld [vmem:[%s11 + $0x8] sm:$0xff]
    %v5676 = vld [vmem:[%s11 + $0x10] sm:$0xff]
    %v5677 = vld [vmem:[%s11 + $0x18] sm:$0xff]
    %v5678 = vld [vmem:[%s11 + $0x20] sm:$0xff]
    %v5679 = vld [vmem:[%s11 + $0x28] sm:$0xff]
    %v5680 = vld [vmem:[%s11 + $0x30] sm:$0xff]
    %v5681 = vld [vmem:[%s11 + $0x38] sm:$0xff]
    %v5682 = vld [vmem:[%s11 + $0x40] sm:$0xff]
    %v5683 = vld [vmem:[%s11 + $0x48] sm:$0xff]
    %v5684 = vld [vmem:[%s11 + $0x50] sm:$0xff]
    %v5685 = vld [vmem:[%s11 + $0x58] sm:$0xff]
    %v5686 = vld [vmem:[%s11 + $0x60] sm:$0xff]
    %v5687 = vld [vmem:[%s11 + $0x68] sm:$0xff]
    %v5688 = vld [vmem:[%s11 + $0x70] sm:$0xff]
    %v5689 = vld [vmem:[%s11 + $0x78] sm:$0xff]
    %v5690 = vld [vmem:[%s11 + $0x80] sm:$0xff]
    %v5691 = vld [vmem:[%s11 + $0x88] sm:$0xff]
    %v5692 = vld [vmem:[%s11 + $0x90] sm:$0xff]
    %v5693 = vld [vmem:[%s11 + $0x98] sm:$0xff]
    %v5694 = vld [vmem:[%s11 + $0xa0] sm:$0xff]
    %v5695 = vld [vmem:[%s11 + $0xa8] sm:$0xff]
    %v5696 = vld [vmem:[%s11 + $0xb0] sm:$0xff]
    %v5697 = vld [vmem:[%s11 + $0xb8] sm:$0xff]
    %v5698 = vld [vmem:[%s11 + $0xc0] sm:$0xff]
    %v5699 = vld [vmem:[%s11 + $0xc8] sm:$0xff]
    %v5700 = vld [vmem:[%s11 + $0xd0] sm:$0xff]
    %v5701 = vld [vmem:[%s11 + $0xd8] sm:$0xff]
    %v5702 = vld [vmem:[%s11 + $0xe0] sm:$0xff]
    %v5703 = vld [vmem:[%s11 + $0xe8] sm:$0xff]
    %v5704 = vld [vmem:[%s11 + $0xf0] sm:$0xff]
    %v5705 = vld [vmem:[%s11 + $0xf8] sm:$0xff]
    %v5706 = vld [vmem:[%s11 + $0x100] sm:$0xff]
    %v5707 = vld [vmem:[%s11 + $0x108] sm:$0xff]
    %v5708 = vld [vmem:[%s11 + $0x110] sm:$0xff]
    %v5709 = vld [vmem:[%s11 + $0x118] sm:$0xff]
    %v5710 = vld [vmem:[%s11 + $0x120] sm:$0xff]
    %v5711 = vld [vmem:[%s11 + $0x128] sm:$0xff]
    %v5712 = vld [vmem:[%s11 + $0x130] sm:$0xff]
    %v5713 = vld [vmem:[%s11 + $0x138] sm:$0xff]
    %v5714 = vld [vmem:[%s11 + $0x140] sm:$0xff]
    %v5715 = vld [vmem:[%s11 + $0x148] sm:$0xff]
    %v5716 = vld [vmem:[%s11 + $0x150] sm:$0xff]
    %v5717 = vld [vmem:[%s11 + $0x158] sm:$0xff]
    %v5718 = vld [vmem:[%s11 + $0x160] sm:$0xff]
    %v5719 = vld [vmem:[%s11 + $0x168] sm:$0xff]
    %v5720 = vld [vmem:[%s11 + $0x170] sm:$0xff]
    %v5721 = vld [vmem:[%s11 + $0x178] sm:$0xff]
    %v5722 = vld [vmem:[%s11 + $0x180] sm:$0xff]
    %v5723 = vld [vmem:[%s11 + $0x188] sm:$0xff]
    %v5724 = vld [vmem:[%s11 + $0x190] sm:$0xff]
    %v5725 = vld [vmem:[%s11 + $0x198] sm:$0xff]
    %v5726 = vld [vmem:[%s11 + $0x1a0] sm:$0xff]
    %v5727 = vld [vmem:[%s11 + $0x1a8] sm:$0xff]
    %v5728 = vld [vmem:[%s11 + $0x1b0] sm:$0xff]
    %v5729 = vld [vmem:[%s11 + $0x1b8] sm:$0xff]
    %v5730 = vld [vmem:[%s11 + $0x1c0] sm:$0xff]
    %v5731 = vld [vmem:[%s11 + $0x1c8] sm:$0xff]
    %v5732 = vld [vmem:[%s11 + $0x1d0] sm:$0xff]
    %v5733 = vld [vmem:[%s11 + $0x1d8] sm:$0xff]
    %v5734 = vld [vmem:[%s11 + $0x1e0] sm:$0xff]
    %v5735 = vld [vmem:[%s11 + $0x1e8] sm:$0xff]
    %v5736 = vld [vmem:[%s11 + $0x1f0] sm:$0xff]
    %v5737 = vld [vmem:[%s11 + $0x1f8] sm:$0xff]
    %v5738 = vld [vmem:[%s11 + $0x200] sm:$0xff]
    %v5739 = vld [vmem:[%s11 + $0x208] sm:$0xff]
    %v5740 = vld [vmem:[%s11 + $0x210] sm:$0xff]
    %v5741 = vld [vmem:[%s11 + $0x218] sm:$0xff]
    %v5742 = vld [vmem:[%s11 + $0x220] sm:$0xff]
    %v5743 = vld [vmem:[%s11 + $0x228] sm:$0xff]
    %v5744 = vld [vmem:[%s11 + $0x230] sm:$0xff]
    %v5745 = vld [vmem:[%s11 + $0x238] sm:$0xff]
    %v5746 = vld [vmem:[%s11 + $0x240] sm:$0xff]
    %v5747 = vld [vmem:[%s11 + $0x248] sm:$0xff]
    %v5748 = vld [vmem:[%s11 + $0x250] sm:$0xff]
    %v5749 = vld [vmem:[%s11 + $0x258] sm:$0xff]
    %v5750 = vld [vmem:[%s11 + $0x260] sm:$0xff]
    %v5751 = vld [vmem:[%s11 + $0x268] sm:$0xff]
    %v5752 = vld [vmem:[%s11 + $0x270] sm:$0xff]
    %v5753 = vld [vmem:[%s11 + $0x278] sm:$0xff]
    %v5754 = vld [vmem:[%s11 + $0x280] sm:$0xff]
    %v5755 = vld [vmem:[%s11 + $0x288] sm:$0xff]
    %v5756 = vld [vmem:[%s11 + $0x290] sm:$0xff]
    %v5757 = vld [vmem:[%s11 + $0x298] sm:$0xff]
    %v5758 = vld [vmem:[%s11 + $0x2a0] sm:$0xff]
    %v5759 = vld [vmem:[%s11 + $0x2a8] sm:$0xff]
    %v5760 = vld [vmem:[%s11 + $0x2b0] sm:$0xff]
    %v5761 = vld [vmem:[%s11 + $0x2b8] sm:$0xff]
    %v5762 = vld [vmem:[%s11 + $0x2c0] sm:$0xff]
    %v5763 = vld [vmem:[%s11 + $0x2c8] sm:$0xff]
    %v5764 = vld [vmem:[%s11 + $0x2d0] sm:$0xff]
    %v5765 = vld [vmem:[%s11 + $0x2d8] sm:$0xff]
    %v5766 = vld [vmem:[%s11 + $0x2e0] sm:$0xff]
    %v5767 = vld [vmem:[%s11 + $0x2e8] sm:$0xff]
    %v5768 = vld [vmem:[%s11 + $0x2f0] sm:$0xff]
    %v5769 = vld [vmem:[%s11 + $0x2f8] sm:$0xff]
    %5770 = vmatprep.subr.mxu0 %v5675
    %5771 = vmatpush1.msra.mxu0 %v5674
    %5772 = vmatprep.subr.mxu0 %v5677
    %5773 = vmatpush1.msra.mxu0 %v5676
    %5774 = vmatprep.subr.mxu0 %v5679
    %5775 = vmatpush1.msra.mxu0 %v5678
    %5776 = vmatprep.subr.mxu0 %v5681
    %5777 = vmatpush1.msra.mxu0 %v5680
    %5778 = vmatprep.subr.mxu0 %v5683
    %5779 = vmatpush1.msra.mxu0 %v5682
    %5780 = vmatprep.subr.mxu0 %v5685
    %5781 = vmatpush1.msra.mxu0 %v5684
    %5782 = vmatprep.subr.mxu0 %v5687
    %5783 = vmatpush1.msra.mxu0 %v5686
    %5784 = vmatprep.subr.mxu0 %v5689
    %5785 = vmatpush1.msra.mxu0 %v5688
    %5786 = vmatprep.subr.mxu0 %v5691
    %5787 = vmatpush1.msra.mxu0 %v5690
    %5788 = vmatprep.subr.mxu0 %v5693
    %5789 = vmatpush1.msra.mxu0 %v5692
    %5790 = vmatprep.subr.mxu0 %v5695
    %5791 = vmatpush1.msra.mxu0 %v5694
    %5792 = vmatprep.subr.mxu0 %v5697
    %5793 = vmatpush1.msra.mxu0 %v5696
    %5794 = vmatprep.subr.mxu0 %v5699
    %5795 = vmatpush1.msra.mxu0 %v5698
    %5796 = vmatprep.subr.mxu0 %v5701
    %5797 = vmatpush1.msra.mxu0 %v5700
    %5798 = vmatprep.subr.mxu0 %v5703
    %5799 = vmatpush1.msra.mxu0 %v5702
    %5800 = vmatprep.subr.mxu0 %v5705
    %5801 = vmatpush1.msra.mxu0 %v5704
    %5802 = vmatprep.subr.mxu0 %v5707
    %5803 = vmatpush1.msra.mxu0 %v5706
    %5804 = vmatprep.subr.mxu0 %v5709
    %5805 = vmatpush1.msra.mxu0 %v5708
    %5806 = vmatprep.subr.mxu0 %v5711
    %5807 = vmatpush1.msra.mxu0 %v5710
    %5808 = vmatprep.subr.mxu0 %v5713
    %5809 = vmatpush1.msra.mxu0 %v5712
    %5810 = vmatprep.subr.mxu0 %v5715
    %5811 = vmatpush1.msra.mxu0 %v5714
    %5812 = vmatprep.subr.mxu0 %v5717
    %5813 = vmatpush1.msra.mxu0 %v5716
    %5814 = vmatprep.subr.mxu0 %v5719
    %5815 = vmatpush1.msra.mxu0 %v5718
    %5816 = vmatprep.subr.mxu0 %v5721
    %5817 = vmatpush1.msra.mxu0 %v5720
    %5818 = vmatprep.subr.mxu0 %v5723
    %5819 = vmatpush1.msra.mxu0 %v5722
    %5820 = vmatprep.subr.mxu0 %v5725
    %5821 = vmatpush1.msra.mxu0 %v5724
    %5822 = vmatprep.subr.mxu0 %v5727
    %5823 = vmatpush1.msra.mxu0 %v5726
    %5824 = vmatprep.subr.mxu0 %v5729
    %5825 = vmatpush1.msra.mxu0 %v5728
    %5826 = vmatprep.subr.mxu0 %v5731
    %5827 = vmatpush1.msra.mxu0 %v5730
    %5828 = vmatprep.subr.mxu0 %v5733
    %5829 = vmatpush1.msra.mxu0 %v5732
    %5830 = vmatprep.subr.mxu0 %v5735
    %5831 = vmatpush1.msra.mxu0 %v5734
    %5832 = vmatprep.subr.mxu0 %v5737
    %5833 = vmatpush1.msra.mxu0 %v5736
    %5834 = vmatprep.mubr.f32.mxu0 %v5663
    %5835 = vmatmul.mubr.f32.gmra.mrb[0].mxu0 %v5662
    %v5836 = vpop.f32.mrb[0].mxu0
    %v5837 = vadd.f32 0.0, %v5836
    %v5838 = vpop.f32.mrb[0].mxu0
    %v5839 = vadd.f32 0.0, %v5838
    %5840 = vmatprep.mubr.f32.mxu0 %v5666
    %5841 = vmatmul.mubr.f32.gmra.mrb[0].mxu0 %v5665
    %v5842 = vpop.f32.mrb[0].mxu0
    %v5843 = vadd.f32 0.0, %v5842
    %v5844 = vpop.f32.mrb[0].mxu0
    %v5845 = vadd.f32 0.0, %v5844
    %5846 = vmatprep.mubr.f32.mxu0 %v5669
    %5847 = vmatmul.mubr.f32.gmra.mrb[0].mxu0 %v5668
    %v5848 = vpop.f32.mrb[0].mxu0
    %v5849 = vadd.f32 0.0, %v5848
    %v5850 = vpop.f32.mrb[0].mxu0
    %v5851 = vadd.f32 0.0, %v5850
    %5852 = vmatprep.mubr.f32.mxu0 %v5672
    %5853 = vmatmul.mubr.f32.gmra.mrb[0].mxu0 %v5671
    %v5854 = vpop.f32.mrb[0].mxu0
    %v5855 = vadd.f32 0.0, %v5854
    %v5856 = vpop.f32.mrb[0].mxu0
    %v5857 = vadd.f32 0.0, %v5856
    %5858 = vdwg.mxu0
    %5859 = vmatprep.subr.mxu0 %v5739
    %5860 = vmatpush1.msra.mxu0 %v5738
    %5861 = vmatprep.subr.mxu0 %v5741
    %5862 = vmatpush1.msra.mxu0 %v5740
    %5863 = vmatprep.subr.mxu0 %v5743
    %5864 = vmatpush1.msra.mxu0 %v5742
    %5865 = vmatprep.subr.mxu0 %v5745
    %5866 = vmatpush1.msra.mxu0 %v5744
    %5867 = vmatprep.subr.mxu0 %v5747
    %5868 = vmatpush1.msra.mxu0 %v5746
    %5869 = vmatprep.subr.mxu0 %v5749
    %5870 = vmatpush1.msra.mxu0 %v5748
    %5871 = vmatprep.subr.mxu0 %v5751
    %5872 = vmatpush1.msra.mxu0 %v5750
    %5873 = vmatprep.subr.mxu0 %v5753
    %5874 = vmatpush1.msra.mxu0 %v5752
    %5875 = vmatprep.subr.mxu0 %v5755
    %5876 = vmatpush1.msra.mxu0 %v5754
    %5877 = vmatprep.subr.mxu0 %v5757
    %5878 = vmatpush1.msra.mxu0 %v5756
    %5879 = vmatprep.subr.mxu0 %v5759
    %5880 = vmatpush1.msra.mxu0 %v5758
    %5881 = vmatprep.subr.mxu0 %v5761
    %5882 = vmatpush1.msra.mxu0 %v5760
    %5883 = vmatprep.subr.mxu0 %v5763
    %5884 = vmatpush1.msra.mxu0 %v5762
    %5885 = vmatprep.subr.mxu0 %v5765
    %5886 = vmatpush1.msra.mxu0 %v5764
    %5887 = vmatprep.subr.mxu0 %v5767
    %5888 = vmatpush1.msra.mxu0 %v5766
    %5889 = vmatprep.subr.mxu0 %v5769
    %5890 = vmatpush1.msra.mxu0 %v5768
    %5891 = vmatprep.subr.mxu0 0.0
    %5892 = vmatpush1.msra.mxu0 0.0
    %5893 = vmatprep.subr.mxu0 0.0
    %5894 = vmatpush1.msra.mxu0 0.0
    %5895 = vmatprep.subr.mxu0 0.0
    %5896 = vmatpush1.msra.mxu0 0.0
    %5897 = vmatprep.subr.mxu0 0.0
    %5898 = vmatpush1.msra.mxu0 0.0
    %5899 = vmatprep.subr.mxu0 0.0
    %5900 = vmatpush1.msra.mxu0 0.0
    %5901 = vmatprep.subr.mxu0 0.0
    %5902 = vmatpush1.msra.mxu0 0.0
    %5903 = vmatprep.subr.mxu0 0.0
    %5904 = vmatpush1.msra.mxu0 0.0
    %5905 = vmatprep.subr.mxu0 0.0
    %5906 = vmatpush1.msra.mxu0 0.0
    %5907 = vmatprep.subr.mxu0 0.0
    %5908 = vmatpush1.msra.mxu0 0.0
    %5909 = vmatprep.subr.mxu0 0.0
    %5910 = vmatpush1.msra.mxu0 0.0
    %5911 = vmatprep.subr.mxu0 0.0
    %5912 = vmatpush1.msra.mxu0 0.0
    %5913 = vmatprep.subr.mxu0 0.0
    %5914 = vmatpush1.msra.mxu0 0.0
    %5915 = vmatprep.subr.mxu0 0.0
    %5916 = vmatpush1.msra.mxu0 0.0
    %5917 = vmatprep.subr.mxu0 0.0
    %5918 = vmatpush1.msra.mxu0 0.0
    %5919 = vmatprep.subr.mxu0 0.0
    %5920 = vmatpush1.msra.mxu0 0.0
    %5921 = vmatprep.subr.mxu0 0.0
    %5922 = vmatpush1.msra.mxu0 0.0
    %5923 = vmatprep.mubr.f32.mxu0 0.0
    %5924 = vmatmul.mubr.f32.gmra.mrb[0].mxu0 %v5664
    %v5925 = vpop.f32.mrb[0].mxu0
    %v5926 = vadd.f32 %v5837, %v5925
    %v5927 = vpop.f32.mrb[0].mxu0
    %v5928 = vadd.f32 %v5839, %v5927
    %5929 = vmatprep.mubr.f32.mxu0 0.0
    %5930 = vmatmul.mubr.f32.gmra.mrb[0].mxu0 %v5667
    %v5931 = vpop.f32.mrb[0].mxu0
    %v5932 = vadd.f32 %v5843, %v5931
    %v5933 = vpop.f32.mrb[0].mxu0
    %v5934 = vadd.f32 %v5845, %v5933
    %5935 = vmatprep.mubr.f32.mxu0 0.0
    %5936 = vmatmul.mubr.f32.gmra.mrb[0].mxu0 %v5670
    %v5937 = vpop.f32.mrb[0].mxu0
    %v5938 = vadd.f32 %v5849, %v5937
    %v5939 = vpop.f32.mrb[0].mxu0
    %v5940 = vadd.f32 %v5851, %v5939
    %5941 = vmatprep.mubr.f32.mxu0 0.0
    %5942 = vmatmul.mubr.f32.gmra.mrb[0].mxu0 %v5673
    %v5943 = vpop.f32.mrb[0].mxu0
    %v5944 = vadd.f32 %v5855, %v5943
    %v5945 = vpop.f32.mrb[0].mxu0
    %v5946 = vadd.f32 %v5857, %v5945
    %5947 = vdwg.mxu0
    %s5948 = scalar_lea.vmem %s11, 768
    %v5949 = vld [vmem:[%s5948] sm:$0xff]
    %v5950 = vld [vmem:[%s5948 + $0x8] sm:$0xff]
    %v5951 = vld [vmem:[%s5948 + $0x10] sm:$0xff]
    %v5952 = vld [vmem:[%s5948 + $0x18] sm:$0xff]
    %v5953 = vld [vmem:[%s5948 + $0x20] sm:$0xff]
    %v5954 = vld [vmem:[%s5948 + $0x28] sm:$0xff]
    %v5955 = vld [vmem:[%s5948 + $0x30] sm:$0xff]
    %v5956 = vld [vmem:[%s5948 + $0x38] sm:$0xff]
    %v5957 = vld [vmem:[%s5948 + $0x40] sm:$0xff]
    %v5958 = vld [vmem:[%s5948 + $0x48] sm:$0xff]
    %v5959 = vld [vmem:[%s5948 + $0x50] sm:$0xff]
    %v5960 = vld [vmem:[%s5948 + $0x58] sm:$0xff]
    %v5961 = vld [vmem:[%s5948 + $0x60] sm:$0xff]
    %v5962 = vld [vmem:[%s5948 + $0x68] sm:$0xff]
    %v5963 = vld [vmem:[%s5948 + $0x70] sm:$0xff]
    %v5964 = vld [vmem:[%s5948 + $0x78] sm:$0xff]
    %v5965 = vld [vmem:[%s5948 + $0x80] sm:$0xff]
    %v5966 = vld [vmem:[%s5948 + $0x88] sm:$0xff]
    %v5967 = vld [vmem:[%s5948 + $0x90] sm:$0xff]
    %v5968 = vld [vmem:[%s5948 + $0x98] sm:$0xff]
    %v5969 = vld [vmem:[%s5948 + $0xa0] sm:$0xff]
    %v5970 = vld [vmem:[%s5948 + $0xa8] sm:$0xff]
    %v5971 = vld [vmem:[%s5948 + $0xb0] sm:$0xff]
    %v5972 = vld [vmem:[%s5948 + $0xb8] sm:$0xff]
    %v5973 = vld [vmem:[%s5948 + $0xc0] sm:$0xff]
    %v5974 = vld [vmem:[%s5948 + $0xc8] sm:$0xff]
    %v5975 = vld [vmem:[%s5948 + $0xd0] sm:$0xff]
    %v5976 = vld [vmem:[%s5948 + $0xd8] sm:$0xff]
    %v5977 = vld [vmem:[%s5948 + $0xe0] sm:$0xff]
    %v5978 = vld [vmem:[%s5948 + $0xe8] sm:$0xff]
    %v5979 = vld [vmem:[%s5948 + $0xf0] sm:$0xff]
    %v5980 = vld [vmem:[%s5948 + $0xf8] sm:$0xff]
    %v5981 = vld [vmem:[%s5948 + $0x100] sm:$0xff]
    %v5982 = vld [vmem:[%s5948 + $0x108] sm:$0xff]
    %v5983 = vld [vmem:[%s5948 + $0x110] sm:$0xff]
    %v5984 = vld [vmem:[%s5948 + $0x118] sm:$0xff]
    %v5985 = vld [vmem:[%s5948 + $0x120] sm:$0xff]
    %v5986 = vld [vmem:[%s5948 + $0x128] sm:$0xff]
    %v5987 = vld [vmem:[%s5948 + $0x130] sm:$0xff]
    %v5988 = vld [vmem:[%s5948 + $0x138] sm:$0xff]
    %v5989 = vld [vmem:[%s5948 + $0x140] sm:$0xff]
    %v5990 = vld [vmem:[%s5948 + $0x148] sm:$0xff]
    %v5991 = vld [vmem:[%s5948 + $0x150] sm:$0xff]
    %v5992 = vld [vmem:[%s5948 + $0x158] sm:$0xff]
    %v5993 = vld [vmem:[%s5948 + $0x160] sm:$0xff]
    %v5994 = vld [vmem:[%s5948 + $0x168] sm:$0xff]
    %v5995 = vld [vmem:[%s5948 + $0x170] sm:$0xff]
    %v5996 = vld [vmem:[%s5948 + $0x178] sm:$0xff]
    %v5997 = vld [vmem:[%s5948 + $0x180] sm:$0xff]
    %v5998 = vld [vmem:[%s5948 + $0x188] sm:$0xff]
    %v5999 = vld [vmem:[%s5948 + $0x190] sm:$0xff]
    %v6000 = vld [vmem:[%s5948 + $0x198] sm:$0xff]
    %v6001 = vld [vmem:[%s5948 + $0x1a0] sm:$0xff]
    %v6002 = vld [vmem:[%s5948 + $0x1a8] sm:$0xff]
    %v6003 = vld [vmem:[%s5948 + $0x1b0] sm:$0xff]
    %v6004 = vld [vmem:[%s5948 + $0x1b8] sm:$0xff]
    %v6005 = vld [vmem:[%s5948 + $0x1c0] sm:$0xff]
    %v6006 = vld [vmem:[%s5948 + $0x1c8] sm:$0xff]
    %v6007 = vld [vmem:[%s5948 + $0x1d0] sm:$0xff]
    %v6008 = vld [vmem:[%s5948 + $0x1d8] sm:$0xff]
    %v6009 = vld [vmem:[%s5948 + $0x1e0] sm:$0xff]
    %v6010 = vld [vmem:[%s5948 + $0x1e8] sm:$0xff]
    %v6011 = vld [vmem:[%s5948 + $0x1f0] sm:$0xff]
    %v6012 = vld [vmem:[%s5948 + $0x1f8] sm:$0xff]
    %v6013 = vld [vmem:[%s5948 + $0x200] sm:$0xff]
    %v6014 = vld [vmem:[%s5948 + $0x208] sm:$0xff]
    %v6015 = vld [vmem:[%s5948 + $0x210] sm:$0xff]
    %v6016 = vld [vmem:[%s5948 + $0x218] sm:$0xff]
    %v6017 = vld [vmem:[%s5948 + $0x220] sm:$0xff]
    %v6018 = vld [vmem:[%s5948 + $0x228] sm:$0xff]
    %v6019 = vld [vmem:[%s5948 + $0x230] sm:$0xff]
    %v6020 = vld [vmem:[%s5948 + $0x238] sm:$0xff]
    %v6021 = vld [vmem:[%s5948 + $0x240] sm:$0xff]
    %v6022 = vld [vmem:[%s5948 + $0x248] sm:$0xff]
    %v6023 = vld [vmem:[%s5948 + $0x250] sm:$0xff]
    %v6024 = vld [vmem:[%s5948 + $0x258] sm:$0xff]
    %v6025 = vld [vmem:[%s5948 + $0x260] sm:$0xff]
    %v6026 = vld [vmem:[%s5948 + $0x268] sm:$0xff]
    %v6027 = vld [vmem:[%s5948 + $0x270] sm:$0xff]
    %v6028 = vld [vmem:[%s5948 + $0x278] sm:$0xff]
    %v6029 = vld [vmem:[%s5948 + $0x280] sm:$0xff]
    %v6030 = vld [vmem:[%s5948 + $0x288] sm:$0xff]
    %v6031 = vld [vmem:[%s5948 + $0x290] sm:$0xff]
    %v6032 = vld [vmem:[%s5948 + $0x298] sm:$0xff]
    %v6033 = vld [vmem:[%s5948 + $0x2a0] sm:$0xff]
    %v6034 = vld [vmem:[%s5948 + $0x2a8] sm:$0xff]
    %v6035 = vld [vmem:[%s5948 + $0x2b0] sm:$0xff]
    %v6036 = vld [vmem:[%s5948 + $0x2b8] sm:$0xff]
    %v6037 = vld [vmem:[%s5948 + $0x2c0] sm:$0xff]
    %v6038 = vld [vmem:[%s5948 + $0x2c8] sm:$0xff]
    %v6039 = vld [vmem:[%s5948 + $0x2d0] sm:$0xff]
    %v6040 = vld [vmem:[%s5948 + $0x2d8] sm:$0xff]
    %v6041 = vld [vmem:[%s5948 + $0x2e0] sm:$0xff]
    %v6042 = vld [vmem:[%s5948 + $0x2e8] sm:$0xff]
    %v6043 = vld [vmem:[%s5948 + $0x2f0] sm:$0xff]
    %v6044 = vld [vmem:[%s5948 + $0x2f8] sm:$0xff]
    %6045 = vmatprep.subr.mxu0 %v5950
    %6046 = vmatpush1.msra.mxu0 %v5949
    %6047 = vmatprep.subr.mxu0 %v5952
    %6048 = vmatpush1.msra.mxu0 %v5951
    %6049 = vmatprep.subr.mxu0 %v5954
    %6050 = vmatpush1.msra.mxu0 %v5953
    %6051 = vmatprep.subr.mxu0 %v5956
    %6052 = vmatpush1.msra.mxu0 %v5955
    %6053 = vmatprep.subr.mxu0 %v5958
    %6054 = vmatpush1.msra.mxu0 %v5957
    %6055 = vmatprep.subr.mxu0 %v5960
    %6056 = vmatpush1.msra.mxu0 %v5959
    %6057 = vmatprep.subr.mxu0 %v5962
    %6058 = vmatpush1.msra.mxu0 %v5961
    %6059 = vmatprep.subr.mxu0 %v5964
    %6060 = vmatpush1.msra.mxu0 %v5963
    %6061 = vmatprep.subr.mxu0 %v5966
    %6062 = vmatpush1.msra.mxu0 %v5965
    %6063 = vmatprep.subr.mxu0 %v5968
    %6064 = vmatpush1.msra.mxu0 %v5967
    %6065 = vmatprep.subr.mxu0 %v5970
    %6066 = vmatpush1.msra.mxu0 %v5969
    %6067 = vmatprep.subr.mxu0 %v5972
    %6068 = vmatpush1.msra.mxu0 %v5971
    %6069 = vmatprep.subr.mxu0 %v5974
    %6070 = vmatpush1.msra.mxu0 %v5973
    %6071 = vmatprep.subr.mxu0 %v5976
    %6072 = vmatpush1.msra.mxu0 %v5975
    %6073 = vmatprep.subr.mxu0 %v5978
    %6074 = vmatpush1.msra.mxu0 %v5977
    %6075 = vmatprep.subr.mxu0 %v5980
    %6076 = vmatpush1.msra.mxu0 %v5979
    %6077 = vmatprep.subr.mxu0 %v5982
    %6078 = vmatpush1.msra.mxu0 %v5981
    %6079 = vmatprep.subr.mxu0 %v5984
    %6080 = vmatpush1.msra.mxu0 %v5983
    %6081 = vmatprep.subr.mxu0 %v5986
    %6082 = vmatpush1.msra.mxu0 %v5985
    %6083 = vmatprep.subr.mxu0 %v5988
    %6084 = vmatpush1.msra.mxu0 %v5987
    %6085 = vmatprep.subr.mxu0 %v5990
    %6086 = vmatpush1.msra.mxu0 %v5989
    %6087 = vmatprep.subr.mxu0 %v5992
    %6088 = vmatpush1.msra.mxu0 %v5991
    %6089 = vmatprep.subr.mxu0 %v5994
    %6090 = vmatpush1.msra.mxu0 %v5993
    %6091 = vmatprep.subr.mxu0 %v5996
    %6092 = vmatpush1.msra.mxu0 %v5995
    %6093 = vmatprep.subr.mxu0 %v5998
    %6094 = vmatpush1.msra.mxu0 %v5997
    %6095 = vmatprep.subr.mxu0 %v6000
    %6096 = vmatpush1.msra.mxu0 %v5999
    %6097 = vmatprep.subr.mxu0 %v6002
    %6098 = vmatpush1.msra.mxu0 %v6001
    %6099 = vmatprep.subr.mxu0 %v6004
    %6100 = vmatpush1.msra.mxu0 %v6003
    %6101 = vmatprep.subr.mxu0 %v6006
    %6102 = vmatpush1.msra.mxu0 %v6005
    %6103 = vmatprep.subr.mxu0 %v6008
    %6104 = vmatpush1.msra.mxu0 %v6007
    %6105 = vmatprep.subr.mxu0 %v6010
    %6106 = vmatpush1.msra.mxu0 %v6009
    %6107 = vmatprep.subr.mxu0 %v6012
    %6108 = vmatpush1.msra.mxu0 %v6011
    %6109 = vmatprep.mubr.f32.mxu0 %v5663
    %6110 = vmatmul.mubr.f32.gmra.mrb[0].mxu0 %v5662
    %v6111 = vpop.f32.mrb[0].mxu0
    %v6112 = vadd.f32 0.0, %v6111
    %v6113 = vpop.f32.mrb[0].mxu0
    %v6114 = vadd.f32 0.0, %v6113
    %6115 = vmatprep.mubr.f32.mxu0 %v5666
    %6116 = vmatmul.mubr.f32.gmra.mrb[0].mxu0 %v5665
    %v6117 = vpop.f32.mrb[0].mxu0
    %v6118 = vadd.f32 0.0, %v6117
    %v6119 = vpop.f32.mrb[0].mxu0
    %v6120 = vadd.f32 0.0, %v6119
    %6121 = vmatprep.mubr.f32.mxu0 %v5669
    %6122 = vmatmul.mubr.f32.gmra.mrb[0].mxu0 %v5668
    %v6123 = vpop.f32.mrb[0].mxu0
    %v6124 = vadd.f32 0.0, %v6123
    %v6125 = vpop.f32.mrb[0].mxu0
    %v6126 = vadd.f32 0.0, %v6125
    %6127 = vmatprep.mubr.f32.mxu0 %v5672
    %6128 = vmatmul.mubr.f32.gmra.mrb[0].mxu0 %v5671
    %v6129 = vpop.f32.mrb[0].mxu0
    %v6130 = vadd.f32 0.0, %v6129
    %v6131 = vpop.f32.mrb[0].mxu0
    %v6132 = vadd.f32 0.0, %v6131
    %6133 = vdwg.mxu0
    %6134 = vmatprep.subr.mxu0 %v6014
    %6135 = vmatpush1.msra.mxu0 %v6013
    %6136 = vmatprep.subr.mxu0 %v6016
    %6137 = vmatpush1.msra.mxu0 %v6015
    %6138 = vmatprep.subr.mxu0 %v6018
    %6139 = vmatpush1.msra.mxu0 %v6017
    %6140 = vmatprep.subr.mxu0 %v6020
    %6141 = vmatpush1.msra.mxu0 %v6019
    %6142 = vmatprep.subr.mxu0 %v6022
    %6143 = vmatpush1.msra.mxu0 %v6021
    %6144 = vmatprep.subr.mxu0 %v6024
    %6145 = vmatpush1.msra.mxu0 %v6023
    %6146 = vmatprep.subr.mxu0 %v6026
    %6147 = vmatpush1.msra.mxu0 %v6025
    %6148 = vmatprep.subr.mxu0 %v6028
    %6149 = vmatpush1.msra.mxu0 %v6027
    %6150 = vmatprep.subr.mxu0 %v6030
    %6151 = vmatpush1.msra.mxu0 %v6029
    %6152 = vmatprep.subr.mxu0 %v6032
    %6153 = vmatpush1.msra.mxu0 %v6031
    %6154 = vmatprep.subr.mxu0 %v6034
    %6155 = vmatpush1.msra.mxu0 %v6033
    %6156 = vmatprep.subr.mxu0 %v6036
    %6157 = vmatpush1.msra.mxu0 %v6035
    %6158 = vmatprep.subr.mxu0 %v6038
    %6159 = vmatpush1.msra.mxu0 %v6037
    %6160 = vmatprep.subr.mxu0 %v6040
    %6161 = vmatpush1.msra.mxu0 %v6039
    %6162 = vmatprep.subr.mxu0 %v6042
    %6163 = vmatpush1.msra.mxu0 %v6041
    %6164 = vmatprep.subr.mxu0 %v6044
    %6165 = vmatpush1.msra.mxu0 %v6043
    %6166 = vmatprep.subr.mxu0 0.0
    %6167 = vmatpush1.msra.mxu0 0.0
    %6168 = vmatprep.subr.mxu0 0.0
    %6169 = vmatpush1.msra.mxu0 0.0
    %6170 = vmatprep.subr.mxu0 0.0
    %6171 = vmatpush1.msra.mxu0 0.0
    %6172 = vmatprep.subr.mxu0 0.0
    %6173 = vmatpush1.msra.mxu0 0.0
    %6174 = vmatprep.subr.mxu0 0.0
    %6175 = vmatpush1.msra.mxu0 0.0
    %6176 = vmatprep.subr.mxu0 0.0
    %6177 = vmatpush1.msra.mxu0 0.0
    %6178 = vmatprep.subr.mxu0 0.0
    %6179 = vmatpush1.msra.mxu0 0.0
    %6180 = vmatprep.subr.mxu0 0.0
    %6181 = vmatpush1.msra.mxu0 0.0
    %6182 = vmatprep.subr.mxu0 0.0
    %6183 = vmatpush1.msra.mxu0 0.0
    %6184 = vmatprep.subr.mxu0 0.0
    %6185 = vmatpush1.msra.mxu0 0.0
    %6186 = vmatprep.subr.mxu0 0.0
    %6187 = vmatpush1.msra.mxu0 0.0
    %6188 = vmatprep.subr.mxu0 0.0
    %6189 = vmatpush1.msra.mxu0 0.0
    %6190 = vmatprep.subr.mxu0 0.0
    %6191 = vmatpush1.msra.mxu0 0.0
    %6192 = vmatprep.subr.mxu0 0.0
    %6193 = vmatpush1.msra.mxu0 0.0
    %6194 = vmatprep.subr.mxu0 0.0
    %6195 = vmatpush1.msra.mxu0 0.0
    %6196 = vmatprep.subr.mxu0 0.0
    %6197 = vmatpush1.msra.mxu0 0.0
    %6198 = vmatprep.mubr.f32.mxu0 0.0
    %6199 = vmatmul.mubr.f32.gmra.mrb[0].mxu0 %v5664
    %v6200 = vpop.f32.mrb[0].mxu0
    %v6201 = vadd.f32 %v6112, %v6200
    %v6202 = vpop.f32.mrb[0].mxu0
    %v6203 = vadd.f32 %v6114, %v6202
    %6204 = vmatprep.mubr.f32.mxu0 0.0
    %6205 = vmatmul.mubr.f32.gmra.mrb[0].mxu0 %v5667
    %v6206 = vpop.f32.mrb[0].mxu0
    %v6207 = vadd.f32 %v6118, %v6206
    %v6208 = vpop.f32.mrb[0].mxu0
    %v6209 = vadd.f32 %v6120, %v6208
    %6210 = vmatprep.mubr.f32.mxu0 0.0
    %6211 = vmatmul.mubr.f32.gmra.mrb[0].mxu0 %v5670
    %v6212 = vpop.f32.mrb[0].mxu0
    %v6213 = vadd.f32 %v6124, %v6212
    %v6214 = vpop.f32.mrb[0].mxu0
    %v6215 = vadd.f32 %v6126, %v6214
    %6216 = vmatprep.mubr.f32.mxu0 0.0
    %6217 = vmatmul.mubr.f32.gmra.mrb[0].mxu0 %v5673
    %v6218 = vpop.f32.mrb[0].mxu0
    %v6219 = vadd.f32 %v6130, %v6218
    %v6220 = vpop.f32.mrb[0].mxu0
    %v6221 = vadd.f32 %v6132, %v6220
    %6222 = vdwg.mxu0
    %v6223 = vmax.f32 %v5926, %v6201
    %v6224 = vmax.f32 %v5928, %v6203
    %v6225 = vmax.f32 %v5932, %v6207
    %v6226 = vmax.f32 %v5934, %v6209
    %v6227 = vmax.f32 %v5938, %v6213
    %v6228 = vmax.f32 %v5940, %v6215
    %v6229 = vmax.f32 %v5944, %v6219
    %v6230 = vmax.f32 %v5946, %v6221
    %v6231 = vld [vmem:[%s12] sm:$0x3]
    %vm6232 = vcmask 211968
    %v6234 = vsel %vm6232, %v6231, 0
    %v6237 = vsel %vm251, %v6229, 0
    %v6240 = vsel %vm251, %v6230, 0
    %6242 = vmatprep.subr.mxu0 %v6224
    %6243 = vmatpush1.msra.mxu0 %v6223
    %6244 = vmatprep.subr.mxu0 %v6226
    %6245 = vmatpush1.msra.mxu0 %v6225
    %6246 = vmatprep.subr.mxu0 %v6228
    %6247 = vmatpush1.msra.mxu0 %v6227
    %6248 = vmatprep.subr.mxu0 %v6240
    %6249 = vmatpush1.msra.mxu0 %v6237
    %6250 = vmatprep.subr.mxu0 0.0
    %6251 = vmatpush1.msra.mxu0 0.0
    %6252 = vmatprep.subr.mxu0 0.0
    %6253 = vmatpush1.msra.mxu0 0.0
    %6254 = vmatprep.subr.mxu0 0.0
    %6255 = vmatpush1.msra.mxu0 0.0
    %6256 = vmatprep.subr.mxu0 0.0
    %6257 = vmatpush1.msra.mxu0 0.0
    %6258 = vmatprep.subr.mxu0 0.0
    %6259 = vmatpush1.msra.mxu0 0.0
    %6260 = vmatprep.subr.mxu0 0.0
    %6261 = vmatpush1.msra.mxu0 0.0
    %6262 = vmatprep.subr.mxu0 0.0
    %6263 = vmatpush1.msra.mxu0 0.0
    %6264 = vmatprep.subr.mxu0 0.0
    %6265 = vmatpush1.msra.mxu0 0.0
    %6266 = vmatprep.subr.mxu0 0.0
    %6267 = vmatpush1.msra.mxu0 0.0
    %6268 = vmatprep.subr.mxu0 0.0
    %6269 = vmatpush1.msra.mxu0 0.0
    %6270 = vmatprep.subr.mxu0 0.0
    %6271 = vmatpush1.msra.mxu0 0.0
    %6272 = vmatprep.subr.mxu0 0.0
    %6273 = vmatpush1.msra.mxu0 0.0
    %6274 = vmatprep.subr.mxu0 0.0
    %6275 = vmatpush1.msra.mxu0 0.0
    %6276 = vmatprep.subr.mxu0 0.0
    %6277 = vmatpush1.msra.mxu0 0.0
    %6278 = vmatprep.subr.mxu0 0.0
    %6279 = vmatpush1.msra.mxu0 0.0
    %6280 = vmatprep.subr.mxu0 0.0
    %6281 = vmatpush1.msra.mxu0 0.0
    %6282 = vmatprep.subr.mxu0 0.0
    %6283 = vmatpush1.msra.mxu0 0.0
    %6284 = vmatprep.subr.mxu0 0.0
    %6285 = vmatpush1.msra.mxu0 0.0
    %6286 = vmatprep.subr.mxu0 0.0
    %6287 = vmatpush1.msra.mxu0 0.0
    %6288 = vmatprep.subr.mxu0 0.0
    %6289 = vmatpush1.msra.mxu0 0.0
    %6290 = vmatprep.subr.mxu0 0.0
    %6291 = vmatpush1.msra.mxu0 0.0
    %6292 = vmatprep.subr.mxu0 0.0
    %6293 = vmatpush1.msra.mxu0 0.0
    %6294 = vmatprep.subr.mxu0 0.0
    %6295 = vmatpush1.msra.mxu0 0.0
    %6296 = vmatprep.subr.mxu0 0.0
    %6297 = vmatpush1.msra.mxu0 0.0
    %6298 = vmatprep.subr.mxu0 0.0
    %6299 = vmatpush1.msra.mxu0 0.0
    %6300 = vmatprep.subr.mxu0 0.0
    %6301 = vmatpush1.msra.mxu0 0.0
    %6302 = vmatprep.subr.mxu0 0.0
    %6303 = vmatpush1.msra.mxu0 0.0
    %6304 = vmatprep.subr.mxu0 0.0
    %6305 = vmatpush1.msra.mxu0 0.0
    %6306 = vmatprep.mubr.f32.mxu0 0.0
    %6307 = vmatmul.mubr.f32.gmra.mrb[0].mxu0 %v6234
    %v6308 = vpop.f32.mrb[0].mxu0
    %v6309 = vadd.f32 0.0, %v6308
    %v6310 = vpop.f32.mrb[0].mxu0
    %v6311 = vadd.f32 0.0, %v6310
    %6312 = vdwg.mxu0
    %s6313 = scalar_lea.vmem %s12, 12
    %v6314 = vld [vmem:[%s6313] sm:$0x3]
    %v6316 = vsel %vm6232, %v6314, 0
    %6318 = vmatprep.subr.mxu0 %v6224
    %6319 = vmatpush1.msra.mxu0 %v6223
    %6320 = vmatprep.subr.mxu0 %v6226
    %6321 = vmatpush1.msra.mxu0 %v6225
    %6322 = vmatprep.subr.mxu0 %v6228
    %6323 = vmatpush1.msra.mxu0 %v6227
    %6324 = vmatprep.subr.mxu0 %v6240
    %6325 = vmatpush1.msra.mxu0 %v6237
    %6326 = vmatprep.subr.mxu0 0.0
    %6327 = vmatpush1.msra.mxu0 0.0
    %6328 = vmatprep.subr.mxu0 0.0
    %6329 = vmatpush1.msra.mxu0 0.0
    %6330 = vmatprep.subr.mxu0 0.0
    %6331 = vmatpush1.msra.mxu0 0.0
    %6332 = vmatprep.subr.mxu0 0.0
    %6333 = vmatpush1.msra.mxu0 0.0
    %6334 = vmatprep.subr.mxu0 0.0
    %6335 = vmatpush1.msra.mxu0 0.0
    %6336 = vmatprep.subr.mxu0 0.0
    %6337 = vmatpush1.msra.mxu0 0.0
    %6338 = vmatprep.subr.mxu0 0.0
    %6339 = vmatpush1.msra.mxu0 0.0
    %6340 = vmatprep.subr.mxu0 0.0
    %6341 = vmatpush1.msra.mxu0 0.0
    %6342 = vmatprep.subr.mxu0 0.0
    %6343 = vmatpush1.msra.mxu0 0.0
    %6344 = vmatprep.subr.mxu0 0.0
    %6345 = vmatpush1.msra.mxu0 0.0
    %6346 = vmatprep.subr.mxu0 0.0
    %6347 = vmatpush1.msra.mxu0 0.0
    %6348 = vmatprep.subr.mxu0 0.0
    %6349 = vmatpush1.msra.mxu0 0.0
    %6350 = vmatprep.subr.mxu0 0.0
    %6351 = vmatpush1.msra.mxu0 0.0
    %6352 = vmatprep.subr.mxu0 0.0
    %6353 = vmatpush1.msra.mxu0 0.0
    %6354 = vmatprep.subr.mxu0 0.0
    %6355 = vmatpush1.msra.mxu0 0.0
    %6356 = vmatprep.subr.mxu0 0.0
    %6357 = vmatpush1.msra.mxu0 0.0
    %6358 = vmatprep.subr.mxu0 0.0
    %6359 = vmatpush1.msra.mxu0 0.0
    %6360 = vmatprep.subr.mxu0 0.0
    %6361 = vmatpush1.msra.mxu0 0.0
    %6362 = vmatprep.subr.mxu0 0.0
    %6363 = vmatpush1.msra.mxu0 0.0
    %6364 = vmatprep.subr.mxu0 0.0
    %6365 = vmatpush1.msra.mxu0 0.0
    %6366 = vmatprep.subr.mxu0 0.0
    %6367 = vmatpush1.msra.mxu0 0.0
    %6368 = vmatprep.subr.mxu0 0.0
    %6369 = vmatpush1.msra.mxu0 0.0
    %6370 = vmatprep.subr.mxu0 0.0
    %6371 = vmatpush1.msra.mxu0 0.0
    %6372 = vmatprep.subr.mxu0 0.0
    %6373 = vmatpush1.msra.mxu0 0.0
    %6374 = vmatprep.subr.mxu0 0.0
    %6375 = vmatpush1.msra.mxu0 0.0
    %6376 = vmatprep.subr.mxu0 0.0
    %6377 = vmatpush1.msra.mxu0 0.0
    %6378 = vmatprep.subr.mxu0 0.0
    %6379 = vmatpush1.msra.mxu0 0.0
    %6380 = vmatprep.subr.mxu0 0.0
    %6381 = vmatpush1.msra.mxu0 0.0
    %6382 = vmatprep.mubr.f32.mxu0 0.0
    %6383 = vmatmul.mubr.f32.gmra.mrb[0].mxu0 %v6316
    %v6384 = vpop.f32.mrb[0].mxu0
    %v6385 = vadd.f32 0.0, %v6384
    %v6386 = vpop.f32.mrb[0].mxu0
    %v6387 = vadd.f32 0.0, %v6386
    %6388 = vdwg.mxu0
    %v6389 = vmax.f32 %v6309, %v6385
    %v6390 = vmax.f32 %v6311, %v6387
    %v6391 = vpack.c.bf16 %v6389, %v6389
    %v6392 = vpack.c.bf16 %v6390, %v6390
    %v6393 = vld [vmem:[%s13] sm:$0xff]
    %v6394 = vld [vmem:[%s13 + $0x8] sm:$0xff]
    %v6395 = vld [vmem:[%s13 + $0x10] sm:$0xff]
    %v6396 = vld [vmem:[%s13 + $0x18] sm:$0xff]
    %v6397 = vld [vmem:[%s13 + $0x20] sm:$0xff]
    %v6398 = vld [vmem:[%s13 + $0x28] sm:$0xff]
    %v6399 = vld [vmem:[%s13 + $0x30] sm:$0xff]
    %v6400 = vld [vmem:[%s13 + $0x38] sm:$0xff]
    %v6401 = vld [vmem:[%s13 + $0x40] sm:$0xff]
    %v6402 = vld [vmem:[%s13 + $0x48] sm:$0xff]
    %v6403 = vld [vmem:[%s13 + $0x50] sm:$0xff]
    %v6404 = vld [vmem:[%s13 + $0x58] sm:$0xff]
    %v6405 = vld [vmem:[%s13 + $0x60] sm:$0xff]
    %v6406 = vld [vmem:[%s13 + $0x68] sm:$0xff]
    %v6407 = vld [vmem:[%s13 + $0x70] sm:$0xff]
    %v6408 = vld [vmem:[%s13 + $0x78] sm:$0xff]
    %v6409 = vld [vmem:[%s13 + $0x80] sm:$0xff]
    %v6410 = vld [vmem:[%s13 + $0x88] sm:$0xff]
    %v6411 = vld [vmem:[%s13 + $0x90] sm:$0xff]
    %v6412 = vld [vmem:[%s13 + $0x98] sm:$0xff]
    %v6413 = vld [vmem:[%s13 + $0xa0] sm:$0xff]
    %v6414 = vld [vmem:[%s13 + $0xa8] sm:$0xff]
    %v6415 = vld [vmem:[%s13 + $0xb0] sm:$0xff]
    %v6416 = vld [vmem:[%s13 + $0xb8] sm:$0xff]
    %s6417 = scalar_lea.vmem %s12, 2
    %v6418 = vld [vmem:[%s6417] sm:$0x3]
    %v6420 = vsel %vm6232, %v6418, 0
    %6422 = vmatprep.subr.mxu0 %v6224
    %6423 = vmatpush1.msra.mxu0 %v6223
    %6424 = vmatprep.subr.mxu0 %v6226
    %6425 = vmatpush1.msra.mxu0 %v6225
    %6426 = vmatprep.subr.mxu0 %v6228
    %6427 = vmatpush1.msra.mxu0 %v6227
    %6428 = vmatprep.subr.mxu0 %v6240
    %6429 = vmatpush1.msra.mxu0 %v6237
    %6430 = vmatprep.subr.mxu0 0.0
    %6431 = vmatpush1.msra.mxu0 0.0
    %6432 = vmatprep.subr.mxu0 0.0
    %6433 = vmatpush1.msra.mxu0 0.0
    %6434 = vmatprep.subr.mxu0 0.0
    %6435 = vmatpush1.msra.mxu0 0.0
    %6436 = vmatprep.subr.mxu0 0.0
    %6437 = vmatpush1.msra.mxu0 0.0
    %6438 = vmatprep.subr.mxu0 0.0
    %6439 = vmatpush1.msra.mxu0 0.0
    %6440 = vmatprep.subr.mxu0 0.0
    %6441 = vmatpush1.msra.mxu0 0.0
    %6442 = vmatprep.subr.mxu0 0.0
    %6443 = vmatpush1.msra.mxu0 0.0
    %6444 = vmatprep.subr.mxu0 0.0
    %6445 = vmatpush1.msra.mxu0 0.0
    %6446 = vmatprep.subr.mxu0 0.0
    %6447 = vmatpush1.msra.mxu0 0.0
    %6448 = vmatprep.subr.mxu0 0.0
    %6449 = vmatpush1.msra.mxu0 0.0
    %6450 = vmatprep.subr.mxu0 0.0
    %6451 = vmatpush1.msra.mxu0 0.0
    %6452 = vmatprep.subr.mxu0 0.0
    %6453 = vmatpush1.msra.mxu0 0.0
    %6454 = vmatprep.subr.mxu0 0.0
    %6455 = vmatpush1.msra.mxu0 0.0
    %6456 = vmatprep.subr.mxu0 0.0
    %6457 = vmatpush1.msra.mxu0 0.0
    %6458 = vmatprep.subr.mxu0 0.0
    %6459 = vmatpush1.msra.mxu0 0.0
    %6460 = vmatprep.subr.mxu0 0.0
    %6461 = vmatpush1.msra.mxu0 0.0
    %6462 = vmatprep.subr.mxu0 0.0
    %6463 = vmatpush1.msra.mxu0 0.0
    %6464 = vmatprep.subr.mxu0 0.0
    %6465 = vmatpush1.msra.mxu0 0.0
    %6466 = vmatprep.subr.mxu0 0.0
    %6467 = vmatpush1.msra.mxu0 0.0
    %6468 = vmatprep.subr.mxu0 0.0
    %6469 = vmatpush1.msra.mxu0 0.0
    %6470 = vmatprep.subr.mxu0 0.0
    %6471 = vmatpush1.msra.mxu0 0.0
    %6472 = vmatprep.subr.mxu0 0.0
    %6473 = vmatpush1.msra.mxu0 0.0
    %6474 = vmatprep.subr.mxu0 0.0
    %6475 = vmatpush1.msra.mxu0 0.0
    %6476 = vmatprep.subr.mxu0 0.0
    %6477 = vmatpush1.msra.mxu0 0.0
    %6478 = vmatprep.subr.mxu0 0.0
    %6479 = vmatpush1.msra.mxu0 0.0
    %6480 = vmatprep.subr.mxu0 0.0
    %6481 = vmatpush1.msra.mxu0 0.0
    %6482 = vmatprep.subr.mxu0 0.0
    %6483 = vmatpush1.msra.mxu0 0.0
    %6484 = vmatprep.subr.mxu0 0.0
    %6485 = vmatpush1.msra.mxu0 0.0
    %6486 = vmatprep.mubr.f32.mxu0 0.0
    %6487 = vmatmul.mubr.f32.gmra.mrb[0].mxu0 %v6420
    %v6488 = vpop.f32.mrb[0].mxu0
    %v6489 = vadd.f32 0.0, %v6488
    %v6490 = vpop.f32.mrb[0].mxu0
    %v6491 = vadd.f32 0.0, %v6490
    %6492 = vdwg.mxu0
    %s6493 = scalar_lea.vmem %s12, 14
    %v6494 = vld [vmem:[%s6493] sm:$0x3]
    %v6496 = vsel %vm6232, %v6494, 0
    %6498 = vmatprep.subr.mxu0 %v6224
    %6499 = vmatpush1.msra.mxu0 %v6223
    %6500 = vmatprep.subr.mxu0 %v6226
    %6501 = vmatpush1.msra.mxu0 %v6225
    %6502 = vmatprep.subr.mxu0 %v6228
    %6503 = vmatpush1.msra.mxu0 %v6227
    %6504 = vmatprep.subr.mxu0 %v6240
    %6505 = vmatpush1.msra.mxu0 %v6237
    %6506 = vmatprep.subr.mxu0 0.0
    %6507 = vmatpush1.msra.mxu0 0.0
    %6508 = vmatprep.subr.mxu0 0.0
    %6509 = vmatpush1.msra.mxu0 0.0
    %6510 = vmatprep.subr.mxu0 0.0
    %6511 = vmatpush1.msra.mxu0 0.0
    %6512 = vmatprep.subr.mxu0 0.0
    %6513 = vmatpush1.msra.mxu0 0.0
    %6514 = vmatprep.subr.mxu0 0.0
    %6515 = vmatpush1.msra.mxu0 0.0
    %6516 = vmatprep.subr.mxu0 0.0
    %6517 = vmatpush1.msra.mxu0 0.0
    %6518 = vmatprep.subr.mxu0 0.0
    %6519 = vmatpush1.msra.mxu0 0.0
    %6520 = vmatprep.subr.mxu0 0.0
    %6521 = vmatpush1.msra.mxu0 0.0
    %6522 = vmatprep.subr.mxu0 0.0
    %6523 = vmatpush1.msra.mxu0 0.0
    %6524 = vmatprep.subr.mxu0 0.0
    %6525 = vmatpush1.msra.mxu0 0.0
    %6526 = vmatprep.subr.mxu0 0.0
    %6527 = vmatpush1.msra.mxu0 0.0
    %6528 = vmatprep.subr.mxu0 0.0
    %6529 = vmatpush1.msra.mxu0 0.0
    %6530 = vmatprep.subr.mxu0 0.0
    %6531 = vmatpush1.msra.mxu0 0.0
    %6532 = vmatprep.subr.mxu0 0.0
    %6533 = vmatpush1.msra.mxu0 0.0
    %6534 = vmatprep.subr.mxu0 0.0
    %6535 = vmatpush1.msra.mxu0 0.0
    %6536 = vmatprep.subr.mxu0 0.0
    %6537 = vmatpush1.msra.mxu0 0.0
    %6538 = vmatprep.subr.mxu0 0.0
    %6539 = vmatpush1.msra.mxu0 0.0
    %6540 = vmatprep.subr.mxu0 0.0
    %6541 = vmatpush1.msra.mxu0 0.0
    %6542 = vmatprep.subr.mxu0 0.0
    %6543 = vmatpush1.msra.mxu0 0.0
    %6544 = vmatprep.subr.mxu0 0.0
    %6545 = vmatpush1.msra.mxu0 0.0
    %6546 = vmatprep.subr.mxu0 0.0
    %6547 = vmatpush1.msra.mxu0 0.0
    %6548 = vmatprep.subr.mxu0 0.0
    %6549 = vmatpush1.msra.mxu0 0.0
    %6550 = vmatprep.subr.mxu0 0.0
    %6551 = vmatpush1.msra.mxu0 0.0
    %6552 = vmatprep.subr.mxu0 0.0
    %6553 = vmatpush1.msra.mxu0 0.0
    %6554 = vmatprep.subr.mxu0 0.0
    %6555 = vmatpush1.msra.mxu0 0.0
    %6556 = vmatprep.subr.mxu0 0.0
    %6557 = vmatpush1.msra.mxu0 0.0
    %6558 = vmatprep.subr.mxu0 0.0
    %6559 = vmatpush1.msra.mxu0 0.0
    %6560 = vmatprep.subr.mxu0 0.0
    %6561 = vmatpush1.msra.mxu0 0.0
    %6562 = vmatprep.mubr.f32.mxu0 0.0
    %6563 = vmatmul.mubr.f32.gmra.mrb[0].mxu0 %v6496
    %v6564 = vpop.f32.mrb[0].mxu0
    %v6565 = vadd.f32 0.0, %v6564
    %v6566 = vpop.f32.mrb[0].mxu0
    %v6567 = vadd.f32 0.0, %v6566
    %6568 = vdwg.mxu0
    %v6569 = vmax.f32 %v6489, %v6565
    %v6570 = vmax.f32 %v6491, %v6567
    %v6571 = vpack.c.bf16 %v6569, %v6569
    %v6572 = vpack.c.bf16 %v6570, %v6570
    %v6573 = vld [vmem:[%s13 + $0xc0] sm:$0xff]
    %v6574 = vld [vmem:[%s13 + $0xc8] sm:$0xff]
    %v6575 = vld [vmem:[%s13 + $0xd0] sm:$0xff]
    %v6576 = vld [vmem:[%s13 + $0xd8] sm:$0xff]
    %v6577 = vld [vmem:[%s13 + $0xe0] sm:$0xff]
    %v6578 = vld [vmem:[%s13 + $0xe8] sm:$0xff]
    %v6579 = vld [vmem:[%s13 + $0xf0] sm:$0xff]
    %v6580 = vld [vmem:[%s13 + $0xf8] sm:$0xff]
    %v6581 = vld [vmem:[%s13 + $0x100] sm:$0xff]
    %v6582 = vld [vmem:[%s13 + $0x108] sm:$0xff]
    %v6583 = vld [vmem:[%s13 + $0x110] sm:$0xff]
    %v6584 = vld [vmem:[%s13 + $0x118] sm:$0xff]
    %v6585 = vld [vmem:[%s13 + $0x120] sm:$0xff]
    %v6586 = vld [vmem:[%s13 + $0x128] sm:$0xff]
    %v6587 = vld [vmem:[%s13 + $0x130] sm:$0xff]
    %v6588 = vld [vmem:[%s13 + $0x138] sm:$0xff]
    %v6589 = vld [vmem:[%s13 + $0x140] sm:$0xff]
    %v6590 = vld [vmem:[%s13 + $0x148] sm:$0xff]
    %v6591 = vld [vmem:[%s13 + $0x150] sm:$0xff]
    %v6592 = vld [vmem:[%s13 + $0x158] sm:$0xff]
    %v6593 = vld [vmem:[%s13 + $0x160] sm:$0xff]
    %v6594 = vld [vmem:[%s13 + $0x168] sm:$0xff]
    %v6595 = vld [vmem:[%s13 + $0x170] sm:$0xff]
    %v6596 = vld [vmem:[%s13 + $0x178] sm:$0xff]
    %v6621 = vunpack.c.l.b16 %v6573
    %v6622 = vunpack.c.h.b16 %v6573
    %v6623 = vunpack.c.l.b16 %v6574
    %v6624 = vunpack.c.h.b16 %v6574
    %v6625 = vunpack.c.l.b16 %v6575
    %v6626 = vunpack.c.h.b16 %v6575
    %v6627 = vunpack.c.l.b16 %v6576
    %v6628 = vunpack.c.h.b16 %v6576
    %v6629 = vunpack.c.l.b16 %v6577
    %v6630 = vunpack.c.h.b16 %v6577
    %v6631 = vunpack.c.l.b16 %v6578
    %v6632 = vunpack.c.h.b16 %v6578
    %v6633 = vunpack.c.l.b16 %v6579
    %v6634 = vunpack.c.h.b16 %v6579
    %v6635 = vunpack.c.l.b16 %v6580
    %v6636 = vunpack.c.h.b16 %v6580
    %v6637 = vunpack.c.l.b16 %v6581
    %v6638 = vunpack.c.h.b16 %v6581
    %v6639 = vunpack.c.l.b16 %v6582
    %v6640 = vunpack.c.h.b16 %v6582
    %v6641 = vunpack.c.l.b16 %v6583
    %v6642 = vunpack.c.h.b16 %v6583
    %v6643 = vunpack.c.l.b16 %v6584
    %v6644 = vunpack.c.h.b16 %v6584
    %v6645 = vunpack.c.l.b16 %v6585
    %v6646 = vunpack.c.h.b16 %v6585
    %v6647 = vunpack.c.l.b16 %v6586
    %v6648 = vunpack.c.h.b16 %v6586
    %v6649 = vunpack.c.l.b16 %v6587
    %v6650 = vunpack.c.h.b16 %v6587
    %v6651 = vunpack.c.l.b16 %v6588
    %v6652 = vunpack.c.h.b16 %v6588
    %v6653 = vunpack.c.l.b16 %v6589
    %v6654 = vunpack.c.h.b16 %v6589
    %v6655 = vunpack.c.l.b16 %v6590
    %v6656 = vunpack.c.h.b16 %v6590
    %v6657 = vunpack.c.l.b16 %v6591
    %v6658 = vunpack.c.h.b16 %v6591
    %v6659 = vunpack.c.l.b16 %v6592
    %v6660 = vunpack.c.h.b16 %v6592
    %v6661 = vunpack.c.l.b16 %v6593
    %v6662 = vunpack.c.h.b16 %v6593
    %v6663 = vunpack.c.l.b16 %v6594
    %v6664 = vunpack.c.h.b16 %v6594
    %v6665 = vunpack.c.l.b16 %v6595
    %v6666 = vunpack.c.h.b16 %v6595
    %v6667 = vunpack.c.l.b16 %v6596
    %v6668 = vunpack.c.h.b16 %v6596
    %v6669 = vpack.c.b16 %v6623, %v6621
    %v6670 = vpack.c.b16 %v6624, %v6622
    %v6671 = vpack.c.b16 %v6627, %v6625
    %v6672 = vpack.c.b16 %v6628, %v6626
    %v6673 = vpack.c.b16 %v6631, %v6629
    %v6674 = vpack.c.b16 %v6632, %v6630
    %v6675 = vpack.c.b16 %v6635, %v6633
    %v6676 = vpack.c.b16 %v6636, %v6634
    %v6677 = vpack.c.b16 %v6639, %v6637
    %v6678 = vpack.c.b16 %v6640, %v6638
    %v6679 = vpack.c.b16 %v6643, %v6641
    %v6680 = vpack.c.b16 %v6644, %v6642
    %v6681 = vpack.c.b16 %v6647, %v6645
    %v6682 = vpack.c.b16 %v6648, %v6646
    %v6683 = vpack.c.b16 %v6651, %v6649
    %v6684 = vpack.c.b16 %v6652, %v6650
    %v6685 = vpack.c.b16 %v6655, %v6653
    %v6686 = vpack.c.b16 %v6656, %v6654
    %v6687 = vpack.c.b16 %v6659, %v6657
    %v6688 = vpack.c.b16 %v6660, %v6658
    %v6689 = vpack.c.b16 %v6663, %v6661
    %v6690 = vpack.c.b16 %v6664, %v6662
    %v6691 = vpack.c.b16 %v6667, %v6665
    %v6692 = vpack.c.b16 %v6668, %v6666
    %vm6717 = vcmask 523264
    %v6719 = vsel %vm6717, %v6572, 0
    %6721 = vmatprep.subr.bf16.mxu0 %v6670
    %6722 = vmatpush1.bf16.msra.mxu0 %v6669
    %6723 = vmatprep.subr.bf16.mxu0 %v6672
    %6724 = vmatpush1.bf16.msra.mxu0 %v6671
    %6725 = vmatprep.subr.bf16.mxu0 %v6674
    %6726 = vmatpush1.bf16.msra.mxu0 %v6673
    %6727 = vmatprep.subr.bf16.mxu0 %v6676
    %6728 = vmatpush1.bf16.msra.mxu0 %v6675
    %6729 = vmatprep.subr.bf16.mxu0 %v6678
    %6730 = vmatpush1.bf16.msra.mxu0 %v6677
    %6731 = vmatprep.subr.bf16.mxu0 %v6680
    %6732 = vmatpush1.bf16.msra.mxu0 %v6679
    %6733 = vmatprep.subr.bf16.mxu0 %v6682
    %6734 = vmatpush1.bf16.msra.mxu0 %v6681
    %6735 = vmatprep.subr.bf16.mxu0 %v6684
    %6736 = vmatpush1.bf16.msra.mxu0 %v6683
    %6737 = vmatprep.subr.bf16.mxu0 %v6686
    %6738 = vmatpush1.bf16.msra.mxu0 %v6685
    %6739 = vmatprep.subr.bf16.mxu0 %v6688
    %6740 = vmatpush1.bf16.msra.mxu0 %v6687
    %6741 = vmatprep.subr.bf16.mxu0 %v6690
    %6742 = vmatpush1.bf16.msra.mxu0 %v6689
    %6743 = vmatprep.subr.bf16.mxu0 %v6692
    %6744 = vmatpush1.bf16.msra.mxu0 %v6691
    %6745 = vmatprep.subr.bf16.mxu0 0
    %6746 = vmatpush1.bf16.msra.mxu0 0
    %6747 = vmatprep.subr.bf16.mxu0 0
    %6748 = vmatpush1.bf16.msra.mxu0 0
    %6749 = vmatprep.subr.bf16.mxu0 0
    %6750 = vmatpush1.bf16.msra.mxu0 0
    %6751 = vmatprep.subr.bf16.mxu0 0
    %6752 = vmatpush1.bf16.msra.mxu0 0
    %6753 = vmatprep.mubr.bf16.mxu0 %v6719
    %6754 = vmatmul.mubr.bf16.gmra.mrb[0].mxu0 %v6571
    %v6755 = vpop.f32.mrb[0].mxu0
    %v6756 = vadd.f32 0.0, %v6755
    %v6757 = vpop.f32.mrb[0].mxu0
    %v6758 = vadd.f32 0.0, %v6757
    %v6759 = vpop.f32.mrb[0].mxu0
    %v6760 = vpop.f32.mrb[0].mxu0
    %6761 = vdwg.mxu0
    %v6786 = vunpack.c.l.b16 %v6393
    %v6787 = vunpack.c.h.b16 %v6393
    %v6788 = vunpack.c.l.b16 %v6394
    %v6789 = vunpack.c.h.b16 %v6394
    %v6790 = vunpack.c.l.b16 %v6395
    %v6791 = vunpack.c.h.b16 %v6395
    %v6792 = vunpack.c.l.b16 %v6396
    %v6793 = vunpack.c.h.b16 %v6396
    %v6794 = vunpack.c.l.b16 %v6397
    %v6795 = vunpack.c.h.b16 %v6397
    %v6796 = vunpack.c.l.b16 %v6398
    %v6797 = vunpack.c.h.b16 %v6398
    %v6798 = vunpack.c.l.b16 %v6399
    %v6799 = vunpack.c.h.b16 %v6399
    %v6800 = vunpack.c.l.b16 %v6400
    %v6801 = vunpack.c.h.b16 %v6400
    %v6802 = vunpack.c.l.b16 %v6401
    %v6803 = vunpack.c.h.b16 %v6401
    %v6804 = vunpack.c.l.b16 %v6402
    %v6805 = vunpack.c.h.b16 %v6402
    %v6806 = vunpack.c.l.b16 %v6403
    %v6807 = vunpack.c.h.b16 %v6403
    %v6808 = vunpack.c.l.b16 %v6404
    %v6809 = vunpack.c.h.b16 %v6404
    %v6810 = vunpack.c.l.b16 %v6405
    %v6811 = vunpack.c.h.b16 %v6405
    %v6812 = vunpack.c.l.b16 %v6406
    %v6813 = vunpack.c.h.b16 %v6406
    %v6814 = vunpack.c.l.b16 %v6407
    %v6815 = vunpack.c.h.b16 %v6407
    %v6816 = vunpack.c.l.b16 %v6408
    %v6817 = vunpack.c.h.b16 %v6408
    %v6818 = vunpack.c.l.b16 %v6409
    %v6819 = vunpack.c.h.b16 %v6409
    %v6820 = vunpack.c.l.b16 %v6410
    %v6821 = vunpack.c.h.b16 %v6410
    %v6822 = vunpack.c.l.b16 %v6411
    %v6823 = vunpack.c.h.b16 %v6411
    %v6824 = vunpack.c.l.b16 %v6412
    %v6825 = vunpack.c.h.b16 %v6412
    %v6826 = vunpack.c.l.b16 %v6413
    %v6827 = vunpack.c.h.b16 %v6413
    %v6828 = vunpack.c.l.b16 %v6414
    %v6829 = vunpack.c.h.b16 %v6414
    %v6830 = vunpack.c.l.b16 %v6415
    %v6831 = vunpack.c.h.b16 %v6415
    %v6832 = vunpack.c.l.b16 %v6416
    %v6833 = vunpack.c.h.b16 %v6416
    %v6834 = vpack.c.b16 %v6788, %v6786
    %v6835 = vpack.c.b16 %v6789, %v6787
    %v6836 = vpack.c.b16 %v6792, %v6790
    %v6837 = vpack.c.b16 %v6793, %v6791
    %v6838 = vpack.c.b16 %v6796, %v6794
    %v6839 = vpack.c.b16 %v6797, %v6795
    %v6840 = vpack.c.b16 %v6800, %v6798
    %v6841 = vpack.c.b16 %v6801, %v6799
    %v6842 = vpack.c.b16 %v6804, %v6802
    %v6843 = vpack.c.b16 %v6805, %v6803
    %v6844 = vpack.c.b16 %v6808, %v6806
    %v6845 = vpack.c.b16 %v6809, %v6807
    %v6846 = vpack.c.b16 %v6812, %v6810
    %v6847 = vpack.c.b16 %v6813, %v6811
    %v6848 = vpack.c.b16 %v6816, %v6814
    %v6849 = vpack.c.b16 %v6817, %v6815
    %v6850 = vpack.c.b16 %v6820, %v6818
    %v6851 = vpack.c.b16 %v6821, %v6819
    %v6852 = vpack.c.b16 %v6824, %v6822
    %v6853 = vpack.c.b16 %v6825, %v6823
    %v6854 = vpack.c.b16 %v6828, %v6826
    %v6855 = vpack.c.b16 %v6829, %v6827
    %v6856 = vpack.c.b16 %v6832, %v6830
    %v6857 = vpack.c.b16 %v6833, %v6831
    %v6883 = vsel %vm6717, %v6392, 0
    %6885 = vmatprep.subr.bf16.mxu0 %v6835
    %6886 = vmatpush1.bf16.msra.mxu0 %v6834
    %6887 = vmatprep.subr.bf16.mxu0 %v6837
    %6888 = vmatpush1.bf16.msra.mxu0 %v6836
    %6889 = vmatprep.subr.bf16.mxu0 %v6839
    %6890 = vmatpush1.bf16.msra.mxu0 %v6838
    %6891 = vmatprep.subr.bf16.mxu0 %v6841
    %6892 = vmatpush1.bf16.msra.mxu0 %v6840
    %6893 = vmatprep.subr.bf16.mxu0 %v6843
    %6894 = vmatpush1.bf16.msra.mxu0 %v6842
    %6895 = vmatprep.subr.bf16.mxu0 %v6845
    %6896 = vmatpush1.bf16.msra.mxu0 %v6844
    %6897 = vmatprep.subr.bf16.mxu0 %v6847
    %6898 = vmatpush1.bf16.msra.mxu0 %v6846
    %6899 = vmatprep.subr.bf16.mxu0 %v6849
    %6900 = vmatpush1.bf16.msra.mxu0 %v6848
    %6901 = vmatprep.subr.bf16.mxu0 %v6851
    %6902 = vmatpush1.bf16.msra.mxu0 %v6850
    %6903 = vmatprep.subr.bf16.mxu0 %v6853
    %6904 = vmatpush1.bf16.msra.mxu0 %v6852
    %6905 = vmatprep.subr.bf16.mxu0 %v6855
    %6906 = vmatpush1.bf16.msra.mxu0 %v6854
    %6907 = vmatprep.subr.bf16.mxu0 %v6857
    %6908 = vmatpush1.bf16.msra.mxu0 %v6856
    %6909 = vmatprep.subr.bf16.mxu0 0
    %6910 = vmatpush1.bf16.msra.mxu0 0
    %6911 = vmatprep.subr.bf16.mxu0 0
    %6912 = vmatpush1.bf16.msra.mxu0 0
    %6913 = vmatprep.subr.bf16.mxu0 0
    %6914 = vmatpush1.bf16.msra.mxu0 0
    %6915 = vmatprep.subr.bf16.mxu0 0
    %6916 = vmatpush1.bf16.msra.mxu0 0
    %6917 = vmatprep.mubr.bf16.mxu0 %v6883
    %6918 = vmatmul.mubr.bf16.gmra.mrb[0].mxu0 %v6391
    %v6919 = vpop.f32.mrb[0].mxu0
    %v6920 = vadd.f32 %v6756, %v6919
    %v6921 = vpop.f32.mrb[0].mxu0
    %v6922 = vadd.f32 %v6758, %v6921
    %v6923 = vpop.f32.mrb[0].mxu0
    %v6924 = vpop.f32.mrb[0].mxu0
    %6925 = vdwg.mxu0
    %s6926 = scalar_lea.vmem %s12, 4
    %v6927 = vld [vmem:[%s6926] sm:$0x3]
    %v6929 = vsel %vm6232, %v6927, 0
    %6931 = vmatprep.subr.mxu0 %v6224
    %6932 = vmatpush1.msra.mxu0 %v6223
    %6933 = vmatprep.subr.mxu0 %v6226
    %6934 = vmatpush1.msra.mxu0 %v6225
    %6935 = vmatprep.subr.mxu0 %v6228
    %6936 = vmatpush1.msra.mxu0 %v6227
    %6937 = vmatprep.subr.mxu0 %v6240
    %6938 = vmatpush1.msra.mxu0 %v6237
    %6939 = vmatprep.subr.mxu0 0.0
    %6940 = vmatpush1.msra.mxu0 0.0
    %6941 = vmatprep.subr.mxu0 0.0
    %6942 = vmatpush1.msra.mxu0 0.0
    %6943 = vmatprep.subr.mxu0 0.0
    %6944 = vmatpush1.msra.mxu0 0.0
    %6945 = vmatprep.subr.mxu0 0.0
    %6946 = vmatpush1.msra.mxu0 0.0
    %6947 = vmatprep.subr.mxu0 0.0
    %6948 = vmatpush1.msra.mxu0 0.0
    %6949 = vmatprep.subr.mxu0 0.0
    %6950 = vmatpush1.msra.mxu0 0.0
    %6951 = vmatprep.subr.mxu0 0.0
    %6952 = vmatpush1.msra.mxu0 0.0
    %6953 = vmatprep.subr.mxu0 0.0
    %6954 = vmatpush1.msra.mxu0 0.0
    %6955 = vmatprep.subr.mxu0 0.0
    %6956 = vmatpush1.msra.mxu0 0.0
    %6957 = vmatprep.subr.mxu0 0.0
    %6958 = vmatpush1.msra.mxu0 0.0
    %6959 = vmatprep.subr.mxu0 0.0
    %6960 = vmatpush1.msra.mxu0 0.0
    %6961 = vmatprep.subr.mxu0 0.0
    %6962 = vmatpush1.msra.mxu0 0.0
    %6963 = vmatprep.subr.mxu0 0.0
    %6964 = vmatpush1.msra.mxu0 0.0
    %6965 = vmatprep.subr.mxu0 0.0
    %6966 = vmatpush1.msra.mxu0 0.0
    %6967 = vmatprep.subr.mxu0 0.0
    %6968 = vmatpush1.msra.mxu0 0.0
    %6969 = vmatprep.subr.mxu0 0.0
    %6970 = vmatpush1.msra.mxu0 0.0
    %6971 = vmatprep.subr.mxu0 0.0
    %6972 = vmatpush1.msra.mxu0 0.0
    %6973 = vmatprep.subr.mxu0 0.0
    %6974 = vmatpush1.msra.mxu0 0.0
    %6975 = vmatprep.subr.mxu0 0.0
    %6976 = vmatpush1.msra.mxu0 0.0
    %6977 = vmatprep.subr.mxu0 0.0
    %6978 = vmatpush1.msra.mxu0 0.0
    %6979 = vmatprep.subr.mxu0 0.0
    %6980 = vmatpush1.msra.mxu0 0.0
    %6981 = vmatprep.subr.mxu0 0.0
    %6982 = vmatpush1.msra.mxu0 0.0
    %6983 = vmatprep.subr.mxu0 0.0
    %6984 = vmatpush1.msra.mxu0 0.0
    %6985 = vmatprep.subr.mxu0 0.0
    %6986 = vmatpush1.msra.mxu0 0.0
    %6987 = vmatprep.subr.mxu0 0.0
    %6988 = vmatpush1.msra.mxu0 0.0
    %6989 = vmatprep.subr.mxu0 0.0
    %6990 = vmatpush1.msra.mxu0 0.0
    %6991 = vmatprep.subr.mxu0 0.0
    %6992 = vmatpush1.msra.mxu0 0.0
    %6993 = vmatprep.subr.mxu0 0.0
    %6994 = vmatpush1.msra.mxu0 0.0
    %6995 = vmatprep.mubr.f32.mxu0 0.0
    %6996 = vmatmul.mubr.f32.gmra.mrb[0].mxu0 %v6929
    %v6997 = vpop.f32.mrb[0].mxu0
    %v6998 = vadd.f32 0.0, %v6997
    %v6999 = vpop.f32.mrb[0].mxu0
    %v7000 = vadd.f32 0.0, %v6999
    %7001 = vdwg.mxu0
    %s7002 = scalar_lea.vmem %s12, 16
    %v7003 = vld [vmem:[%s7002] sm:$0x3]
    %v7005 = vsel %vm6232, %v7003, 0
    %7007 = vmatprep.subr.mxu0 %v6224
    %7008 = vmatpush1.msra.mxu0 %v6223
    %7009 = vmatprep.subr.mxu0 %v6226
    %7010 = vmatpush1.msra.mxu0 %v6225
    %7011 = vmatprep.subr.mxu0 %v6228
    %7012 = vmatpush1.msra.mxu0 %v6227
    %7013 = vmatprep.subr.mxu0 %v6240
    %7014 = vmatpush1.msra.mxu0 %v6237
    %7015 = vmatprep.subr.mxu0 0.0
    %7016 = vmatpush1.msra.mxu0 0.0
    %7017 = vmatprep.subr.mxu0 0.0
    %7018 = vmatpush1.msra.mxu0 0.0
    %7019 = vmatprep.subr.mxu0 0.0
    %7020 = vmatpush1.msra.mxu0 0.0
    %7021 = vmatprep.subr.mxu0 0.0
    %7022 = vmatpush1.msra.mxu0 0.0
    %7023 = vmatprep.subr.mxu0 0.0
    %7024 = vmatpush1.msra.mxu0 0.0
    %7025 = vmatprep.subr.mxu0 0.0
    %7026 = vmatpush1.msra.mxu0 0.0
    %7027 = vmatprep.subr.mxu0 0.0
    %7028 = vmatpush1.msra.mxu0 0.0
    %7029 = vmatprep.subr.mxu0 0.0
    %7030 = vmatpush1.msra.mxu0 0.0
    %7031 = vmatprep.subr.mxu0 0.0
    %7032 = vmatpush1.msra.mxu0 0.0
    %7033 = vmatprep.subr.mxu0 0.0
    %7034 = vmatpush1.msra.mxu0 0.0
    %7035 = vmatprep.subr.mxu0 0.0
    %7036 = vmatpush1.msra.mxu0 0.0
    %7037 = vmatprep.subr.mxu0 0.0
    %7038 = vmatpush1.msra.mxu0 0.0
    %7039 = vmatprep.subr.mxu0 0.0
    %7040 = vmatpush1.msra.mxu0 0.0
    %7041 = vmatprep.subr.mxu0 0.0
    %7042 = vmatpush1.msra.mxu0 0.0
    %7043 = vmatprep.subr.mxu0 0.0
    %7044 = vmatpush1.msra.mxu0 0.0
    %7045 = vmatprep.subr.mxu0 0.0
    %7046 = vmatpush1.msra.mxu0 0.0
    %7047 = vmatprep.subr.mxu0 0.0
    %7048 = vmatpush1.msra.mxu0 0.0
    %7049 = vmatprep.subr.mxu0 0.0
    %7050 = vmatpush1.msra.mxu0 0.0
    %7051 = vmatprep.subr.mxu0 0.0
    %7052 = vmatpush1.msra.mxu0 0.0
    %7053 = vmatprep.subr.mxu0 0.0
    %7054 = vmatpush1.msra.mxu0 0.0
    %7055 = vmatprep.subr.mxu0 0.0
    %7056 = vmatpush1.msra.mxu0 0.0
    %7057 = vmatprep.subr.mxu0 0.0
    %7058 = vmatpush1.msra.mxu0 0.0
    %7059 = vmatprep.subr.mxu0 0.0
    %7060 = vmatpush1.msra.mxu0 0.0
    %7061 = vmatprep.subr.mxu0 0.0
    %7062 = vmatpush1.msra.mxu0 0.0
    %7063 = vmatprep.subr.mxu0 0.0
    %7064 = vmatpush1.msra.mxu0 0.0
    %7065 = vmatprep.subr.mxu0 0.0
    %7066 = vmatpush1.msra.mxu0 0.0
    %7067 = vmatprep.subr.mxu0 0.0
    %7068 = vmatpush1.msra.mxu0 0.0
    %7069 = vmatprep.subr.mxu0 0.0
    %7070 = vmatpush1.msra.mxu0 0.0
    %7071 = vmatprep.mubr.f32.mxu0 0.0
    %7072 = vmatmul.mubr.f32.gmra.mrb[0].mxu0 %v7005
    %v7073 = vpop.f32.mrb[0].mxu0
    %v7074 = vadd.f32 0.0, %v7073
    %v7075 = vpop.f32.mrb[0].mxu0
    %v7076 = vadd.f32 0.0, %v7075
    %7077 = vdwg.mxu0
    %v7078 = vmax.f32 %v6998, %v7074
    %v7079 = vmax.f32 %v7000, %v7076
    %v7080 = vpack.c.bf16 %v7078, %v7078
    %v7081 = vpack.c.bf16 %v7079, %v7079
    %v7082 = vld [vmem:[%s13 + $0x180] sm:$0xff]
    %v7083 = vld [vmem:[%s13 + $0x188] sm:$0xff]
    %v7084 = vld [vmem:[%s13 + $0x190] sm:$0xff]
    %v7085 = vld [vmem:[%s13 + $0x198] sm:$0xff]
    %v7086 = vld [vmem:[%s13 + $0x1a0] sm:$0xff]
    %v7087 = vld [vmem:[%s13 + $0x1a8] sm:$0xff]
    %v7088 = vld [vmem:[%s13 + $0x1b0] sm:$0xff]
    %v7089 = vld [vmem:[%s13 + $0x1b8] sm:$0xff]
    %v7090 = vld [vmem:[%s13 + $0x1c0] sm:$0xff]
    %v7091 = vld [vmem:[%s13 + $0x1c8] sm:$0xff]
    %v7092 = vld [vmem:[%s13 + $0x1d0] sm:$0xff]
    %v7093 = vld [vmem:[%s13 + $0x1d8] sm:$0xff]
    %v7094 = vld [vmem:[%s13 + $0x1e0] sm:$0xff]
    %v7095 = vld [vmem:[%s13 + $0x1e8] sm:$0xff]
    %v7096 = vld [vmem:[%s13 + $0x1f0] sm:$0xff]
    %v7097 = vld [vmem:[%s13 + $0x1f8] sm:$0xff]
    %v7098 = vld [vmem:[%s13 + $0x200] sm:$0xff]
    %v7099 = vld [vmem:[%s13 + $0x208] sm:$0xff]
    %v7100 = vld [vmem:[%s13 + $0x210] sm:$0xff]
    %v7101 = vld [vmem:[%s13 + $0x218] sm:$0xff]
    %v7102 = vld [vmem:[%s13 + $0x220] sm:$0xff]
    %v7103 = vld [vmem:[%s13 + $0x228] sm:$0xff]
    %v7104 = vld [vmem:[%s13 + $0x230] sm:$0xff]
    %v7105 = vld [vmem:[%s13 + $0x238] sm:$0xff]
    %v7130 = vunpack.c.l.b16 %v7082
    %v7131 = vunpack.c.h.b16 %v7082
    %v7132 = vunpack.c.l.b16 %v7083
    %v7133 = vunpack.c.h.b16 %v7083
    %v7134 = vunpack.c.l.b16 %v7084
    %v7135 = vunpack.c.h.b16 %v7084
    %v7136 = vunpack.c.l.b16 %v7085
    %v7137 = vunpack.c.h.b16 %v7085
    %v7138 = vunpack.c.l.b16 %v7086
    %v7139 = vunpack.c.h.b16 %v7086
    %v7140 = vunpack.c.l.b16 %v7087
    %v7141 = vunpack.c.h.b16 %v7087
    %v7142 = vunpack.c.l.b16 %v7088
    %v7143 = vunpack.c.h.b16 %v7088
    %v7144 = vunpack.c.l.b16 %v7089
    %v7145 = vunpack.c.h.b16 %v7089
    %v7146 = vunpack.c.l.b16 %v7090
    %v7147 = vunpack.c.h.b16 %v7090
    %v7148 = vunpack.c.l.b16 %v7091
    %v7149 = vunpack.c.h.b16 %v7091
    %v7150 = vunpack.c.l.b16 %v7092
    %v7151 = vunpack.c.h.b16 %v7092
    %v7152 = vunpack.c.l.b16 %v7093
    %v7153 = vunpack.c.h.b16 %v7093
    %v7154 = vunpack.c.l.b16 %v7094
    %v7155 = vunpack.c.h.b16 %v7094
    %v7156 = vunpack.c.l.b16 %v7095
    %v7157 = vunpack.c.h.b16 %v7095
    %v7158 = vunpack.c.l.b16 %v7096
    %v7159 = vunpack.c.h.b16 %v7096
    %v7160 = vunpack.c.l.b16 %v7097
    %v7161 = vunpack.c.h.b16 %v7097
    %v7162 = vunpack.c.l.b16 %v7098
    %v7163 = vunpack.c.h.b16 %v7098
    %v7164 = vunpack.c.l.b16 %v7099
    %v7165 = vunpack.c.h.b16 %v7099
    %v7166 = vunpack.c.l.b16 %v7100
    %v7167 = vunpack.c.h.b16 %v7100
    %v7168 = vunpack.c.l.b16 %v7101
    %v7169 = vunpack.c.h.b16 %v7101
    %v7170 = vunpack.c.l.b16 %v7102
    %v7171 = vunpack.c.h.b16 %v7102
    %v7172 = vunpack.c.l.b16 %v7103
    %v7173 = vunpack.c.h.b16 %v7103
    %v7174 = vunpack.c.l.b16 %v7104
    %v7175 = vunpack.c.h.b16 %v7104
    %v7176 = vunpack.c.l.b16 %v7105
    %v7177 = vunpack.c.h.b16 %v7105
    %v7178 = vpack.c.b16 %v7132, %v7130
    %v7179 = vpack.c.b16 %v7133, %v7131
    %v7180 = vpack.c.b16 %v7136, %v7134
    %v7181 = vpack.c.b16 %v7137, %v7135
    %v7182 = vpack.c.b16 %v7140, %v7138
    %v7183 = vpack.c.b16 %v7141, %v7139
    %v7184 = vpack.c.b16 %v7144, %v7142
    %v7185 = vpack.c.b16 %v7145, %v7143
    %v7186 = vpack.c.b16 %v7148, %v7146
    %v7187 = vpack.c.b16 %v7149, %v7147
    %v7188 = vpack.c.b16 %v7152, %v7150
    %v7189 = vpack.c.b16 %v7153, %v7151
    %v7190 = vpack.c.b16 %v7156, %v7154
    %v7191 = vpack.c.b16 %v7157, %v7155
    %v7192 = vpack.c.b16 %v7160, %v7158
    %v7193 = vpack.c.b16 %v7161, %v7159
    %v7194 = vpack.c.b16 %v7164, %v7162
    %v7195 = vpack.c.b16 %v7165, %v7163
    %v7196 = vpack.c.b16 %v7168, %v7166
    %v7197 = vpack.c.b16 %v7169, %v7167
    %v7198 = vpack.c.b16 %v7172, %v7170
    %v7199 = vpack.c.b16 %v7173, %v7171
    %v7200 = vpack.c.b16 %v7176, %v7174
    %v7201 = vpack.c.b16 %v7177, %v7175
    %v7227 = vsel %vm6717, %v7081, 0
    %7229 = vmatprep.subr.bf16.mxu0 %v7179
    %7230 = vmatpush1.bf16.msra.mxu0 %v7178
    %7231 = vmatprep.subr.bf16.mxu0 %v7181
    %7232 = vmatpush1.bf16.msra.mxu0 %v7180
    %7233 = vmatprep.subr.bf16.mxu0 %v7183
    %7234 = vmatpush1.bf16.msra.mxu0 %v7182
    %7235 = vmatprep.subr.bf16.mxu0 %v7185
    %7236 = vmatpush1.bf16.msra.mxu0 %v7184
    %7237 = vmatprep.subr.bf16.mxu0 %v7187
    %7238 = vmatpush1.bf16.msra.mxu0 %v7186
    %7239 = vmatprep.subr.bf16.mxu0 %v7189
    %7240 = vmatpush1.bf16.msra.mxu0 %v7188
    %7241 = vmatprep.subr.bf16.mxu0 %v7191
    %7242 = vmatpush1.bf16.msra.mxu0 %v7190
    %7243 = vmatprep.subr.bf16.mxu0 %v7193
    %7244 = vmatpush1.bf16.msra.mxu0 %v7192
    %7245 = vmatprep.subr.bf16.mxu0 %v7195
    %7246 = vmatpush1.bf16.msra.mxu0 %v7194
    %7247 = vmatprep.subr.bf16.mxu0 %v7197
    %7248 = vmatpush1.bf16.msra.mxu0 %v7196
    %7249 = vmatprep.subr.bf16.mxu0 %v7199
    %7250 = vmatpush1.bf16.msra.mxu0 %v7198
    %7251 = vmatprep.subr.bf16.mxu0 %v7201
    %7252 = vmatpush1.bf16.msra.mxu0 %v7200
    %7253 = vmatprep.subr.bf16.mxu0 0
    %7254 = vmatpush1.bf16.msra.mxu0 0
    %7255 = vmatprep.subr.bf16.mxu0 0
    %7256 = vmatpush1.bf16.msra.mxu0 0
    %7257 = vmatprep.subr.bf16.mxu0 0
    %7258 = vmatpush1.bf16.msra.mxu0 0
    %7259 = vmatprep.subr.bf16.mxu0 0
    %7260 = vmatpush1.bf16.msra.mxu0 0
    %7261 = vmatprep.mubr.bf16.mxu0 %v7227
    %7262 = vmatmul.mubr.bf16.gmra.mrb[0].mxu0 %v7080
    %v7263 = vpop.f32.mrb[0].mxu0
    %v7264 = vadd.f32 0.0, %v7263
    %v7265 = vpop.f32.mrb[0].mxu0
    %v7266 = vadd.f32 0.0, %v7265
    %v7267 = vpop.f32.mrb[0].mxu0
    %v7268 = vpop.f32.mrb[0].mxu0
    %7269 = vdwg.mxu0
    %v7270 = vadd.f32 %v6920, %v7264
    %v7271 = vadd.f32 %v6922, %v7266
    %s7272 = scalar_lea.vmem %s12, 6
    %v7273 = vld [vmem:[%s7272] sm:$0x3]
    %v7275 = vsel %vm6232, %v7273, 0
    %7277 = vmatprep.subr.mxu0 %v6224
    %7278 = vmatpush1.msra.mxu0 %v6223
    %7279 = vmatprep.subr.mxu0 %v6226
    %7280 = vmatpush1.msra.mxu0 %v6225
    %7281 = vmatprep.subr.mxu0 %v6228
    %7282 = vmatpush1.msra.mxu0 %v6227
    %7283 = vmatprep.subr.mxu0 %v6240
    %7284 = vmatpush1.msra.mxu0 %v6237
    %7285 = vmatprep.subr.mxu0 0.0
    %7286 = vmatpush1.msra.mxu0 0.0
    %7287 = vmatprep.subr.mxu0 0.0
    %7288 = vmatpush1.msra.mxu0 0.0
    %7289 = vmatprep.subr.mxu0 0.0
    %7290 = vmatpush1.msra.mxu0 0.0
    %7291 = vmatprep.subr.mxu0 0.0
    %7292 = vmatpush1.msra.mxu0 0.0
    %7293 = vmatprep.subr.mxu0 0.0
    %7294 = vmatpush1.msra.mxu0 0.0
    %7295 = vmatprep.subr.mxu0 0.0
    %7296 = vmatpush1.msra.mxu0 0.0
    %7297 = vmatprep.subr.mxu0 0.0
    %7298 = vmatpush1.msra.mxu0 0.0
    %7299 = vmatprep.subr.mxu0 0.0
    %7300 = vmatpush1.msra.mxu0 0.0
    %7301 = vmatprep.subr.mxu0 0.0
    %7302 = vmatpush1.msra.mxu0 0.0
    %7303 = vmatprep.subr.mxu0 0.0
    %7304 = vmatpush1.msra.mxu0 0.0
    %7305 = vmatprep.subr.mxu0 0.0
    %7306 = vmatpush1.msra.mxu0 0.0
    %7307 = vmatprep.subr.mxu0 0.0
    %7308 = vmatpush1.msra.mxu0 0.0
    %7309 = vmatprep.subr.mxu0 0.0
    %7310 = vmatpush1.msra.mxu0 0.0
    %7311 = vmatprep.subr.mxu0 0.0
    %7312 = vmatpush1.msra.mxu0 0.0
    %7313 = vmatprep.subr.mxu0 0.0
    %7314 = vmatpush1.msra.mxu0 0.0
    %7315 = vmatprep.subr.mxu0 0.0
    %7316 = vmatpush1.msra.mxu0 0.0
    %7317 = vmatprep.subr.mxu0 0.0
    %7318 = vmatpush1.msra.mxu0 0.0
    %7319 = vmatprep.subr.mxu0 0.0
    %7320 = vmatpush1.msra.mxu0 0.0
    %7321 = vmatprep.subr.mxu0 0.0
    %7322 = vmatpush1.msra.mxu0 0.0
    %7323 = vmatprep.subr.mxu0 0.0
    %7324 = vmatpush1.msra.mxu0 0.0
    %7325 = vmatprep.subr.mxu0 0.0
    %7326 = vmatpush1.msra.mxu0 0.0
    %7327 = vmatprep.subr.mxu0 0.0
    %7328 = vmatpush1.msra.mxu0 0.0
    %7329 = vmatprep.subr.mxu0 0.0
    %7330 = vmatpush1.msra.mxu0 0.0
    %7331 = vmatprep.subr.mxu0 0.0
    %7332 = vmatpush1.msra.mxu0 0.0
    %7333 = vmatprep.subr.mxu0 0.0
    %7334 = vmatpush1.msra.mxu0 0.0
    %7335 = vmatprep.subr.mxu0 0.0
    %7336 = vmatpush1.msra.mxu0 0.0
    %7337 = vmatprep.subr.mxu0 0.0
    %7338 = vmatpush1.msra.mxu0 0.0
    %7339 = vmatprep.subr.mxu0 0.0
    %7340 = vmatpush1.msra.mxu0 0.0
    %7341 = vmatprep.mubr.f32.mxu0 0.0
    %7342 = vmatmul.mubr.f32.gmra.mrb[0].mxu0 %v7275
    %v7343 = vpop.f32.mrb[0].mxu0
    %v7344 = vadd.f32 0.0, %v7343
    %v7345 = vpop.f32.mrb[0].mxu0
    %v7346 = vadd.f32 0.0, %v7345
    %7347 = vdwg.mxu0
    %s7348 = scalar_lea.vmem %s12, 18
    %v7349 = vld [vmem:[%s7348] sm:$0x3]
    %v7351 = vsel %vm6232, %v7349, 0
    %7353 = vmatprep.subr.mxu0 %v6224
    %7354 = vmatpush1.msra.mxu0 %v6223
    %7355 = vmatprep.subr.mxu0 %v6226
    %7356 = vmatpush1.msra.mxu0 %v6225
    %7357 = vmatprep.subr.mxu0 %v6228
    %7358 = vmatpush1.msra.mxu0 %v6227
    %7359 = vmatprep.subr.mxu0 %v6240
    %7360 = vmatpush1.msra.mxu0 %v6237
    %7361 = vmatprep.subr.mxu0 0.0
    %7362 = vmatpush1.msra.mxu0 0.0
    %7363 = vmatprep.subr.mxu0 0.0
    %7364 = vmatpush1.msra.mxu0 0.0
    %7365 = vmatprep.subr.mxu0 0.0
    %7366 = vmatpush1.msra.mxu0 0.0
    %7367 = vmatprep.subr.mxu0 0.0
    %7368 = vmatpush1.msra.mxu0 0.0
    %7369 = vmatprep.subr.mxu0 0.0
    %7370 = vmatpush1.msra.mxu0 0.0
    %7371 = vmatprep.subr.mxu0 0.0
    %7372 = vmatpush1.msra.mxu0 0.0
    %7373 = vmatprep.subr.mxu0 0.0
    %7374 = vmatpush1.msra.mxu0 0.0
    %7375 = vmatprep.subr.mxu0 0.0
    %7376 = vmatpush1.msra.mxu0 0.0
    %7377 = vmatprep.subr.mxu0 0.0
    %7378 = vmatpush1.msra.mxu0 0.0
    %7379 = vmatprep.subr.mxu0 0.0
    %7380 = vmatpush1.msra.mxu0 0.0
    %7381 = vmatprep.subr.mxu0 0.0
    %7382 = vmatpush1.msra.mxu0 0.0
    %7383 = vmatprep.subr.mxu0 0.0
    %7384 = vmatpush1.msra.mxu0 0.0
    %7385 = vmatprep.subr.mxu0 0.0
    %7386 = vmatpush1.msra.mxu0 0.0
    %7387 = vmatprep.subr.mxu0 0.0
    %7388 = vmatpush1.msra.mxu0 0.0
    %7389 = vmatprep.subr.mxu0 0.0
    %7390 = vmatpush1.msra.mxu0 0.0
    %7391 = vmatprep.subr.mxu0 0.0
    %7392 = vmatpush1.msra.mxu0 0.0
    %7393 = vmatprep.subr.mxu0 0.0
    %7394 = vmatpush1.msra.mxu0 0.0
    %7395 = vmatprep.subr.mxu0 0.0
    %7396 = vmatpush1.msra.mxu0 0.0
    %7397 = vmatprep.subr.mxu0 0.0
    %7398 = vmatpush1.msra.mxu0 0.0
    %7399 = vmatprep.subr.mxu0 0.0
    %7400 = vmatpush1.msra.mxu0 0.0
    %7401 = vmatprep.subr.mxu0 0.0
    %7402 = vmatpush1.msra.mxu0 0.0
    %7403 = vmatprep.subr.mxu0 0.0
    %7404 = vmatpush1.msra.mxu0 0.0
    %7405 = vmatprep.subr.mxu0 0.0
    %7406 = vmatpush1.msra.mxu0 0.0
    %7407 = vmatprep.subr.mxu0 0.0
    %7408 = vmatpush1.msra.mxu0 0.0
    %7409 = vmatprep.subr.mxu0 0.0
    %7410 = vmatpush1.msra.mxu0 0.0
    %7411 = vmatprep.subr.mxu0 0.0
    %7412 = vmatpush1.msra.mxu0 0.0
    %7413 = vmatprep.subr.mxu0 0.0
    %7414 = vmatpush1.msra.mxu0 0.0
    %7415 = vmatprep.subr.mxu0 0.0
    %7416 = vmatpush1.msra.mxu0 0.0
    %7417 = vmatprep.mubr.f32.mxu0 0.0
    %7418 = vmatmul.mubr.f32.gmra.mrb[0].mxu0 %v7351
    %v7419 = vpop.f32.mrb[0].mxu0
    %v7420 = vadd.f32 0.0, %v7419
    %v7421 = vpop.f32.mrb[0].mxu0
    %v7422 = vadd.f32 0.0, %v7421
    %7423 = vdwg.mxu0
    %v7424 = vmax.f32 %v7344, %v7420
    %v7425 = vmax.f32 %v7346, %v7422
    %v7426 = vpack.c.bf16 %v7424, %v7424
    %v7427 = vpack.c.bf16 %v7425, %v7425
    %v7428 = vld [vmem:[%s13 + $0x240] sm:$0xff]
    %v7429 = vld [vmem:[%s13 + $0x248] sm:$0xff]
    %v7430 = vld [vmem:[%s13 + $0x250] sm:$0xff]
    %v7431 = vld [vmem:[%s13 + $0x258] sm:$0xff]
    %v7432 = vld [vmem:[%s13 + $0x260] sm:$0xff]
    %v7433 = vld [vmem:[%s13 + $0x268] sm:$0xff]
    %v7434 = vld [vmem:[%s13 + $0x270] sm:$0xff]
    %v7435 = vld [vmem:[%s13 + $0x278] sm:$0xff]
    %v7436 = vld [vmem:[%s13 + $0x280] sm:$0xff]
    %v7437 = vld [vmem:[%s13 + $0x288] sm:$0xff]
    %v7438 = vld [vmem:[%s13 + $0x290] sm:$0xff]
    %v7439 = vld [vmem:[%s13 + $0x298] sm:$0xff]
    %v7440 = vld [vmem:[%s13 + $0x2a0] sm:$0xff]
    %v7441 = vld [vmem:[%s13 + $0x2a8] sm:$0xff]
    %v7442 = vld [vmem:[%s13 + $0x2b0] sm:$0xff]
    %v7443 = vld [vmem:[%s13 + $0x2b8] sm:$0xff]
    %v7444 = vld [vmem:[%s13 + $0x2c0] sm:$0xff]
    %v7445 = vld [vmem:[%s13 + $0x2c8] sm:$0xff]
    %v7446 = vld [vmem:[%s13 + $0x2d0] sm:$0xff]
    %v7447 = vld [vmem:[%s13 + $0x2d8] sm:$0xff]
    %v7448 = vld [vmem:[%s13 + $0x2e0] sm:$0xff]
    %v7449 = vld [vmem:[%s13 + $0x2e8] sm:$0xff]
    %v7450 = vld [vmem:[%s13 + $0x2f0] sm:$0xff]
    %v7451 = vld [vmem:[%s13 + $0x2f8] sm:$0xff]
    %v7476 = vunpack.c.l.b16 %v7428
    %v7477 = vunpack.c.h.b16 %v7428
    %v7478 = vunpack.c.l.b16 %v7429
    %v7479 = vunpack.c.h.b16 %v7429
    %v7480 = vunpack.c.l.b16 %v7430
    %v7481 = vunpack.c.h.b16 %v7430
    %v7482 = vunpack.c.l.b16 %v7431
    %v7483 = vunpack.c.h.b16 %v7431
    %v7484 = vunpack.c.l.b16 %v7432
    %v7485 = vunpack.c.h.b16 %v7432
    %v7486 = vunpack.c.l.b16 %v7433
    %v7487 = vunpack.c.h.b16 %v7433
    %v7488 = vunpack.c.l.b16 %v7434
    %v7489 = vunpack.c.h.b16 %v7434
    %v7490 = vunpack.c.l.b16 %v7435
    %v7491 = vunpack.c.h.b16 %v7435
    %v7492 = vunpack.c.l.b16 %v7436
    %v7493 = vunpack.c.h.b16 %v7436
    %v7494 = vunpack.c.l.b16 %v7437
    %v7495 = vunpack.c.h.b16 %v7437
    %v7496 = vunpack.c.l.b16 %v7438
    %v7497 = vunpack.c.h.b16 %v7438
    %v7498 = vunpack.c.l.b16 %v7439
    %v7499 = vunpack.c.h.b16 %v7439
    %v7500 = vunpack.c.l.b16 %v7440
    %v7501 = vunpack.c.h.b16 %v7440
    %v7502 = vunpack.c.l.b16 %v7441
    %v7503 = vunpack.c.h.b16 %v7441
    %v7504 = vunpack.c.l.b16 %v7442
    %v7505 = vunpack.c.h.b16 %v7442
    %v7506 = vunpack.c.l.b16 %v7443
    %v7507 = vunpack.c.h.b16 %v7443
    %v7508 = vunpack.c.l.b16 %v7444
    %v7509 = vunpack.c.h.b16 %v7444
    %v7510 = vunpack.c.l.b16 %v7445
    %v7511 = vunpack.c.h.b16 %v7445
    %v7512 = vunpack.c.l.b16 %v7446
    %v7513 = vunpack.c.h.b16 %v7446
    %v7514 = vunpack.c.l.b16 %v7447
    %v7515 = vunpack.c.h.b16 %v7447
    %v7516 = vunpack.c.l.b16 %v7448
    %v7517 = vunpack.c.h.b16 %v7448
    %v7518 = vunpack.c.l.b16 %v7449
    %v7519 = vunpack.c.h.b16 %v7449
    %v7520 = vunpack.c.l.b16 %v7450
    %v7521 = vunpack.c.h.b16 %v7450
    %v7522 = vunpack.c.l.b16 %v7451
    %v7523 = vunpack.c.h.b16 %v7451
    %v7524 = vpack.c.b16 %v7478, %v7476
    %v7525 = vpack.c.b16 %v7479, %v7477
    %v7526 = vpack.c.b16 %v7482, %v7480
    %v7527 = vpack.c.b16 %v7483, %v7481
    %v7528 = vpack.c.b16 %v7486, %v7484
    %v7529 = vpack.c.b16 %v7487, %v7485
    %v7530 = vpack.c.b16 %v7490, %v7488
    %v7531 = vpack.c.b16 %v7491, %v7489
    %v7532 = vpack.c.b16 %v7494, %v7492
    %v7533 = vpack.c.b16 %v7495, %v7493
    %v7534 = vpack.c.b16 %v7498, %v7496
    %v7535 = vpack.c.b16 %v7499, %v7497
    %v7536 = vpack.c.b16 %v7502, %v7500
    %v7537 = vpack.c.b16 %v7503, %v7501
    %v7538 = vpack.c.b16 %v7506, %v7504
    %v7539 = vpack.c.b16 %v7507, %v7505
    %v7540 = vpack.c.b16 %v7510, %v7508
    %v7541 = vpack.c.b16 %v7511, %v7509
    %v7542 = vpack.c.b16 %v7514, %v7512
    %v7543 = vpack.c.b16 %v7515, %v7513
    %v7544 = vpack.c.b16 %v7518, %v7516
    %v7545 = vpack.c.b16 %v7519, %v7517
    %v7546 = vpack.c.b16 %v7522, %v7520
    %v7547 = vpack.c.b16 %v7523, %v7521
    %v7573 = vsel %vm6717, %v7427, 0
    %7575 = vmatprep.subr.bf16.mxu0 %v7525
    %7576 = vmatpush1.bf16.msra.mxu0 %v7524
    %7577 = vmatprep.subr.bf16.mxu0 %v7527
    %7578 = vmatpush1.bf16.msra.mxu0 %v7526
    %7579 = vmatprep.subr.bf16.mxu0 %v7529
    %7580 = vmatpush1.bf16.msra.mxu0 %v7528
    %7581 = vmatprep.subr.bf16.mxu0 %v7531
    %7582 = vmatpush1.bf16.msra.mxu0 %v7530
    %7583 = vmatprep.subr.bf16.mxu0 %v7533
    %7584 = vmatpush1.bf16.msra.mxu0 %v7532
    %7585 = vmatprep.subr.bf16.mxu0 %v7535
    %7586 = vmatpush1.bf16.msra.mxu0 %v7534
    %7587 = vmatprep.subr.bf16.mxu0 %v7537
    %7588 = vmatpush1.bf16.msra.mxu0 %v7536
    %7589 = vmatprep.subr.bf16.mxu0 %v7539
    %7590 = vmatpush1.bf16.msra.mxu0 %v7538
    %7591 = vmatprep.subr.bf16.mxu0 %v7541
    %7592 = vmatpush1.bf16.msra.mxu0 %v7540
    %7593 = vmatprep.subr.bf16.mxu0 %v7543
    %7594 = vmatpush1.bf16.msra.mxu0 %v7542
    %7595 = vmatprep.subr.bf16.mxu0 %v7545
    %7596 = vmatpush1.bf16.msra.mxu0 %v7544
    %7597 = vmatprep.subr.bf16.mxu0 %v7547
    %7598 = vmatpush1.bf16.msra.mxu0 %v7546
    %7599 = vmatprep.subr.bf16.mxu0 0
    %7600 = vmatpush1.bf16.msra.mxu0 0
    %7601 = vmatprep.subr.bf16.mxu0 0
    %7602 = vmatpush1.bf16.msra.mxu0 0
    %7603 = vmatprep.subr.bf16.mxu0 0
    %7604 = vmatpush1.bf16.msra.mxu0 0
    %7605 = vmatprep.subr.bf16.mxu0 0
    %7606 = vmatpush1.bf16.msra.mxu0 0
    %7607 = vmatprep.mubr.bf16.mxu0 %v7573
    %7608 = vmatmul.mubr.bf16.gmra.mrb[0].mxu0 %v7426
    %v7609 = vpop.f32.mrb[0].mxu0
    %v7610 = vadd.f32 0.0, %v7609
    %v7611 = vpop.f32.mrb[0].mxu0
    %v7612 = vadd.f32 0.0, %v7611
    %v7613 = vpop.f32.mrb[0].mxu0
    %v7614 = vpop.f32.mrb[0].mxu0
    %7615 = vdwg.mxu0
    %v7616 = vadd.f32 %v7270, %v7610
    %v7617 = vadd.f32 %v7271, %v7612
    %s7618 = scalar_lea.vmem %s12, 8
    %v7619 = vld [vmem:[%s7618] sm:$0x3]
    %v7621 = vsel %vm6232, %v7619, 0
    %7623 = vmatprep.subr.mxu0 %v6224
    %7624 = vmatpush1.msra.mxu0 %v6223
    %7625 = vmatprep.subr.mxu0 %v6226
    %7626 = vmatpush1.msra.mxu0 %v6225
    %7627 = vmatprep.subr.mxu0 %v6228
    %7628 = vmatpush1.msra.mxu0 %v6227
    %7629 = vmatprep.subr.mxu0 %v6240
    %7630 = vmatpush1.msra.mxu0 %v6237
    %7631 = vmatprep.subr.mxu0 0.0
    %7632 = vmatpush1.msra.mxu0 0.0
    %7633 = vmatprep.subr.mxu0 0.0
    %7634 = vmatpush1.msra.mxu0 0.0
    %7635 = vmatprep.subr.mxu0 0.0
    %7636 = vmatpush1.msra.mxu0 0.0
    %7637 = vmatprep.subr.mxu0 0.0
    %7638 = vmatpush1.msra.mxu0 0.0
    %7639 = vmatprep.subr.mxu0 0.0
    %7640 = vmatpush1.msra.mxu0 0.0
    %7641 = vmatprep.subr.mxu0 0.0
    %7642 = vmatpush1.msra.mxu0 0.0
    %7643 = vmatprep.subr.mxu0 0.0
    %7644 = vmatpush1.msra.mxu0 0.0
    %7645 = vmatprep.subr.mxu0 0.0
    %7646 = vmatpush1.msra.mxu0 0.0
    %7647 = vmatprep.subr.mxu0 0.0
    %7648 = vmatpush1.msra.mxu0 0.0
    %7649 = vmatprep.subr.mxu0 0.0
    %7650 = vmatpush1.msra.mxu0 0.0
    %7651 = vmatprep.subr.mxu0 0.0
    %7652 = vmatpush1.msra.mxu0 0.0
    %7653 = vmatprep.subr.mxu0 0.0
    %7654 = vmatpush1.msra.mxu0 0.0
    %7655 = vmatprep.subr.mxu0 0.0
    %7656 = vmatpush1.msra.mxu0 0.0
    %7657 = vmatprep.subr.mxu0 0.0
    %7658 = vmatpush1.msra.mxu0 0.0
    %7659 = vmatprep.subr.mxu0 0.0
    %7660 = vmatpush1.msra.mxu0 0.0
    %7661 = vmatprep.subr.mxu0 0.0
    %7662 = vmatpush1.msra.mxu0 0.0
    %7663 = vmatprep.subr.mxu0 0.0
    %7664 = vmatpush1.msra.mxu0 0.0
    %7665 = vmatprep.subr.mxu0 0.0
    %7666 = vmatpush1.msra.mxu0 0.0
    %7667 = vmatprep.subr.mxu0 0.0
    %7668 = vmatpush1.msra.mxu0 0.0
    %7669 = vmatprep.subr.mxu0 0.0
    %7670 = vmatpush1.msra.mxu0 0.0
    %7671 = vmatprep.subr.mxu0 0.0
    %7672 = vmatpush1.msra.mxu0 0.0
    %7673 = vmatprep.subr.mxu0 0.0
    %7674 = vmatpush1.msra.mxu0 0.0
    %7675 = vmatprep.subr.mxu0 0.0
    %7676 = vmatpush1.msra.mxu0 0.0
    %7677 = vmatprep.subr.mxu0 0.0
    %7678 = vmatpush1.msra.mxu0 0.0
    %7679 = vmatprep.subr.mxu0 0.0
    %7680 = vmatpush1.msra.mxu0 0.0
    %7681 = vmatprep.subr.mxu0 0.0
    %7682 = vmatpush1.msra.mxu0 0.0
    %7683 = vmatprep.subr.mxu0 0.0
    %7684 = vmatpush1.msra.mxu0 0.0
    %7685 = vmatprep.subr.mxu0 0.0
    %7686 = vmatpush1.msra.mxu0 0.0
    %7687 = vmatprep.mubr.f32.mxu0 0.0
    %7688 = vmatmul.mubr.f32.gmra.mrb[0].mxu0 %v7621
    %v7689 = vpop.f32.mrb[0].mxu0
    %v7690 = vadd.f32 0.0, %v7689
    %v7691 = vpop.f32.mrb[0].mxu0
    %v7692 = vadd.f32 0.0, %v7691
    %7693 = vdwg.mxu0
    %s7694 = scalar_lea.vmem %s12, 20
    %v7695 = vld [vmem:[%s7694] sm:$0x3]
    %v7697 = vsel %vm6232, %v7695, 0
    %7699 = vmatprep.subr.mxu0 %v6224
    %7700 = vmatpush1.msra.mxu0 %v6223
    %7701 = vmatprep.subr.mxu0 %v6226
    %7702 = vmatpush1.msra.mxu0 %v6225
    %7703 = vmatprep.subr.mxu0 %v6228
    %7704 = vmatpush1.msra.mxu0 %v6227
    %7705 = vmatprep.subr.mxu0 %v6240
    %7706 = vmatpush1.msra.mxu0 %v6237
    %7707 = vmatprep.subr.mxu0 0.0
    %7708 = vmatpush1.msra.mxu0 0.0
    %7709 = vmatprep.subr.mxu0 0.0
    %7710 = vmatpush1.msra.mxu0 0.0
    %7711 = vmatprep.subr.mxu0 0.0
    %7712 = vmatpush1.msra.mxu0 0.0
    %7713 = vmatprep.subr.mxu0 0.0
    %7714 = vmatpush1.msra.mxu0 0.0
    %7715 = vmatprep.subr.mxu0 0.0
    %7716 = vmatpush1.msra.mxu0 0.0
    %7717 = vmatprep.subr.mxu0 0.0
    %7718 = vmatpush1.msra.mxu0 0.0
    %7719 = vmatprep.subr.mxu0 0.0
    %7720 = vmatpush1.msra.mxu0 0.0
    %7721 = vmatprep.subr.mxu0 0.0
    %7722 = vmatpush1.msra.mxu0 0.0
    %7723 = vmatprep.subr.mxu0 0.0
    %7724 = vmatpush1.msra.mxu0 0.0
    %7725 = vmatprep.subr.mxu0 0.0
    %7726 = vmatpush1.msra.mxu0 0.0
    %7727 = vmatprep.subr.mxu0 0.0
    %7728 = vmatpush1.msra.mxu0 0.0
    %7729 = vmatprep.subr.mxu0 0.0
    %7730 = vmatpush1.msra.mxu0 0.0
    %7731 = vmatprep.subr.mxu0 0.0
    %7732 = vmatpush1.msra.mxu0 0.0
    %7733 = vmatprep.subr.mxu0 0.0
    %7734 = vmatpush1.msra.mxu0 0.0
    %7735 = vmatprep.subr.mxu0 0.0
    %7736 = vmatpush1.msra.mxu0 0.0
    %7737 = vmatprep.subr.mxu0 0.0
    %7738 = vmatpush1.msra.mxu0 0.0
    %7739 = vmatprep.subr.mxu0 0.0
    %7740 = vmatpush1.msra.mxu0 0.0
    %7741 = vmatprep.subr.mxu0 0.0
    %7742 = vmatpush1.msra.mxu0 0.0
    %7743 = vmatprep.subr.mxu0 0.0
    %7744 = vmatpush1.msra.mxu0 0.0
    %7745 = vmatprep.subr.mxu0 0.0
    %7746 = vmatpush1.msra.mxu0 0.0
    %7747 = vmatprep.subr.mxu0 0.0
    %7748 = vmatpush1.msra.mxu0 0.0
    %7749 = vmatprep.subr.mxu0 0.0
    %7750 = vmatpush1.msra.mxu0 0.0
    %7751 = vmatprep.subr.mxu0 0.0
    %7752 = vmatpush1.msra.mxu0 0.0
    %7753 = vmatprep.subr.mxu0 0.0
    %7754 = vmatpush1.msra.mxu0 0.0
    %7755 = vmatprep.subr.mxu0 0.0
    %7756 = vmatpush1.msra.mxu0 0.0
    %7757 = vmatprep.subr.mxu0 0.0
    %7758 = vmatpush1.msra.mxu0 0.0
    %7759 = vmatprep.subr.mxu0 0.0
    %7760 = vmatpush1.msra.mxu0 0.0
    %7761 = vmatprep.subr.mxu0 0.0
    %7762 = vmatpush1.msra.mxu0 0.0
    %7763 = vmatprep.mubr.f32.mxu0 0.0
    %7764 = vmatmul.mubr.f32.gmra.mrb[0].mxu0 %v7697
    %v7765 = vpop.f32.mrb[0].mxu0
    %v7766 = vadd.f32 0.0, %v7765
    %v7767 = vpop.f32.mrb[0].mxu0
    %v7768 = vadd.f32 0.0, %v7767
    %7769 = vdwg.mxu0
    %v7770 = vmax.f32 %v7690, %v7766
    %v7771 = vmax.f32 %v7692, %v7768
    %v7772 = vpack.c.bf16 %v7770, %v7770
    %v7773 = vpack.c.bf16 %v7771, %v7771
    %v7774 = vld [vmem:[%s13 + $0x300] sm:$0xff]
    %v7775 = vld [vmem:[%s13 + $0x308] sm:$0xff]
    %v7776 = vld [vmem:[%s13 + $0x310] sm:$0xff]
    %v7777 = vld [vmem:[%s13 + $0x318] sm:$0xff]
    %v7778 = vld [vmem:[%s13 + $0x320] sm:$0xff]
    %v7779 = vld [vmem:[%s13 + $0x328] sm:$0xff]
    %v7780 = vld [vmem:[%s13 + $0x330] sm:$0xff]
    %v7781 = vld [vmem:[%s13 + $0x338] sm:$0xff]
    %v7782 = vld [vmem:[%s13 + $0x340] sm:$0xff]
    %v7783 = vld [vmem:[%s13 + $0x348] sm:$0xff]
    %v7784 = vld [vmem:[%s13 + $0x350] sm:$0xff]
    %v7785 = vld [vmem:[%s13 + $0x358] sm:$0xff]
    %v7786 = vld [vmem:[%s13 + $0x360] sm:$0xff]
    %v7787 = vld [vmem:[%s13 + $0x368] sm:$0xff]
    %v7788 = vld [vmem:[%s13 + $0x370] sm:$0xff]
    %v7789 = vld [vmem:[%s13 + $0x378] sm:$0xff]
    %v7790 = vld [vmem:[%s13 + $0x380] sm:$0xff]
    %v7791 = vld [vmem:[%s13 + $0x388] sm:$0xff]
    %v7792 = vld [vmem:[%s13 + $0x390] sm:$0xff]
    %v7793 = vld [vmem:[%s13 + $0x398] sm:$0xff]
    %v7794 = vld [vmem:[%s13 + $0x3a0] sm:$0xff]
    %v7795 = vld [vmem:[%s13 + $0x3a8] sm:$0xff]
    %v7796 = vld [vmem:[%s13 + $0x3b0] sm:$0xff]
    %v7797 = vld [vmem:[%s13 + $0x3b8] sm:$0xff]
    %v7822 = vunpack.c.l.b16 %v7774
    %v7823 = vunpack.c.h.b16 %v7774
    %v7824 = vunpack.c.l.b16 %v7775
    %v7825 = vunpack.c.h.b16 %v7775
    %v7826 = vunpack.c.l.b16 %v7776
    %v7827 = vunpack.c.h.b16 %v7776
    %v7828 = vunpack.c.l.b16 %v7777
    %v7829 = vunpack.c.h.b16 %v7777
    %v7830 = vunpack.c.l.b16 %v7778
    %v7831 = vunpack.c.h.b16 %v7778
    %v7832 = vunpack.c.l.b16 %v7779
    %v7833 = vunpack.c.h.b16 %v7779
    %v7834 = vunpack.c.l.b16 %v7780
    %v7835 = vunpack.c.h.b16 %v7780
    %v7836 = vunpack.c.l.b16 %v7781
    %v7837 = vunpack.c.h.b16 %v7781
    %v7838 = vunpack.c.l.b16 %v7782
    %v7839 = vunpack.c.h.b16 %v7782
    %v7840 = vunpack.c.l.b16 %v7783
    %v7841 = vunpack.c.h.b16 %v7783
    %v7842 = vunpack.c.l.b16 %v7784
    %v7843 = vunpack.c.h.b16 %v7784
    %v7844 = vunpack.c.l.b16 %v7785
    %v7845 = vunpack.c.h.b16 %v7785
    %v7846 = vunpack.c.l.b16 %v7786
    %v7847 = vunpack.c.h.b16 %v7786
    %v7848 = vunpack.c.l.b16 %v7787
    %v7849 = vunpack.c.h.b16 %v7787
    %v7850 = vunpack.c.l.b16 %v7788
    %v7851 = vunpack.c.h.b16 %v7788
    %v7852 = vunpack.c.l.b16 %v7789
    %v7853 = vunpack.c.h.b16 %v7789
    %v7854 = vunpack.c.l.b16 %v7790
    %v7855 = vunpack.c.h.b16 %v7790
    %v7856 = vunpack.c.l.b16 %v7791
    %v7857 = vunpack.c.h.b16 %v7791
    %v7858 = vunpack.c.l.b16 %v7792
    %v7859 = vunpack.c.h.b16 %v7792
    %v7860 = vunpack.c.l.b16 %v7793
    %v7861 = vunpack.c.h.b16 %v7793
    %v7862 = vunpack.c.l.b16 %v7794
    %v7863 = vunpack.c.h.b16 %v7794
    %v7864 = vunpack.c.l.b16 %v7795
    %v7865 = vunpack.c.h.b16 %v7795
    %v7866 = vunpack.c.l.b16 %v7796
    %v7867 = vunpack.c.h.b16 %v7796
    %v7868 = vunpack.c.l.b16 %v7797
    %v7869 = vunpack.c.h.b16 %v7797
    %v7870 = vpack.c.b16 %v7824, %v7822
    %v7871 = vpack.c.b16 %v7825, %v7823
    %v7872 = vpack.c.b16 %v7828, %v7826
    %v7873 = vpack.c.b16 %v7829, %v7827
    %v7874 = vpack.c.b16 %v7832, %v7830
    %v7875 = vpack.c.b16 %v7833, %v7831
    %v7876 = vpack.c.b16 %v7836, %v7834
    %v7877 = vpack.c.b16 %v7837, %v7835
    %v7878 = vpack.c.b16 %v7840, %v7838
    %v7879 = vpack.c.b16 %v7841, %v7839
    %v7880 = vpack.c.b16 %v7844, %v7842
    %v7881 = vpack.c.b16 %v7845, %v7843
    %v7882 = vpack.c.b16 %v7848, %v7846
    %v7883 = vpack.c.b16 %v7849, %v7847
    %v7884 = vpack.c.b16 %v7852, %v7850
    %v7885 = vpack.c.b16 %v7853, %v7851
    %v7886 = vpack.c.b16 %v7856, %v7854
    %v7887 = vpack.c.b16 %v7857, %v7855
    %v7888 = vpack.c.b16 %v7860, %v7858
    %v7889 = vpack.c.b16 %v7861, %v7859
    %v7890 = vpack.c.b16 %v7864, %v7862
    %v7891 = vpack.c.b16 %v7865, %v7863
    %v7892 = vpack.c.b16 %v7868, %v7866
    %v7893 = vpack.c.b16 %v7869, %v7867
    %v7919 = vsel %vm6717, %v7773, 0
    %7921 = vmatprep.subr.bf16.mxu0 %v7871
    %7922 = vmatpush1.bf16.msra.mxu0 %v7870
    %7923 = vmatprep.subr.bf16.mxu0 %v7873
    %7924 = vmatpush1.bf16.msra.mxu0 %v7872
    %7925 = vmatprep.subr.bf16.mxu0 %v7875
    %7926 = vmatpush1.bf16.msra.mxu0 %v7874
    %7927 = vmatprep.subr.bf16.mxu0 %v7877
    %7928 = vmatpush1.bf16.msra.mxu0 %v7876
    %7929 = vmatprep.subr.bf16.mxu0 %v7879
    %7930 = vmatpush1.bf16.msra.mxu0 %v7878
    %7931 = vmatprep.subr.bf16.mxu0 %v7881
    %7932 = vmatpush1.bf16.msra.mxu0 %v7880
    %7933 = vmatprep.subr.bf16.mxu0 %v7883
    %7934 = vmatpush1.bf16.msra.mxu0 %v7882
    %7935 = vmatprep.subr.bf16.mxu0 %v7885
    %7936 = vmatpush1.bf16.msra.mxu0 %v7884
    %7937 = vmatprep.subr.bf16.mxu0 %v7887
    %7938 = vmatpush1.bf16.msra.mxu0 %v7886
    %7939 = vmatprep.subr.bf16.mxu0 %v7889
    %7940 = vmatpush1.bf16.msra.mxu0 %v7888
    %7941 = vmatprep.subr.bf16.mxu0 %v7891
    %7942 = vmatpush1.bf16.msra.mxu0 %v7890
    %7943 = vmatprep.subr.bf16.mxu0 %v7893
    %7944 = vmatpush1.bf16.msra.mxu0 %v7892
    %7945 = vmatprep.subr.bf16.mxu0 0
    %7946 = vmatpush1.bf16.msra.mxu0 0
    %7947 = vmatprep.subr.bf16.mxu0 0
    %7948 = vmatpush1.bf16.msra.mxu0 0
    %7949 = vmatprep.subr.bf16.mxu0 0
    %7950 = vmatpush1.bf16.msra.mxu0 0
    %7951 = vmatprep.subr.bf16.mxu0 0
    %7952 = vmatpush1.bf16.msra.mxu0 0
    %7953 = vmatprep.mubr.bf16.mxu0 %v7919
    %7954 = vmatmul.mubr.bf16.gmra.mrb[0].mxu0 %v7772
    %v7955 = vpop.f32.mrb[0].mxu0
    %v7956 = vadd.f32 0.0, %v7955
    %v7957 = vpop.f32.mrb[0].mxu0
    %v7958 = vadd.f32 0.0, %v7957
    %v7959 = vpop.f32.mrb[0].mxu0
    %v7960 = vpop.f32.mrb[0].mxu0
    %7961 = vdwg.mxu0
    %v7962 = vadd.f32 %v7616, %v7956
    %v7963 = vadd.f32 %v7617, %v7958
    %s7964 = scalar_lea.vmem %s12, 10
    %v7965 = vld [vmem:[%s7964] sm:$0x3]
    %v7967 = vsel %vm6232, %v7965, 0
    %7969 = vmatprep.subr.mxu0 %v6224
    %7970 = vmatpush1.msra.mxu0 %v6223
    %7971 = vmatprep.subr.mxu0 %v6226
    %7972 = vmatpush1.msra.mxu0 %v6225
    %7973 = vmatprep.subr.mxu0 %v6228
    %7974 = vmatpush1.msra.mxu0 %v6227
    %7975 = vmatprep.subr.mxu0 %v6240
    %7976 = vmatpush1.msra.mxu0 %v6237
    %7977 = vmatprep.subr.mxu0 0.0
    %7978 = vmatpush1.msra.mxu0 0.0
    %7979 = vmatprep.subr.mxu0 0.0
    %7980 = vmatpush1.msra.mxu0 0.0
    %7981 = vmatprep.subr.mxu0 0.0
    %7982 = vmatpush1.msra.mxu0 0.0
    %7983 = vmatprep.subr.mxu0 0.0
    %7984 = vmatpush1.msra.mxu0 0.0
    %7985 = vmatprep.subr.mxu0 0.0
    %7986 = vmatpush1.msra.mxu0 0.0
    %7987 = vmatprep.subr.mxu0 0.0
    %7988 = vmatpush1.msra.mxu0 0.0
    %7989 = vmatprep.subr.mxu0 0.0
    %7990 = vmatpush1.msra.mxu0 0.0
    %7991 = vmatprep.subr.mxu0 0.0
    %7992 = vmatpush1.msra.mxu0 0.0
    %7993 = vmatprep.subr.mxu0 0.0
    %7994 = vmatpush1.msra.mxu0 0.0
    %7995 = vmatprep.subr.mxu0 0.0
    %7996 = vmatpush1.msra.mxu0 0.0
    %7997 = vmatprep.subr.mxu0 0.0
    %7998 = vmatpush1.msra.mxu0 0.0
    %7999 = vmatprep.subr.mxu0 0.0
    %8000 = vmatpush1.msra.mxu0 0.0
    %8001 = vmatprep.subr.mxu0 0.0
    %8002 = vmatpush1.msra.mxu0 0.0
    %8003 = vmatprep.subr.mxu0 0.0
    %8004 = vmatpush1.msra.mxu0 0.0
    %8005 = vmatprep.subr.mxu0 0.0
    %8006 = vmatpush1.msra.mxu0 0.0
    %8007 = vmatprep.subr.mxu0 0.0
    %8008 = vmatpush1.msra.mxu0 0.0
    %8009 = vmatprep.subr.mxu0 0.0
    %8010 = vmatpush1.msra.mxu0 0.0
    %8011 = vmatprep.subr.mxu0 0.0
    %8012 = vmatpush1.msra.mxu0 0.0
    %8013 = vmatprep.subr.mxu0 0.0
    %8014 = vmatpush1.msra.mxu0 0.0
    %8015 = vmatprep.subr.mxu0 0.0
    %8016 = vmatpush1.msra.mxu0 0.0
    %8017 = vmatprep.subr.mxu0 0.0
    %8018 = vmatpush1.msra.mxu0 0.0
    %8019 = vmatprep.subr.mxu0 0.0
    %8020 = vmatpush1.msra.mxu0 0.0
    %8021 = vmatprep.subr.mxu0 0.0
    %8022 = vmatpush1.msra.mxu0 0.0
    %8023 = vmatprep.subr.mxu0 0.0
    %8024 = vmatpush1.msra.mxu0 0.0
    %8025 = vmatprep.subr.mxu0 0.0
    %8026 = vmatpush1.msra.mxu0 0.0
    %8027 = vmatprep.subr.mxu0 0.0
    %8028 = vmatpush1.msra.mxu0 0.0
    %8029 = vmatprep.subr.mxu0 0.0
    %8030 = vmatpush1.msra.mxu0 0.0
    %8031 = vmatprep.subr.mxu0 0.0
    %8032 = vmatpush1.msra.mxu0 0.0
    %8033 = vmatprep.mubr.f32.mxu0 0.0
    %8034 = vmatmul.mubr.f32.gmra.mrb[0].mxu0 %v7967
    %v8035 = vpop.f32.mrb[0].mxu0
    %v8036 = vadd.f32 0.0, %v8035
    %v8037 = vpop.f32.mrb[0].mxu0
    %v8038 = vadd.f32 0.0, %v8037
    %8039 = vdwg.mxu0
    %s8040 = scalar_lea.vmem %s12, 22
    %v8041 = vld [vmem:[%s8040] sm:$0x3]
    %v8043 = vsel %vm6232, %v8041, 0
    %8045 = vmatprep.subr.mxu0 %v6224
    %8046 = vmatpush1.msra.mxu0 %v6223
    %8047 = vmatprep.subr.mxu0 %v6226
    %8048 = vmatpush1.msra.mxu0 %v6225
    %8049 = vmatprep.subr.mxu0 %v6228
    %8050 = vmatpush1.msra.mxu0 %v6227
    %8051 = vmatprep.subr.mxu0 %v6240
    %8052 = vmatpush1.msra.mxu0 %v6237
    %8053 = vmatprep.subr.mxu0 0.0
    %8054 = vmatpush1.msra.mxu0 0.0
    %8055 = vmatprep.subr.mxu0 0.0
    %8056 = vmatpush1.msra.mxu0 0.0
    %8057 = vmatprep.subr.mxu0 0.0
    %8058 = vmatpush1.msra.mxu0 0.0
    %8059 = vmatprep.subr.mxu0 0.0
    %8060 = vmatpush1.msra.mxu0 0.0
    %8061 = vmatprep.subr.mxu0 0.0
    %8062 = vmatpush1.msra.mxu0 0.0
    %8063 = vmatprep.subr.mxu0 0.0
    %8064 = vmatpush1.msra.mxu0 0.0
    %8065 = vmatprep.subr.mxu0 0.0
    %8066 = vmatpush1.msra.mxu0 0.0
    %8067 = vmatprep.subr.mxu0 0.0
    %8068 = vmatpush1.msra.mxu0 0.0
    %8069 = vmatprep.subr.mxu0 0.0
    %8070 = vmatpush1.msra.mxu0 0.0
    %8071 = vmatprep.subr.mxu0 0.0
    %8072 = vmatpush1.msra.mxu0 0.0
    %8073 = vmatprep.subr.mxu0 0.0
    %8074 = vmatpush1.msra.mxu0 0.0
    %8075 = vmatprep.subr.mxu0 0.0
    %8076 = vmatpush1.msra.mxu0 0.0
    %8077 = vmatprep.subr.mxu0 0.0
    %8078 = vmatpush1.msra.mxu0 0.0
    %8079 = vmatprep.subr.mxu0 0.0
    %8080 = vmatpush1.msra.mxu0 0.0
    %8081 = vmatprep.subr.mxu0 0.0
    %8082 = vmatpush1.msra.mxu0 0.0
    %8083 = vmatprep.subr.mxu0 0.0
    %8084 = vmatpush1.msra.mxu0 0.0
    %8085 = vmatprep.subr.mxu0 0.0
    %8086 = vmatpush1.msra.mxu0 0.0
    %8087 = vmatprep.subr.mxu0 0.0
    %8088 = vmatpush1.msra.mxu0 0.0
    %8089 = vmatprep.subr.mxu0 0.0
    %8090 = vmatpush1.msra.mxu0 0.0
    %8091 = vmatprep.subr.mxu0 0.0
    %8092 = vmatpush1.msra.mxu0 0.0
    %8093 = vmatprep.subr.mxu0 0.0
    %8094 = vmatpush1.msra.mxu0 0.0
    %8095 = vmatprep.subr.mxu0 0.0
    %8096 = vmatpush1.msra.mxu0 0.0
    %8097 = vmatprep.subr.mxu0 0.0
    %8098 = vmatpush1.msra.mxu0 0.0
    %8099 = vmatprep.subr.mxu0 0.0
    %8100 = vmatpush1.msra.mxu0 0.0
    %8101 = vmatprep.subr.mxu0 0.0
    %8102 = vmatpush1.msra.mxu0 0.0
    %8103 = vmatprep.subr.mxu0 0.0
    %8104 = vmatpush1.msra.mxu0 0.0
    %8105 = vmatprep.subr.mxu0 0.0
    %8106 = vmatpush1.msra.mxu0 0.0
    %8107 = vmatprep.subr.mxu0 0.0
    %8108 = vmatpush1.msra.mxu0 0.0
    %8109 = vmatprep.mubr.f32.mxu0 0.0
    %8110 = vmatmul.mubr.f32.gmra.mrb[0].mxu0 %v8043
    %v8111 = vpop.f32.mrb[0].mxu0
    %v8112 = vadd.f32 0.0, %v8111
    %v8113 = vpop.f32.mrb[0].mxu0
    %v8114 = vadd.f32 0.0, %v8113
    %8115 = vdwg.mxu0
    %v8116 = vmax.f32 %v8036, %v8112
    %v8117 = vmax.f32 %v8038, %v8114
    %v8118 = vpack.c.bf16 %v8116, %v8116
    %v8119 = vpack.c.bf16 %v8117, %v8117
    %v8120 = vld [vmem:[%s13 + $0x3c0] sm:$0xff]
    %v8121 = vld [vmem:[%s13 + $0x3c8] sm:$0xff]
    %v8122 = vld [vmem:[%s13 + $0x3d0] sm:$0xff]
    %v8123 = vld [vmem:[%s13 + $0x3d8] sm:$0xff]
    %v8124 = vld [vmem:[%s13 + $0x3e0] sm:$0xff]
    %v8125 = vld [vmem:[%s13 + $0x3e8] sm:$0xff]
    %v8126 = vld [vmem:[%s13 + $0x3f0] sm:$0xff]
    %v8127 = vld [vmem:[%s13 + $0x3f8] sm:$0xff]
    %v8128 = vld [vmem:[%s13 + $0x400] sm:$0xff]
    %v8129 = vld [vmem:[%s13 + $0x408] sm:$0xff]
    %v8130 = vld [vmem:[%s13 + $0x410] sm:$0xff]
    %v8131 = vld [vmem:[%s13 + $0x418] sm:$0xff]
    %v8132 = vld [vmem:[%s13 + $0x420] sm:$0xff]
    %v8133 = vld [vmem:[%s13 + $0x428] sm:$0xff]
    %v8134 = vld [vmem:[%s13 + $0x430] sm:$0xff]
    %v8135 = vld [vmem:[%s13 + $0x438] sm:$0xff]
    %v8136 = vld [vmem:[%s13 + $0x440] sm:$0xff]
    %v8137 = vld [vmem:[%s13 + $0x448] sm:$0xff]
    %v8138 = vld [vmem:[%s13 + $0x450] sm:$0xff]
    %v8139 = vld [vmem:[%s13 + $0x458] sm:$0xff]
    %v8140 = vld [vmem:[%s13 + $0x460] sm:$0xff]
    %v8141 = vld [vmem:[%s13 + $0x468] sm:$0xff]
    %v8142 = vld [vmem:[%s13 + $0x470] sm:$0xff]
    %v8143 = vld [vmem:[%s13 + $0x478] sm:$0xff]
    %v8168 = vunpack.c.l.b16 %v8120
    %v8169 = vunpack.c.h.b16 %v8120
    %v8170 = vunpack.c.l.b16 %v8121
    %v8171 = vunpack.c.h.b16 %v8121
    %v8172 = vunpack.c.l.b16 %v8122
    %v8173 = vunpack.c.h.b16 %v8122
    %v8174 = vunpack.c.l.b16 %v8123
    %v8175 = vunpack.c.h.b16 %v8123
    %v8176 = vunpack.c.l.b16 %v8124
    %v8177 = vunpack.c.h.b16 %v8124
    %v8178 = vunpack.c.l.b16 %v8125
    %v8179 = vunpack.c.h.b16 %v8125
    %v8180 = vunpack.c.l.b16 %v8126
    %v8181 = vunpack.c.h.b16 %v8126
    %v8182 = vunpack.c.l.b16 %v8127
    %v8183 = vunpack.c.h.b16 %v8127
    %v8184 = vunpack.c.l.b16 %v8128
    %v8185 = vunpack.c.h.b16 %v8128
    %v8186 = vunpack.c.l.b16 %v8129
    %v8187 = vunpack.c.h.b16 %v8129
    %v8188 = vunpack.c.l.b16 %v8130
    %v8189 = vunpack.c.h.b16 %v8130
    %v8190 = vunpack.c.l.b16 %v8131
    %v8191 = vunpack.c.h.b16 %v8131
    %v8192 = vunpack.c.l.b16 %v8132
    %v8193 = vunpack.c.h.b16 %v8132
    %v8194 = vunpack.c.l.b16 %v8133
    %v8195 = vunpack.c.h.b16 %v8133
    %v8196 = vunpack.c.l.b16 %v8134
    %v8197 = vunpack.c.h.b16 %v8134
    %v8198 = vunpack.c.l.b16 %v8135
    %v8199 = vunpack.c.h.b16 %v8135
    %v8200 = vunpack.c.l.b16 %v8136
    %v8201 = vunpack.c.h.b16 %v8136
    %v8202 = vunpack.c.l.b16 %v8137
    %v8203 = vunpack.c.h.b16 %v8137
    %v8204 = vunpack.c.l.b16 %v8138
    %v8205 = vunpack.c.h.b16 %v8138
    %v8206 = vunpack.c.l.b16 %v8139
    %v8207 = vunpack.c.h.b16 %v8139
    %v8208 = vunpack.c.l.b16 %v8140
    %v8209 = vunpack.c.h.b16 %v8140
    %v8210 = vunpack.c.l.b16 %v8141
    %v8211 = vunpack.c.h.b16 %v8141
    %v8212 = vunpack.c.l.b16 %v8142
    %v8213 = vunpack.c.h.b16 %v8142
    %v8214 = vunpack.c.l.b16 %v8143
    %v8215 = vunpack.c.h.b16 %v8143
    %v8216 = vpack.c.b16 %v8170, %v8168
    %v8217 = vpack.c.b16 %v8171, %v8169
    %v8218 = vpack.c.b16 %v8174, %v8172
    %v8219 = vpack.c.b16 %v8175, %v8173
    %v8220 = vpack.c.b16 %v8178, %v8176
    %v8221 = vpack.c.b16 %v8179, %v8177
    %v8222 = vpack.c.b16 %v8182, %v8180
    %v8223 = vpack.c.b16 %v8183, %v8181
    %v8224 = vpack.c.b16 %v8186, %v8184
    %v8225 = vpack.c.b16 %v8187, %v8185
    %v8226 = vpack.c.b16 %v8190, %v8188
    %v8227 = vpack.c.b16 %v8191, %v8189
    %v8228 = vpack.c.b16 %v8194, %v8192
    %v8229 = vpack.c.b16 %v8195, %v8193
    %v8230 = vpack.c.b16 %v8198, %v8196
    %v8231 = vpack.c.b16 %v8199, %v8197
    %v8232 = vpack.c.b16 %v8202, %v8200
    %v8233 = vpack.c.b16 %v8203, %v8201
    %v8234 = vpack.c.b16 %v8206, %v8204
    %v8235 = vpack.c.b16 %v8207, %v8205
    %v8236 = vpack.c.b16 %v8210, %v8208
    %v8237 = vpack.c.b16 %v8211, %v8209
    %v8238 = vpack.c.b16 %v8214, %v8212
    %v8239 = vpack.c.b16 %v8215, %v8213
    %v8265 = vsel %vm6717, %v8119, 0
    %8267 = vmatprep.subr.bf16.mxu0 %v8217
    %8268 = vmatpush1.bf16.msra.mxu0 %v8216
    %8269 = vmatprep.subr.bf16.mxu0 %v8219
    %8270 = vmatpush1.bf16.msra.mxu0 %v8218
    %8271 = vmatprep.subr.bf16.mxu0 %v8221
    %8272 = vmatpush1.bf16.msra.mxu0 %v8220
    %8273 = vmatprep.subr.bf16.mxu0 %v8223
    %8274 = vmatpush1.bf16.msra.mxu0 %v8222
    %8275 = vmatprep.subr.bf16.mxu0 %v8225
    %8276 = vmatpush1.bf16.msra.mxu0 %v8224
    %8277 = vmatprep.subr.bf16.mxu0 %v8227
    %8278 = vmatpush1.bf16.msra.mxu0 %v8226
    %8279 = vmatprep.subr.bf16.mxu0 %v8229
    %8280 = vmatpush1.bf16.msra.mxu0 %v8228
    %8281 = vmatprep.subr.bf16.mxu0 %v8231
    %8282 = vmatpush1.bf16.msra.mxu0 %v8230
    %8283 = vmatprep.subr.bf16.mxu0 %v8233
    %8284 = vmatpush1.bf16.msra.mxu0 %v8232
    %8285 = vmatprep.subr.bf16.mxu0 %v8235
    %8286 = vmatpush1.bf16.msra.mxu0 %v8234
    %8287 = vmatprep.subr.bf16.mxu0 %v8237
    %8288 = vmatpush1.bf16.msra.mxu0 %v8236
    %8289 = vmatprep.subr.bf16.mxu0 %v8239
    %8290 = vmatpush1.bf16.msra.mxu0 %v8238
    %8291 = vmatprep.subr.bf16.mxu0 0
    %8292 = vmatpush1.bf16.msra.mxu0 0
    %8293 = vmatprep.subr.bf16.mxu0 0
    %8294 = vmatpush1.bf16.msra.mxu0 0
    %8295 = vmatprep.subr.bf16.mxu0 0
    %8296 = vmatpush1.bf16.msra.mxu0 0
    %8297 = vmatprep.subr.bf16.mxu0 0
    %8298 = vmatpush1.bf16.msra.mxu0 0
    %8299 = vmatprep.mubr.bf16.mxu0 %v8265
    %8300 = vmatmul.mubr.bf16.gmra.mrb[0].mxu0 %v8118
    %v8301 = vpop.f32.mrb[0].mxu0
    %v8302 = vadd.f32 0.0, %v8301
    %v8303 = vpop.f32.mrb[0].mxu0
    %v8304 = vadd.f32 0.0, %v8303
    %v8305 = vpop.f32.mrb[0].mxu0
    %v8306 = vpop.f32.mrb[0].mxu0
    %8307 = vdwg.mxu0
    %v8308 = vadd.f32 %v7962, %v8302
    %v8309 = vadd.f32 %v7963, %v8304
    %v8310 = vld [vmem:[%s14] sm:$0x3]
    %v8312 = vlaneseq
    %v8313 = vshrl.u32 %v8312, 7
    %v8314 = vsub.s32 0, %v8313
    %v8315 = vrot.slane %v8310, %v8314
    %v8316 = vlaneseq
    %v8317 = vshrl.u32 %v8316, 7
    %v8318 = vsub.s32 1, %v8317
    %v8319 = vrot.slane %v8310, %v8318
    %v8322 = vadd.f32 %v8308, %v8315
    %v8323 = vadd.f32 %v8309, %v8319
    %v8324 = vld [vmem:[%s15] sm:$0xff]
    %v8325 = vld [vmem:[%s15 + $0x8] sm:$0xff]
    %v8326 = vld [vmem:[%s15 + $0x10] sm:$0xff]
    %v8327 = vld [vmem:[%s15 + $0x18] sm:$0xff]
    %v8328 = vld [vmem:[%s15 + $0x20] sm:$0xff]
    %v8329 = vld [vmem:[%s15 + $0x28] sm:$0xff]
    %v8330 = vld [vmem:[%s15 + $0x30] sm:$0xff]
    %v8331 = vld [vmem:[%s15 + $0x38] sm:$0xff]
    %v8332 = vld [vmem:[%s15 + $0x40] sm:$0xff]
    %v8333 = vld [vmem:[%s15 + $0x48] sm:$0xff]
    %v8334 = vld [vmem:[%s15 + $0x50] sm:$0xff]
    %v8335 = vld [vmem:[%s15 + $0x58] sm:$0xff]
    %v8336 = vld [vmem:[%s15 + $0x60] sm:$0xff]
    %v8337 = vld [vmem:[%s15 + $0x68] sm:$0xff]
    %v8338 = vld [vmem:[%s15 + $0x70] sm:$0xff]
    %v8339 = vld [vmem:[%s15 + $0x78] sm:$0xff]
    %v8340 = vld [vmem:[%s15 + $0x80] sm:$0xff]
    %v8341 = vld [vmem:[%s15 + $0x88] sm:$0xff]
    %v8342 = vld [vmem:[%s15 + $0x90] sm:$0xff]
    %v8343 = vld [vmem:[%s15 + $0x98] sm:$0xff]
    %v8344 = vld [vmem:[%s15 + $0xa0] sm:$0xff]
    %v8345 = vld [vmem:[%s15 + $0xa8] sm:$0xff]
    %v8346 = vld [vmem:[%s15 + $0xb0] sm:$0xff]
    %v8347 = vld [vmem:[%s15 + $0xb8] sm:$0xff]
    %v8348 = vld [vmem:[%s15 + $0xc0] sm:$0xff]
    %v8349 = vld [vmem:[%s15 + $0xc8] sm:$0xff]
    %v8350 = vld [vmem:[%s15 + $0xd0] sm:$0xff]
    %v8351 = vld [vmem:[%s15 + $0xd8] sm:$0xff]
    %v8352 = vld [vmem:[%s15 + $0xe0] sm:$0xff]
    %v8353 = vld [vmem:[%s15 + $0xe8] sm:$0xff]
    %v8354 = vld [vmem:[%s15 + $0xf0] sm:$0xff]
    %v8355 = vld [vmem:[%s15 + $0xf8] sm:$0xff]
    %v8356 = vld [vmem:[%s16] sm:$0x1]
    %v8358 = vlaneseq
    %v8359 = vshrl.u32 %v8358, 7
    %v8360 = vsub.s32 0, %v8359
    %v8361 = vrot.slane %v8356, %v8360
    %8363 = vmatprep.subr.mxu0 0.0
    %8364 = vmatpush1.msra.mxu0 %v8324
    %8365 = vmatprep.subr.mxu0 0.0
    %8366 = vmatpush1.msra.mxu0 %v8325
    %8367 = vmatprep.subr.mxu0 0.0
    %8368 = vmatpush1.msra.mxu0 %v8326
    %8369 = vmatprep.subr.mxu0 0.0
    %8370 = vmatpush1.msra.mxu0 %v8327
    %8371 = vmatprep.subr.mxu0 0.0
    %8372 = vmatpush1.msra.mxu0 %v8328
    %8373 = vmatprep.subr.mxu0 0.0
    %8374 = vmatpush1.msra.mxu0 %v8329
    %8375 = vmatprep.subr.mxu0 0.0
    %8376 = vmatpush1.msra.mxu0 %v8330
    %8377 = vmatprep.subr.mxu0 0.0
    %8378 = vmatpush1.msra.mxu0 %v8331
    %8379 = vmatprep.subr.mxu0 0.0
    %8380 = vmatpush1.msra.mxu0 %v8332
    %8381 = vmatprep.subr.mxu0 0.0
    %8382 = vmatpush1.msra.mxu0 %v8333
    %8383 = vmatprep.subr.mxu0 0.0
    %8384 = vmatpush1.msra.mxu0 %v8334
    %8385 = vmatprep.subr.mxu0 0.0
    %8386 = vmatpush1.msra.mxu0 %v8335
    %8387 = vmatprep.subr.mxu0 0.0
    %8388 = vmatpush1.msra.mxu0 %v8336
    %8389 = vmatprep.subr.mxu0 0.0
    %8390 = vmatpush1.msra.mxu0 %v8337
    %8391 = vmatprep.subr.mxu0 0.0
    %8392 = vmatpush1.msra.mxu0 %v8338
    %8393 = vmatprep.subr.mxu0 0.0
    %8394 = vmatpush1.msra.mxu0 %v8339
    %8395 = vmatprep.subr.mxu0 0.0
    %8396 = vmatpush1.msra.mxu0 %v8340
    %8397 = vmatprep.subr.mxu0 0.0
    %8398 = vmatpush1.msra.mxu0 %v8341
    %8399 = vmatprep.subr.mxu0 0.0
    %8400 = vmatpush1.msra.mxu0 %v8342
    %8401 = vmatprep.subr.mxu0 0.0
    %8402 = vmatpush1.msra.mxu0 %v8343
    %8403 = vmatprep.subr.mxu0 0.0
    %8404 = vmatpush1.msra.mxu0 %v8344
    %8405 = vmatprep.subr.mxu0 0.0
    %8406 = vmatpush1.msra.mxu0 %v8345
    %8407 = vmatprep.subr.mxu0 0.0
    %8408 = vmatpush1.msra.mxu0 %v8346
    %8409 = vmatprep.subr.mxu0 0.0
    %8410 = vmatpush1.msra.mxu0 %v8347
    %8411 = vmatprep.subr.mxu0 0.0
    %8412 = vmatpush1.msra.mxu0 %v8348
    %8413 = vmatprep.subr.mxu0 0.0
    %8414 = vmatpush1.msra.mxu0 %v8349
    %8415 = vmatprep.subr.mxu0 0.0
    %8416 = vmatpush1.msra.mxu0 %v8350
    %8417 = vmatprep.subr.mxu0 0.0
    %8418 = vmatpush1.msra.mxu0 %v8351
    %8419 = vmatprep.subr.mxu0 0.0
    %8420 = vmatpush1.msra.mxu0 %v8352
    %8421 = vmatprep.subr.mxu0 0.0
    %8422 = vmatpush1.msra.mxu0 %v8353
    %8423 = vmatprep.subr.mxu0 0.0
    %8424 = vmatpush1.msra.mxu0 %v8354
    %8425 = vmatprep.subr.mxu0 0.0
    %8426 = vmatpush1.msra.mxu0 %v8355
    %8427 = vmatprep.mubr.f32.mxu0 %v8323
    %8428 = vmatmul.mubr.f32.gmra.mrb[0].mxu0 %v8322
    %v8429 = vpop.f32.mrb[0].mxu0
    %v8430 = vadd.f32 %v8361, %v8429
    %v8431 = vpop.f32.mrb[0].mxu0
    %8432 = vdwg.mxu0
    %vm8433 = vcmask 41984
    %8434 = vst.msk [vmem:[#allocation13] sm:$0x3] %vm8433, %v8430
    // Predicated region
    $region82: #{forward.1} parent=1 // pred_check
      _
    $region83: #{forward.1} parent=1 // pred_check_branch
      %8436 = sbr.rel (0) target = $region85
    $region84: #{forward.1} parent=1 // pred_region
      %s8438 = ssub.s32 32, 32
      %8439 = vsyncadd [#allocation9], %s8438
      %s8441 = sshll.u32 [#allocation13], 4
      %s8442 = int_to_ptr.vmem [resolvable:$true] %s8441
      %8444 = dma.vmem_to_hbm [thread:$0]  %s8442, 32, %s17, [#allocation9]
    $region85: #{forward.1} parent=1 // pred_fallthru
      _
    // Predicated region
    $region86: #{forward.1} parent=1 // pred_check
      _
    $region87: #{forward.1} parent=1 // pred_check_branch
      %8446 = sbr.rel (0) target = $region89
    $region88: #{forward.1} parent=1 // pred_region
      %8447 = dma.done [#allocation9], 32
    $region89: #{forward.1} parent=1 // pred_fallthru
      _
    %8448 = vsyncpa [#allocation8], 1
    %8449 = vsyncpa [#allocation11], 1
    %8450 = vsyncpa [#allocation9], 1

</llo_original>
